<compile_context>
chip_gen: v5e
topology: v5e:2x2
jax: 0.10.0
libtpu: 0.0.40
codegen_flags: <defaults>
</compile_context>

<pallas_src>
import functools

import jax
import jax.numpy as jnp
from jax.experimental import pallas as pl
from jax.experimental.pallas import tpu as pltpu

_LANE = 128


def _round_up(x, m):
    return ((x + m - 1) // m) * m


@functools.lru_cache(maxsize=None)
def _vmem_limit():
    """Generation-aware scoped-VMEM request (bytes)."""
    try:
        cap = pltpu.get_tpu_info().vmem_capacity_bytes
    except Exception:
        cap = 64 * 1024 * 1024            # conservative: assume the smaller (v7x) VMEM
    # leave ~3/8 headroom for internal scratch / double buffers
    return int(min(48 * 1024 * 1024, cap * 5 // 8))


def _pick_chunk(T, B, Hp, vmem_limit, max_chunk=8):
    """Time-chunk depth bounded by a VMEM budget for the streamed pregates blocks."""
    bytes_per_step = B * 4 * Hp * 4                    # one f32 time step of pregates
    budget = vmem_limit // 2                           # half for streams, half for weights/state
    c = max(1, min(max_chunk, budget // max(1, 4 * bytes_per_step)))  # in+out, double-buffered
    c = min(c, max(T, 1))
    # keep the streamed row-block (t_chunk*B) a multiple of 8 sublanes
    while (c * B) % 8:
        c += 1
    return c


def _sigmoid(x):
    # tanh identity: one EUP push + cheap VPU mul/add instead of exp + reciprocal.
    return 0.5 * jnp.tanh(0.5 * x) + 0.5


# ----------------------------------------------------------------------------
# Tiled input projection:  out = X2d @ W_ih^T + b   (layer 0 only; later layers
# get their projection fused into the previous layer's recurrence kernel).
# ----------------------------------------------------------------------------
def _input_proj_kernel(x_ref, w_ref, b_ref, o_ref, acc_ref):
    @pl.when(pl.program_id(2) == 0)
    def _():
        acc_ref[...] = jnp.zeros_like(acc_ref)

    acc_ref[...] += jnp.dot(x_ref[...], w_ref[...],
                            preferred_element_type=jnp.float32)

    @pl.when(pl.program_id(2) == pl.num_programs(2) - 1)
    def _():
        o_ref[...] = acc_ref[...] + b_ref[...]


def input_projection(x2d, w_t, b, *, vmem_limit, tm=256, tn=512, tk=256):
    M, K = x2d.shape
    N = w_t.shape[1]                                    # 4*Hp, always a multiple of 512

    tn = min(tn, N)
    tm = min(tm, _round_up(M, 8))
    M_pad = _round_up(M, tm)
    if K <= tk:                                         # full-K blocks: no K tiling / padding
        tk_eff, K_pad = K, K
    else:
        tk_eff = tk
        K_pad = _round_up(K, tk_eff)

    x = x2d
    if M_pad != M or K_pad != K:
        x = jnp.pad(x2d, ((0, M_pad - M), (0, K_pad - K)))
    w = w_t if K_pad == K else jnp.pad(w_t, ((0, K_pad - K), (0, 0)))

    grid = (M_pad // tm, N // tn, K_pad // tk_eff)
    out = pl.pallas_call(
        _input_proj_kernel,
        grid=grid,
        in_specs=[
            pl.BlockSpec((tm, tk_eff), lambda i, j, k: (i, k)),
            pl.BlockSpec((tk_eff, tn), lambda i, j, k: (k, j)),
            pl.BlockSpec((1, tn), lambda i, j, k: (0, j)),
        ],
        out_specs=pl.BlockSpec((tm, tn), lambda i, j, k: (i, j)),
        out_shape=jax.ShapeDtypeStruct((M_pad, N), jnp.float32),
        scratch_shapes=[pltpu.VMEM((tm, tn), jnp.float32)],
        compiler_params=pltpu.CompilerParams(
            dimension_semantics=("parallel", "parallel", "arbitrary"),
            vmem_limit_bytes=vmem_limit),
    )(x, w, b)
    return out if M_pad == M else out[:M]


# ----------------------------------------------------------------------------
# Recurrent kernels: grid = (T_pad // t_chunk,), state carried in resident
# (constant-index-map) hT/cT outputs.  Pregates are a lane-dense 2-D stream
# with blocks of (t_chunk*B, 4*Hp).
# ----------------------------------------------------------------------------
def _chunk_steps(pg_ref, whh_ref, h_ref, c_ref, *, hidden_pad, t_chunk, batch,
                 total_t, n_chunks, emit=None):
    Hp, B = hidden_pad, batch
    # Static Python loop: t_chunk is capped at 8, so full unrolling keeps vreg
    # pressure bounded.  For bigger chunks use lax.fori_loop(..., unroll=2..4).
    for i in range(t_chunk):
        r0, r1 = i * B, (i + 1) * B
        h_prev = h_ref[...]
        c_prev = c_ref[...]
        # Only h @ W_hh is left on the serial critical path (input proj hoisted).
        gates = pg_ref[r0:r1, :] + jnp.dot(h_prev, whh_ref[...],
                                           preferred_element_type=jnp.float32)
        # Hp is a multiple of 128, so every gate slab is a whole-vreg lane slice.
        i_g = _sigmoid(gates[:, 0 * Hp:1 * Hp])
        f_g = _sigmoid(gates[:, 1 * Hp:2 * Hp])
        g_g = jnp.tanh(gates[:, 2 * Hp:3 * Hp])
        o_g = _sigmoid(gates[:, 3 * Hp:4 * Hp])
        c_new = f_g * c_prev + i_g * g_g
        h_new = o_g * jnp.tanh(c_new)

        # Only steps of the (zero-padded) last chunk can be out of range; the mask
        # is emitted only when it is statically possible for this step index.
        if ((n_chunks - 1) * t_chunk + i) >= total_t:
            valid = (pl.program_id(0) * t_chunk + i) < total_t
            c_new = jnp.where(valid, c_new, c_prev)
            h_new = jnp.where(valid, h_new, h_prev)

        c_ref[...] = c_new
        h_ref[...] = h_new
        if emit is not None:
            emit(r0, r1, h_new)


def _lstm_seq_fused_kernel(pg_ref, h0_ref, c0_ref, whh_ref, wihn_ref, bn_ref,
                           pgn_ref, h_ref, c_ref, *, hidden_pad, t_chunk, batch,
                           total_t, n_chunks):
    @pl.when(pl.program_id(0) == 0)
    def _():
        h_ref[...] = h0_ref[...]
        c_ref[...] = c0_ref[...]

    def emit(r0, r1, h_new):
        # Fused NEXT-layer input projection on the fresh hidden state: removes the
        # (T, B, Hp) HBM writeback + re-read and one pallas_call per layer boundary.
        pgn_ref[r0:r1, :] = (jnp.dot(h_new, wihn_ref[...],
                                     preferred_element_type=jnp.float32)
                             + bn_ref[...])

    _chunk_steps(pg_ref, whh_ref, h_ref, c_ref, hidden_pad=hidden_pad,
                 t_chunk=t_chunk, batch=batch, total_t=total_t,
                 n_chunks=n_chunks, emit=emit)


def _lstm_seq_head_kernel(pg_ref, h0_ref, c0_ref, whh_ref, fcw_ref, fcb_ref,
                          h_ref, c_ref, res_ref, *, hidden_pad, t_chunk, batch,
                          total_t, n_chunks):
    @pl.when(pl.program_id(0) == 0)
    def _():
        h_ref[...] = h0_ref[...]
        c_ref[...] = c0_ref[...]

    _chunk_steps(pg_ref, whh_ref, h_ref, c_ref, hidden_pad=hidden_pad,
                 t_chunk=t_chunk, batch=batch, total_t=total_t,
                 n_chunks=n_chunks, emit=None)

    # fc head fused into the last layer: h for the final real time step is already
    # resident in VMEM.  Padded h lanes and padded fc weights are exactly 0.
    @pl.when(pl.program_id(0) == pl.num_programs(0) - 1)
    def _():
        res_ref[...] = (jnp.sum(h_ref[...] * fcw_ref[...], axis=1, keepdims=True)
                        + fcb_ref[0])


def lstm_recurrence_fused(pregates, h0, c0, w_hh_t, w_ih_next_t, b_next, *,
                          t_chunk, total_t, batch, vmem_limit):
    """Non-last layer: emits pregates for the NEXT layer plus (hT, cT)."""
    rows, G = pregates.shape
    Hp = G // 4
    B = batch
    rb = t_chunk * B
    n_chunks = rows // rb
    const = lambda n: (0, 0)
    kernel = functools.partial(_lstm_seq_fused_kernel, hidden_pad=Hp,
                               t_chunk=t_chunk, batch=B, total_t=total_t,
                               n_chunks=n_chunks)
    return pl.pallas_call(
        kernel,
        grid=(n_chunks,),
        in_specs=[
            pl.BlockSpec((rb, G), lambda n: (n, 0)),
            pl.BlockSpec((B, Hp), const, pipeline_mode=pl.Buffered(1)),
            pl.BlockSpec((B, Hp), const, pipeline_mode=pl.Buffered(1)),
            pl.BlockSpec((Hp, G), const, pipeline_mode=pl.Buffered(1)),
            pl.BlockSpec((Hp, G), const, pipeline_mode=pl.Buffered(1)),
            pl.BlockSpec((1, G), const, pipeline_mode=pl.Buffered(1)),
        ],
        out_specs=[
            pl.BlockSpec((rb, G), lambda n: (n, 0)),
            pl.BlockSpec((B, Hp), const),   # resident: carries h across chunks
            pl.BlockSpec((B, Hp), const),   # resident: carries c across chunks
        ],
        out_shape=[
            jax.ShapeDtypeStruct((rows, G), jnp.float32),
            jax.ShapeDtypeStruct((B, Hp), jnp.float32),
            jax.ShapeDtypeStruct((B, Hp), jnp.float32),
        ],
        compiler_params=pltpu.CompilerParams(
            dimension_semantics=("arbitrary",),
            vmem_limit_bytes=vmem_limit),
    )(pregates, h0, c0, w_hh_t, w_ih_next_t, b_next)


def lstm_recurrence_with_head(pregates, h0, c0, w_hh_t, fc_w, fc_b, *,
                              t_chunk, total_t, batch, vmem_limit):
    """Last layer: no sequence output; emits (hT, cT, res=fc(h_last))."""
    rows, G = pregates.shape
    Hp = G // 4
    B = batch
    rb = t_chunk * B
    n_chunks = rows // rb
    const = lambda n: (0, 0)
    kernel = functools.partial(_lstm_seq_head_kernel, hidden_pad=Hp,
                               t_chunk=t_chunk, batch=B, total_t=total_t,
                               n_chunks=n_chunks)
    return pl.pallas_call(
        kernel,
        grid=(n_chunks,),
        in_specs=[
            pl.BlockSpec((rb, G), lambda n: (n, 0)),
            pl.BlockSpec((B, Hp), const, pipeline_mode=pl.Buffered(1)),
            pl.BlockSpec((B, Hp), const, pipeline_mode=pl.Buffered(1)),
            pl.BlockSpec((Hp, G), const, pipeline_mode=pl.Buffered(1)),
            pl.BlockSpec((1, Hp), const, pipeline_mode=pl.Buffered(1)),
            pl.BlockSpec(memory_space=pltpu.MemorySpace.SMEM),   # fc_b scalar
        ],
        out_specs=[
            pl.BlockSpec((B, Hp), const),
            pl.BlockSpec((B, Hp), const),
            pl.BlockSpec((B, 1), const),
        ],
        out_shape=[
            jax.ShapeDtypeStruct((B, Hp), jnp.float32),
            jax.ShapeDtypeStruct((B, Hp), jnp.float32),
            jax.ShapeDtypeStruct((B, 1), jnp.float32),
        ],
        compiler_params=pltpu.CompilerParams(
            dimension_semantics=("arbitrary",),
            vmem_limit_bytes=vmem_limit),
    )(pregates, h0, c0, w_hh_t, fc_w, fc_b)


# ----------------------------------------------------------------------------
# Weight padding / re-layout helpers (zero padding is exact for LSTM state:
# padded gate pre-activations are 0 => i=f=o=0.5, g=0 => padded c,h stay 0).
# ----------------------------------------------------------------------------
def _pad_gate_matrix(w, H, Hp, in_pad):
    """w: (4H, d_in) PyTorch layout -> (d_in + in_pad, 4*Hp), transposed + padded."""
    d_in = w.shape[1]
    wt = w.reshape(4, H, d_in).transpose(2, 0, 1)            # (d_in, 4, H)
    wt = jnp.pad(wt, ((0, in_pad), (0, 0), (0, Hp - H)))     # (d_in+in_pad, 4, Hp)
    return wt.reshape(d_in + in_pad, 4 * Hp)


def _pad_gate_bias(b, H, Hp):
    return jnp.pad(b.reshape(4, H), ((0, 0), (0, Hp - H))).reshape(1, 4 * Hp)


def _pad_cols(x, Hp):
    return jnp.pad(x, ((0, 0), (0, Hp - x.shape[1])))


# ----------------------------------------------------------------------------
# Full module forward (mirrors LSTM.forward: returns (res, h_n, c_n))
# ----------------------------------------------------------------------------
def lstm_module_forward(X, h_n, c_n, params):
    T, B, D = X.shape
    layers = params["layers"]
    num_layers = len(layers)
    H = layers[0][1].shape[1]                 # w_hh: (4H, H)
    Hp = _round_up(H, _LANE)
    vlim = _vmem_limit()
    t_chunk = _pick_chunk(T, B, Hp, vlim)
    T_pad = _round_up(T, t_chunk)

    # Padded / transposed weights.
    w_ih_t, w_hh_t, biases = [], [], []
    for l, (w_ih, w_hh, b_ih, b_hh) in enumerate(layers):
        in_pad = 0 if l == 0 else (Hp - H)
        w_ih_t.append(_pad_gate_matrix(w_ih, H, Hp, in_pad))
        w_hh_t.append(_pad_gate_matrix(w_hh, H, Hp, Hp - H))
        biases.append(_pad_gate_bias(b_ih + b_hh, H, Hp))

    # Layer-0 hoisted input projection over all (zero-padded) time steps: one
    # tiled MXU matmul.  Padded time rows are masked out inside the recurrence.
    Xp = X if T_pad == T else jnp.pad(X, ((0, T_pad - T), (0, 0), (0, 0)))
    x2d = Xp.reshape(T_pad * B, D)
    pregates = input_projection(x2d, w_ih_t[0], biases[0], vmem_limit=vlim)

    h_outs, c_outs = [], []
    res = None
    for l in range(num_layers):
        h0 = _pad_cols(h_n[l], Hp)                          # (B, Hp)
        c0 = _pad_cols(c_n[l], Hp)                          # (B, Hp)
        if l < num_layers - 1:
            # Sequential recurrence + fused NEXT-layer input projection.
            pregates, hT, cT = lstm_recurrence_fused(
                pregates, h0, c0, w_hh_t[l], w_ih_t[l + 1], biases[l + 1],
                t_chunk=t_chunk, total_t=T, batch=B, vmem_limit=vlim)
        else:
            fc_w = _pad_cols(params["fc_w"], Hp)            # (1, Hp)
            fc_b = params["fc_b"].reshape(1)                # (1,) scalar via SMEM
            hT, cT, res = lstm_recurrence_with_head(
                pregates, h0, c0, w_hh_t[l], fc_w, fc_b,
                t_chunk=t_chunk, total_t=T, batch=B, vmem_limit=vlim)
        h_outs.append(hT[:, :H])
        c_outs.append(cT[:, :H])

    return res, jnp.stack(h_outs, axis=0), jnp.stack(c_outs, axis=0)


# ----------------------------------------------------------------------------
# Deterministic parameter init (PyTorch-style uniform(-1/sqrt(H), 1/sqrt(H)),
# raw PyTorch weight layout).
# ----------------------------------------------------------------------------
def init_params(key, input_size, hidden_size, num_layers):
    k = 1.0 / float(hidden_size) ** 0.5
    layers = []
    for l in range(num_layers):
        d_in = input_size if l == 0 else hidden_size
        key, k1, k2, k3, k4 = jax.random.split(key, 5)
        w_ih = jax.random.uniform(k1, (4 * hidden_size, d_in), jnp.float32, -k, k)
        w_hh = jax.random.uniform(k2, (4 * hidden_size, hidden_size), jnp.float32, -k, k)
        b_ih = jax.random.uniform(k3, (4 * hidden_size,), jnp.float32, -k, k)
        b_hh = jax.random.uniform(k4, (4 * hidden_size,), jnp.float32, -k, k)
        layers.append((w_ih, w_hh, b_ih, b_hh))
    key, k5, k6 = jax.random.split(key, 3)
    fc_w = jax.random.uniform(k5, (1, hidden_size), jnp.float32, -k, k)
    fc_b = jax.random.uniform(k6, (1,), jnp.float32, -k, k)
    return {"layers": layers, "fc_w": fc_w, "fc_b": fc_b}


# ----------------------------------------------------------------------------
# Pure-JAX reference (for correctness check)
# ----------------------------------------------------------------------------
def reference_forward(X, h_n, c_n, params):
    seq = X
    h_outs, c_outs = [], []
    for l, (w_ih, w_hh, b_ih, b_hh) in enumerate(params["layers"]):
        H = w_hh.shape[1]
        h, c = h_n[l], c_n[l]
        ys = []
        for t in range(seq.shape[0]):
            gates = seq[t] @ w_ih.T + h @ w_hh.T + b_ih + b_hh
            i = jax.nn.sigmoid(gates[:, 0 * H:1 * H])
            f = jax.nn.sigmoid(gates[:, 1 * H:2 * H])
            g = jnp.tanh(gates[:, 2 * H:3 * H])
            o = jax.nn.sigmoid(gates[:, 3 * H:4 * H])
            c = f * c + i * g
            h = o * jnp.tanh(c)
            ys.append(h)
        seq = jnp.stack(ys, axis=0)
        h_outs.append(h)
        c_outs.append(c)
    res = seq[-1] @ params["fc_w"].T + params["fc_b"]
    return res, jnp.stack(h_outs), jnp.stack(c_outs)


if __name__ == "__main__":
    seq_len, batch, input_size, hidden_size, num_layers = 8, 2, 16, 32, 2

    root = jax.random.PRNGKey(0)
    k_param, k_x, k_h, k_c = jax.random.split(root, 4)

    params = init_params(k_param, input_size, hidden_size, num_layers)
    X = jax.random.normal(k_x, (seq_len, batch, input_size), jnp.float32)
    h0 = jax.random.normal(k_h, (num_layers, batch, hidden_size), jnp.float32)
    c0 = jax.random.normal(k_c, (num_layers, batch, hidden_size), jnp.float32)

    fwd = jax.jit(lstm_module_forward)
    res, h_n, c_n = jax.block_until_ready(fwd(X, h0, c0, params))

    res_ref, h_ref, c_ref = reference_forward(X, h0, c0, params)
    assert res.shape == (batch, 1)
    assert h_n.shape == (num_layers, batch, hidden_size)
    assert c_n.shape == (num_layers, batch, hidden_size)
    assert jnp.allclose(res, res_ref, atol=1e-4, rtol=1e-4)
    assert jnp.allclose(h_n, h_ref, atol=1e-4, rtol=1e-4)
    assert jnp.allclose(c_n, c_ref, atol=1e-4, rtol=1e-4)

    print("KERNEL_OK")
</pallas_src>

<mosaic_0001>
module attributes {stable_mosaic.version = 11 : i64} {
  func.func @_lstm_seq_fused_kernel(%arg0: i32, %arg1: memref<16x512xf32, #tpu.memory_space<vmem>>, %arg2: memref<2x128xf32, #tpu.memory_space<vmem>>, %arg3: memref<2x128xf32, #tpu.memory_space<vmem>>, %arg4: memref<128x512xf32, #tpu.memory_space<vmem>>, %arg5: memref<128x512xf32, #tpu.memory_space<vmem>>, %arg6: memref<1x512xf32, #tpu.memory_space<vmem>>, %arg7: memref<16x512xf32, #tpu.memory_space<vmem>>, %arg8: memref<2x128xf32, #tpu.memory_space<vmem>>, %arg9: memref<2x128xf32, #tpu.memory_space<vmem>>) attributes {dimension_semantics = [#tpu.dimension_semantics<arbitrary>], iteration_bounds = array<i64: 1>, scalar_prefetch = 0 : i64, scratch_operands = 0 : i64, tpu.core_type = #tpu.core_type<tc>, window_params = [{transform_indices = @transform_0, window_bounds = array<i64: 16, 512>}, {pipeline_mode = #tpu.pipeline_mode<synchronous>, transform_indices = @transform_1, window_bounds = array<i64: 2, 128>}, {pipeline_mode = #tpu.pipeline_mode<synchronous>, transform_indices = @transform_2, window_bounds = array<i64: 2, 128>}, {pipeline_mode = #tpu.pipeline_mode<synchronous>, transform_indices = @transform_3, window_bounds = array<i64: 128, 512>}, {pipeline_mode = #tpu.pipeline_mode<synchronous>, transform_indices = @transform_4, window_bounds = array<i64: 128, 512>}, {pipeline_mode = #tpu.pipeline_mode<synchronous>, transform_indices = @transform_5, window_bounds = array<i64: 1, 512>}, {transform_indices = @transform_6, window_bounds = array<i64: 16, 512>}, {pipeline_mode = #tpu.pipeline_mode<synchronous>, transform_indices = @transform_7, window_bounds = array<i64: 2, 128>}, {pipeline_mode = #tpu.pipeline_mode<synchronous>, transform_indices = @transform_8, window_bounds = array<i64: 2, 128>}]} {
    %c0_i32 = arith.constant 0 : i32
    %0 = arith.cmpi eq, %arg0, %c0_i32 : i32
    %1 = arith.extui %0 : i1 to i32
    %c0_i32_0 = arith.constant 0 : i32
    %2 = arith.cmpi ne, %1, %c0_i32_0 : i32
    scf.if %2 {
      %c0_224 = arith.constant 0 : index
      %c0_225 = arith.constant 0 : index
      %363 = vector.load %arg2[%c0_224, %c0_225] : memref<2x128xf32, #tpu.memory_space<vmem>>, vector<2x128xf32>
      %c0_226 = arith.constant 0 : index
      %c0_227 = arith.constant 0 : index
      %364 = vector.load %arg8[%c0_226, %c0_227] : memref<2x128xf32, #tpu.memory_space<vmem>>, vector<2x128xf32>
      tpu.vector_store %arg8[%c0_226, %c0_227], %363 {strides = array<i32>} : memref<2x128xf32, #tpu.memory_space<vmem>>, vector<2x128xf32>,
      %c0_228 = arith.constant 0 : index
      %c0_229 = arith.constant 0 : index
      %365 = vector.load %arg3[%c0_228, %c0_229] : memref<2x128xf32, #tpu.memory_space<vmem>>, vector<2x128xf32>
      %c0_230 = arith.constant 0 : index
      %c0_231 = arith.constant 0 : index
      %366 = vector.load %arg9[%c0_230, %c0_231] : memref<2x128xf32, #tpu.memory_space<vmem>>, vector<2x128xf32>
      tpu.vector_store %arg9[%c0_230, %c0_231], %365 {strides = array<i32>} : memref<2x128xf32, #tpu.memory_space<vmem>>, vector<2x128xf32>,
    } else {
    }
    %c0 = arith.constant 0 : index
    %c0_1 = arith.constant 0 : index
    %3 = vector.load %arg8[%c0, %c0_1] : memref<2x128xf32, #tpu.memory_space<vmem>>, vector<2x128xf32>
    %c0_2 = arith.constant 0 : index
    %c0_3 = arith.constant 0 : index
    %4 = vector.load %arg9[%c0_2, %c0_3] : memref<2x128xf32, #tpu.memory_space<vmem>>, vector<2x128xf32>
    %c0_4 = arith.constant 0 : index
    %c0_5 = arith.constant 0 : index
    %5 = vector.load %arg1[%c0_4, %c0_5] : memref<16x512xf32, #tpu.memory_space<vmem>>, vector<2x512xf32>
    %c0_6 = arith.constant 0 : index
    %c0_7 = arith.constant 0 : index
    %6 = vector.load %arg4[%c0_6, %c0_7] : memref<128x512xf32, #tpu.memory_space<vmem>>, vector<128x512xf32>
    %cst = arith.constant dense<0.000000e+00> : vector<2x512xf32>
    %7 = tpu.matmul %3, %6, %cst {dimension_numbers = #tpu.dot_dimension_numbers<[1], [0], [0], [1], [0, 0, 1, 1], [], []>} : vector<2x128xf32>, vector<128x512xf32>, vector<2x512xf32> -> vector<2x512xf32>
    %8 = arith.addf %5, %7 : vector<2x512xf32>
    %9 = vector.extract_strided_slice %8 {offsets = [0, 0], sizes = [2, 128], strides = [1, 1]} : vector<2x512xf32> to vector<2x128xf32>
    %cst_8 = arith.constant 5.000000e-01 : f32
    %10 = vector.broadcast %cst_8 : f32 to vector<2x128xf32>
    %11 = arith.mulf %10, %9 : vector<2x128xf32>
    %12 = math.tanh %11 : vector<2x128xf32>
    %cst_9 = arith.constant 5.000000e-01 : f32
    %13 = vector.broadcast %cst_9 : f32 to vector<2x128xf32>
    %14 = arith.mulf %13, %12 : vector<2x128xf32>
    %cst_10 = arith.constant 5.000000e-01 : f32
    %15 = vector.broadcast %cst_10 : f32 to vector<2x128xf32>
    %16 = arith.addf %14, %15 : vector<2x128xf32>
    %17 = vector.extract_strided_slice %8 {offsets = [0, 128], sizes = [2, 128], strides = [1, 1]} : vector<2x512xf32> to vector<2x128xf32>
    %cst_11 = arith.constant 5.000000e-01 : f32
    %18 = vector.broadcast %cst_11 : f32 to vector<2x128xf32>
    %19 = arith.mulf %18, %17 : vector<2x128xf32>
    %20 = math.tanh %19 : vector<2x128xf32>
    %cst_12 = arith.constant 5.000000e-01 : f32
    %21 = vector.broadcast %cst_12 : f32 to vector<2x128xf32>
    %22 = arith.mulf %21, %20 : vector<2x128xf32>
    %cst_13 = arith.constant 5.000000e-01 : f32
    %23 = vector.broadcast %cst_13 : f32 to vector<2x128xf32>
    %24 = arith.addf %22, %23 : vector<2x128xf32>
    %25 = vector.extract_strided_slice %8 {offsets = [0, 256], sizes = [2, 128], strides = [1, 1]} : vector<2x512xf32> to vector<2x128xf32>
    %26 = math.tanh %25 : vector<2x128xf32>
    %27 = vector.extract_strided_slice %8 {offsets = [0, 384], sizes = [2, 128], strides = [1, 1]} : vector<2x512xf32> to vector<2x128xf32>
    %cst_14 = arith.constant 5.000000e-01 : f32
    %28 = vector.broadcast %cst_14 : f32 to vector<2x128xf32>
    %29 = arith.mulf %28, %27 : vector<2x128xf32>
    %30 = math.tanh %29 : vector<2x128xf32>
    %cst_15 = arith.constant 5.000000e-01 : f32
    %31 = vector.broadcast %cst_15 : f32 to vector<2x128xf32>
    %32 = arith.mulf %31, %30 : vector<2x128xf32>
    %cst_16 = arith.constant 5.000000e-01 : f32
    %33 = vector.broadcast %cst_16 : f32 to vector<2x128xf32>
    %34 = arith.addf %32, %33 : vector<2x128xf32>
    %35 = arith.mulf %24, %4 : vector<2x128xf32>
    %36 = arith.mulf %16, %26 : vector<2x128xf32>
    %37 = arith.addf %35, %36 : vector<2x128xf32>
    %38 = math.tanh %37 : vector<2x128xf32>
    %39 = arith.mulf %34, %38 : vector<2x128xf32>
    %c0_17 = arith.constant 0 : index
    %c0_18 = arith.constant 0 : index
    %40 = vector.load %arg9[%c0_17, %c0_18] : memref<2x128xf32, #tpu.memory_space<vmem>>, vector<2x128xf32>
    tpu.vector_store %arg9[%c0_17, %c0_18], %37 {strides = array<i32>} : memref<2x128xf32, #tpu.memory_space<vmem>>, vector<2x128xf32>,
    %c0_19 = arith.constant 0 : index
    %c0_20 = arith.constant 0 : index
    %41 = vector.load %arg8[%c0_19, %c0_20] : memref<2x128xf32, #tpu.memory_space<vmem>>, vector<2x128xf32>
    tpu.vector_store %arg8[%c0_19, %c0_20], %39 {strides = array<i32>} : memref<2x128xf32, #tpu.memory_space<vmem>>, vector<2x128xf32>,
    %c0_21 = arith.constant 0 : index
    %c0_22 = arith.constant 0 : index
    %42 = vector.load %arg5[%c0_21, %c0_22] : memref<128x512xf32, #tpu.memory_space<vmem>>, vector<128x512xf32>
    %cst_23 = arith.constant dense<0.000000e+00> : vector<2x512xf32>
    %43 = tpu.matmul %39, %42, %cst_23 {dimension_numbers = #tpu.dot_dimension_numbers<[1], [0], [0], [1], [0, 0, 1, 1], [], []>} : vector<2x128xf32>, vector<128x512xf32>, vector<2x512xf32> -> vector<2x512xf32>
    %c0_24 = arith.constant 0 : index
    %c0_25 = arith.constant 0 : index
    %44 = vector.load %arg6[%c0_24, %c0_25] : memref<1x512xf32, #tpu.memory_space<vmem>>, vector<1x512xf32>
    %45 = vector.broadcast %44 : vector<1x512xf32> to vector<2x512xf32>
    %46 = arith.addf %43, %45 : vector<2x512xf32>
    %c0_26 = arith.constant 0 : index
    %c0_27 = arith.constant 0 : index
    %47 = vector.load %arg7[%c0_26, %c0_27] : memref<16x512xf32, #tpu.memory_space<vmem>>, vector<2x512xf32>
    tpu.vector_store %arg7[%c0_26, %c0_27], %46 {strides = array<i32>} : memref<16x512xf32, #tpu.memory_space<vmem>>, vector<2x512xf32>,
    %c0_28 = arith.constant 0 : index
    %c0_29 = arith.constant 0 : index
    %48 = vector.load %arg8[%c0_28, %c0_29] : memref<2x128xf32, #tpu.memory_space<vmem>>, vector<2x128xf32>
    %c0_30 = arith.constant 0 : index
    %c0_31 = arith.constant 0 : index
    %49 = vector.load %arg9[%c0_30, %c0_31] : memref<2x128xf32, #tpu.memory_space<vmem>>, vector<2x128xf32>
    %c2 = arith.constant 2 : index
    %c0_32 = arith.constant 0 : index
    %50 = vector.load %arg1[%c2, %c0_32] : memref<16x512xf32, #tpu.memory_space<vmem>>, vector<2x512xf32>
    %c0_33 = arith.constant 0 : index
    %c0_34 = arith.constant 0 : index
    %51 = vector.load %arg4[%c0_33, %c0_34] : memref<128x512xf32, #tpu.memory_space<vmem>>, vector<128x512xf32>
    %cst_35 = arith.constant dense<0.000000e+00> : vector<2x512xf32>
    %52 = tpu.matmul %48, %51, %cst_35 {dimension_numbers = #tpu.dot_dimension_numbers<[1], [0], [0], [1], [0, 0, 1, 1], [], []>} : vector<2x128xf32>, vector<128x512xf32>, vector<2x512xf32> -> vector<2x512xf32>
    %53 = arith.addf %50, %52 : vector<2x512xf32>
    %54 = vector.extract_strided_slice %53 {offsets = [0, 0], sizes = [2, 128], strides = [1, 1]} : vector<2x512xf32> to vector<2x128xf32>
    %cst_36 = arith.constant 5.000000e-01 : f32
    %55 = vector.broadcast %cst_36 : f32 to vector<2x128xf32>
    %56 = arith.mulf %55, %54 : vector<2x128xf32>
    %57 = math.tanh %56 : vector<2x128xf32>
    %cst_37 = arith.constant 5.000000e-01 : f32
    %58 = vector.broadcast %cst_37 : f32 to vector<2x128xf32>
    %59 = arith.mulf %58, %57 : vector<2x128xf32>
    %cst_38 = arith.constant 5.000000e-01 : f32
    %60 = vector.broadcast %cst_38 : f32 to vector<2x128xf32>
    %61 = arith.addf %59, %60 : vector<2x128xf32>
    %62 = vector.extract_strided_slice %53 {offsets = [0, 128], sizes = [2, 128], strides = [1, 1]} : vector<2x512xf32> to vector<2x128xf32>
    %cst_39 = arith.constant 5.000000e-01 : f32
    %63 = vector.broadcast %cst_39 : f32 to vector<2x128xf32>
    %64 = arith.mulf %63, %62 : vector<2x128xf32>
    %65 = math.tanh %64 : vector<2x128xf32>
    %cst_40 = arith.constant 5.000000e-01 : f32
    %66 = vector.broadcast %cst_40 : f32 to vector<2x128xf32>
    %67 = arith.mulf %66, %65 : vector<2x128xf32>
    %cst_41 = arith.constant 5.000000e-01 : f32
    %68 = vector.broadcast %cst_41 : f32 to vector<2x128xf32>
    %69 = arith.addf %67, %68 : vector<2x128xf32>
    %70 = vector.extract_strided_slice %53 {offsets = [0, 256], sizes = [2, 128], strides = [1, 1]} : vector<2x512xf32> to vector<2x128xf32>
    %71 = math.tanh %70 : vector<2x128xf32>
    %72 = vector.extract_strided_slice %53 {offsets = [0, 384], sizes = [2, 128], strides = [1, 1]} : vector<2x512xf32> to vector<2x128xf32>
    %cst_42 = arith.constant 5.000000e-01 : f32
    %73 = vector.broadcast %cst_42 : f32 to vector<2x128xf32>
    %74 = arith.mulf %73, %72 : vector<2x128xf32>
    %75 = math.tanh %74 : vector<2x128xf32>
    %cst_43 = arith.constant 5.000000e-01 : f32
    %76 = vector.broadcast %cst_43 : f32 to vector<2x128xf32>
    %77 = arith.mulf %76, %75 : vector<2x128xf32>
    %cst_44 = arith.constant 5.000000e-01 : f32
    %78 = vector.broadcast %cst_44 : f32 to vector<2x128xf32>
    %79 = arith.addf %77, %78 : vector<2x128xf32>
    %80 = arith.mulf %69, %49 : vector<2x128xf32>
    %81 = arith.mulf %61, %71 : vector<2x128xf32>
    %82 = arith.addf %80, %81 : vector<2x128xf32>
    %83 = math.tanh %82 : vector<2x128xf32>
    %84 = arith.mulf %79, %83 : vector<2x128xf32>
    %c0_45 = arith.constant 0 : index
    %c0_46 = arith.constant 0 : index
    %85 = vector.load %arg9[%c0_45, %c0_46] : memref<2x128xf32, #tpu.memory_space<vmem>>, vector<2x128xf32>
    tpu.vector_store %arg9[%c0_45, %c0_46], %82 {strides = array<i32>} : memref<2x128xf32, #tpu.memory_space<vmem>>, vector<2x128xf32>,
    %c0_47 = arith.constant 0 : index
    %c0_48 = arith.constant 0 : index
    %86 = vector.load %arg8[%c0_47, %c0_48] : memref<2x128xf32, #tpu.memory_space<vmem>>, vector<2x128xf32>
    tpu.vector_store %arg8[%c0_47, %c0_48], %84 {strides = array<i32>} : memref<2x128xf32, #tpu.memory_space<vmem>>, vector<2x128xf32>,
    %c0_49 = arith.constant 0 : index
    %c0_50 = arith.constant 0 : index
    %87 = vector.load %arg5[%c0_49, %c0_50] : memref<128x512xf32, #tpu.memory_space<vmem>>, vector<128x512xf32>
    %cst_51 = arith.constant dense<0.000000e+00> : vector<2x512xf32>
    %88 = tpu.matmul %84, %87, %cst_51 {dimension_numbers = #tpu.dot_dimension_numbers<[1], [0], [0], [1], [0, 0, 1, 1], [], []>} : vector<2x128xf32>, vector<128x512xf32>, vector<2x512xf32> -> vector<2x512xf32>
    %c0_52 = arith.constant 0 : index
    %c0_53 = arith.constant 0 : index
    %89 = vector.load %arg6[%c0_52, %c0_53] : memref<1x512xf32, #tpu.memory_space<vmem>>, vector<1x512xf32>
    %90 = vector.broadcast %89 : vector<1x512xf32> to vector<2x512xf32>
    %91 = arith.addf %88, %90 : vector<2x512xf32>
    %c2_54 = arith.constant 2 : index
    %c0_55 = arith.constant 0 : index
    %92 = vector.load %arg7[%c2_54, %c0_55] : memref<16x512xf32, #tpu.memory_space<vmem>>, vector<2x512xf32>
    tpu.vector_store %arg7[%c2_54, %c0_55], %91 {strides = array<i32>} : memref<16x512xf32, #tpu.memory_space<vmem>>, vector<2x512xf32>,
    %c0_56 = arith.constant 0 : index
    %c0_57 = arith.constant 0 : index
    %93 = vector.load %arg8[%c0_56, %c0_57] : memref<2x128xf32, #tpu.memory_space<vmem>>, vector<2x128xf32>
    %c0_58 = arith.constant 0 : index
    %c0_59 = arith.constant 0 : index
    %94 = vector.load %arg9[%c0_58, %c0_59] : memref<2x128xf32, #tpu.memory_space<vmem>>, vector<2x128xf32>
    %c4 = arith.constant 4 : index
    %c0_60 = arith.constant 0 : index
    %95 = vector.load %arg1[%c4, %c0_60] : memref<16x512xf32, #tpu.memory_space<vmem>>, vector<2x512xf32>
    %c0_61 = arith.constant 0 : index
    %c0_62 = arith.constant 0 : index
    %96 = vector.load %arg4[%c0_61, %c0_62] : memref<128x512xf32, #tpu.memory_space<vmem>>, vector<128x512xf32>
    %cst_63 = arith.constant dense<0.000000e+00> : vector<2x512xf32>
    %97 = tpu.matmul %93, %96, %cst_63 {dimension_numbers = #tpu.dot_dimension_numbers<[1], [0], [0], [1], [0, 0, 1, 1], [], []>} : vector<2x128xf32>, vector<128x512xf32>, vector<2x512xf32> -> vector<2x512xf32>
    %98 = arith.addf %95, %97 : vector<2x512xf32>
    %99 = vector.extract_strided_slice %98 {offsets = [0, 0], sizes = [2, 128], strides = [1, 1]} : vector<2x512xf32> to vector<2x128xf32>
    %cst_64 = arith.constant 5.000000e-01 : f32
    %100 = vector.broadcast %cst_64 : f32 to vector<2x128xf32>
    %101 = arith.mulf %100, %99 : vector<2x128xf32>
    %102 = math.tanh %101 : vector<2x128xf32>
    %cst_65 = arith.constant 5.000000e-01 : f32
    %103 = vector.broadcast %cst_65 : f32 to vector<2x128xf32>
    %104 = arith.mulf %103, %102 : vector<2x128xf32>
    %cst_66 = arith.constant 5.000000e-01 : f32
    %105 = vector.broadcast %cst_66 : f32 to vector<2x128xf32>
    %106 = arith.addf %104, %105 : vector<2x128xf32>
    %107 = vector.extract_strided_slice %98 {offsets = [0, 128], sizes = [2, 128], strides = [1, 1]} : vector<2x512xf32> to vector<2x128xf32>
    %cst_67 = arith.constant 5.000000e-01 : f32
    %108 = vector.broadcast %cst_67 : f32 to vector<2x128xf32>
    %109 = arith.mulf %108, %107 : vector<2x128xf32>
    %110 = math.tanh %109 : vector<2x128xf32>
    %cst_68 = arith.constant 5.000000e-01 : f32
    %111 = vector.broadcast %cst_68 : f32 to vector<2x128xf32>
    %112 = arith.mulf %111, %110 : vector<2x128xf32>
    %cst_69 = arith.constant 5.000000e-01 : f32
    %113 = vector.broadcast %cst_69 : f32 to vector<2x128xf32>
    %114 = arith.addf %112, %113 : vector<2x128xf32>
    %115 = vector.extract_strided_slice %98 {offsets = [0, 256], sizes = [2, 128], strides = [1, 1]} : vector<2x512xf32> to vector<2x128xf32>
    %116 = math.tanh %115 : vector<2x128xf32>
    %117 = vector.extract_strided_slice %98 {offsets = [0, 384], sizes = [2, 128], strides = [1, 1]} : vector<2x512xf32> to vector<2x128xf32>
    %cst_70 = arith.constant 5.000000e-01 : f32
    %118 = vector.broadcast %cst_70 : f32 to vector<2x128xf32>
    %119 = arith.mulf %118, %117 : vector<2x128xf32>
    %120 = math.tanh %119 : vector<2x128xf32>
    %cst_71 = arith.constant 5.000000e-01 : f32
    %121 = vector.broadcast %cst_71 : f32 to vector<2x128xf32>
    %122 = arith.mulf %121, %120 : vector<2x128xf32>
    %cst_72 = arith.constant 5.000000e-01 : f32
    %123 = vector.broadcast %cst_72 : f32 to vector<2x128xf32>
    %124 = arith.addf %122, %123 : vector<2x128xf32>
    %125 = arith.mulf %114, %94 : vector<2x128xf32>
    %126 = arith.mulf %106, %116 : vector<2x128xf32>
    %127 = arith.addf %125, %126 : vector<2x128xf32>
    %128 = math.tanh %127 : vector<2x128xf32>
    %129 = arith.mulf %124, %128 : vector<2x128xf32>
    %c0_73 = arith.constant 0 : index
    %c0_74 = arith.constant 0 : index
    %130 = vector.load %arg9[%c0_73, %c0_74] : memref<2x128xf32, #tpu.memory_space<vmem>>, vector<2x128xf32>
    tpu.vector_store %arg9[%c0_73, %c0_74], %127 {strides = array<i32>} : memref<2x128xf32, #tpu.memory_space<vmem>>, vector<2x128xf32>,
    %c0_75 = arith.constant 0 : index
    %c0_76 = arith.constant 0 : index
    %131 = vector.load %arg8[%c0_75, %c0_76] : memref<2x128xf32, #tpu.memory_space<vmem>>, vector<2x128xf32>
    tpu.vector_store %arg8[%c0_75, %c0_76], %129 {strides = array<i32>} : memref<2x128xf32, #tpu.memory_space<vmem>>, vector<2x128xf32>,
    %c0_77 = arith.constant 0 : index
    %c0_78 = arith.constant 0 : index
    %132 = vector.load %arg5[%c0_77, %c0_78] : memref<128x512xf32, #tpu.memory_space<vmem>>, vector<128x512xf32>
    %cst_79 = arith.constant dense<0.000000e+00> : vector<2x512xf32>
    %133 = tpu.matmul %129, %132, %cst_79 {dimension_numbers = #tpu.dot_dimension_numbers<[1], [0], [0], [1], [0, 0, 1, 1], [], []>} : vector<2x128xf32>, vector<128x512xf32>, vector<2x512xf32> -> vector<2x512xf32>
    %c0_80 = arith.constant 0 : index
    %c0_81 = arith.constant 0 : index
    %134 = vector.load %arg6[%c0_80, %c0_81] : memref<1x512xf32, #tpu.memory_space<vmem>>, vector<1x512xf32>
    %135 = vector.broadcast %134 : vector<1x512xf32> to vector<2x512xf32>
    %136 = arith.addf %133, %135 : vector<2x512xf32>
    %c4_82 = arith.constant 4 : index
    %c0_83 = arith.constant 0 : index
    %137 = vector.load %arg7[%c4_82, %c0_83] : memref<16x512xf32, #tpu.memory_space<vmem>>, vector<2x512xf32>
    tpu.vector_store %arg7[%c4_82, %c0_83], %136 {strides = array<i32>} : memref<16x512xf32, #tpu.memory_space<vmem>>, vector<2x512xf32>,
    %c0_84 = arith.constant 0 : index
    %c0_85 = arith.constant 0 : index
    %138 = vector.load %arg8[%c0_84, %c0_85] : memref<2x128xf32, #tpu.memory_space<vmem>>, vector<2x128xf32>
    %c0_86 = arith.constant 0 : index
    %c0_87 = arith.constant 0 : index
    %139 = vector.load %arg9[%c0_86, %c0_87] : memref<2x128xf32, #tpu.memory_space<vmem>>, vector<2x128xf32>
    %c6 = arith.constant 6 : index
    %c0_88 = arith.constant 0 : index
    %140 = vector.load %arg1[%c6, %c0_88] : memref<16x512xf32, #tpu.memory_space<vmem>>, vector<2x512xf32>
    %c0_89 = arith.constant 0 : index
    %c0_90 = arith.constant 0 : index
    %141 = vector.load %arg4[%c0_89, %c0_90] : memref<128x512xf32, #tpu.memory_space<vmem>>, vector<128x512xf32>
    %cst_91 = arith.constant dense<0.000000e+00> : vector<2x512xf32>
    %142 = tpu.matmul %138, %141, %cst_91 {dimension_numbers = #tpu.dot_dimension_numbers<[1], [0], [0], [1], [0, 0, 1, 1], [], []>} : vector<2x128xf32>, vector<128x512xf32>, vector<2x512xf32> -> vector<2x512xf32>
    %143 = arith.addf %140, %142 : vector<2x512xf32>
    %144 = vector.extract_strided_slice %143 {offsets = [0, 0], sizes = [2, 128], strides = [1, 1]} : vector<2x512xf32> to vector<2x128xf32>
    %cst_92 = arith.constant 5.000000e-01 : f32
    %145 = vector.broadcast %cst_92 : f32 to vector<2x128xf32>
    %146 = arith.mulf %145, %144 : vector<2x128xf32>
    %147 = math.tanh %146 : vector<2x128xf32>
    %cst_93 = arith.constant 5.000000e-01 : f32
    %148 = vector.broadcast %cst_93 : f32 to vector<2x128xf32>
    %149 = arith.mulf %148, %147 : vector<2x128xf32>
    %cst_94 = arith.constant 5.000000e-01 : f32
    %150 = vector.broadcast %cst_94 : f32 to vector<2x128xf32>
    %151 = arith.addf %149, %150 : vector<2x128xf32>
    %152 = vector.extract_strided_slice %143 {offsets = [0, 128], sizes = [2, 128], strides = [1, 1]} : vector<2x512xf32> to vector<2x128xf32>
    %cst_95 = arith.constant 5.000000e-01 : f32
    %153 = vector.broadcast %cst_95 : f32 to vector<2x128xf32>
    %154 = arith.mulf %153, %152 : vector<2x128xf32>
    %155 = math.tanh %154 : vector<2x128xf32>
    %cst_96 = arith.constant 5.000000e-01 : f32
    %156 = vector.broadcast %cst_96 : f32 to vector<2x128xf32>
    %157 = arith.mulf %156, %155 : vector<2x128xf32>
    %cst_97 = arith.constant 5.000000e-01 : f32
    %158 = vector.broadcast %cst_97 : f32 to vector<2x128xf32>
    %159 = arith.addf %157, %158 : vector<2x128xf32>
    %160 = vector.extract_strided_slice %143 {offsets = [0, 256], sizes = [2, 128], strides = [1, 1]} : vector<2x512xf32> to vector<2x128xf32>
    %161 = math.tanh %160 : vector<2x128xf32>
    %162 = vector.extract_strided_slice %143 {offsets = [0, 384], sizes = [2, 128], strides = [1, 1]} : vector<2x512xf32> to vector<2x128xf32>
    %cst_98 = arith.constant 5.000000e-01 : f32
    %163 = vector.broadcast %cst_98 : f32 to vector<2x128xf32>
    %164 = arith.mulf %163, %162 : vector<2x128xf32>
    %165 = math.tanh %164 : vector<2x128xf32>
    %cst_99 = arith.constant 5.000000e-01 : f32
    %166 = vector.broadcast %cst_99 : f32 to vector<2x128xf32>
    %167 = arith.mulf %166, %165 : vector<2x128xf32>
    %cst_100 = arith.constant 5.000000e-01 : f32
    %168 = vector.broadcast %cst_100 : f32 to vector<2x128xf32>
    %169 = arith.addf %167, %168 : vector<2x128xf32>
    %170 = arith.mulf %159, %139 : vector<2x128xf32>
    %171 = arith.mulf %151, %161 : vector<2x128xf32>
    %172 = arith.addf %170, %171 : vector<2x128xf32>
    %173 = math.tanh %172 : vector<2x128xf32>
    %174 = arith.mulf %169, %173 : vector<2x128xf32>
    %c0_101 = arith.constant 0 : index
    %c0_102 = arith.constant 0 : index
    %175 = vector.load %arg9[%c0_101, %c0_102] : memref<2x128xf32, #tpu.memory_space<vmem>>, vector<2x128xf32>
    tpu.vector_store %arg9[%c0_101, %c0_102], %172 {strides = array<i32>} : memref<2x128xf32, #tpu.memory_space<vmem>>, vector<2x128xf32>,
    %c0_103 = arith.constant 0 : index
    %c0_104 = arith.constant 0 : index
    %176 = vector.load %arg8[%c0_103, %c0_104] : memref<2x128xf32, #tpu.memory_space<vmem>>, vector<2x128xf32>
    tpu.vector_store %arg8[%c0_103, %c0_104], %174 {strides = array<i32>} : memref<2x128xf32, #tpu.memory_space<vmem>>, vector<2x128xf32>,
    %c0_105 = arith.constant 0 : index
    %c0_106 = arith.constant 0 : index
    %177 = vector.load %arg5[%c0_105, %c0_106] : memref<128x512xf32, #tpu.memory_space<vmem>>, vector<128x512xf32>
    %cst_107 = arith.constant dense<0.000000e+00> : vector<2x512xf32>
    %178 = tpu.matmul %174, %177, %cst_107 {dimension_numbers = #tpu.dot_dimension_numbers<[1], [0], [0], [1], [0, 0, 1, 1], [], []>} : vector<2x128xf32>, vector<128x512xf32>, vector<2x512xf32> -> vector<2x512xf32>
    %c0_108 = arith.constant 0 : index
    %c0_109 = arith.constant 0 : index
    %179 = vector.load %arg6[%c0_108, %c0_109] : memref<1x512xf32, #tpu.memory_space<vmem>>, vector<1x512xf32>
    %180 = vector.broadcast %179 : vector<1x512xf32> to vector<2x512xf32>
    %181 = arith.addf %178, %180 : vector<2x512xf32>
    %c6_110 = arith.constant 6 : index
    %c0_111 = arith.constant 0 : index
    %182 = vector.load %arg7[%c6_110, %c0_111] : memref<16x512xf32, #tpu.memory_space<vmem>>, vector<2x512xf32>
    tpu.vector_store %arg7[%c6_110, %c0_111], %181 {strides = array<i32>} : memref<16x512xf32, #tpu.memory_space<vmem>>, vector<2x512xf32>,
    %c0_112 = arith.constant 0 : index
    %c0_113 = arith.constant 0 : index
    %183 = vector.load %arg8[%c0_112, %c0_113] : memref<2x128xf32, #tpu.memory_space<vmem>>, vector<2x128xf32>
    %c0_114 = arith.constant 0 : index
    %c0_115 = arith.constant 0 : index
    %184 = vector.load %arg9[%c0_114, %c0_115] : memref<2x128xf32, #tpu.memory_space<vmem>>, vector<2x128xf32>
    %c8 = arith.constant 8 : index
    %c0_116 = arith.constant 0 : index
    %185 = vector.load %arg1[%c8, %c0_116] : memref<16x512xf32, #tpu.memory_space<vmem>>, vector<2x512xf32>
    %c0_117 = arith.constant 0 : index
    %c0_118 = arith.constant 0 : index
    %186 = vector.load %arg4[%c0_117, %c0_118] : memref<128x512xf32, #tpu.memory_space<vmem>>, vector<128x512xf32>
    %cst_119 = arith.constant dense<0.000000e+00> : vector<2x512xf32>
    %187 = tpu.matmul %183, %186, %cst_119 {dimension_numbers = #tpu.dot_dimension_numbers<[1], [0], [0], [1], [0, 0, 1, 1], [], []>} : vector<2x128xf32>, vector<128x512xf32>, vector<2x512xf32> -> vector<2x512xf32>
    %188 = arith.addf %185, %187 : vector<2x512xf32>
    %189 = vector.extract_strided_slice %188 {offsets = [0, 0], sizes = [2, 128], strides = [1, 1]} : vector<2x512xf32> to vector<2x128xf32>
    %cst_120 = arith.constant 5.000000e-01 : f32
    %190 = vector.broadcast %cst_120 : f32 to vector<2x128xf32>
    %191 = arith.mulf %190, %189 : vector<2x128xf32>
    %192 = math.tanh %191 : vector<2x128xf32>
    %cst_121 = arith.constant 5.000000e-01 : f32
    %193 = vector.broadcast %cst_121 : f32 to vector<2x128xf32>
    %194 = arith.mulf %193, %192 : vector<2x128xf32>
    %cst_122 = arith.constant 5.000000e-01 : f32
    %195 = vector.broadcast %cst_122 : f32 to vector<2x128xf32>
    %196 = arith.addf %194, %195 : vector<2x128xf32>
    %197 = vector.extract_strided_slice %188 {offsets = [0, 128], sizes = [2, 128], strides = [1, 1]} : vector<2x512xf32> to vector<2x128xf32>
    %cst_123 = arith.constant 5.000000e-01 : f32
    %198 = vector.broadcast %cst_123 : f32 to vector<2x128xf32>
    %199 = arith.mulf %198, %197 : vector<2x128xf32>
    %200 = math.tanh %199 : vector<2x128xf32>
    %cst_124 = arith.constant 5.000000e-01 : f32
    %201 = vector.broadcast %cst_124 : f32 to vector<2x128xf32>
    %202 = arith.mulf %201, %200 : vector<2x128xf32>
    %cst_125 = arith.constant 5.000000e-01 : f32
    %203 = vector.broadcast %cst_125 : f32 to vector<2x128xf32>
    %204 = arith.addf %202, %203 : vector<2x128xf32>
    %205 = vector.extract_strided_slice %188 {offsets = [0, 256], sizes = [2, 128], strides = [1, 1]} : vector<2x512xf32> to vector<2x128xf32>
    %206 = math.tanh %205 : vector<2x128xf32>
    %207 = vector.extract_strided_slice %188 {offsets = [0, 384], sizes = [2, 128], strides = [1, 1]} : vector<2x512xf32> to vector<2x128xf32>
    %cst_126 = arith.constant 5.000000e-01 : f32
    %208 = vector.broadcast %cst_126 : f32 to vector<2x128xf32>
    %209 = arith.mulf %208, %207 : vector<2x128xf32>
    %210 = math.tanh %209 : vector<2x128xf32>
    %cst_127 = arith.constant 5.000000e-01 : f32
    %211 = vector.broadcast %cst_127 : f32 to vector<2x128xf32>
    %212 = arith.mulf %211, %210 : vector<2x128xf32>
    %cst_128 = arith.constant 5.000000e-01 : f32
    %213 = vector.broadcast %cst_128 : f32 to vector<2x128xf32>
    %214 = arith.addf %212, %213 : vector<2x128xf32>
    %215 = arith.mulf %204, %184 : vector<2x128xf32>
    %216 = arith.mulf %196, %206 : vector<2x128xf32>
    %217 = arith.addf %215, %216 : vector<2x128xf32>
    %218 = math.tanh %217 : vector<2x128xf32>
    %219 = arith.mulf %214, %218 : vector<2x128xf32>
    %c0_129 = arith.constant 0 : index
    %c0_130 = arith.constant 0 : index
    %220 = vector.load %arg9[%c0_129, %c0_130] : memref<2x128xf32, #tpu.memory_space<vmem>>, vector<2x128xf32>
    tpu.vector_store %arg9[%c0_129, %c0_130], %217 {strides = array<i32>} : memref<2x128xf32, #tpu.memory_space<vmem>>, vector<2x128xf32>,
    %c0_131 = arith.constant 0 : index
    %c0_132 = arith.constant 0 : index
    %221 = vector.load %arg8[%c0_131, %c0_132] : memref<2x128xf32, #tpu.memory_space<vmem>>, vector<2x128xf32>
    tpu.vector_store %arg8[%c0_131, %c0_132], %219 {strides = array<i32>} : memref<2x128xf32, #tpu.memory_space<vmem>>, vector<2x128xf32>,
    %c0_133 = arith.constant 0 : index
    %c0_134 = arith.constant 0 : index
    %222 = vector.load %arg5[%c0_133, %c0_134] : memref<128x512xf32, #tpu.memory_space<vmem>>, vector<128x512xf32>
    %cst_135 = arith.constant dense<0.000000e+00> : vector<2x512xf32>
    %223 = tpu.matmul %219, %222, %cst_135 {dimension_numbers = #tpu.dot_dimension_numbers<[1], [0], [0], [1], [0, 0, 1, 1], [], []>} : vector<2x128xf32>, vector<128x512xf32>, vector<2x512xf32> -> vector<2x512xf32>
    %c0_136 = arith.constant 0 : index
    %c0_137 = arith.constant 0 : index
    %224 = vector.load %arg6[%c0_136, %c0_137] : memref<1x512xf32, #tpu.memory_space<vmem>>, vector<1x512xf32>
    %225 = vector.broadcast %224 : vector<1x512xf32> to vector<2x512xf32>
    %226 = arith.addf %223, %225 : vector<2x512xf32>
    %c8_138 = arith.constant 8 : index
    %c0_139 = arith.constant 0 : index
    %227 = vector.load %arg7[%c8_138, %c0_139] : memref<16x512xf32, #tpu.memory_space<vmem>>, vector<2x512xf32>
    tpu.vector_store %arg7[%c8_138, %c0_139], %226 {strides = array<i32>} : memref<16x512xf32, #tpu.memory_space<vmem>>, vector<2x512xf32>,
    %c0_140 = arith.constant 0 : index
    %c0_141 = arith.constant 0 : index
    %228 = vector.load %arg8[%c0_140, %c0_141] : memref<2x128xf32, #tpu.memory_space<vmem>>, vector<2x128xf32>
    %c0_142 = arith.constant 0 : index
    %c0_143 = arith.constant 0 : index
    %229 = vector.load %arg9[%c0_142, %c0_143] : memref<2x128xf32, #tpu.memory_space<vmem>>, vector<2x128xf32>
    %c10 = arith.constant 10 : index
    %c0_144 = arith.constant 0 : index
    %230 = vector.load %arg1[%c10, %c0_144] : memref<16x512xf32, #tpu.memory_space<vmem>>, vector<2x512xf32>
    %c0_145 = arith.constant 0 : index
    %c0_146 = arith.constant 0 : index
    %231 = vector.load %arg4[%c0_145, %c0_146] : memref<128x512xf32, #tpu.memory_space<vmem>>, vector<128x512xf32>
    %cst_147 = arith.constant dense<0.000000e+00> : vector<2x512xf32>
    %232 = tpu.matmul %228, %231, %cst_147 {dimension_numbers = #tpu.dot_dimension_numbers<[1], [0], [0], [1], [0, 0, 1, 1], [], []>} : vector<2x128xf32>, vector<128x512xf32>, vector<2x512xf32> -> vector<2x512xf32>
    %233 = arith.addf %230, %232 : vector<2x512xf32>
    %234 = vector.extract_strided_slice %233 {offsets = [0, 0], sizes = [2, 128], strides = [1, 1]} : vector<2x512xf32> to vector<2x128xf32>
    %cst_148 = arith.constant 5.000000e-01 : f32
    %235 = vector.broadcast %cst_148 : f32 to vector<2x128xf32>
    %236 = arith.mulf %235, %234 : vector<2x128xf32>
    %237 = math.tanh %236 : vector<2x128xf32>
    %cst_149 = arith.constant 5.000000e-01 : f32
    %238 = vector.broadcast %cst_149 : f32 to vector<2x128xf32>
    %239 = arith.mulf %238, %237 : vector<2x128xf32>
    %cst_150 = arith.constant 5.000000e-01 : f32
    %240 = vector.broadcast %cst_150 : f32 to vector<2x128xf32>
    %241 = arith.addf %239, %240 : vector<2x128xf32>
    %242 = vector.extract_strided_slice %233 {offsets = [0, 128], sizes = [2, 128], strides = [1, 1]} : vector<2x512xf32> to vector<2x128xf32>
    %cst_151 = arith.constant 5.000000e-01 : f32
    %243 = vector.broadcast %cst_151 : f32 to vector<2x128xf32>
    %244 = arith.mulf %243, %242 : vector<2x128xf32>
    %245 = math.tanh %244 : vector<2x128xf32>
    %cst_152 = arith.constant 5.000000e-01 : f32
    %246 = vector.broadcast %cst_152 : f32 to vector<2x128xf32>
    %247 = arith.mulf %246, %245 : vector<2x128xf32>
    %cst_153 = arith.constant 5.000000e-01 : f32
    %248 = vector.broadcast %cst_153 : f32 to vector<2x128xf32>
    %249 = arith.addf %247, %248 : vector<2x128xf32>
    %250 = vector.extract_strided_slice %233 {offsets = [0, 256], sizes = [2, 128], strides = [1, 1]} : vector<2x512xf32> to vector<2x128xf32>
    %251 = math.tanh %250 : vector<2x128xf32>
    %252 = vector.extract_strided_slice %233 {offsets = [0, 384], sizes = [2, 128], strides = [1, 1]} : vector<2x512xf32> to vector<2x128xf32>
    %cst_154 = arith.constant 5.000000e-01 : f32
    %253 = vector.broadcast %cst_154 : f32 to vector<2x128xf32>
    %254 = arith.mulf %253, %252 : vector<2x128xf32>
    %255 = math.tanh %254 : vector<2x128xf32>
    %cst_155 = arith.constant 5.000000e-01 : f32
    %256 = vector.broadcast %cst_155 : f32 to vector<2x128xf32>
    %257 = arith.mulf %256, %255 : vector<2x128xf32>
    %cst_156 = arith.constant 5.000000e-01 : f32
    %258 = vector.broadcast %cst_156 : f32 to vector<2x128xf32>
    %259 = arith.addf %257, %258 : vector<2x128xf32>
    %260 = arith.mulf %249, %229 : vector<2x128xf32>
    %261 = arith.mulf %241, %251 : vector<2x128xf32>
    %262 = arith.addf %260, %261 : vector<2x128xf32>
    %263 = math.tanh %262 : vector<2x128xf32>
    %264 = arith.mulf %259, %263 : vector<2x128xf32>
    %c0_157 = arith.constant 0 : index
    %c0_158 = arith.constant 0 : index
    %265 = vector.load %arg9[%c0_157, %c0_158] : memref<2x128xf32, #tpu.memory_space<vmem>>, vector<2x128xf32>
    tpu.vector_store %arg9[%c0_157, %c0_158], %262 {strides = array<i32>} : memref<2x128xf32, #tpu.memory_space<vmem>>, vector<2x128xf32>,
    %c0_159 = arith.constant 0 : index
    %c0_160 = arith.constant 0 : index
    %266 = vector.load %arg8[%c0_159, %c0_160] : memref<2x128xf32, #tpu.memory_space<vmem>>, vector<2x128xf32>
    tpu.vector_store %arg8[%c0_159, %c0_160], %264 {strides = array<i32>} : memref<2x128xf32, #tpu.memory_space<vmem>>, vector<2x128xf32>,
    %c0_161 = arith.constant 0 : index
    %c0_162 = arith.constant 0 : index
    %267 = vector.load %arg5[%c0_161, %c0_162] : memref<128x512xf32, #tpu.memory_space<vmem>>, vector<128x512xf32>
    %cst_163 = arith.constant dense<0.000000e+00> : vector<2x512xf32>
    %268 = tpu.matmul %264, %267, %cst_163 {dimension_numbers = #tpu.dot_dimension_numbers<[1], [0], [0], [1], [0, 0, 1, 1], [], []>} : vector<2x128xf32>, vector<128x512xf32>, vector<2x512xf32> -> vector<2x512xf32>
    %c0_164 = arith.constant 0 : index
    %c0_165 = arith.constant 0 : index
    %269 = vector.load %arg6[%c0_164, %c0_165] : memref<1x512xf32, #tpu.memory_space<vmem>>, vector<1x512xf32>
    %270 = vector.broadcast %269 : vector<1x512xf32> to vector<2x512xf32>
    %271 = arith.addf %268, %270 : vector<2x512xf32>
    %c10_166 = arith.constant 10 : index
    %c0_167 = arith.constant 0 : index
    %272 = vector.load %arg7[%c10_166, %c0_167] : memref<16x512xf32, #tpu.memory_space<vmem>>, vector<2x512xf32>
    tpu.vector_store %arg7[%c10_166, %c0_167], %271 {strides = array<i32>} : memref<16x512xf32, #tpu.memory_space<vmem>>, vector<2x512xf32>,
    %c0_168 = arith.constant 0 : index
    %c0_169 = arith.constant 0 : index
    %273 = vector.load %arg8[%c0_168, %c0_169] : memref<2x128xf32, #tpu.memory_space<vmem>>, vector<2x128xf32>
    %c0_170 = arith.constant 0 : index
    %c0_171 = arith.constant 0 : index
    %274 = vector.load %arg9[%c0_170, %c0_171] : memref<2x128xf32, #tpu.memory_space<vmem>>, vector<2x128xf32>
    %c12 = arith.constant 12 : index
    %c0_172 = arith.constant 0 : index
    %275 = vector.load %arg1[%c12, %c0_172] : memref<16x512xf32, #tpu.memory_space<vmem>>, vector<2x512xf32>
    %c0_173 = arith.constant 0 : index
    %c0_174 = arith.constant 0 : index
    %276 = vector.load %arg4[%c0_173, %c0_174] : memref<128x512xf32, #tpu.memory_space<vmem>>, vector<128x512xf32>
    %cst_175 = arith.constant dense<0.000000e+00> : vector<2x512xf32>
    %277 = tpu.matmul %273, %276, %cst_175 {dimension_numbers = #tpu.dot_dimension_numbers<[1], [0], [0], [1], [0, 0, 1, 1], [], []>} : vector<2x128xf32>, vector<128x512xf32>, vector<2x512xf32> -> vector<2x512xf32>
    %278 = arith.addf %275, %277 : vector<2x512xf32>
    %279 = vector.extract_strided_slice %278 {offsets = [0, 0], sizes = [2, 128], strides = [1, 1]} : vector<2x512xf32> to vector<2x128xf32>
    %cst_176 = arith.constant 5.000000e-01 : f32
    %280 = vector.broadcast %cst_176 : f32 to vector<2x128xf32>
    %281 = arith.mulf %280, %279 : vector<2x128xf32>
    %282 = math.tanh %281 : vector<2x128xf32>
    %cst_177 = arith.constant 5.000000e-01 : f32
    %283 = vector.broadcast %cst_177 : f32 to vector<2x128xf32>
    %284 = arith.mulf %283, %282 : vector<2x128xf32>
    %cst_178 = arith.constant 5.000000e-01 : f32
    %285 = vector.broadcast %cst_178 : f32 to vector<2x128xf32>
    %286 = arith.addf %284, %285 : vector<2x128xf32>
    %287 = vector.extract_strided_slice %278 {offsets = [0, 128], sizes = [2, 128], strides = [1, 1]} : vector<2x512xf32> to vector<2x128xf32>
    %cst_179 = arith.constant 5.000000e-01 : f32
    %288 = vector.broadcast %cst_179 : f32 to vector<2x128xf32>
    %289 = arith.mulf %288, %287 : vector<2x128xf32>
    %290 = math.tanh %289 : vector<2x128xf32>
    %cst_180 = arith.constant 5.000000e-01 : f32
    %291 = vector.broadcast %cst_180 : f32 to vector<2x128xf32>
    %292 = arith.mulf %291, %290 : vector<2x128xf32>
    %cst_181 = arith.constant 5.000000e-01 : f32
    %293 = vector.broadcast %cst_181 : f32 to vector<2x128xf32>
    %294 = arith.addf %292, %293 : vector<2x128xf32>
    %295 = vector.extract_strided_slice %278 {offsets = [0, 256], sizes = [2, 128], strides = [1, 1]} : vector<2x512xf32> to vector<2x128xf32>
    %296 = math.tanh %295 : vector<2x128xf32>
    %297 = vector.extract_strided_slice %278 {offsets = [0, 384], sizes = [2, 128], strides = [1, 1]} : vector<2x512xf32> to vector<2x128xf32>
    %cst_182 = arith.constant 5.000000e-01 : f32
    %298 = vector.broadcast %cst_182 : f32 to vector<2x128xf32>
    %299 = arith.mulf %298, %297 : vector<2x128xf32>
    %300 = math.tanh %299 : vector<2x128xf32>
    %cst_183 = arith.constant 5.000000e-01 : f32
    %301 = vector.broadcast %cst_183 : f32 to vector<2x128xf32>
    %302 = arith.mulf %301, %300 : vector<2x128xf32>
    %cst_184 = arith.constant 5.000000e-01 : f32
    %303 = vector.broadcast %cst_184 : f32 to vector<2x128xf32>
    %304 = arith.addf %302, %303 : vector<2x128xf32>
    %305 = arith.mulf %294, %274 : vector<2x128xf32>
    %306 = arith.mulf %286, %296 : vector<2x128xf32>
    %307 = arith.addf %305, %306 : vector<2x128xf32>
    %308 = math.tanh %307 : vector<2x128xf32>
    %309 = arith.mulf %304, %308 : vector<2x128xf32>
    %c0_185 = arith.constant 0 : index
    %c0_186 = arith.constant 0 : index
    %310 = vector.load %arg9[%c0_185, %c0_186] : memref<2x128xf32, #tpu.memory_space<vmem>>, vector<2x128xf32>
    tpu.vector_store %arg9[%c0_185, %c0_186], %307 {strides = array<i32>} : memref<2x128xf32, #tpu.memory_space<vmem>>, vector<2x128xf32>,
    %c0_187 = arith.constant 0 : index
    %c0_188 = arith.constant 0 : index
    %311 = vector.load %arg8[%c0_187, %c0_188] : memref<2x128xf32, #tpu.memory_space<vmem>>, vector<2x128xf32>
    tpu.vector_store %arg8[%c0_187, %c0_188], %309 {strides = array<i32>} : memref<2x128xf32, #tpu.memory_space<vmem>>, vector<2x128xf32>,
    %c0_189 = arith.constant 0 : index
    %c0_190 = arith.constant 0 : index
    %312 = vector.load %arg5[%c0_189, %c0_190] : memref<128x512xf32, #tpu.memory_space<vmem>>, vector<128x512xf32>
    %cst_191 = arith.constant dense<0.000000e+00> : vector<2x512xf32>
    %313 = tpu.matmul %309, %312, %cst_191 {dimension_numbers = #tpu.dot_dimension_numbers<[1], [0], [0], [1], [0, 0, 1, 1], [], []>} : vector<2x128xf32>, vector<128x512xf32>, vector<2x512xf32> -> vector<2x512xf32>
    %c0_192 = arith.constant 0 : index
    %c0_193 = arith.constant 0 : index
    %314 = vector.load %arg6[%c0_192, %c0_193] : memref<1x512xf32, #tpu.memory_space<vmem>>, vector<1x512xf32>
    %315 = vector.broadcast %314 : vector<1x512xf32> to vector<2x512xf32>
    %316 = arith.addf %313, %315 : vector<2x512xf32>
    %c12_194 = arith.constant 12 : index
    %c0_195 = arith.constant 0 : index
    %317 = vector.load %arg7[%c12_194, %c0_195] : memref<16x512xf32, #tpu.memory_space<vmem>>, vector<2x512xf32>
    tpu.vector_store %arg7[%c12_194, %c0_195], %316 {strides = array<i32>} : memref<16x512xf32, #tpu.memory_space<vmem>>, vector<2x512xf32>,
    %c0_196 = arith.constant 0 : index
    %c0_197 = arith.constant 0 : index
    %318 = vector.load %arg8[%c0_196, %c0_197] : memref<2x128xf32, #tpu.memory_space<vmem>>, vector<2x128xf32>
    %c0_198 = arith.constant 0 : index
    %c0_199 = arith.constant 0 : index
    %319 = vector.load %arg9[%c0_198, %c0_199] : memref<2x128xf32, #tpu.memory_space<vmem>>, vector<2x128xf32>
    %c14 = arith.constant 14 : index
    %c0_200 = arith.constant 0 : index
    %320 = vector.load %arg1[%c14, %c0_200] : memref<16x512xf32, #tpu.memory_space<vmem>>, vector<2x512xf32>
    %c0_201 = arith.constant 0 : index
    %c0_202 = arith.constant 0 : index
    %321 = vector.load %arg4[%c0_201, %c0_202] : memref<128x512xf32, #tpu.memory_space<vmem>>, vector<128x512xf32>
    %cst_203 = arith.constant dense<0.000000e+00> : vector<2x512xf32>
    %322 = tpu.matmul %318, %321, %cst_203 {dimension_numbers = #tpu.dot_dimension_numbers<[1], [0], [0], [1], [0, 0, 1, 1], [], []>} : vector<2x128xf32>, vector<128x512xf32>, vector<2x512xf32> -> vector<2x512xf32>
    %323 = arith.addf %320, %322 : vector<2x512xf32>
    %324 = vector.extract_strided_slice %323 {offsets = [0, 0], sizes = [2, 128], strides = [1, 1]} : vector<2x512xf32> to vector<2x128xf32>
    %cst_204 = arith.constant 5.000000e-01 : f32
    %325 = vector.broadcast %cst_204 : f32 to vector<2x128xf32>
    %326 = arith.mulf %325, %324 : vector<2x128xf32>
    %327 = math.tanh %326 : vector<2x128xf32>
    %cst_205 = arith.constant 5.000000e-01 : f32
    %328 = vector.broadcast %cst_205 : f32 to vector<2x128xf32>
    %329 = arith.mulf %328, %327 : vector<2x128xf32>
    %cst_206 = arith.constant 5.000000e-01 : f32
    %330 = vector.broadcast %cst_206 : f32 to vector<2x128xf32>
    %331 = arith.addf %329, %330 : vector<2x128xf32>
    %332 = vector.extract_strided_slice %323 {offsets = [0, 128], sizes = [2, 128], strides = [1, 1]} : vector<2x512xf32> to vector<2x128xf32>
    %cst_207 = arith.constant 5.000000e-01 : f32
    %333 = vector.broadcast %cst_207 : f32 to vector<2x128xf32>
    %334 = arith.mulf %333, %332 : vector<2x128xf32>
    %335 = math.tanh %334 : vector<2x128xf32>
    %cst_208 = arith.constant 5.000000e-01 : f32
    %336 = vector.broadcast %cst_208 : f32 to vector<2x128xf32>
    %337 = arith.mulf %336, %335 : vector<2x128xf32>
    %cst_209 = arith.constant 5.000000e-01 : f32
    %338 = vector.broadcast %cst_209 : f32 to vector<2x128xf32>
    %339 = arith.addf %337, %338 : vector<2x128xf32>
    %340 = vector.extract_strided_slice %323 {offsets = [0, 256], sizes = [2, 128], strides = [1, 1]} : vector<2x512xf32> to vector<2x128xf32>
    %341 = math.tanh %340 : vector<2x128xf32>
    %342 = vector.extract_strided_slice %323 {offsets = [0, 384], sizes = [2, 128], strides = [1, 1]} : vector<2x512xf32> to vector<2x128xf32>
    %cst_210 = arith.constant 5.000000e-01 : f32
    %343 = vector.broadcast %cst_210 : f32 to vector<2x128xf32>
    %344 = arith.mulf %343, %342 : vector<2x128xf32>
    %345 = math.tanh %344 : vector<2x128xf32>
    %cst_211 = arith.constant 5.000000e-01 : f32
    %346 = vector.broadcast %cst_211 : f32 to vector<2x128xf32>
    %347 = arith.mulf %346, %345 : vector<2x128xf32>
    %cst_212 = arith.constant 5.000000e-01 : f32
    %348 = vector.broadcast %cst_212 : f32 to vector<2x128xf32>
    %349 = arith.addf %347, %348 : vector<2x128xf32>
    %350 = arith.mulf %339, %319 : vector<2x128xf32>
    %351 = arith.mulf %331, %341 : vector<2x128xf32>
    %352 = arith.addf %350, %351 : vector<2x128xf32>
    %353 = math.tanh %352 : vector<2x128xf32>
    %354 = arith.mulf %349, %353 : vector<2x128xf32>
    %c0_213 = arith.constant 0 : index
    %c0_214 = arith.constant 0 : index
    %355 = vector.load %arg9[%c0_213, %c0_214] : memref<2x128xf32, #tpu.memory_space<vmem>>, vector<2x128xf32>
    tpu.vector_store %arg9[%c0_213, %c0_214], %352 {strides = array<i32>} : memref<2x128xf32, #tpu.memory_space<vmem>>, vector<2x128xf32>,
    %c0_215 = arith.constant 0 : index
    %c0_216 = arith.constant 0 : index
    %356 = vector.load %arg8[%c0_215, %c0_216] : memref<2x128xf32, #tpu.memory_space<vmem>>, vector<2x128xf32>
    tpu.vector_store %arg8[%c0_215, %c0_216], %354 {strides = array<i32>} : memref<2x128xf32, #tpu.memory_space<vmem>>, vector<2x128xf32>,
    %c0_217 = arith.constant 0 : index
    %c0_218 = arith.constant 0 : index
    %357 = vector.load %arg5[%c0_217, %c0_218] : memref<128x512xf32, #tpu.memory_space<vmem>>, vector<128x512xf32>
    %cst_219 = arith.constant dense<0.000000e+00> : vector<2x512xf32>
    %358 = tpu.matmul %354, %357, %cst_219 {dimension_numbers = #tpu.dot_dimension_numbers<[1], [0], [0], [1], [0, 0, 1, 1], [], []>} : vector<2x128xf32>, vector<128x512xf32>, vector<2x512xf32> -> vector<2x512xf32>
    %c0_220 = arith.constant 0 : index
    %c0_221 = arith.constant 0 : index
    %359 = vector.load %arg6[%c0_220, %c0_221] : memref<1x512xf32, #tpu.memory_space<vmem>>, vector<1x512xf32>
    %360 = vector.broadcast %359 : vector<1x512xf32> to vector<2x512xf32>
    %361 = arith.addf %358, %360 : vector<2x512xf32>
    %c14_222 = arith.constant 14 : index
    %c0_223 = arith.constant 0 : index
    %362 = vector.load %arg7[%c14_222, %c0_223] : memref<16x512xf32, #tpu.memory_space<vmem>>, vector<2x512xf32>
    tpu.vector_store %arg7[%c14_222, %c0_223], %361 {strides = array<i32>} : memref<16x512xf32, #tpu.memory_space<vmem>>, vector<2x512xf32>,
    return
  }
  func.func @transform_0(%arg0: i32) -> (i32, i32) {
    %c0_i32 = arith.constant 0 : i32
    %c0_i32_0 = arith.constant 0 : i32
    return %arg0, %c0_i32 : i32, i32
  }
  func.func @transform_1(%arg0: i32) -> (i32, i32) {
    %c0_i32 = arith.constant 0 : i32
    %c0_i32_0 = arith.constant 0 : i32
    %c0_i32_1 = arith.constant 0 : i32
    return %c0_i32, %c0_i32_0 : i32, i32
  }
  func.func @transform_2(%arg0: i32) -> (i32, i32) {
    %c0_i32 = arith.constant 0 : i32
    %c0_i32_0 = arith.constant 0 : i32
    %c0_i32_1 = arith.constant 0 : i32
    return %c0_i32, %c0_i32_0 : i32, i32
  }
  func.func @transform_3(%arg0: i32) -> (i32, i32) {
    %c0_i32 = arith.constant 0 : i32
    %c0_i32_0 = arith.constant 0 : i32
    %c0_i32_1 = arith.constant 0 : i32
    return %c0_i32, %c0_i32_0 : i32, i32
  }
  func.func @transform_4(%arg0: i32) -> (i32, i32) {
    %c0_i32 = arith.constant 0 : i32
    %c0_i32_0 = arith.constant 0 : i32
    %c0_i32_1 = arith.constant 0 : i32
    return %c0_i32, %c0_i32_0 : i32, i32
  }
  func.func @transform_5(%arg0: i32) -> (i32, i32) {
    %c0_i32 = arith.constant 0 : i32
    %c0_i32_0 = arith.constant 0 : i32
    %c0_i32_1 = arith.constant 0 : i32
    return %c0_i32, %c0_i32_0 : i32, i32
  }
  func.func @transform_6(%arg0: i32) -> (i32, i32) {
    %c0_i32 = arith.constant 0 : i32
    %c0_i32_0 = arith.constant 0 : i32
    return %arg0, %c0_i32 : i32, i32
  }
  func.func @transform_7(%arg0: i32) -> (i32, i32) {
    %c0_i32 = arith.constant 0 : i32
    %c0_i32_0 = arith.constant 0 : i32
    %c0_i32_1 = arith.constant 0 : i32
    return %c0_i32, %c0_i32_0 : i32, i32
  }
  func.func @transform_8(%arg0: i32) -> (i32, i32) {
    %c0_i32 = arith.constant 0 : i32
    %c0_i32_0 = arith.constant 0 : i32
    %c0_i32_1 = arith.constant 0 : i32
    return %c0_i32, %c0_i32_0 : i32, i32
  }
}

module attributes {stable_mosaic.version = 11 : i64} {
  func.func @_input_proj_kernel(%arg0: i32, %arg1: i32, %arg2: i32, %arg3: memref<16x16xf32, #tpu.memory_space<vmem>>, %arg4: memref<16x512xf32, #tpu.memory_space<vmem>>, %arg5: memref<1x512xf32, #tpu.memory_space<vmem>>, %arg6: memref<16x512xf32, #tpu.memory_space<vmem>>, %arg7: memref<16x512xf32, #tpu.memory_space<vmem>>) attributes {dimension_semantics = [#tpu.dimension_semantics<parallel>, #tpu.dimension_semantics<parallel>, #tpu.dimension_semantics<arbitrary>], iteration_bounds = array<i64: 1, 1, 1>, scalar_prefetch = 0 : i64, scratch_operands = 1 : i64, tpu.core_type = #tpu.core_type<tc>, window_params = [{transform_indices = @transform_0, window_bounds = array<i64: 16, 16>}, {transform_indices = @transform_1, window_bounds = array<i64: 16, 512>}, {transform_indices = @transform_2, window_bounds = array<i64: 1, 512>}, {transform_indices = @transform_3, window_bounds = array<i64: 16, 512>}]} {
    %c0_i32 = arith.constant 0 : i32
    %0 = arith.cmpi eq, %arg2, %c0_i32 : i32
    %1 = arith.extui %0 : i1 to i32
    %c0_i32_0 = arith.constant 0 : i32
    %2 = arith.cmpi ne, %1, %c0_i32_0 : i32
    scf.if %2 {
      %cst_10 = arith.constant 0.000000e+00 : f32
      %12 = vector.broadcast %cst_10 : f32 to vector<16x512xf32>
      %c0_11 = arith.constant 0 : index
      %c0_12 = arith.constant 0 : index
      %13 = vector.load %arg7[%c0_11, %c0_12] : memref<16x512xf32, #tpu.memory_space<vmem>>, vector<16x512xf32>
      tpu.vector_store %arg7[%c0_11, %c0_12], %12 {strides = array<i32>} : memref<16x512xf32, #tpu.memory_space<vmem>>, vector<16x512xf32>,
    } else {
    }
    %c0 = arith.constant 0 : index
    %c0_1 = arith.constant 0 : index
    %3 = vector.load %arg7[%c0, %c0_1] : memref<16x512xf32, #tpu.memory_space<vmem>>, vector<16x512xf32>
    %c0_2 = arith.constant 0 : index
    %c0_3 = arith.constant 0 : index
    %4 = vector.load %arg3[%c0_2, %c0_3] : memref<16x16xf32, #tpu.memory_space<vmem>>, vector<16x16xf32>
    %c0_4 = arith.constant 0 : index
    %c0_5 = arith.constant 0 : index
    %5 = vector.load %arg4[%c0_4, %c0_5] : memref<16x512xf32, #tpu.memory_space<vmem>>, vector<16x512xf32>
    %cst = arith.constant dense<0.000000e+00> : vector<16x512xf32>
    %6 = tpu.matmul %4, %5, %cst {dimension_numbers = #tpu.dot_dimension_numbers<[1], [0], [0], [1], [0, 0, 1, 1], [], []>} : vector<16x16xf32>, vector<16x512xf32>, vector<16x512xf32> -> vector<16x512xf32>
    %7 = arith.addf %3, %6 : vector<16x512xf32>
    %c0_6 = arith.constant 0 : index
    %c0_7 = arith.constant 0 : index
    %8 = vector.load %arg7[%c0_6, %c0_7] : memref<16x512xf32, #tpu.memory_space<vmem>>, vector<16x512xf32>
    tpu.vector_store %arg7[%c0_6, %c0_7], %7 {strides = array<i32>} : memref<16x512xf32, #tpu.memory_space<vmem>>, vector<16x512xf32>,
    %c0_i32_8 = arith.constant 0 : i32
    %9 = arith.cmpi eq, %arg2, %c0_i32_8 : i32
    %10 = arith.extui %9 : i1 to i32
    %c0_i32_9 = arith.constant 0 : i32
    %11 = arith.cmpi ne, %10, %c0_i32_9 : i32
    scf.if %11 {
      %c0_10 = arith.constant 0 : index
      %c0_11 = arith.constant 0 : index
      %12 = vector.load %arg7[%c0_10, %c0_11] : memref<16x512xf32, #tpu.memory_space<vmem>>, vector<16x512xf32>
      %c0_12 = arith.constant 0 : index
      %c0_13 = arith.constant 0 : index
      %13 = vector.load %arg5[%c0_12, %c0_13] : memref<1x512xf32, #tpu.memory_space<vmem>>, vector<1x512xf32>
      %14 = vector.broadcast %13 : vector<1x512xf32> to vector<16x512xf32>
      %15 = arith.addf %12, %14 : vector<16x512xf32>
      %c0_14 = arith.constant 0 : index
      %c0_15 = arith.constant 0 : index
      %16 = vector.load %arg6[%c0_14, %c0_15] : memref<16x512xf32, #tpu.memory_space<vmem>>, vector<16x512xf32>
      tpu.vector_store %arg6[%c0_14, %c0_15], %15 {strides = array<i32>} : memref<16x512xf32, #tpu.memory_space<vmem>>, vector<16x512xf32>,
    } else {
    }
    return
  }
  func.func @transform_0(%arg0: i32, %arg1: i32, %arg2: i32) -> (i32, i32) {
    %c0_i32 = arith.constant 0 : i32
    return %arg0, %arg2 : i32, i32
  }
  func.func @transform_1(%arg0: i32, %arg1: i32, %arg2: i32) -> (i32, i32) {
    %c0_i32 = arith.constant 0 : i32
    return %arg2, %arg1 : i32, i32
  }
  func.func @transform_2(%arg0: i32, %arg1: i32, %arg2: i32) -> (i32, i32) {
    %c0_i32 = arith.constant 0 : i32
    %c0_i32_0 = arith.constant 0 : i32
    return %c0_i32, %arg1 : i32, i32
  }
  func.func @transform_3(%arg0: i32, %arg1: i32, %arg2: i32) -> (i32, i32) {
    %c0_i32 = arith.constant 0 : i32
    return %arg0, %arg1 : i32, i32
  }
}

module attributes {stable_mosaic.version = 11 : i64} {
  func.func @_lstm_seq_head_kernel(%arg0: i32, %arg1: memref<16x512xf32, #tpu.memory_space<vmem>>, %arg2: memref<2x128xf32, #tpu.memory_space<vmem>>, %arg3: memref<2x128xf32, #tpu.memory_space<vmem>>, %arg4: memref<128x512xf32, #tpu.memory_space<vmem>>, %arg5: memref<1x128xf32, #tpu.memory_space<vmem>>, %arg6: memref<1xf32, #tpu.memory_space<smem>>, %arg7: memref<2x128xf32, #tpu.memory_space<vmem>>, %arg8: memref<2x128xf32, #tpu.memory_space<vmem>>, %arg9: memref<2x1xf32, #tpu.memory_space<vmem>>) attributes {dimension_semantics = [#tpu.dimension_semantics<arbitrary>], iteration_bounds = array<i64: 1>, scalar_prefetch = 0 : i64, scratch_operands = 0 : i64, tpu.core_type = #tpu.core_type<tc>, window_params = [{transform_indices = @transform_0, window_bounds = array<i64: 16, 512>}, {pipeline_mode = #tpu.pipeline_mode<synchronous>, transform_indices = @transform_1, window_bounds = array<i64: 2, 128>}, {pipeline_mode = #tpu.pipeline_mode<synchronous>, transform_indices = @transform_2, window_bounds = array<i64: 2, 128>}, {pipeline_mode = #tpu.pipeline_mode<synchronous>, transform_indices = @transform_3, window_bounds = array<i64: 128, 512>}, {pipeline_mode = #tpu.pipeline_mode<synchronous>, transform_indices = @transform_4, window_bounds = array<i64: 1, 128>}, {transform_indices = @transform_5, window_bounds = array<i64: 1>}, {pipeline_mode = #tpu.pipeline_mode<synchronous>, transform_indices = @transform_6, window_bounds = array<i64: 2, 128>}, {pipeline_mode = #tpu.pipeline_mode<synchronous>, transform_indices = @transform_7, window_bounds = array<i64: 2, 128>}, {pipeline_mode = #tpu.pipeline_mode<synchronous>, transform_indices = @transform_8, window_bounds = array<i64: 2, 1>}]} {
    %c0_i32 = arith.constant 0 : i32
    %0 = arith.cmpi eq, %arg0, %c0_i32 : i32
    %1 = arith.extui %0 : i1 to i32
    %c0_i32_0 = arith.constant 0 : i32
    %2 = arith.cmpi ne, %1, %c0_i32_0 : i32
    scf.if %2 {
      %c0_170 = arith.constant 0 : index
      %c0_171 = arith.constant 0 : index
      %318 = vector.load %arg2[%c0_170, %c0_171] : memref<2x128xf32, #tpu.memory_space<vmem>>, vector<2x128xf32>
      %c0_172 = arith.constant 0 : index
      %c0_173 = arith.constant 0 : index
      %319 = vector.load %arg7[%c0_172, %c0_173] : memref<2x128xf32, #tpu.memory_space<vmem>>, vector<2x128xf32>
      tpu.vector_store %arg7[%c0_172, %c0_173], %318 {strides = array<i32>} : memref<2x128xf32, #tpu.memory_space<vmem>>, vector<2x128xf32>,
      %c0_174 = arith.constant 0 : index
      %c0_175 = arith.constant 0 : index
      %320 = vector.load %arg3[%c0_174, %c0_175] : memref<2x128xf32, #tpu.memory_space<vmem>>, vector<2x128xf32>
      %c0_176 = arith.constant 0 : index
      %c0_177 = arith.constant 0 : index
      %321 = vector.load %arg8[%c0_176, %c0_177] : memref<2x128xf32, #tpu.memory_space<vmem>>, vector<2x128xf32>
      tpu.vector_store %arg8[%c0_176, %c0_177], %320 {strides = array<i32>} : memref<2x128xf32, #tpu.memory_space<vmem>>, vector<2x128xf32>,
    } else {
    }
    %c0 = arith.constant 0 : index
    %c0_1 = arith.constant 0 : index
    %3 = vector.load %arg7[%c0, %c0_1] : memref<2x128xf32, #tpu.memory_space<vmem>>, vector<2x128xf32>
    %c0_2 = arith.constant 0 : index
    %c0_3 = arith.constant 0 : index
    %4 = vector.load %arg8[%c0_2, %c0_3] : memref<2x128xf32, #tpu.memory_space<vmem>>, vector<2x128xf32>
    %c0_4 = arith.constant 0 : index
    %c0_5 = arith.constant 0 : index
    %5 = vector.load %arg1[%c0_4, %c0_5] : memref<16x512xf32, #tpu.memory_space<vmem>>, vector<2x512xf32>
    %c0_6 = arith.constant 0 : index
    %c0_7 = arith.constant 0 : index
    %6 = vector.load %arg4[%c0_6, %c0_7] : memref<128x512xf32, #tpu.memory_space<vmem>>, vector<128x512xf32>
    %cst = arith.constant dense<0.000000e+00> : vector<2x512xf32>
    %7 = tpu.matmul %3, %6, %cst {dimension_numbers = #tpu.dot_dimension_numbers<[1], [0], [0], [1], [0, 0, 1, 1], [], []>} : vector<2x128xf32>, vector<128x512xf32>, vector<2x512xf32> -> vector<2x512xf32>
    %8 = arith.addf %5, %7 : vector<2x512xf32>
    %9 = vector.extract_strided_slice %8 {offsets = [0, 0], sizes = [2, 128], strides = [1, 1]} : vector<2x512xf32> to vector<2x128xf32>
    %cst_8 = arith.constant 5.000000e-01 : f32
    %10 = vector.broadcast %cst_8 : f32 to vector<2x128xf32>
    %11 = arith.mulf %10, %9 : vector<2x128xf32>
    %12 = math.tanh %11 : vector<2x128xf32>
    %cst_9 = arith.constant 5.000000e-01 : f32
    %13 = vector.broadcast %cst_9 : f32 to vector<2x128xf32>
    %14 = arith.mulf %13, %12 : vector<2x128xf32>
    %cst_10 = arith.constant 5.000000e-01 : f32
    %15 = vector.broadcast %cst_10 : f32 to vector<2x128xf32>
    %16 = arith.addf %14, %15 : vector<2x128xf32>
    %17 = vector.extract_strided_slice %8 {offsets = [0, 128], sizes = [2, 128], strides = [1, 1]} : vector<2x512xf32> to vector<2x128xf32>
    %cst_11 = arith.constant 5.000000e-01 : f32
    %18 = vector.broadcast %cst_11 : f32 to vector<2x128xf32>
    %19 = arith.mulf %18, %17 : vector<2x128xf32>
    %20 = math.tanh %19 : vector<2x128xf32>
    %cst_12 = arith.constant 5.000000e-01 : f32
    %21 = vector.broadcast %cst_12 : f32 to vector<2x128xf32>
    %22 = arith.mulf %21, %20 : vector<2x128xf32>
    %cst_13 = arith.constant 5.000000e-01 : f32
    %23 = vector.broadcast %cst_13 : f32 to vector<2x128xf32>
    %24 = arith.addf %22, %23 : vector<2x128xf32>
    %25 = vector.extract_strided_slice %8 {offsets = [0, 256], sizes = [2, 128], strides = [1, 1]} : vector<2x512xf32> to vector<2x128xf32>
    %26 = math.tanh %25 : vector<2x128xf32>
    %27 = vector.extract_strided_slice %8 {offsets = [0, 384], sizes = [2, 128], strides = [1, 1]} : vector<2x512xf32> to vector<2x128xf32>
    %cst_14 = arith.constant 5.000000e-01 : f32
    %28 = vector.broadcast %cst_14 : f32 to vector<2x128xf32>
    %29 = arith.mulf %28, %27 : vector<2x128xf32>
    %30 = math.tanh %29 : vector<2x128xf32>
    %cst_15 = arith.constant 5.000000e-01 : f32
    %31 = vector.broadcast %cst_15 : f32 to vector<2x128xf32>
    %32 = arith.mulf %31, %30 : vector<2x128xf32>
    %cst_16 = arith.constant 5.000000e-01 : f32
    %33 = vector.broadcast %cst_16 : f32 to vector<2x128xf32>
    %34 = arith.addf %32, %33 : vector<2x128xf32>
    %35 = arith.mulf %24, %4 : vector<2x128xf32>
    %36 = arith.mulf %16, %26 : vector<2x128xf32>
    %37 = arith.addf %35, %36 : vector<2x128xf32>
    %38 = math.tanh %37 : vector<2x128xf32>
    %39 = arith.mulf %34, %38 : vector<2x128xf32>
    %c0_17 = arith.constant 0 : index
    %c0_18 = arith.constant 0 : index
    %40 = vector.load %arg8[%c0_17, %c0_18] : memref<2x128xf32, #tpu.memory_space<vmem>>, vector<2x128xf32>
    tpu.vector_store %arg8[%c0_17, %c0_18], %37 {strides = array<i32>} : memref<2x128xf32, #tpu.memory_space<vmem>>, vector<2x128xf32>,
    %c0_19 = arith.constant 0 : index
    %c0_20 = arith.constant 0 : index
    %41 = vector.load %arg7[%c0_19, %c0_20] : memref<2x128xf32, #tpu.memory_space<vmem>>, vector<2x128xf32>
    tpu.vector_store %arg7[%c0_19, %c0_20], %39 {strides = array<i32>} : memref<2x128xf32, #tpu.memory_space<vmem>>, vector<2x128xf32>,
    %c0_21 = arith.constant 0 : index
    %c0_22 = arith.constant 0 : index
    %42 = vector.load %arg7[%c0_21, %c0_22] : memref<2x128xf32, #tpu.memory_space<vmem>>, vector<2x128xf32>
    %c0_23 = arith.constant 0 : index
    %c0_24 = arith.constant 0 : index
    %43 = vector.load %arg8[%c0_23, %c0_24] : memref<2x128xf32, #tpu.memory_space<vmem>>, vector<2x128xf32>
    %c2 = arith.constant 2 : index
    %c0_25 = arith.constant 0 : index
    %44 = vector.load %arg1[%c2, %c0_25] : memref<16x512xf32, #tpu.memory_space<vmem>>, vector<2x512xf32>
    %c0_26 = arith.constant 0 : index
    %c0_27 = arith.constant 0 : index
    %45 = vector.load %arg4[%c0_26, %c0_27] : memref<128x512xf32, #tpu.memory_space<vmem>>, vector<128x512xf32>
    %cst_28 = arith.constant dense<0.000000e+00> : vector<2x512xf32>
    %46 = tpu.matmul %42, %45, %cst_28 {dimension_numbers = #tpu.dot_dimension_numbers<[1], [0], [0], [1], [0, 0, 1, 1], [], []>} : vector<2x128xf32>, vector<128x512xf32>, vector<2x512xf32> -> vector<2x512xf32>
    %47 = arith.addf %44, %46 : vector<2x512xf32>
    %48 = vector.extract_strided_slice %47 {offsets = [0, 0], sizes = [2, 128], strides = [1, 1]} : vector<2x512xf32> to vector<2x128xf32>
    %cst_29 = arith.constant 5.000000e-01 : f32
    %49 = vector.broadcast %cst_29 : f32 to vector<2x128xf32>
    %50 = arith.mulf %49, %48 : vector<2x128xf32>
    %51 = math.tanh %50 : vector<2x128xf32>
    %cst_30 = arith.constant 5.000000e-01 : f32
    %52 = vector.broadcast %cst_30 : f32 to vector<2x128xf32>
    %53 = arith.mulf %52, %51 : vector<2x128xf32>
    %cst_31 = arith.constant 5.000000e-01 : f32
    %54 = vector.broadcast %cst_31 : f32 to vector<2x128xf32>
    %55 = arith.addf %53, %54 : vector<2x128xf32>
    %56 = vector.extract_strided_slice %47 {offsets = [0, 128], sizes = [2, 128], strides = [1, 1]} : vector<2x512xf32> to vector<2x128xf32>
    %cst_32 = arith.constant 5.000000e-01 : f32
    %57 = vector.broadcast %cst_32 : f32 to vector<2x128xf32>
    %58 = arith.mulf %57, %56 : vector<2x128xf32>
    %59 = math.tanh %58 : vector<2x128xf32>
    %cst_33 = arith.constant 5.000000e-01 : f32
    %60 = vector.broadcast %cst_33 : f32 to vector<2x128xf32>
    %61 = arith.mulf %60, %59 : vector<2x128xf32>
    %cst_34 = arith.constant 5.000000e-01 : f32
    %62 = vector.broadcast %cst_34 : f32 to vector<2x128xf32>
    %63 = arith.addf %61, %62 : vector<2x128xf32>
    %64 = vector.extract_strided_slice %47 {offsets = [0, 256], sizes = [2, 128], strides = [1, 1]} : vector<2x512xf32> to vector<2x128xf32>
    %65 = math.tanh %64 : vector<2x128xf32>
    %66 = vector.extract_strided_slice %47 {offsets = [0, 384], sizes = [2, 128], strides = [1, 1]} : vector<2x512xf32> to vector<2x128xf32>
    %cst_35 = arith.constant 5.000000e-01 : f32
    %67 = vector.broadcast %cst_35 : f32 to vector<2x128xf32>
    %68 = arith.mulf %67, %66 : vector<2x128xf32>
    %69 = math.tanh %68 : vector<2x128xf32>
    %cst_36 = arith.constant 5.000000e-01 : f32
    %70 = vector.broadcast %cst_36 : f32 to vector<2x128xf32>
    %71 = arith.mulf %70, %69 : vector<2x128xf32>
    %cst_37 = arith.constant 5.000000e-01 : f32
    %72 = vector.broadcast %cst_37 : f32 to vector<2x128xf32>
    %73 = arith.addf %71, %72 : vector<2x128xf32>
    %74 = arith.mulf %63, %43 : vector<2x128xf32>
    %75 = arith.mulf %55, %65 : vector<2x128xf32>
    %76 = arith.addf %74, %75 : vector<2x128xf32>
    %77 = math.tanh %76 : vector<2x128xf32>
    %78 = arith.mulf %73, %77 : vector<2x128xf32>
    %c0_38 = arith.constant 0 : index
    %c0_39 = arith.constant 0 : index
    %79 = vector.load %arg8[%c0_38, %c0_39] : memref<2x128xf32, #tpu.memory_space<vmem>>, vector<2x128xf32>
    tpu.vector_store %arg8[%c0_38, %c0_39], %76 {strides = array<i32>} : memref<2x128xf32, #tpu.memory_space<vmem>>, vector<2x128xf32>,
    %c0_40 = arith.constant 0 : index
    %c0_41 = arith.constant 0 : index
    %80 = vector.load %arg7[%c0_40, %c0_41] : memref<2x128xf32, #tpu.memory_space<vmem>>, vector<2x128xf32>
    tpu.vector_store %arg7[%c0_40, %c0_41], %78 {strides = array<i32>} : memref<2x128xf32, #tpu.memory_space<vmem>>, vector<2x128xf32>,
    %c0_42 = arith.constant 0 : index
    %c0_43 = arith.constant 0 : index
    %81 = vector.load %arg7[%c0_42, %c0_43] : memref<2x128xf32, #tpu.memory_space<vmem>>, vector<2x128xf32>
    %c0_44 = arith.constant 0 : index
    %c0_45 = arith.constant 0 : index
    %82 = vector.load %arg8[%c0_44, %c0_45] : memref<2x128xf32, #tpu.memory_space<vmem>>, vector<2x128xf32>
    %c4 = arith.constant 4 : index
    %c0_46 = arith.constant 0 : index
    %83 = vector.load %arg1[%c4, %c0_46] : memref<16x512xf32, #tpu.memory_space<vmem>>, vector<2x512xf32>
    %c0_47 = arith.constant 0 : index
    %c0_48 = arith.constant 0 : index
    %84 = vector.load %arg4[%c0_47, %c0_48] : memref<128x512xf32, #tpu.memory_space<vmem>>, vector<128x512xf32>
    %cst_49 = arith.constant dense<0.000000e+00> : vector<2x512xf32>
    %85 = tpu.matmul %81, %84, %cst_49 {dimension_numbers = #tpu.dot_dimension_numbers<[1], [0], [0], [1], [0, 0, 1, 1], [], []>} : vector<2x128xf32>, vector<128x512xf32>, vector<2x512xf32> -> vector<2x512xf32>
    %86 = arith.addf %83, %85 : vector<2x512xf32>
    %87 = vector.extract_strided_slice %86 {offsets = [0, 0], sizes = [2, 128], strides = [1, 1]} : vector<2x512xf32> to vector<2x128xf32>
    %cst_50 = arith.constant 5.000000e-01 : f32
    %88 = vector.broadcast %cst_50 : f32 to vector<2x128xf32>
    %89 = arith.mulf %88, %87 : vector<2x128xf32>
    %90 = math.tanh %89 : vector<2x128xf32>
    %cst_51 = arith.constant 5.000000e-01 : f32
    %91 = vector.broadcast %cst_51 : f32 to vector<2x128xf32>
    %92 = arith.mulf %91, %90 : vector<2x128xf32>
    %cst_52 = arith.constant 5.000000e-01 : f32
    %93 = vector.broadcast %cst_52 : f32 to vector<2x128xf32>
    %94 = arith.addf %92, %93 : vector<2x128xf32>
    %95 = vector.extract_strided_slice %86 {offsets = [0, 128], sizes = [2, 128], strides = [1, 1]} : vector<2x512xf32> to vector<2x128xf32>
    %cst_53 = arith.constant 5.000000e-01 : f32
    %96 = vector.broadcast %cst_53 : f32 to vector<2x128xf32>
    %97 = arith.mulf %96, %95 : vector<2x128xf32>
    %98 = math.tanh %97 : vector<2x128xf32>
    %cst_54 = arith.constant 5.000000e-01 : f32
    %99 = vector.broadcast %cst_54 : f32 to vector<2x128xf32>
    %100 = arith.mulf %99, %98 : vector<2x128xf32>
    %cst_55 = arith.constant 5.000000e-01 : f32
    %101 = vector.broadcast %cst_55 : f32 to vector<2x128xf32>
    %102 = arith.addf %100, %101 : vector<2x128xf32>
    %103 = vector.extract_strided_slice %86 {offsets = [0, 256], sizes = [2, 128], strides = [1, 1]} : vector<2x512xf32> to vector<2x128xf32>
    %104 = math.tanh %103 : vector<2x128xf32>
    %105 = vector.extract_strided_slice %86 {offsets = [0, 384], sizes = [2, 128], strides = [1, 1]} : vector<2x512xf32> to vector<2x128xf32>
    %cst_56 = arith.constant 5.000000e-01 : f32
    %106 = vector.broadcast %cst_56 : f32 to vector<2x128xf32>
    %107 = arith.mulf %106, %105 : vector<2x128xf32>
    %108 = math.tanh %107 : vector<2x128xf32>
    %cst_57 = arith.constant 5.000000e-01 : f32
    %109 = vector.broadcast %cst_57 : f32 to vector<2x128xf32>
    %110 = arith.mulf %109, %108 : vector<2x128xf32>
    %cst_58 = arith.constant 5.000000e-01 : f32
    %111 = vector.broadcast %cst_58 : f32 to vector<2x128xf32>
    %112 = arith.addf %110, %111 : vector<2x128xf32>
    %113 = arith.mulf %102, %82 : vector<2x128xf32>
    %114 = arith.mulf %94, %104 : vector<2x128xf32>
    %115 = arith.addf %113, %114 : vector<2x128xf32>
    %116 = math.tanh %115 : vector<2x128xf32>
    %117 = arith.mulf %112, %116 : vector<2x128xf32>
    %c0_59 = arith.constant 0 : index
    %c0_60 = arith.constant 0 : index
    %118 = vector.load %arg8[%c0_59, %c0_60] : memref<2x128xf32, #tpu.memory_space<vmem>>, vector<2x128xf32>
    tpu.vector_store %arg8[%c0_59, %c0_60], %115 {strides = array<i32>} : memref<2x128xf32, #tpu.memory_space<vmem>>, vector<2x128xf32>,
    %c0_61 = arith.constant 0 : index
    %c0_62 = arith.constant 0 : index
    %119 = vector.load %arg7[%c0_61, %c0_62] : memref<2x128xf32, #tpu.memory_space<vmem>>, vector<2x128xf32>
    tpu.vector_store %arg7[%c0_61, %c0_62], %117 {strides = array<i32>} : memref<2x128xf32, #tpu.memory_space<vmem>>, vector<2x128xf32>,
    %c0_63 = arith.constant 0 : index
    %c0_64 = arith.constant 0 : index
    %120 = vector.load %arg7[%c0_63, %c0_64] : memref<2x128xf32, #tpu.memory_space<vmem>>, vector<2x128xf32>
    %c0_65 = arith.constant 0 : index
    %c0_66 = arith.constant 0 : index
    %121 = vector.load %arg8[%c0_65, %c0_66] : memref<2x128xf32, #tpu.memory_space<vmem>>, vector<2x128xf32>
    %c6 = arith.constant 6 : index
    %c0_67 = arith.constant 0 : index
    %122 = vector.load %arg1[%c6, %c0_67] : memref<16x512xf32, #tpu.memory_space<vmem>>, vector<2x512xf32>
    %c0_68 = arith.constant 0 : index
    %c0_69 = arith.constant 0 : index
    %123 = vector.load %arg4[%c0_68, %c0_69] : memref<128x512xf32, #tpu.memory_space<vmem>>, vector<128x512xf32>
    %cst_70 = arith.constant dense<0.000000e+00> : vector<2x512xf32>
    %124 = tpu.matmul %120, %123, %cst_70 {dimension_numbers = #tpu.dot_dimension_numbers<[1], [0], [0], [1], [0, 0, 1, 1], [], []>} : vector<2x128xf32>, vector<128x512xf32>, vector<2x512xf32> -> vector<2x512xf32>
    %125 = arith.addf %122, %124 : vector<2x512xf32>
    %126 = vector.extract_strided_slice %125 {offsets = [0, 0], sizes = [2, 128], strides = [1, 1]} : vector<2x512xf32> to vector<2x128xf32>
    %cst_71 = arith.constant 5.000000e-01 : f32
    %127 = vector.broadcast %cst_71 : f32 to vector<2x128xf32>
    %128 = arith.mulf %127, %126 : vector<2x128xf32>
    %129 = math.tanh %128 : vector<2x128xf32>
    %cst_72 = arith.constant 5.000000e-01 : f32
    %130 = vector.broadcast %cst_72 : f32 to vector<2x128xf32>
    %131 = arith.mulf %130, %129 : vector<2x128xf32>
    %cst_73 = arith.constant 5.000000e-01 : f32
    %132 = vector.broadcast %cst_73 : f32 to vector<2x128xf32>
    %133 = arith.addf %131, %132 : vector<2x128xf32>
    %134 = vector.extract_strided_slice %125 {offsets = [0, 128], sizes = [2, 128], strides = [1, 1]} : vector<2x512xf32> to vector<2x128xf32>
    %cst_74 = arith.constant 5.000000e-01 : f32
    %135 = vector.broadcast %cst_74 : f32 to vector<2x128xf32>
    %136 = arith.mulf %135, %134 : vector<2x128xf32>
    %137 = math.tanh %136 : vector<2x128xf32>
    %cst_75 = arith.constant 5.000000e-01 : f32
    %138 = vector.broadcast %cst_75 : f32 to vector<2x128xf32>
    %139 = arith.mulf %138, %137 : vector<2x128xf32>
    %cst_76 = arith.constant 5.000000e-01 : f32
    %140 = vector.broadcast %cst_76 : f32 to vector<2x128xf32>
    %141 = arith.addf %139, %140 : vector<2x128xf32>
    %142 = vector.extract_strided_slice %125 {offsets = [0, 256], sizes = [2, 128], strides = [1, 1]} : vector<2x512xf32> to vector<2x128xf32>
    %143 = math.tanh %142 : vector<2x128xf32>
    %144 = vector.extract_strided_slice %125 {offsets = [0, 384], sizes = [2, 128], strides = [1, 1]} : vector<2x512xf32> to vector<2x128xf32>
    %cst_77 = arith.constant 5.000000e-01 : f32
    %145 = vector.broadcast %cst_77 : f32 to vector<2x128xf32>
    %146 = arith.mulf %145, %144 : vector<2x128xf32>
    %147 = math.tanh %146 : vector<2x128xf32>
    %cst_78 = arith.constant 5.000000e-01 : f32
    %148 = vector.broadcast %cst_78 : f32 to vector<2x128xf32>
    %149 = arith.mulf %148, %147 : vector<2x128xf32>
    %cst_79 = arith.constant 5.000000e-01 : f32
    %150 = vector.broadcast %cst_79 : f32 to vector<2x128xf32>
    %151 = arith.addf %149, %150 : vector<2x128xf32>
    %152 = arith.mulf %141, %121 : vector<2x128xf32>
    %153 = arith.mulf %133, %143 : vector<2x128xf32>
    %154 = arith.addf %152, %153 : vector<2x128xf32>
    %155 = math.tanh %154 : vector<2x128xf32>
    %156 = arith.mulf %151, %155 : vector<2x128xf32>
    %c0_80 = arith.constant 0 : index
    %c0_81 = arith.constant 0 : index
    %157 = vector.load %arg8[%c0_80, %c0_81] : memref<2x128xf32, #tpu.memory_space<vmem>>, vector<2x128xf32>
    tpu.vector_store %arg8[%c0_80, %c0_81], %154 {strides = array<i32>} : memref<2x128xf32, #tpu.memory_space<vmem>>, vector<2x128xf32>,
    %c0_82 = arith.constant 0 : index
    %c0_83 = arith.constant 0 : index
    %158 = vector.load %arg7[%c0_82, %c0_83] : memref<2x128xf32, #tpu.memory_space<vmem>>, vector<2x128xf32>
    tpu.vector_store %arg7[%c0_82, %c0_83], %156 {strides = array<i32>} : memref<2x128xf32, #tpu.memory_space<vmem>>, vector<2x128xf32>,
    %c0_84 = arith.constant 0 : index
    %c0_85 = arith.constant 0 : index
    %159 = vector.load %arg7[%c0_84, %c0_85] : memref<2x128xf32, #tpu.memory_space<vmem>>, vector<2x128xf32>
    %c0_86 = arith.constant 0 : index
    %c0_87 = arith.constant 0 : index
    %160 = vector.load %arg8[%c0_86, %c0_87] : memref<2x128xf32, #tpu.memory_space<vmem>>, vector<2x128xf32>
    %c8 = arith.constant 8 : index
    %c0_88 = arith.constant 0 : index
    %161 = vector.load %arg1[%c8, %c0_88] : memref<16x512xf32, #tpu.memory_space<vmem>>, vector<2x512xf32>
    %c0_89 = arith.constant 0 : index
    %c0_90 = arith.constant 0 : index
    %162 = vector.load %arg4[%c0_89, %c0_90] : memref<128x512xf32, #tpu.memory_space<vmem>>, vector<128x512xf32>
    %cst_91 = arith.constant dense<0.000000e+00> : vector<2x512xf32>
    %163 = tpu.matmul %159, %162, %cst_91 {dimension_numbers = #tpu.dot_dimension_numbers<[1], [0], [0], [1], [0, 0, 1, 1], [], []>} : vector<2x128xf32>, vector<128x512xf32>, vector<2x512xf32> -> vector<2x512xf32>
    %164 = arith.addf %161, %163 : vector<2x512xf32>
    %165 = vector.extract_strided_slice %164 {offsets = [0, 0], sizes = [2, 128], strides = [1, 1]} : vector<2x512xf32> to vector<2x128xf32>
    %cst_92 = arith.constant 5.000000e-01 : f32
    %166 = vector.broadcast %cst_92 : f32 to vector<2x128xf32>
    %167 = arith.mulf %166, %165 : vector<2x128xf32>
    %168 = math.tanh %167 : vector<2x128xf32>
    %cst_93 = arith.constant 5.000000e-01 : f32
    %169 = vector.broadcast %cst_93 : f32 to vector<2x128xf32>
    %170 = arith.mulf %169, %168 : vector<2x128xf32>
    %cst_94 = arith.constant 5.000000e-01 : f32
    %171 = vector.broadcast %cst_94 : f32 to vector<2x128xf32>
    %172 = arith.addf %170, %171 : vector<2x128xf32>
    %173 = vector.extract_strided_slice %164 {offsets = [0, 128], sizes = [2, 128], strides = [1, 1]} : vector<2x512xf32> to vector<2x128xf32>
    %cst_95 = arith.constant 5.000000e-01 : f32
    %174 = vector.broadcast %cst_95 : f32 to vector<2x128xf32>
    %175 = arith.mulf %174, %173 : vector<2x128xf32>
    %176 = math.tanh %175 : vector<2x128xf32>
    %cst_96 = arith.constant 5.000000e-01 : f32
    %177 = vector.broadcast %cst_96 : f32 to vector<2x128xf32>
    %178 = arith.mulf %177, %176 : vector<2x128xf32>
    %cst_97 = arith.constant 5.000000e-01 : f32
    %179 = vector.broadcast %cst_97 : f32 to vector<2x128xf32>
    %180 = arith.addf %178, %179 : vector<2x128xf32>
    %181 = vector.extract_strided_slice %164 {offsets = [0, 256], sizes = [2, 128], strides = [1, 1]} : vector<2x512xf32> to vector<2x128xf32>
    %182 = math.tanh %181 : vector<2x128xf32>
    %183 = vector.extract_strided_slice %164 {offsets = [0, 384], sizes = [2, 128], strides = [1, 1]} : vector<2x512xf32> to vector<2x128xf32>
    %cst_98 = arith.constant 5.000000e-01 : f32
    %184 = vector.broadcast %cst_98 : f32 to vector<2x128xf32>
    %185 = arith.mulf %184, %183 : vector<2x128xf32>
    %186 = math.tanh %185 : vector<2x128xf32>
    %cst_99 = arith.constant 5.000000e-01 : f32
    %187 = vector.broadcast %cst_99 : f32 to vector<2x128xf32>
    %188 = arith.mulf %187, %186 : vector<2x128xf32>
    %cst_100 = arith.constant 5.000000e-01 : f32
    %189 = vector.broadcast %cst_100 : f32 to vector<2x128xf32>
    %190 = arith.addf %188, %189 : vector<2x128xf32>
    %191 = arith.mulf %180, %160 : vector<2x128xf32>
    %192 = arith.mulf %172, %182 : vector<2x128xf32>
    %193 = arith.addf %191, %192 : vector<2x128xf32>
    %194 = math.tanh %193 : vector<2x128xf32>
    %195 = arith.mulf %190, %194 : vector<2x128xf32>
    %c0_101 = arith.constant 0 : index
    %c0_102 = arith.constant 0 : index
    %196 = vector.load %arg8[%c0_101, %c0_102] : memref<2x128xf32, #tpu.memory_space<vmem>>, vector<2x128xf32>
    tpu.vector_store %arg8[%c0_101, %c0_102], %193 {strides = array<i32>} : memref<2x128xf32, #tpu.memory_space<vmem>>, vector<2x128xf32>,
    %c0_103 = arith.constant 0 : index
    %c0_104 = arith.constant 0 : index
    %197 = vector.load %arg7[%c0_103, %c0_104] : memref<2x128xf32, #tpu.memory_space<vmem>>, vector<2x128xf32>
    tpu.vector_store %arg7[%c0_103, %c0_104], %195 {strides = array<i32>} : memref<2x128xf32, #tpu.memory_space<vmem>>, vector<2x128xf32>,
    %c0_105 = arith.constant 0 : index
    %c0_106 = arith.constant 0 : index
    %198 = vector.load %arg7[%c0_105, %c0_106] : memref<2x128xf32, #tpu.memory_space<vmem>>, vector<2x128xf32>
    %c0_107 = arith.constant 0 : index
    %c0_108 = arith.constant 0 : index
    %199 = vector.load %arg8[%c0_107, %c0_108] : memref<2x128xf32, #tpu.memory_space<vmem>>, vector<2x128xf32>
    %c10 = arith.constant 10 : index
    %c0_109 = arith.constant 0 : index
    %200 = vector.load %arg1[%c10, %c0_109] : memref<16x512xf32, #tpu.memory_space<vmem>>, vector<2x512xf32>
    %c0_110 = arith.constant 0 : index
    %c0_111 = arith.constant 0 : index
    %201 = vector.load %arg4[%c0_110, %c0_111] : memref<128x512xf32, #tpu.memory_space<vmem>>, vector<128x512xf32>
    %cst_112 = arith.constant dense<0.000000e+00> : vector<2x512xf32>
    %202 = tpu.matmul %198, %201, %cst_112 {dimension_numbers = #tpu.dot_dimension_numbers<[1], [0], [0], [1], [0, 0, 1, 1], [], []>} : vector<2x128xf32>, vector<128x512xf32>, vector<2x512xf32> -> vector<2x512xf32>
    %203 = arith.addf %200, %202 : vector<2x512xf32>
    %204 = vector.extract_strided_slice %203 {offsets = [0, 0], sizes = [2, 128], strides = [1, 1]} : vector<2x512xf32> to vector<2x128xf32>
    %cst_113 = arith.constant 5.000000e-01 : f32
    %205 = vector.broadcast %cst_113 : f32 to vector<2x128xf32>
    %206 = arith.mulf %205, %204 : vector<2x128xf32>
    %207 = math.tanh %206 : vector<2x128xf32>
    %cst_114 = arith.constant 5.000000e-01 : f32
    %208 = vector.broadcast %cst_114 : f32 to vector<2x128xf32>
    %209 = arith.mulf %208, %207 : vector<2x128xf32>
    %cst_115 = arith.constant 5.000000e-01 : f32
    %210 = vector.broadcast %cst_115 : f32 to vector<2x128xf32>
    %211 = arith.addf %209, %210 : vector<2x128xf32>
    %212 = vector.extract_strided_slice %203 {offsets = [0, 128], sizes = [2, 128], strides = [1, 1]} : vector<2x512xf32> to vector<2x128xf32>
    %cst_116 = arith.constant 5.000000e-01 : f32
    %213 = vector.broadcast %cst_116 : f32 to vector<2x128xf32>
    %214 = arith.mulf %213, %212 : vector<2x128xf32>
    %215 = math.tanh %214 : vector<2x128xf32>
    %cst_117 = arith.constant 5.000000e-01 : f32
    %216 = vector.broadcast %cst_117 : f32 to vector<2x128xf32>
    %217 = arith.mulf %216, %215 : vector<2x128xf32>
    %cst_118 = arith.constant 5.000000e-01 : f32
    %218 = vector.broadcast %cst_118 : f32 to vector<2x128xf32>
    %219 = arith.addf %217, %218 : vector<2x128xf32>
    %220 = vector.extract_strided_slice %203 {offsets = [0, 256], sizes = [2, 128], strides = [1, 1]} : vector<2x512xf32> to vector<2x128xf32>
    %221 = math.tanh %220 : vector<2x128xf32>
    %222 = vector.extract_strided_slice %203 {offsets = [0, 384], sizes = [2, 128], strides = [1, 1]} : vector<2x512xf32> to vector<2x128xf32>
    %cst_119 = arith.constant 5.000000e-01 : f32
    %223 = vector.broadcast %cst_119 : f32 to vector<2x128xf32>
    %224 = arith.mulf %223, %222 : vector<2x128xf32>
    %225 = math.tanh %224 : vector<2x128xf32>
    %cst_120 = arith.constant 5.000000e-01 : f32
    %226 = vector.broadcast %cst_120 : f32 to vector<2x128xf32>
    %227 = arith.mulf %226, %225 : vector<2x128xf32>
    %cst_121 = arith.constant 5.000000e-01 : f32
    %228 = vector.broadcast %cst_121 : f32 to vector<2x128xf32>
    %229 = arith.addf %227, %228 : vector<2x128xf32>
    %230 = arith.mulf %219, %199 : vector<2x128xf32>
    %231 = arith.mulf %211, %221 : vector<2x128xf32>
    %232 = arith.addf %230, %231 : vector<2x128xf32>
    %233 = math.tanh %232 : vector<2x128xf32>
    %234 = arith.mulf %229, %233 : vector<2x128xf32>
    %c0_122 = arith.constant 0 : index
    %c0_123 = arith.constant 0 : index
    %235 = vector.load %arg8[%c0_122, %c0_123] : memref<2x128xf32, #tpu.memory_space<vmem>>, vector<2x128xf32>
    tpu.vector_store %arg8[%c0_122, %c0_123], %232 {strides = array<i32>} : memref<2x128xf32, #tpu.memory_space<vmem>>, vector<2x128xf32>,
    %c0_124 = arith.constant 0 : index
    %c0_125 = arith.constant 0 : index
    %236 = vector.load %arg7[%c0_124, %c0_125] : memref<2x128xf32, #tpu.memory_space<vmem>>, vector<2x128xf32>
    tpu.vector_store %arg7[%c0_124, %c0_125], %234 {strides = array<i32>} : memref<2x128xf32, #tpu.memory_space<vmem>>, vector<2x128xf32>,
    %c0_126 = arith.constant 0 : index
    %c0_127 = arith.constant 0 : index
    %237 = vector.load %arg7[%c0_126, %c0_127] : memref<2x128xf32, #tpu.memory_space<vmem>>, vector<2x128xf32>
    %c0_128 = arith.constant 0 : index
    %c0_129 = arith.constant 0 : index
    %238 = vector.load %arg8[%c0_128, %c0_129] : memref<2x128xf32, #tpu.memory_space<vmem>>, vector<2x128xf32>
    %c12 = arith.constant 12 : index
    %c0_130 = arith.constant 0 : index
    %239 = vector.load %arg1[%c12, %c0_130] : memref<16x512xf32, #tpu.memory_space<vmem>>, vector<2x512xf32>
    %c0_131 = arith.constant 0 : index
    %c0_132 = arith.constant 0 : index
    %240 = vector.load %arg4[%c0_131, %c0_132] : memref<128x512xf32, #tpu.memory_space<vmem>>, vector<128x512xf32>
    %cst_133 = arith.constant dense<0.000000e+00> : vector<2x512xf32>
    %241 = tpu.matmul %237, %240, %cst_133 {dimension_numbers = #tpu.dot_dimension_numbers<[1], [0], [0], [1], [0, 0, 1, 1], [], []>} : vector<2x128xf32>, vector<128x512xf32>, vector<2x512xf32> -> vector<2x512xf32>
    %242 = arith.addf %239, %241 : vector<2x512xf32>
    %243 = vector.extract_strided_slice %242 {offsets = [0, 0], sizes = [2, 128], strides = [1, 1]} : vector<2x512xf32> to vector<2x128xf32>
    %cst_134 = arith.constant 5.000000e-01 : f32
    %244 = vector.broadcast %cst_134 : f32 to vector<2x128xf32>
    %245 = arith.mulf %244, %243 : vector<2x128xf32>
    %246 = math.tanh %245 : vector<2x128xf32>
    %cst_135 = arith.constant 5.000000e-01 : f32
    %247 = vector.broadcast %cst_135 : f32 to vector<2x128xf32>
    %248 = arith.mulf %247, %246 : vector<2x128xf32>
    %cst_136 = arith.constant 5.000000e-01 : f32
    %249 = vector.broadcast %cst_136 : f32 to vector<2x128xf32>
    %250 = arith.addf %248, %249 : vector<2x128xf32>
    %251 = vector.extract_strided_slice %242 {offsets = [0, 128], sizes = [2, 128], strides = [1, 1]} : vector<2x512xf32> to vector<2x128xf32>
    %cst_137 = arith.constant 5.000000e-01 : f32
    %252 = vector.broadcast %cst_137 : f32 to vector<2x128xf32>
    %253 = arith.mulf %252, %251 : vector<2x128xf32>
    %254 = math.tanh %253 : vector<2x128xf32>
    %cst_138 = arith.constant 5.000000e-01 : f32
    %255 = vector.broadcast %cst_138 : f32 to vector<2x128xf32>
    %256 = arith.mulf %255, %254 : vector<2x128xf32>
    %cst_139 = arith.constant 5.000000e-01 : f32
    %257 = vector.broadcast %cst_139 : f32 to vector<2x128xf32>
    %258 = arith.addf %256, %257 : vector<2x128xf32>
    %259 = vector.extract_strided_slice %242 {offsets = [0, 256], sizes = [2, 128], strides = [1, 1]} : vector<2x512xf32> to vector<2x128xf32>
    %260 = math.tanh %259 : vector<2x128xf32>
    %261 = vector.extract_strided_slice %242 {offsets = [0, 384], sizes = [2, 128], strides = [1, 1]} : vector<2x512xf32> to vector<2x128xf32>
    %cst_140 = arith.constant 5.000000e-01 : f32
    %262 = vector.broadcast %cst_140 : f32 to vector<2x128xf32>
    %263 = arith.mulf %262, %261 : vector<2x128xf32>
    %264 = math.tanh %263 : vector<2x128xf32>
    %cst_141 = arith.constant 5.000000e-01 : f32
    %265 = vector.broadcast %cst_141 : f32 to vector<2x128xf32>
    %266 = arith.mulf %265, %264 : vector<2x128xf32>
    %cst_142 = arith.constant 5.000000e-01 : f32
    %267 = vector.broadcast %cst_142 : f32 to vector<2x128xf32>
    %268 = arith.addf %266, %267 : vector<2x128xf32>
    %269 = arith.mulf %258, %238 : vector<2x128xf32>
    %270 = arith.mulf %250, %260 : vector<2x128xf32>
    %271 = arith.addf %269, %270 : vector<2x128xf32>
    %272 = math.tanh %271 : vector<2x128xf32>
    %273 = arith.mulf %268, %272 : vector<2x128xf32>
    %c0_143 = arith.constant 0 : index
    %c0_144 = arith.constant 0 : index
    %274 = vector.load %arg8[%c0_143, %c0_144] : memref<2x128xf32, #tpu.memory_space<vmem>>, vector<2x128xf32>
    tpu.vector_store %arg8[%c0_143, %c0_144], %271 {strides = array<i32>} : memref<2x128xf32, #tpu.memory_space<vmem>>, vector<2x128xf32>,
    %c0_145 = arith.constant 0 : index
    %c0_146 = arith.constant 0 : index
    %275 = vector.load %arg7[%c0_145, %c0_146] : memref<2x128xf32, #tpu.memory_space<vmem>>, vector<2x128xf32>
    tpu.vector_store %arg7[%c0_145, %c0_146], %273 {strides = array<i32>} : memref<2x128xf32, #tpu.memory_space<vmem>>, vector<2x128xf32>,
    %c0_147 = arith.constant 0 : index
    %c0_148 = arith.constant 0 : index
    %276 = vector.load %arg7[%c0_147, %c0_148] : memref<2x128xf32, #tpu.memory_space<vmem>>, vector<2x128xf32>
    %c0_149 = arith.constant 0 : index
    %c0_150 = arith.constant 0 : index
    %277 = vector.load %arg8[%c0_149, %c0_150] : memref<2x128xf32, #tpu.memory_space<vmem>>, vector<2x128xf32>
    %c14 = arith.constant 14 : index
    %c0_151 = arith.constant 0 : index
    %278 = vector.load %arg1[%c14, %c0_151] : memref<16x512xf32, #tpu.memory_space<vmem>>, vector<2x512xf32>
    %c0_152 = arith.constant 0 : index
    %c0_153 = arith.constant 0 : index
    %279 = vector.load %arg4[%c0_152, %c0_153] : memref<128x512xf32, #tpu.memory_space<vmem>>, vector<128x512xf32>
    %cst_154 = arith.constant dense<0.000000e+00> : vector<2x512xf32>
    %280 = tpu.matmul %276, %279, %cst_154 {dimension_numbers = #tpu.dot_dimension_numbers<[1], [0], [0], [1], [0, 0, 1, 1], [], []>} : vector<2x128xf32>, vector<128x512xf32>, vector<2x512xf32> -> vector<2x512xf32>
    %281 = arith.addf %278, %280 : vector<2x512xf32>
    %282 = vector.extract_strided_slice %281 {offsets = [0, 0], sizes = [2, 128], strides = [1, 1]} : vector<2x512xf32> to vector<2x128xf32>
    %cst_155 = arith.constant 5.000000e-01 : f32
    %283 = vector.broadcast %cst_155 : f32 to vector<2x128xf32>
    %284 = arith.mulf %283, %282 : vector<2x128xf32>
    %285 = math.tanh %284 : vector<2x128xf32>
    %cst_156 = arith.constant 5.000000e-01 : f32
    %286 = vector.broadcast %cst_156 : f32 to vector<2x128xf32>
    %287 = arith.mulf %286, %285 : vector<2x128xf32>
    %cst_157 = arith.constant 5.000000e-01 : f32
    %288 = vector.broadcast %cst_157 : f32 to vector<2x128xf32>
    %289 = arith.addf %287, %288 : vector<2x128xf32>
    %290 = vector.extract_strided_slice %281 {offsets = [0, 128], sizes = [2, 128], strides = [1, 1]} : vector<2x512xf32> to vector<2x128xf32>
    %cst_158 = arith.constant 5.000000e-01 : f32
    %291 = vector.broadcast %cst_158 : f32 to vector<2x128xf32>
    %292 = arith.mulf %291, %290 : vector<2x128xf32>
    %293 = math.tanh %292 : vector<2x128xf32>
    %cst_159 = arith.constant 5.000000e-01 : f32
    %294 = vector.broadcast %cst_159 : f32 to vector<2x128xf32>
    %295 = arith.mulf %294, %293 : vector<2x128xf32>
    %cst_160 = arith.constant 5.000000e-01 : f32
    %296 = vector.broadcast %cst_160 : f32 to vector<2x128xf32>
    %297 = arith.addf %295, %296 : vector<2x128xf32>
    %298 = vector.extract_strided_slice %281 {offsets = [0, 256], sizes = [2, 128], strides = [1, 1]} : vector<2x512xf32> to vector<2x128xf32>
    %299 = math.tanh %298 : vector<2x128xf32>
    %300 = vector.extract_strided_slice %281 {offsets = [0, 384], sizes = [2, 128], strides = [1, 1]} : vector<2x512xf32> to vector<2x128xf32>
    %cst_161 = arith.constant 5.000000e-01 : f32
    %301 = vector.broadcast %cst_161 : f32 to vector<2x128xf32>
    %302 = arith.mulf %301, %300 : vector<2x128xf32>
    %303 = math.tanh %302 : vector<2x128xf32>
    %cst_162 = arith.constant 5.000000e-01 : f32
    %304 = vector.broadcast %cst_162 : f32 to vector<2x128xf32>
    %305 = arith.mulf %304, %303 : vector<2x128xf32>
    %cst_163 = arith.constant 5.000000e-01 : f32
    %306 = vector.broadcast %cst_163 : f32 to vector<2x128xf32>
    %307 = arith.addf %305, %306 : vector<2x128xf32>
    %308 = arith.mulf %297, %277 : vector<2x128xf32>
    %309 = arith.mulf %289, %299 : vector<2x128xf32>
    %310 = arith.addf %308, %309 : vector<2x128xf32>
    %311 = math.tanh %310 : vector<2x128xf32>
    %312 = arith.mulf %307, %311 : vector<2x128xf32>
    %c0_164 = arith.constant 0 : index
    %c0_165 = arith.constant 0 : index
    %313 = vector.load %arg8[%c0_164, %c0_165] : memref<2x128xf32, #tpu.memory_space<vmem>>, vector<2x128xf32>
    tpu.vector_store %arg8[%c0_164, %c0_165], %310 {strides = array<i32>} : memref<2x128xf32, #tpu.memory_space<vmem>>, vector<2x128xf32>,
    %c0_166 = arith.constant 0 : index
    %c0_167 = arith.constant 0 : index
    %314 = vector.load %arg7[%c0_166, %c0_167] : memref<2x128xf32, #tpu.memory_space<vmem>>, vector<2x128xf32>
    tpu.vector_store %arg7[%c0_166, %c0_167], %312 {strides = array<i32>} : memref<2x128xf32, #tpu.memory_space<vmem>>, vector<2x128xf32>,
    %c0_i32_168 = arith.constant 0 : i32
    %315 = arith.cmpi eq, %arg0, %c0_i32_168 : i32
    %316 = arith.extui %315 : i1 to i32
    %c0_i32_169 = arith.constant 0 : i32
    %317 = arith.cmpi ne, %316, %c0_i32_169 : i32
    scf.if %317 {
      %c0_170 = arith.constant 0 : index
      %c0_171 = arith.constant 0 : index
      %318 = vector.load %arg7[%c0_170, %c0_171] : memref<2x128xf32, #tpu.memory_space<vmem>>, vector<2x128xf32>
      %c0_172 = arith.constant 0 : index
      %c0_173 = arith.constant 0 : index
      %319 = vector.load %arg5[%c0_172, %c0_173] : memref<1x128xf32, #tpu.memory_space<vmem>>, vector<1x128xf32>
      %320 = vector.broadcast %319 : vector<1x128xf32> to vector<2x128xf32>
      %321 = arith.mulf %318, %320 : vector<2x128xf32>
      %cst_174 = arith.constant dense<0.000000e+00> : vector<2xf32>
      %322 = vector.multi_reduction <add>, %321, %cst_174 [1] : vector<2x128xf32> to vector<2xf32>
      %323 = vector.shape_cast %322 : vector<2xf32> to vector<2x1xf32>
      %c0_175 = arith.constant 0 : index
      %324 = memref.load %arg6[%c0_175] : memref<1xf32, #tpu.memory_space<smem>>
      %325 = vector.broadcast %324 : f32 to vector<2x1xf32>
      %326 = arith.addf %323, %325 : vector<2x1xf32>
      %c0_176 = arith.constant 0 : index
      %c0_177 = arith.constant 0 : index
      %327 = vector.load %arg9[%c0_176, %c0_177] : memref<2x1xf32, #tpu.memory_space<vmem>>, vector<2x1xf32>
      tpu.vector_store %arg9[%c0_176, %c0_177], %326 {strides = array<i32>} : memref<2x1xf32, #tpu.memory_space<vmem>>, vector<2x1xf32>,
    } else {
    }
    return
  }
  func.func @transform_0(%arg0: i32) -> (i32, i32) {
    %c0_i32 = arith.constant 0 : i32
    %c0_i32_0 = arith.constant 0 : i32
    return %arg0, %c0_i32 : i32, i32
  }
  func.func @transform_1(%arg0: i32) -> (i32, i32) {
    %c0_i32 = arith.constant 0 : i32
    %c0_i32_0 = arith.constant 0 : i32
    %c0_i32_1 = arith.constant 0 : i32
    return %c0_i32, %c0_i32_0 : i32, i32
  }
  func.func @transform_2(%arg0: i32) -> (i32, i32) {
    %c0_i32 = arith.constant 0 : i32
    %c0_i32_0 = arith.constant 0 : i32
    %c0_i32_1 = arith.constant 0 : i32
    return %c0_i32, %c0_i32_0 : i32, i32
  }
  func.func @transform_3(%arg0: i32) -> (i32, i32) {
    %c0_i32 = arith.constant 0 : i32
    %c0_i32_0 = arith.constant 0 : i32
    %c0_i32_1 = arith.constant 0 : i32
    return %c0_i32, %c0_i32_0 : i32, i32
  }
  func.func @transform_4(%arg0: i32) -> (i32, i32) {
    %c0_i32 = arith.constant 0 : i32
    %c0_i32_0 = arith.constant 0 : i32
    %c0_i32_1 = arith.constant 0 : i32
    return %c0_i32, %c0_i32_0 : i32, i32
  }
  func.func @transform_5(%arg0: i32) -> i32 {
    %c0_i32 = arith.constant 0 : i32
    %c0_i32_0 = arith.constant 0 : i32
    return %c0_i32 : i32
  }
  func.func @transform_6(%arg0: i32) -> (i32, i32) {
    %c0_i32 = arith.constant 0 : i32
    %c0_i32_0 = arith.constant 0 : i32
    %c0_i32_1 = arith.constant 0 : i32
    return %c0_i32, %c0_i32_0 : i32, i32
  }
  func.func @transform_7(%arg0: i32) -> (i32, i32) {
    %c0_i32 = arith.constant 0 : i32
    %c0_i32_0 = arith.constant 0 : i32
    %c0_i32_1 = arith.constant 0 : i32
    return %c0_i32, %c0_i32_0 : i32, i32
  }
  func.func @transform_8(%arg0: i32) -> (i32, i32) {
    %c0_i32 = arith.constant 0 : i32
    %c0_i32_0 = arith.constant 0 : i32
    %c0_i32_1 = arith.constant 0 : i32
    return %c0_i32, %c0_i32_0 : i32, i32
  }
}

</mosaic_0001>

<llo_original>
// kernel: lstm_module_forward.3
$region0: #{lstm_module_forward.3}
  #allocation0 [shape = 'u32[]', space=smem, size = 0x4, offset = 0x4, fixed_abs, tag = 'smem constant byte address 0x4 - core index']
  #allocation1 [shape = 'u32[72,128]{1,0:T(1,128)}', space=vmem, size = 0x9000, scoped, tag = 'internal scratch']
  #allocation2 [shape = 'f32[16,512]{1,0:T(8,128)}', space=vmem, size = 0x8000, scoped, tag = 'scratch operand']
  %s0 = inlined_call_operand.vmem [shape: f32[16,16], index: 0, kind: input, shape index: {}]
  %s1 = inlined_call_operand.vmem [shape: f32[16,512], index: 1, kind: input, shape index: {}]
  %s2 = inlined_call_operand.vmem [shape: f32[1,512], index: 2, kind: input, shape index: {}]
  %s3 = inlined_call_operand.vmem [shape: f32[16,512], index: 3, kind: output, shape index: {}]
  %s4 = sld [smem:[#allocation0]]
  $region30: #{lstm_module_forward.3} parent=0
    _
  %s6 = ssub.s32 1, %s4
  %s7 = scalar_select 0, %s6, %s4
  // Predicated region
  $region2: #{lstm_module_forward.3} parent=0 // pred_check
    _
  $region3: #{lstm_module_forward.3} parent=0 // pred_check_branch
    %9 = sbr.rel (0) target = $region5
  $region4: #{lstm_module_forward.3} parent=0 // pred_region
    _
  $region5: #{lstm_module_forward.3} parent=0 // pred_fallthru
    _
  // Predicated region
  $region6: #{lstm_module_forward.3} parent=0 // pred_check
    _
  $region7: #{lstm_module_forward.3} parent=0 // pred_check_branch
    %11 = sbr.rel (0) target = $region9
  $region8: #{lstm_module_forward.3} parent=0 // pred_region
    _
  $region9: #{lstm_module_forward.3} parent=0 // pred_fallthru
    _
  // Predicated region
  $region10: #{lstm_module_forward.3} parent=0 // pred_check
    _
  $region11: #{lstm_module_forward.3} parent=0 // pred_check_branch
    %13 = sbr.rel (0) target = $region13
  $region12: #{lstm_module_forward.3} parent=0 // pred_region
    _
  $region13: #{lstm_module_forward.3} parent=0 // pred_fallthru
    _
  %p14 = scmp.eq.s32.totalorder 0, 0
  // Predicated region
  $region14: #{lstm_module_forward.3} parent=0 // pred_check
    %p15 = pneg %p14
  $region15: #{lstm_module_forward.3} parent=0 // pred_check_branch
    %17 = sbr.rel (%p15) target = $region17
  $region16: #{lstm_module_forward.3} parent=0 // pred_region
    %18 = vst [vmem:[#allocation2] sm:$0xff] 0.0
    %19 = vst [vmem:[#allocation2 + $0x8] sm:$0xff] 0.0
    %20 = vst [vmem:[#allocation2 + $0x10] sm:$0xff] 0.0
    %21 = vst [vmem:[#allocation2 + $0x18] sm:$0xff] 0.0
    %22 = vst [vmem:[#allocation2 + $0x20] sm:$0xff] 0.0
    %23 = vst [vmem:[#allocation2 + $0x28] sm:$0xff] 0.0
    %24 = vst [vmem:[#allocation2 + $0x30] sm:$0xff] 0.0
    %25 = vst [vmem:[#allocation2 + $0x38] sm:$0xff] 0.0
  $region17: #{lstm_module_forward.3} parent=0 // pred_fallthru
    _
  %v26 = vld [vmem:[#allocation2] sm:$0xff]
  %v27 = vld [vmem:[#allocation2 + $0x8] sm:$0xff]
  %v28 = vld [vmem:[#allocation2 + $0x10] sm:$0xff]
  %v29 = vld [vmem:[#allocation2 + $0x18] sm:$0xff]
  %v30 = vld [vmem:[#allocation2 + $0x20] sm:$0xff]
  %v31 = vld [vmem:[#allocation2 + $0x28] sm:$0xff]
  %v32 = vld [vmem:[#allocation2 + $0x30] sm:$0xff]
  %v33 = vld [vmem:[#allocation2 + $0x38] sm:$0xff]
  %v34 = vld [vmem:[%s0] sm:$0xff]
  %v35 = vld [vmem:[%s0 + $0x8] sm:$0xff]
  %v36 = vld [vmem:[%s1] sm:$0xff]
  %v37 = vld [vmem:[%s1 + $0x8] sm:$0xff]
  %v38 = vld [vmem:[%s1 + $0x10] sm:$0xff]
  %v39 = vld [vmem:[%s1 + $0x18] sm:$0xff]
  %v40 = vld [vmem:[%s1 + $0x20] sm:$0xff]
  %v41 = vld [vmem:[%s1 + $0x28] sm:$0xff]
  %v42 = vld [vmem:[%s1 + $0x30] sm:$0xff]
  %v43 = vld [vmem:[%s1 + $0x38] sm:$0xff]
  %vm44 = vcmask 130048
  %v46 = vsel %vm44, %v34, 0
  %v49 = vsel %vm44, %v35, 0
  %51 = vmatpush.msra.mxu0 0.0
  %52 = vmatpush.msra.mxu0 0.0
  %53 = vmatpush.msra.mxu0 0.0
  %54 = vmatpush.msra.mxu0 0.0
  %55 = vmatpush.msra.mxu0 0.0
  %56 = vmatpush.msra.mxu0 0.0
  %57 = vmatpush.msra.mxu0 0.0
  %58 = vmatpush.msra.mxu0 0.0
  %59 = vmatpush.msra.mxu0 0.0
  %60 = vmatpush.msra.mxu0 0.0
  %61 = vmatpush.msra.mxu0 0.0
  %62 = vmatpush.msra.mxu0 0.0
  %63 = vmatpush.msra.mxu0 0.0
  %64 = vmatpush.msra.mxu0 0.0
  %65 = vmatpush.msra.mxu0 %v40
  %66 = vmatpush.msra.mxu0 %v36
  %67 = vmatmul.f32.gmra.mxu0 %v46
  %v68 = vpop.f32.mrf.mxu0
  %v69 = vadd.f32 0.0, %v68
  %70 = vmatmul.f32.gmra.mxu0 %v49
  %v71 = vpop.f32.mrf.mxu0
  %v72 = vadd.f32 0.0, %v71
  %73 = vdwg.mxu0
  %74 = vmatpush.msra.mxu0 0.0
  %75 = vmatpush.msra.mxu0 0.0
  %76 = vmatpush.msra.mxu0 0.0
  %77 = vmatpush.msra.mxu0 0.0
  %78 = vmatpush.msra.mxu0 0.0
  %79 = vmatpush.msra.mxu0 0.0
  %80 = vmatpush.msra.mxu0 0.0
  %81 = vmatpush.msra.mxu0 0.0
  %82 = vmatpush.msra.mxu0 0.0
  %83 = vmatpush.msra.mxu0 0.0
  %84 = vmatpush.msra.mxu0 0.0
  %85 = vmatpush.msra.mxu0 0.0
  %86 = vmatpush.msra.mxu0 0.0
  %87 = vmatpush.msra.mxu0 0.0
  %88 = vmatpush.msra.mxu0 %v41
  %89 = vmatpush.msra.mxu0 %v37
  %90 = vmatmul.f32.gmra.mxu0 %v46
  %v91 = vpop.f32.mrf.mxu0
  %v92 = vadd.f32 0.0, %v91
  %93 = vmatmul.f32.gmra.mxu0 %v49
  %v94 = vpop.f32.mrf.mxu0
  %v95 = vadd.f32 0.0, %v94
  %96 = vdwg.mxu0
  %97 = vmatpush.msra.mxu0 0.0
  %98 = vmatpush.msra.mxu0 0.0
  %99 = vmatpush.msra.mxu0 0.0
  %100 = vmatpush.msra.mxu0 0.0
  %101 = vmatpush.msra.mxu0 0.0
  %102 = vmatpush.msra.mxu0 0.0
  %103 = vmatpush.msra.mxu0 0.0
  %104 = vmatpush.msra.mxu0 0.0
  %105 = vmatpush.msra.mxu0 0.0
  %106 = vmatpush.msra.mxu0 0.0
  %107 = vmatpush.msra.mxu0 0.0
  %108 = vmatpush.msra.mxu0 0.0
  %109 = vmatpush.msra.mxu0 0.0
  %110 = vmatpush.msra.mxu0 0.0
  %111 = vmatpush.msra.mxu0 %v42
  %112 = vmatpush.msra.mxu0 %v38
  %113 = vmatmul.f32.gmra.mxu0 %v46
  %v114 = vpop.f32.mrf.mxu0
  %v115 = vadd.f32 0.0, %v114
  %116 = vmatmul.f32.gmra.mxu0 %v49
  %v117 = vpop.f32.mrf.mxu0
  %v118 = vadd.f32 0.0, %v117
  %119 = vdwg.mxu0
  %120 = vmatpush.msra.mxu0 0.0
  %121 = vmatpush.msra.mxu0 0.0
  %122 = vmatpush.msra.mxu0 0.0
  %123 = vmatpush.msra.mxu0 0.0
  %124 = vmatpush.msra.mxu0 0.0
  %125 = vmatpush.msra.mxu0 0.0
  %126 = vmatpush.msra.mxu0 0.0
  %127 = vmatpush.msra.mxu0 0.0
  %128 = vmatpush.msra.mxu0 0.0
  %129 = vmatpush.msra.mxu0 0.0
  %130 = vmatpush.msra.mxu0 0.0
  %131 = vmatpush.msra.mxu0 0.0
  %132 = vmatpush.msra.mxu0 0.0
  %133 = vmatpush.msra.mxu0 0.0
  %134 = vmatpush.msra.mxu0 %v43
  %135 = vmatpush.msra.mxu0 %v39
  %136 = vmatmul.f32.gmra.mxu0 %v46
  %v137 = vpop.f32.mrf.mxu0
  %v138 = vadd.f32 0.0, %v137
  %139 = vmatmul.f32.gmra.mxu0 %v49
  %v140 = vpop.f32.mrf.mxu0
  %v141 = vadd.f32 0.0, %v140
  %142 = vdwg.mxu0
  %v143 = vadd.f32 %v26, %v69
  %v144 = vadd.f32 %v27, %v92
  %v145 = vadd.f32 %v28, %v115
  %v146 = vadd.f32 %v29, %v138
  %v147 = vadd.f32 %v30, %v72
  %v148 = vadd.f32 %v31, %v95
  %v149 = vadd.f32 %v32, %v118
  %v150 = vadd.f32 %v33, %v141
  %151 = vst [vmem:[#allocation2] sm:$0xff] %v143
  %152 = vst [vmem:[#allocation2 + $0x8] sm:$0xff] %v144
  %153 = vst [vmem:[#allocation2 + $0x10] sm:$0xff] %v145
  %154 = vst [vmem:[#allocation2 + $0x18] sm:$0xff] %v146
  %155 = vst [vmem:[#allocation2 + $0x20] sm:$0xff] %v147
  %156 = vst [vmem:[#allocation2 + $0x28] sm:$0xff] %v148
  %157 = vst [vmem:[#allocation2 + $0x30] sm:$0xff] %v149
  %158 = vst [vmem:[#allocation2 + $0x38] sm:$0xff] %v150
  // Predicated region
  $region18: #{lstm_module_forward.3} parent=0 // pred_check
    %p159 = pneg %p14
  $region19: #{lstm_module_forward.3} parent=0 // pred_check_branch
    %161 = sbr.rel (%p159) target = $region21
  $region20: #{lstm_module_forward.3} parent=0 // pred_region
    %v162 = vld [vmem:[#allocation2] sm:$0xff]
    %v163 = vld [vmem:[#allocation2 + $0x8] sm:$0xff]
    %v164 = vld [vmem:[#allocation2 + $0x10] sm:$0xff]
    %v165 = vld [vmem:[#allocation2 + $0x18] sm:$0xff]
    %v166 = vld [vmem:[#allocation2 + $0x20] sm:$0xff]
    %v167 = vld [vmem:[#allocation2 + $0x28] sm:$0xff]
    %v168 = vld [vmem:[#allocation2 + $0x30] sm:$0xff]
    %v169 = vld [vmem:[#allocation2 + $0x38] sm:$0xff]
    %v170 = vld [vmem:[%s2] sm:$0xf]
    %v172 = vperm.slane %v170, 0
    %v173 = vperm.slane %v170, 1
    %v174 = vperm.slane %v170, 2
    %v175 = vperm.slane %v170, 3
    %v180 = vadd.f32 %v162, %v172
    %v181 = vadd.f32 %v163, %v173
    %v182 = vadd.f32 %v164, %v174
    %v183 = vadd.f32 %v165, %v175
    %v184 = vadd.f32 %v166, %v172
    %v185 = vadd.f32 %v167, %v173
    %v186 = vadd.f32 %v168, %v174
    %v187 = vadd.f32 %v169, %v175
    %188 = vst [vmem:[%s3] sm:$0xff] %v180
    %189 = vst [vmem:[%s3 + $0x8] sm:$0xff] %v181
    %190 = vst [vmem:[%s3 + $0x10] sm:$0xff] %v182
    %191 = vst [vmem:[%s3 + $0x18] sm:$0xff] %v183
    %192 = vst [vmem:[%s3 + $0x20] sm:$0xff] %v184
    %193 = vst [vmem:[%s3 + $0x28] sm:$0xff] %v185
    %194 = vst [vmem:[%s3 + $0x30] sm:$0xff] %v186
    %195 = vst [vmem:[%s3 + $0x38] sm:$0xff] %v187
  $region21: #{lstm_module_forward.3} parent=0 // pred_fallthru
    _
  // Predicated region
  $region22: #{lstm_module_forward.3} parent=0 // pred_check
    _
  $region23: #{lstm_module_forward.3} parent=0 // pred_check_branch
    %197 = sbr.rel (0) target = $region25
  $region24: #{lstm_module_forward.3} parent=0 // pred_region
    _
  $region25: #{lstm_module_forward.3} parent=0 // pred_fallthru
    _
  // Predicated region
  $region26: #{lstm_module_forward.3} parent=0 // pred_check
    _
  $region27: #{lstm_module_forward.3} parent=0 // pred_check_branch
    %199 = sbr.rel (0) target = $region29
  $region28: #{lstm_module_forward.3} parent=0 // pred_region
    _
  $region29: #{lstm_module_forward.3} parent=0 // pred_fallthru
    _

// kernel: lstm_module_forward.4
$region0: #{lstm_module_forward.4}
  #allocation0 [shape = 'u32[]', space=smem, size = 0x4, offset = 0x4, fixed_abs, tag = 'smem constant byte address 0x4 - core index']
  #allocation1 [shape = 'u32[72,128]{1,0:T(1,128)}', space=vmem, size = 0x9000, scoped, tag = 'internal scratch']
  %s0 = inlined_call_operand.vmem [shape: f32[16,512], index: 0, kind: input, shape index: {}]
  %s1 = inlined_call_operand.vmem [shape: f32[2,128], index: 1, kind: input, shape index: {}]
  %s2 = inlined_call_operand.vmem [shape: f32[2,128], index: 2, kind: input, shape index: {}]
  %s3 = inlined_call_operand.vmem [shape: f32[128,512], index: 3, kind: input, shape index: {}]
  %s4 = inlined_call_operand.vmem [shape: f32[128,512], index: 4, kind: input, shape index: {}]
  %s5 = inlined_call_operand.vmem [shape: f32[1,512], index: 5, kind: input, shape index: {}]
  %s6 = inlined_call_operand.vmem [shape: f32[16,512], index: 6, kind: output, shape index: {0}]
  %s7 = inlined_call_operand.vmem [shape: f32[2,128], index: 7, kind: output, shape index: {1}]
  %s8 = inlined_call_operand.vmem [shape: f32[2,128], index: 8, kind: output, shape index: {2}]
  %9 = xla_tuple %s6, %s7, %s8
  %s10 = sld [smem:[#allocation0]]
  $region54: #{lstm_module_forward.4} parent=0
    _
  %s12 = ssub.s32 1, %s10
  %s13 = scalar_select 0, %s12, %s10
  // Predicated region
  $region2: #{lstm_module_forward.4} parent=0 // pred_check
    _
  $region3: #{lstm_module_forward.4} parent=0 // pred_check_branch
    %15 = sbr.rel (0) target = $region5
  $region4: #{lstm_module_forward.4} parent=0 // pred_region
    _
  $region5: #{lstm_module_forward.4} parent=0 // pred_fallthru
    _
  // Predicated region
  $region6: #{lstm_module_forward.4} parent=0 // pred_check
    _
  $region7: #{lstm_module_forward.4} parent=0 // pred_check_branch
    %17 = sbr.rel (0) target = $region9
  $region8: #{lstm_module_forward.4} parent=0 // pred_region
    _
  $region9: #{lstm_module_forward.4} parent=0 // pred_fallthru
    _
  // Predicated region
  $region10: #{lstm_module_forward.4} parent=0 // pred_check
    _
  $region11: #{lstm_module_forward.4} parent=0 // pred_check_branch
    %19 = sbr.rel (0) target = $region13
  $region12: #{lstm_module_forward.4} parent=0 // pred_region
    _
  $region13: #{lstm_module_forward.4} parent=0 // pred_fallthru
    _
  // Predicated region
  $region14: #{lstm_module_forward.4} parent=0 // pred_check
    _
  $region15: #{lstm_module_forward.4} parent=0 // pred_check_branch
    %21 = sbr.rel (0) target = $region17
  $region16: #{lstm_module_forward.4} parent=0 // pred_region
    _
  $region17: #{lstm_module_forward.4} parent=0 // pred_fallthru
    _
  // Predicated region
  $region18: #{lstm_module_forward.4} parent=0 // pred_check
    _
  $region19: #{lstm_module_forward.4} parent=0 // pred_check_branch
    %23 = sbr.rel (0) target = $region21
  $region20: #{lstm_module_forward.4} parent=0 // pred_region
    _
  $region21: #{lstm_module_forward.4} parent=0 // pred_fallthru
    _
  // Predicated region
  $region22: #{lstm_module_forward.4} parent=0 // pred_check
    _
  $region23: #{lstm_module_forward.4} parent=0 // pred_check_branch
    %25 = sbr.rel (0) target = $region25
  $region24: #{lstm_module_forward.4} parent=0 // pred_region
    _
  $region25: #{lstm_module_forward.4} parent=0 // pred_fallthru
    _
  %p26 = scmp.eq.s32.totalorder 0, 0
  // Predicated region
  $region26: #{lstm_module_forward.4} parent=0 // pred_check
    %p27 = pneg %p26
  $region27: #{lstm_module_forward.4} parent=0 // pred_check_branch
    %29 = sbr.rel (%p27) target = $region29
  $region28: #{lstm_module_forward.4} parent=0 // pred_region
    %v30 = vld [vmem:[%s1] sm:$0x3]
    %31 = vst [vmem:[%s7] sm:$0x3] %v30
    %v32 = vld [vmem:[%s2] sm:$0x3]
    %33 = vst [vmem:[%s8] sm:$0x3] %v32
  $region29: #{lstm_module_forward.4} parent=0 // pred_fallthru
    _
  %v34 = vld [vmem:[%s7] sm:$0x3]
  %v35 = vld [vmem:[%s8] sm:$0x3]
  %v36 = vld [vmem:[%s0] sm:$0x3]
  %v37 = vld [vmem:[%s0 + $0x8] sm:$0x3]
  %v38 = vld [vmem:[%s0 + $0x10] sm:$0x3]
  %v39 = vld [vmem:[%s0 + $0x18] sm:$0x3]
  %v40 = vld [vmem:[%s3] sm:$0xff]
  %v41 = vld [vmem:[%s3 + $0x8] sm:$0xff]
  %v42 = vld [vmem:[%s3 + $0x10] sm:$0xff]
  %v43 = vld [vmem:[%s3 + $0x18] sm:$0xff]
  %v44 = vld [vmem:[%s3 + $0x20] sm:$0xff]
  %v45 = vld [vmem:[%s3 + $0x28] sm:$0xff]
  %v46 = vld [vmem:[%s3 + $0x30] sm:$0xff]
  %v47 = vld [vmem:[%s3 + $0x38] sm:$0xff]
  %v48 = vld [vmem:[%s3 + $0x40] sm:$0xff]
  %v49 = vld [vmem:[%s3 + $0x48] sm:$0xff]
  %v50 = vld [vmem:[%s3 + $0x50] sm:$0xff]
  %v51 = vld [vmem:[%s3 + $0x58] sm:$0xff]
  %v52 = vld [vmem:[%s3 + $0x60] sm:$0xff]
  %v53 = vld [vmem:[%s3 + $0x68] sm:$0xff]
  %v54 = vld [vmem:[%s3 + $0x70] sm:$0xff]
  %v55 = vld [vmem:[%s3 + $0x78] sm:$0xff]
  %v56 = vld [vmem:[%s3 + $0x80] sm:$0xff]
  %v57 = vld [vmem:[%s3 + $0x88] sm:$0xff]
  %v58 = vld [vmem:[%s3 + $0x90] sm:$0xff]
  %v59 = vld [vmem:[%s3 + $0x98] sm:$0xff]
  %v60 = vld [vmem:[%s3 + $0xa0] sm:$0xff]
  %v61 = vld [vmem:[%s3 + $0xa8] sm:$0xff]
  %v62 = vld [vmem:[%s3 + $0xb0] sm:$0xff]
  %v63 = vld [vmem:[%s3 + $0xb8] sm:$0xff]
  %v64 = vld [vmem:[%s3 + $0xc0] sm:$0xff]
  %v65 = vld [vmem:[%s3 + $0xc8] sm:$0xff]
  %v66 = vld [vmem:[%s3 + $0xd0] sm:$0xff]
  %v67 = vld [vmem:[%s3 + $0xd8] sm:$0xff]
  %v68 = vld [vmem:[%s3 + $0xe0] sm:$0xff]
  %v69 = vld [vmem:[%s3 + $0xe8] sm:$0xff]
  %v70 = vld [vmem:[%s3 + $0xf0] sm:$0xff]
  %v71 = vld [vmem:[%s3 + $0xf8] sm:$0xff]
  %v72 = vld [vmem:[%s3 + $0x100] sm:$0xff]
  %v73 = vld [vmem:[%s3 + $0x108] sm:$0xff]
  %v74 = vld [vmem:[%s3 + $0x110] sm:$0xff]
  %v75 = vld [vmem:[%s3 + $0x118] sm:$0xff]
  %v76 = vld [vmem:[%s3 + $0x120] sm:$0xff]
  %v77 = vld [vmem:[%s3 + $0x128] sm:$0xff]
  %v78 = vld [vmem:[%s3 + $0x130] sm:$0xff]
  %v79 = vld [vmem:[%s3 + $0x138] sm:$0xff]
  %v80 = vld [vmem:[%s3 + $0x140] sm:$0xff]
  %v81 = vld [vmem:[%s3 + $0x148] sm:$0xff]
  %v82 = vld [vmem:[%s3 + $0x150] sm:$0xff]
  %v83 = vld [vmem:[%s3 + $0x158] sm:$0xff]
  %v84 = vld [vmem:[%s3 + $0x160] sm:$0xff]
  %v85 = vld [vmem:[%s3 + $0x168] sm:$0xff]
  %v86 = vld [vmem:[%s3 + $0x170] sm:$0xff]
  %v87 = vld [vmem:[%s3 + $0x178] sm:$0xff]
  %v88 = vld [vmem:[%s3 + $0x180] sm:$0xff]
  %v89 = vld [vmem:[%s3 + $0x188] sm:$0xff]
  %v90 = vld [vmem:[%s3 + $0x190] sm:$0xff]
  %v91 = vld [vmem:[%s3 + $0x198] sm:$0xff]
  %v92 = vld [vmem:[%s3 + $0x1a0] sm:$0xff]
  %v93 = vld [vmem:[%s3 + $0x1a8] sm:$0xff]
  %v94 = vld [vmem:[%s3 + $0x1b0] sm:$0xff]
  %v95 = vld [vmem:[%s3 + $0x1b8] sm:$0xff]
  %v96 = vld [vmem:[%s3 + $0x1c0] sm:$0xff]
  %v97 = vld [vmem:[%s3 + $0x1c8] sm:$0xff]
  %v98 = vld [vmem:[%s3 + $0x1d0] sm:$0xff]
  %v99 = vld [vmem:[%s3 + $0x1d8] sm:$0xff]
  %v100 = vld [vmem:[%s3 + $0x1e0] sm:$0xff]
  %v101 = vld [vmem:[%s3 + $0x1e8] sm:$0xff]
  %v102 = vld [vmem:[%s3 + $0x1f0] sm:$0xff]
  %v103 = vld [vmem:[%s3 + $0x1f8] sm:$0xff]
  %104 = vmatpush.msra.mxu0 %v100
  %105 = vmatpush.msra.mxu0 %v96
  %106 = vmatpush.msra.mxu0 %v92
  %107 = vmatpush.msra.mxu0 %v88
  %108 = vmatpush.msra.mxu0 %v84
  %109 = vmatpush.msra.mxu0 %v80
  %110 = vmatpush.msra.mxu0 %v76
  %111 = vmatpush.msra.mxu0 %v72
  %112 = vmatpush.msra.mxu0 %v68
  %113 = vmatpush.msra.mxu0 %v64
  %114 = vmatpush.msra.mxu0 %v60
  %115 = vmatpush.msra.mxu0 %v56
  %116 = vmatpush.msra.mxu0 %v52
  %117 = vmatpush.msra.mxu0 %v48
  %118 = vmatpush.msra.mxu0 %v44
  %119 = vmatpush.msra.mxu0 %v40
  %120 = vmatmul.f32.gmra.mxu0 %v34
  %v121 = vpop.f32.mrf.mxu0
  %v122 = vadd.f32 0.0, %v121
  %123 = vdwg.mxu0
  %124 = vmatpush.msra.mxu0 %v101
  %125 = vmatpush.msra.mxu0 %v97
  %126 = vmatpush.msra.mxu0 %v93
  %127 = vmatpush.msra.mxu0 %v89
  %128 = vmatpush.msra.mxu0 %v85
  %129 = vmatpush.msra.mxu0 %v81
  %130 = vmatpush.msra.mxu0 %v77
  %131 = vmatpush.msra.mxu0 %v73
  %132 = vmatpush.msra.mxu0 %v69
  %133 = vmatpush.msra.mxu0 %v65
  %134 = vmatpush.msra.mxu0 %v61
  %135 = vmatpush.msra.mxu0 %v57
  %136 = vmatpush.msra.mxu0 %v53
  %137 = vmatpush.msra.mxu0 %v49
  %138 = vmatpush.msra.mxu0 %v45
  %139 = vmatpush.msra.mxu0 %v41
  %140 = vmatmul.f32.gmra.mxu0 %v34
  %v141 = vpop.f32.mrf.mxu0
  %v142 = vadd.f32 0.0, %v141
  %143 = vdwg.mxu0
  %144 = vmatpush.msra.mxu0 %v102
  %145 = vmatpush.msra.mxu0 %v98
  %146 = vmatpush.msra.mxu0 %v94
  %147 = vmatpush.msra.mxu0 %v90
  %148 = vmatpush.msra.mxu0 %v86
  %149 = vmatpush.msra.mxu0 %v82
  %150 = vmatpush.msra.mxu0 %v78
  %151 = vmatpush.msra.mxu0 %v74
  %152 = vmatpush.msra.mxu0 %v70
  %153 = vmatpush.msra.mxu0 %v66
  %154 = vmatpush.msra.mxu0 %v62
  %155 = vmatpush.msra.mxu0 %v58
  %156 = vmatpush.msra.mxu0 %v54
  %157 = vmatpush.msra.mxu0 %v50
  %158 = vmatpush.msra.mxu0 %v46
  %159 = vmatpush.msra.mxu0 %v42
  %160 = vmatmul.f32.gmra.mxu0 %v34
  %v161 = vpop.f32.mrf.mxu0
  %v162 = vadd.f32 0.0, %v161
  %163 = vdwg.mxu0
  %164 = vmatpush.msra.mxu0 %v103
  %165 = vmatpush.msra.mxu0 %v99
  %166 = vmatpush.msra.mxu0 %v95
  %167 = vmatpush.msra.mxu0 %v91
  %168 = vmatpush.msra.mxu0 %v87
  %169 = vmatpush.msra.mxu0 %v83
  %170 = vmatpush.msra.mxu0 %v79
  %171 = vmatpush.msra.mxu0 %v75
  %172 = vmatpush.msra.mxu0 %v71
  %173 = vmatpush.msra.mxu0 %v67
  %174 = vmatpush.msra.mxu0 %v63
  %175 = vmatpush.msra.mxu0 %v59
  %176 = vmatpush.msra.mxu0 %v55
  %177 = vmatpush.msra.mxu0 %v51
  %178 = vmatpush.msra.mxu0 %v47
  %179 = vmatpush.msra.mxu0 %v43
  %180 = vmatmul.f32.gmra.mxu0 %v34
  %v181 = vpop.f32.mrf.mxu0
  %v182 = vadd.f32 0.0, %v181
  %183 = vdwg.mxu0
  %v184 = vadd.f32 %v36, %v122
  %v185 = vadd.f32 %v37, %v142
  %v186 = vadd.f32 %v38, %v162
  %v187 = vadd.f32 %v39, %v182
  %v188 = vmul.f32 %v184, 0.5
  %v189 = vtanh.pop %v188
  %v190 = vmul.f32 %v189, 0.5
  %v191 = vadd.f32 %v190, 0.5
  %v192 = vmul.f32 %v185, 0.5
  %v193 = vtanh.pop %v192
  %v194 = vmul.f32 %v193, 0.5
  %v195 = vadd.f32 %v194, 0.5
  %v196 = vtanh.pop %v186
  %v197 = vmul.f32 %v187, 0.5
  %v198 = vtanh.pop %v197
  %v199 = vmul.f32 %v198, 0.5
  %v200 = vadd.f32 %v199, 0.5
  %v201 = vmul.f32 %v195, %v35
  %v202 = vmul.f32 %v191, %v196
  %v203 = vadd.f32 %v201, %v202
  %v204 = vtanh.pop %v203
  %v205 = vmul.f32 %v200, %v204
  %206 = vst [vmem:[%s8] sm:$0x3] %v203
  %207 = vst [vmem:[%s7] sm:$0x3] %v205
  %v208 = vld [vmem:[%s4] sm:$0xff]
  %v209 = vld [vmem:[%s4 + $0x8] sm:$0xff]
  %v210 = vld [vmem:[%s4 + $0x10] sm:$0xff]
  %v211 = vld [vmem:[%s4 + $0x18] sm:$0xff]
  %v212 = vld [vmem:[%s4 + $0x20] sm:$0xff]
  %v213 = vld [vmem:[%s4 + $0x28] sm:$0xff]
  %v214 = vld [vmem:[%s4 + $0x30] sm:$0xff]
  %v215 = vld [vmem:[%s4 + $0x38] sm:$0xff]
  %v216 = vld [vmem:[%s4 + $0x40] sm:$0xff]
  %v217 = vld [vmem:[%s4 + $0x48] sm:$0xff]
  %v218 = vld [vmem:[%s4 + $0x50] sm:$0xff]
  %v219 = vld [vmem:[%s4 + $0x58] sm:$0xff]
  %v220 = vld [vmem:[%s4 + $0x60] sm:$0xff]
  %v221 = vld [vmem:[%s4 + $0x68] sm:$0xff]
  %v222 = vld [vmem:[%s4 + $0x70] sm:$0xff]
  %v223 = vld [vmem:[%s4 + $0x78] sm:$0xff]
  %v224 = vld [vmem:[%s4 + $0x80] sm:$0xff]
  %v225 = vld [vmem:[%s4 + $0x88] sm:$0xff]
  %v226 = vld [vmem:[%s4 + $0x90] sm:$0xff]
  %v227 = vld [vmem:[%s4 + $0x98] sm:$0xff]
  %v228 = vld [vmem:[%s4 + $0xa0] sm:$0xff]
  %v229 = vld [vmem:[%s4 + $0xa8] sm:$0xff]
  %v230 = vld [vmem:[%s4 + $0xb0] sm:$0xff]
  %v231 = vld [vmem:[%s4 + $0xb8] sm:$0xff]
  %v232 = vld [vmem:[%s4 + $0xc0] sm:$0xff]
  %v233 = vld [vmem:[%s4 + $0xc8] sm:$0xff]
  %v234 = vld [vmem:[%s4 + $0xd0] sm:$0xff]
  %v235 = vld [vmem:[%s4 + $0xd8] sm:$0xff]
  %v236 = vld [vmem:[%s4 + $0xe0] sm:$0xff]
  %v237 = vld [vmem:[%s4 + $0xe8] sm:$0xff]
  %v238 = vld [vmem:[%s4 + $0xf0] sm:$0xff]
  %v239 = vld [vmem:[%s4 + $0xf8] sm:$0xff]
  %v240 = vld [vmem:[%s4 + $0x100] sm:$0xff]
  %v241 = vld [vmem:[%s4 + $0x108] sm:$0xff]
  %v242 = vld [vmem:[%s4 + $0x110] sm:$0xff]
  %v243 = vld [vmem:[%s4 + $0x118] sm:$0xff]
  %v244 = vld [vmem:[%s4 + $0x120] sm:$0xff]
  %v245 = vld [vmem:[%s4 + $0x128] sm:$0xff]
  %v246 = vld [vmem:[%s4 + $0x130] sm:$0xff]
  %v247 = vld [vmem:[%s4 + $0x138] sm:$0xff]
  %v248 = vld [vmem:[%s4 + $0x140] sm:$0xff]
  %v249 = vld [vmem:[%s4 + $0x148] sm:$0xff]
  %v250 = vld [vmem:[%s4 + $0x150] sm:$0xff]
  %v251 = vld [vmem:[%s4 + $0x158] sm:$0xff]
  %v252 = vld [vmem:[%s4 + $0x160] sm:$0xff]
  %v253 = vld [vmem:[%s4 + $0x168] sm:$0xff]
  %v254 = vld [vmem:[%s4 + $0x170] sm:$0xff]
  %v255 = vld [vmem:[%s4 + $0x178] sm:$0xff]
  %v256 = vld [vmem:[%s4 + $0x180] sm:$0xff]
  %v257 = vld [vmem:[%s4 + $0x188] sm:$0xff]
  %v258 = vld [vmem:[%s4 + $0x190] sm:$0xff]
  %v259 = vld [vmem:[%s4 + $0x198] sm:$0xff]
  %v260 = vld [vmem:[%s4 + $0x1a0] sm:$0xff]
  %v261 = vld [vmem:[%s4 + $0x1a8] sm:$0xff]
  %v262 = vld [vmem:[%s4 + $0x1b0] sm:$0xff]
  %v263 = vld [vmem:[%s4 + $0x1b8] sm:$0xff]
  %v264 = vld [vmem:[%s4 + $0x1c0] sm:$0xff]
  %v265 = vld [vmem:[%s4 + $0x1c8] sm:$0xff]
  %v266 = vld [vmem:[%s4 + $0x1d0] sm:$0xff]
  %v267 = vld [vmem:[%s4 + $0x1d8] sm:$0xff]
  %v268 = vld [vmem:[%s4 + $0x1e0] sm:$0xff]
  %v269 = vld [vmem:[%s4 + $0x1e8] sm:$0xff]
  %v270 = vld [vmem:[%s4 + $0x1f0] sm:$0xff]
  %v271 = vld [vmem:[%s4 + $0x1f8] sm:$0xff]
  %v272 = vld [vmem:[%s5] sm:$0xf]
  %v274 = vperm.slane %v272, 0
  %v275 = vperm.slane %v272, 1
  %v276 = vperm.slane %v272, 2
  %v277 = vperm.slane %v272, 3
  %282 = vmatpush.msra.mxu0 %v268
  %283 = vmatpush.msra.mxu0 %v264
  %284 = vmatpush.msra.mxu0 %v260
  %285 = vmatpush.msra.mxu0 %v256
  %286 = vmatpush.msra.mxu0 %v252
  %287 = vmatpush.msra.mxu0 %v248
  %288 = vmatpush.msra.mxu0 %v244
  %289 = vmatpush.msra.mxu0 %v240
  %290 = vmatpush.msra.mxu0 %v236
  %291 = vmatpush.msra.mxu0 %v232
  %292 = vmatpush.msra.mxu0 %v228
  %293 = vmatpush.msra.mxu0 %v224
  %294 = vmatpush.msra.mxu0 %v220
  %295 = vmatpush.msra.mxu0 %v216
  %296 = vmatpush.msra.mxu0 %v212
  %297 = vmatpush.msra.mxu0 %v208
  %298 = vmatmul.f32.gmra.mxu0 %v205
  %v299 = vpop.f32.mrf.mxu0
  %v300 = vadd.f32 %v274, %v299
  %301 = vdwg.mxu0
  %302 = vmatpush.msra.mxu0 %v269
  %303 = vmatpush.msra.mxu0 %v265
  %304 = vmatpush.msra.mxu0 %v261
  %305 = vmatpush.msra.mxu0 %v257
  %306 = vmatpush.msra.mxu0 %v253
  %307 = vmatpush.msra.mxu0 %v249
  %308 = vmatpush.msra.mxu0 %v245
  %309 = vmatpush.msra.mxu0 %v241
  %310 = vmatpush.msra.mxu0 %v237
  %311 = vmatpush.msra.mxu0 %v233
  %312 = vmatpush.msra.mxu0 %v229
  %313 = vmatpush.msra.mxu0 %v225
  %314 = vmatpush.msra.mxu0 %v221
  %315 = vmatpush.msra.mxu0 %v217
  %316 = vmatpush.msra.mxu0 %v213
  %317 = vmatpush.msra.mxu0 %v209
  %318 = vmatmul.f32.gmra.mxu0 %v205
  %v319 = vpop.f32.mrf.mxu0
  %v320 = vadd.f32 %v275, %v319
  %321 = vdwg.mxu0
  %322 = vmatpush.msra.mxu0 %v270
  %323 = vmatpush.msra.mxu0 %v266
  %324 = vmatpush.msra.mxu0 %v262
  %325 = vmatpush.msra.mxu0 %v258
  %326 = vmatpush.msra.mxu0 %v254
  %327 = vmatpush.msra.mxu0 %v250
  %328 = vmatpush.msra.mxu0 %v246
  %329 = vmatpush.msra.mxu0 %v242
  %330 = vmatpush.msra.mxu0 %v238
  %331 = vmatpush.msra.mxu0 %v234
  %332 = vmatpush.msra.mxu0 %v230
  %333 = vmatpush.msra.mxu0 %v226
  %334 = vmatpush.msra.mxu0 %v222
  %335 = vmatpush.msra.mxu0 %v218
  %336 = vmatpush.msra.mxu0 %v214
  %337 = vmatpush.msra.mxu0 %v210
  %338 = vmatmul.f32.gmra.mxu0 %v205
  %v339 = vpop.f32.mrf.mxu0
  %v340 = vadd.f32 %v276, %v339
  %341 = vdwg.mxu0
  %342 = vmatpush.msra.mxu0 %v271
  %343 = vmatpush.msra.mxu0 %v267
  %344 = vmatpush.msra.mxu0 %v263
  %345 = vmatpush.msra.mxu0 %v259
  %346 = vmatpush.msra.mxu0 %v255
  %347 = vmatpush.msra.mxu0 %v251
  %348 = vmatpush.msra.mxu0 %v247
  %349 = vmatpush.msra.mxu0 %v243
  %350 = vmatpush.msra.mxu0 %v239
  %351 = vmatpush.msra.mxu0 %v235
  %352 = vmatpush.msra.mxu0 %v231
  %353 = vmatpush.msra.mxu0 %v227
  %354 = vmatpush.msra.mxu0 %v223
  %355 = vmatpush.msra.mxu0 %v219
  %356 = vmatpush.msra.mxu0 %v215
  %357 = vmatpush.msra.mxu0 %v211
  %358 = vmatmul.f32.gmra.mxu0 %v205
  %v359 = vpop.f32.mrf.mxu0
  %v360 = vadd.f32 %v277, %v359
  %361 = vdwg.mxu0
  %362 = vst [vmem:[%s6] sm:$0x3] %v300
  %363 = vst [vmem:[%s6 + $0x8] sm:$0x3] %v320
  %364 = vst [vmem:[%s6 + $0x10] sm:$0x3] %v340
  %365 = vst [vmem:[%s6 + $0x18] sm:$0x3] %v360
  %v366 = vld [vmem:[%s7] sm:$0x3]
  %v367 = vld [vmem:[%s8] sm:$0x3]
  %v368 = vld [vmem:[%s0] sm:$0xc]
  %v369 = vld [vmem:[%s0 + $0x8] sm:$0xc]
  %v370 = vld [vmem:[%s0 + $0x10] sm:$0xc]
  %v371 = vld [vmem:[%s0 + $0x18] sm:$0xc]
  %v372 = vld [vmem:[%s3] sm:$0xff]
  %v373 = vld [vmem:[%s3 + $0x8] sm:$0xff]
  %v374 = vld [vmem:[%s3 + $0x10] sm:$0xff]
  %v375 = vld [vmem:[%s3 + $0x18] sm:$0xff]
  %v376 = vld [vmem:[%s3 + $0x20] sm:$0xff]
  %v377 = vld [vmem:[%s3 + $0x28] sm:$0xff]
  %v378 = vld [vmem:[%s3 + $0x30] sm:$0xff]
  %v379 = vld [vmem:[%s3 + $0x38] sm:$0xff]
  %v380 = vld [vmem:[%s3 + $0x40] sm:$0xff]
  %v381 = vld [vmem:[%s3 + $0x48] sm:$0xff]
  %v382 = vld [vmem:[%s3 + $0x50] sm:$0xff]
  %v383 = vld [vmem:[%s3 + $0x58] sm:$0xff]
  %v384 = vld [vmem:[%s3 + $0x60] sm:$0xff]
  %v385 = vld [vmem:[%s3 + $0x68] sm:$0xff]
  %v386 = vld [vmem:[%s3 + $0x70] sm:$0xff]
  %v387 = vld [vmem:[%s3 + $0x78] sm:$0xff]
  %v388 = vld [vmem:[%s3 + $0x80] sm:$0xff]
  %v389 = vld [vmem:[%s3 + $0x88] sm:$0xff]
  %v390 = vld [vmem:[%s3 + $0x90] sm:$0xff]
  %v391 = vld [vmem:[%s3 + $0x98] sm:$0xff]
  %v392 = vld [vmem:[%s3 + $0xa0] sm:$0xff]
  %v393 = vld [vmem:[%s3 + $0xa8] sm:$0xff]
  %v394 = vld [vmem:[%s3 + $0xb0] sm:$0xff]
  %v395 = vld [vmem:[%s3 + $0xb8] sm:$0xff]
  %v396 = vld [vmem:[%s3 + $0xc0] sm:$0xff]
  %v397 = vld [vmem:[%s3 + $0xc8] sm:$0xff]
  %v398 = vld [vmem:[%s3 + $0xd0] sm:$0xff]
  %v399 = vld [vmem:[%s3 + $0xd8] sm:$0xff]
  %v400 = vld [vmem:[%s3 + $0xe0] sm:$0xff]
  %v401 = vld [vmem:[%s3 + $0xe8] sm:$0xff]
  %v402 = vld [vmem:[%s3 + $0xf0] sm:$0xff]
  %v403 = vld [vmem:[%s3 + $0xf8] sm:$0xff]
  %v404 = vld [vmem:[%s3 + $0x100] sm:$0xff]
  %v405 = vld [vmem:[%s3 + $0x108] sm:$0xff]
  %v406 = vld [vmem:[%s3 + $0x110] sm:$0xff]
  %v407 = vld [vmem:[%s3 + $0x118] sm:$0xff]
  %v408 = vld [vmem:[%s3 + $0x120] sm:$0xff]
  %v409 = vld [vmem:[%s3 + $0x128] sm:$0xff]
  %v410 = vld [vmem:[%s3 + $0x130] sm:$0xff]
  %v411 = vld [vmem:[%s3 + $0x138] sm:$0xff]
  %v412 = vld [vmem:[%s3 + $0x140] sm:$0xff]
  %v413 = vld [vmem:[%s3 + $0x148] sm:$0xff]
  %v414 = vld [vmem:[%s3 + $0x150] sm:$0xff]
  %v415 = vld [vmem:[%s3 + $0x158] sm:$0xff]
  %v416 = vld [vmem:[%s3 + $0x160] sm:$0xff]
  %v417 = vld [vmem:[%s3 + $0x168] sm:$0xff]
  %v418 = vld [vmem:[%s3 + $0x170] sm:$0xff]
  %v419 = vld [vmem:[%s3 + $0x178] sm:$0xff]
  %v420 = vld [vmem:[%s3 + $0x180] sm:$0xff]
  %v421 = vld [vmem:[%s3 + $0x188] sm:$0xff]
  %v422 = vld [vmem:[%s3 + $0x190] sm:$0xff]
  %v423 = vld [vmem:[%s3 + $0x198] sm:$0xff]
  %v424 = vld [vmem:[%s3 + $0x1a0] sm:$0xff]
  %v425 = vld [vmem:[%s3 + $0x1a8] sm:$0xff]
  %v426 = vld [vmem:[%s3 + $0x1b0] sm:$0xff]
  %v427 = vld [vmem:[%s3 + $0x1b8] sm:$0xff]
  %v428 = vld [vmem:[%s3 + $0x1c0] sm:$0xff]
  %v429 = vld [vmem:[%s3 + $0x1c8] sm:$0xff]
  %v430 = vld [vmem:[%s3 + $0x1d0] sm:$0xff]
  %v431 = vld [vmem:[%s3 + $0x1d8] sm:$0xff]
  %v432 = vld [vmem:[%s3 + $0x1e0] sm:$0xff]
  %v433 = vld [vmem:[%s3 + $0x1e8] sm:$0xff]
  %v434 = vld [vmem:[%s3 + $0x1f0] sm:$0xff]
  %v435 = vld [vmem:[%s3 + $0x1f8] sm:$0xff]
  %436 = vmatpush.msra.mxu0 %v432
  %437 = vmatpush.msra.mxu0 %v428
  %438 = vmatpush.msra.mxu0 %v424
  %439 = vmatpush.msra.mxu0 %v420
  %440 = vmatpush.msra.mxu0 %v416
  %441 = vmatpush.msra.mxu0 %v412
  %442 = vmatpush.msra.mxu0 %v408
  %443 = vmatpush.msra.mxu0 %v404
  %444 = vmatpush.msra.mxu0 %v400
  %445 = vmatpush.msra.mxu0 %v396
  %446 = vmatpush.msra.mxu0 %v392
  %447 = vmatpush.msra.mxu0 %v388
  %448 = vmatpush.msra.mxu0 %v384
  %449 = vmatpush.msra.mxu0 %v380
  %450 = vmatpush.msra.mxu0 %v376
  %451 = vmatpush.msra.mxu0 %v372
  %452 = vmatmul.f32.gmra.mxu0 %v366
  %v453 = vpop.f32.mrf.mxu0
  %v454 = vadd.f32 0.0, %v453
  %455 = vdwg.mxu0
  %456 = vmatpush.msra.mxu0 %v433
  %457 = vmatpush.msra.mxu0 %v429
  %458 = vmatpush.msra.mxu0 %v425
  %459 = vmatpush.msra.mxu0 %v421
  %460 = vmatpush.msra.mxu0 %v417
  %461 = vmatpush.msra.mxu0 %v413
  %462 = vmatpush.msra.mxu0 %v409
  %463 = vmatpush.msra.mxu0 %v405
  %464 = vmatpush.msra.mxu0 %v401
  %465 = vmatpush.msra.mxu0 %v397
  %466 = vmatpush.msra.mxu0 %v393
  %467 = vmatpush.msra.mxu0 %v389
  %468 = vmatpush.msra.mxu0 %v385
  %469 = vmatpush.msra.mxu0 %v381
  %470 = vmatpush.msra.mxu0 %v377
  %471 = vmatpush.msra.mxu0 %v373
  %472 = vmatmul.f32.gmra.mxu0 %v366
  %v473 = vpop.f32.mrf.mxu0
  %v474 = vadd.f32 0.0, %v473
  %475 = vdwg.mxu0
  %476 = vmatpush.msra.mxu0 %v434
  %477 = vmatpush.msra.mxu0 %v430
  %478 = vmatpush.msra.mxu0 %v426
  %479 = vmatpush.msra.mxu0 %v422
  %480 = vmatpush.msra.mxu0 %v418
  %481 = vmatpush.msra.mxu0 %v414
  %482 = vmatpush.msra.mxu0 %v410
  %483 = vmatpush.msra.mxu0 %v406
  %484 = vmatpush.msra.mxu0 %v402
  %485 = vmatpush.msra.mxu0 %v398
  %486 = vmatpush.msra.mxu0 %v394
  %487 = vmatpush.msra.mxu0 %v390
  %488 = vmatpush.msra.mxu0 %v386
  %489 = vmatpush.msra.mxu0 %v382
  %490 = vmatpush.msra.mxu0 %v378
  %491 = vmatpush.msra.mxu0 %v374
  %492 = vmatmul.f32.gmra.mxu0 %v366
  %v493 = vpop.f32.mrf.mxu0
  %v494 = vadd.f32 0.0, %v493
  %495 = vdwg.mxu0
  %496 = vmatpush.msra.mxu0 %v435
  %497 = vmatpush.msra.mxu0 %v431
  %498 = vmatpush.msra.mxu0 %v427
  %499 = vmatpush.msra.mxu0 %v423
  %500 = vmatpush.msra.mxu0 %v419
  %501 = vmatpush.msra.mxu0 %v415
  %502 = vmatpush.msra.mxu0 %v411
  %503 = vmatpush.msra.mxu0 %v407
  %504 = vmatpush.msra.mxu0 %v403
  %505 = vmatpush.msra.mxu0 %v399
  %506 = vmatpush.msra.mxu0 %v395
  %507 = vmatpush.msra.mxu0 %v391
  %508 = vmatpush.msra.mxu0 %v387
  %509 = vmatpush.msra.mxu0 %v383
  %510 = vmatpush.msra.mxu0 %v379
  %511 = vmatpush.msra.mxu0 %v375
  %512 = vmatmul.f32.gmra.mxu0 %v366
  %v513 = vpop.f32.mrf.mxu0
  %v514 = vadd.f32 0.0, %v513
  %515 = vdwg.mxu0
  %v520 = vrot.slane %v454, 6
  %v521 = vrot.slane %v474, 6
  %v522 = vrot.slane %v494, 6
  %v523 = vrot.slane %v514, 6
  %v528 = vadd.f32 %v368, %v520
  %v529 = vadd.f32 %v369, %v521
  %v530 = vadd.f32 %v370, %v522
  %v531 = vadd.f32 %v371, %v523
  %v532 = vmul.f32 %v528, 0.5
  %v533 = vtanh.pop %v532
  %v534 = vmul.f32 %v533, 0.5
  %v535 = vadd.f32 %v534, 0.5
  %v536 = vmul.f32 %v529, 0.5
  %v537 = vtanh.pop %v536
  %v538 = vmul.f32 %v537, 0.5
  %v539 = vadd.f32 %v538, 0.5
  %v540 = vtanh.pop %v530
  %v541 = vmul.f32 %v531, 0.5
  %v542 = vtanh.pop %v541
  %v543 = vmul.f32 %v542, 0.5
  %v544 = vadd.f32 %v543, 0.5
  %v546 = vrot.slane %v367, 6
  %v548 = vmul.f32 %v539, %v546
  %v549 = vmul.f32 %v535, %v540
  %v550 = vadd.f32 %v548, %v549
  %v551 = vtanh.pop %v550
  %v552 = vmul.f32 %v544, %v551
  %553 = vst [vmem:[%s8 - $0x2] sm:$0xc] %v550
  %554 = vst [vmem:[%s7 - $0x2] sm:$0xc] %v552
  %v555 = vld [vmem:[%s4] sm:$0xff]
  %v556 = vld [vmem:[%s4 + $0x8] sm:$0xff]
  %v557 = vld [vmem:[%s4 + $0x10] sm:$0xff]
  %v558 = vld [vmem:[%s4 + $0x18] sm:$0xff]
  %v559 = vld [vmem:[%s4 + $0x20] sm:$0xff]
  %v560 = vld [vmem:[%s4 + $0x28] sm:$0xff]
  %v561 = vld [vmem:[%s4 + $0x30] sm:$0xff]
  %v562 = vld [vmem:[%s4 + $0x38] sm:$0xff]
  %v563 = vld [vmem:[%s4 + $0x40] sm:$0xff]
  %v564 = vld [vmem:[%s4 + $0x48] sm:$0xff]
  %v565 = vld [vmem:[%s4 + $0x50] sm:$0xff]
  %v566 = vld [vmem:[%s4 + $0x58] sm:$0xff]
  %v567 = vld [vmem:[%s4 + $0x60] sm:$0xff]
  %v568 = vld [vmem:[%s4 + $0x68] sm:$0xff]
  %v569 = vld [vmem:[%s4 + $0x70] sm:$0xff]
  %v570 = vld [vmem:[%s4 + $0x78] sm:$0xff]
  %v571 = vld [vmem:[%s4 + $0x80] sm:$0xff]
  %v572 = vld [vmem:[%s4 + $0x88] sm:$0xff]
  %v573 = vld [vmem:[%s4 + $0x90] sm:$0xff]
  %v574 = vld [vmem:[%s4 + $0x98] sm:$0xff]
  %v575 = vld [vmem:[%s4 + $0xa0] sm:$0xff]
  %v576 = vld [vmem:[%s4 + $0xa8] sm:$0xff]
  %v577 = vld [vmem:[%s4 + $0xb0] sm:$0xff]
  %v578 = vld [vmem:[%s4 + $0xb8] sm:$0xff]
  %v579 = vld [vmem:[%s4 + $0xc0] sm:$0xff]
  %v580 = vld [vmem:[%s4 + $0xc8] sm:$0xff]
  %v581 = vld [vmem:[%s4 + $0xd0] sm:$0xff]
  %v582 = vld [vmem:[%s4 + $0xd8] sm:$0xff]
  %v583 = vld [vmem:[%s4 + $0xe0] sm:$0xff]
  %v584 = vld [vmem:[%s4 + $0xe8] sm:$0xff]
  %v585 = vld [vmem:[%s4 + $0xf0] sm:$0xff]
  %v586 = vld [vmem:[%s4 + $0xf8] sm:$0xff]
  %v587 = vld [vmem:[%s4 + $0x100] sm:$0xff]
  %v588 = vld [vmem:[%s4 + $0x108] sm:$0xff]
  %v589 = vld [vmem:[%s4 + $0x110] sm:$0xff]
  %v590 = vld [vmem:[%s4 + $0x118] sm:$0xff]
  %v591 = vld [vmem:[%s4 + $0x120] sm:$0xff]
  %v592 = vld [vmem:[%s4 + $0x128] sm:$0xff]
  %v593 = vld [vmem:[%s4 + $0x130] sm:$0xff]
  %v594 = vld [vmem:[%s4 + $0x138] sm:$0xff]
  %v595 = vld [vmem:[%s4 + $0x140] sm:$0xff]
  %v596 = vld [vmem:[%s4 + $0x148] sm:$0xff]
  %v597 = vld [vmem:[%s4 + $0x150] sm:$0xff]
  %v598 = vld [vmem:[%s4 + $0x158] sm:$0xff]
  %v599 = vld [vmem:[%s4 + $0x160] sm:$0xff]
  %v600 = vld [vmem:[%s4 + $0x168] sm:$0xff]
  %v601 = vld [vmem:[%s4 + $0x170] sm:$0xff]
  %v602 = vld [vmem:[%s4 + $0x178] sm:$0xff]
  %v603 = vld [vmem:[%s4 + $0x180] sm:$0xff]
  %v604 = vld [vmem:[%s4 + $0x188] sm:$0xff]
  %v605 = vld [vmem:[%s4 + $0x190] sm:$0xff]
  %v606 = vld [vmem:[%s4 + $0x198] sm:$0xff]
  %v607 = vld [vmem:[%s4 + $0x1a0] sm:$0xff]
  %v608 = vld [vmem:[%s4 + $0x1a8] sm:$0xff]
  %v609 = vld [vmem:[%s4 + $0x1b0] sm:$0xff]
  %v610 = vld [vmem:[%s4 + $0x1b8] sm:$0xff]
  %v611 = vld [vmem:[%s4 + $0x1c0] sm:$0xff]
  %v612 = vld [vmem:[%s4 + $0x1c8] sm:$0xff]
  %v613 = vld [vmem:[%s4 + $0x1d0] sm:$0xff]
  %v614 = vld [vmem:[%s4 + $0x1d8] sm:$0xff]
  %v615 = vld [vmem:[%s4 + $0x1e0] sm:$0xff]
  %v616 = vld [vmem:[%s4 + $0x1e8] sm:$0xff]
  %v617 = vld [vmem:[%s4 + $0x1f0] sm:$0xff]
  %v618 = vld [vmem:[%s4 + $0x1f8] sm:$0xff]
  %v619 = vld [vmem:[%s5] sm:$0xf]
  %v621 = vperm.slane %v619, 0
  %v622 = vperm.slane %v619, 1
  %v623 = vperm.slane %v619, 2
  %v624 = vperm.slane %v619, 3
  %v630 = vrot.slane %v552, 2
  %632 = vmatpush.msra.mxu0 %v615
  %633 = vmatpush.msra.mxu0 %v611
  %634 = vmatpush.msra.mxu0 %v607
  %635 = vmatpush.msra.mxu0 %v603
  %636 = vmatpush.msra.mxu0 %v599
  %637 = vmatpush.msra.mxu0 %v595
  %638 = vmatpush.msra.mxu0 %v591
  %639 = vmatpush.msra.mxu0 %v587
  %640 = vmatpush.msra.mxu0 %v583
  %641 = vmatpush.msra.mxu0 %v579
  %642 = vmatpush.msra.mxu0 %v575
  %643 = vmatpush.msra.mxu0 %v571
  %644 = vmatpush.msra.mxu0 %v567
  %645 = vmatpush.msra.mxu0 %v563
  %646 = vmatpush.msra.mxu0 %v559
  %647 = vmatpush.msra.mxu0 %v555
  %648 = vmatmul.f32.gmra.mxu0 %v630
  %v649 = vpop.f32.mrf.mxu0
  %v650 = vadd.f32 %v621, %v649
  %651 = vdwg.mxu0
  %652 = vmatpush.msra.mxu0 %v616
  %653 = vmatpush.msra.mxu0 %v612
  %654 = vmatpush.msra.mxu0 %v608
  %655 = vmatpush.msra.mxu0 %v604
  %656 = vmatpush.msra.mxu0 %v600
  %657 = vmatpush.msra.mxu0 %v596
  %658 = vmatpush.msra.mxu0 %v592
  %659 = vmatpush.msra.mxu0 %v588
  %660 = vmatpush.msra.mxu0 %v584
  %661 = vmatpush.msra.mxu0 %v580
  %662 = vmatpush.msra.mxu0 %v576
  %663 = vmatpush.msra.mxu0 %v572
  %664 = vmatpush.msra.mxu0 %v568
  %665 = vmatpush.msra.mxu0 %v564
  %666 = vmatpush.msra.mxu0 %v560
  %667 = vmatpush.msra.mxu0 %v556
  %668 = vmatmul.f32.gmra.mxu0 %v630
  %v669 = vpop.f32.mrf.mxu0
  %v670 = vadd.f32 %v622, %v669
  %671 = vdwg.mxu0
  %672 = vmatpush.msra.mxu0 %v617
  %673 = vmatpush.msra.mxu0 %v613
  %674 = vmatpush.msra.mxu0 %v609
  %675 = vmatpush.msra.mxu0 %v605
  %676 = vmatpush.msra.mxu0 %v601
  %677 = vmatpush.msra.mxu0 %v597
  %678 = vmatpush.msra.mxu0 %v593
  %679 = vmatpush.msra.mxu0 %v589
  %680 = vmatpush.msra.mxu0 %v585
  %681 = vmatpush.msra.mxu0 %v581
  %682 = vmatpush.msra.mxu0 %v577
  %683 = vmatpush.msra.mxu0 %v573
  %684 = vmatpush.msra.mxu0 %v569
  %685 = vmatpush.msra.mxu0 %v565
  %686 = vmatpush.msra.mxu0 %v561
  %687 = vmatpush.msra.mxu0 %v557
  %688 = vmatmul.f32.gmra.mxu0 %v630
  %v689 = vpop.f32.mrf.mxu0
  %v690 = vadd.f32 %v623, %v689
  %691 = vdwg.mxu0
  %692 = vmatpush.msra.mxu0 %v618
  %693 = vmatpush.msra.mxu0 %v614
  %694 = vmatpush.msra.mxu0 %v610
  %695 = vmatpush.msra.mxu0 %v606
  %696 = vmatpush.msra.mxu0 %v602
  %697 = vmatpush.msra.mxu0 %v598
  %698 = vmatpush.msra.mxu0 %v594
  %699 = vmatpush.msra.mxu0 %v590
  %700 = vmatpush.msra.mxu0 %v586
  %701 = vmatpush.msra.mxu0 %v582
  %702 = vmatpush.msra.mxu0 %v578
  %703 = vmatpush.msra.mxu0 %v574
  %704 = vmatpush.msra.mxu0 %v570
  %705 = vmatpush.msra.mxu0 %v566
  %706 = vmatpush.msra.mxu0 %v562
  %707 = vmatpush.msra.mxu0 %v558
  %708 = vmatmul.f32.gmra.mxu0 %v630
  %v709 = vpop.f32.mrf.mxu0
  %v710 = vadd.f32 %v624, %v709
  %711 = vdwg.mxu0
  %v716 = vrot.slane %v650, 6
  %v717 = vrot.slane %v670, 6
  %v718 = vrot.slane %v690, 6
  %v719 = vrot.slane %v710, 6
  %724 = vst [vmem:[%s6] sm:$0xc] %v716
  %725 = vst [vmem:[%s6 + $0x8] sm:$0xc] %v717
  %726 = vst [vmem:[%s6 + $0x10] sm:$0xc] %v718
  %727 = vst [vmem:[%s6 + $0x18] sm:$0xc] %v719
  %v728 = vld [vmem:[%s7] sm:$0x3]
  %v729 = vld [vmem:[%s8] sm:$0x3]
  %v730 = vld [vmem:[%s0] sm:$0x30]
  %v731 = vld [vmem:[%s0 + $0x8] sm:$0x30]
  %v732 = vld [vmem:[%s0 + $0x10] sm:$0x30]
  %v733 = vld [vmem:[%s0 + $0x18] sm:$0x30]
  %v734 = vld [vmem:[%s3] sm:$0xff]
  %v735 = vld [vmem:[%s3 + $0x8] sm:$0xff]
  %v736 = vld [vmem:[%s3 + $0x10] sm:$0xff]
  %v737 = vld [vmem:[%s3 + $0x18] sm:$0xff]
  %v738 = vld [vmem:[%s3 + $0x20] sm:$0xff]
  %v739 = vld [vmem:[%s3 + $0x28] sm:$0xff]
  %v740 = vld [vmem:[%s3 + $0x30] sm:$0xff]
  %v741 = vld [vmem:[%s3 + $0x38] sm:$0xff]
  %v742 = vld [vmem:[%s3 + $0x40] sm:$0xff]
  %v743 = vld [vmem:[%s3 + $0x48] sm:$0xff]
  %v744 = vld [vmem:[%s3 + $0x50] sm:$0xff]
  %v745 = vld [vmem:[%s3 + $0x58] sm:$0xff]
  %v746 = vld [vmem:[%s3 + $0x60] sm:$0xff]
  %v747 = vld [vmem:[%s3 + $0x68] sm:$0xff]
  %v748 = vld [vmem:[%s3 + $0x70] sm:$0xff]
  %v749 = vld [vmem:[%s3 + $0x78] sm:$0xff]
  %v750 = vld [vmem:[%s3 + $0x80] sm:$0xff]
  %v751 = vld [vmem:[%s3 + $0x88] sm:$0xff]
  %v752 = vld [vmem:[%s3 + $0x90] sm:$0xff]
  %v753 = vld [vmem:[%s3 + $0x98] sm:$0xff]
  %v754 = vld [vmem:[%s3 + $0xa0] sm:$0xff]
  %v755 = vld [vmem:[%s3 + $0xa8] sm:$0xff]
  %v756 = vld [vmem:[%s3 + $0xb0] sm:$0xff]
  %v757 = vld [vmem:[%s3 + $0xb8] sm:$0xff]
  %v758 = vld [vmem:[%s3 + $0xc0] sm:$0xff]
  %v759 = vld [vmem:[%s3 + $0xc8] sm:$0xff]
  %v760 = vld [vmem:[%s3 + $0xd0] sm:$0xff]
  %v761 = vld [vmem:[%s3 + $0xd8] sm:$0xff]
  %v762 = vld [vmem:[%s3 + $0xe0] sm:$0xff]
  %v763 = vld [vmem:[%s3 + $0xe8] sm:$0xff]
  %v764 = vld [vmem:[%s3 + $0xf0] sm:$0xff]
  %v765 = vld [vmem:[%s3 + $0xf8] sm:$0xff]
  %v766 = vld [vmem:[%s3 + $0x100] sm:$0xff]
  %v767 = vld [vmem:[%s3 + $0x108] sm:$0xff]
  %v768 = vld [vmem:[%s3 + $0x110] sm:$0xff]
  %v769 = vld [vmem:[%s3 + $0x118] sm:$0xff]
  %v770 = vld [vmem:[%s3 + $0x120] sm:$0xff]
  %v771 = vld [vmem:[%s3 + $0x128] sm:$0xff]
  %v772 = vld [vmem:[%s3 + $0x130] sm:$0xff]
  %v773 = vld [vmem:[%s3 + $0x138] sm:$0xff]
  %v774 = vld [vmem:[%s3 + $0x140] sm:$0xff]
  %v775 = vld [vmem:[%s3 + $0x148] sm:$0xff]
  %v776 = vld [vmem:[%s3 + $0x150] sm:$0xff]
  %v777 = vld [vmem:[%s3 + $0x158] sm:$0xff]
  %v778 = vld [vmem:[%s3 + $0x160] sm:$0xff]
  %v779 = vld [vmem:[%s3 + $0x168] sm:$0xff]
  %v780 = vld [vmem:[%s3 + $0x170] sm:$0xff]
  %v781 = vld [vmem:[%s3 + $0x178] sm:$0xff]
  %v782 = vld [vmem:[%s3 + $0x180] sm:$0xff]
  %v783 = vld [vmem:[%s3 + $0x188] sm:$0xff]
  %v784 = vld [vmem:[%s3 + $0x190] sm:$0xff]
  %v785 = vld [vmem:[%s3 + $0x198] sm:$0xff]
  %v786 = vld [vmem:[%s3 + $0x1a0] sm:$0xff]
  %v787 = vld [vmem:[%s3 + $0x1a8] sm:$0xff]
  %v788 = vld [vmem:[%s3 + $0x1b0] sm:$0xff]
  %v789 = vld [vmem:[%s3 + $0x1b8] sm:$0xff]
  %v790 = vld [vmem:[%s3 + $0x1c0] sm:$0xff]
  %v791 = vld [vmem:[%s3 + $0x1c8] sm:$0xff]
  %v792 = vld [vmem:[%s3 + $0x1d0] sm:$0xff]
  %v793 = vld [vmem:[%s3 + $0x1d8] sm:$0xff]
  %v794 = vld [vmem:[%s3 + $0x1e0] sm:$0xff]
  %v795 = vld [vmem:[%s3 + $0x1e8] sm:$0xff]
  %v796 = vld [vmem:[%s3 + $0x1f0] sm:$0xff]
  %v797 = vld [vmem:[%s3 + $0x1f8] sm:$0xff]
  %798 = vmatpush.msra.mxu0 %v794
  %799 = vmatpush.msra.mxu0 %v790
  %800 = vmatpush.msra.mxu0 %v786
  %801 = vmatpush.msra.mxu0 %v782
  %802 = vmatpush.msra.mxu0 %v778
  %803 = vmatpush.msra.mxu0 %v774
  %804 = vmatpush.msra.mxu0 %v770
  %805 = vmatpush.msra.mxu0 %v766
  %806 = vmatpush.msra.mxu0 %v762
  %807 = vmatpush.msra.mxu0 %v758
  %808 = vmatpush.msra.mxu0 %v754
  %809 = vmatpush.msra.mxu0 %v750
  %810 = vmatpush.msra.mxu0 %v746
  %811 = vmatpush.msra.mxu0 %v742
  %812 = vmatpush.msra.mxu0 %v738
  %813 = vmatpush.msra.mxu0 %v734
  %814 = vmatmul.f32.gmra.mxu0 %v728
  %v815 = vpop.f32.mrf.mxu0
  %v816 = vadd.f32 0.0, %v815
  %817 = vdwg.mxu0
  %818 = vmatpush.msra.mxu0 %v795
  %819 = vmatpush.msra.mxu0 %v791
  %820 = vmatpush.msra.mxu0 %v787
  %821 = vmatpush.msra.mxu0 %v783
  %822 = vmatpush.msra.mxu0 %v779
  %823 = vmatpush.msra.mxu0 %v775
  %824 = vmatpush.msra.mxu0 %v771
  %825 = vmatpush.msra.mxu0 %v767
  %826 = vmatpush.msra.mxu0 %v763
  %827 = vmatpush.msra.mxu0 %v759
  %828 = vmatpush.msra.mxu0 %v755
  %829 = vmatpush.msra.mxu0 %v751
  %830 = vmatpush.msra.mxu0 %v747
  %831 = vmatpush.msra.mxu0 %v743
  %832 = vmatpush.msra.mxu0 %v739
  %833 = vmatpush.msra.mxu0 %v735
  %834 = vmatmul.f32.gmra.mxu0 %v728
  %v835 = vpop.f32.mrf.mxu0
  %v836 = vadd.f32 0.0, %v835
  %837 = vdwg.mxu0
  %838 = vmatpush.msra.mxu0 %v796
  %839 = vmatpush.msra.mxu0 %v792
  %840 = vmatpush.msra.mxu0 %v788
  %841 = vmatpush.msra.mxu0 %v784
  %842 = vmatpush.msra.mxu0 %v780
  %843 = vmatpush.msra.mxu0 %v776
  %844 = vmatpush.msra.mxu0 %v772
  %845 = vmatpush.msra.mxu0 %v768
  %846 = vmatpush.msra.mxu0 %v764
  %847 = vmatpush.msra.mxu0 %v760
  %848 = vmatpush.msra.mxu0 %v756
  %849 = vmatpush.msra.mxu0 %v752
  %850 = vmatpush.msra.mxu0 %v748
  %851 = vmatpush.msra.mxu0 %v744
  %852 = vmatpush.msra.mxu0 %v740
  %853 = vmatpush.msra.mxu0 %v736
  %854 = vmatmul.f32.gmra.mxu0 %v728
  %v855 = vpop.f32.mrf.mxu0
  %v856 = vadd.f32 0.0, %v855
  %857 = vdwg.mxu0
  %858 = vmatpush.msra.mxu0 %v797
  %859 = vmatpush.msra.mxu0 %v793
  %860 = vmatpush.msra.mxu0 %v789
  %861 = vmatpush.msra.mxu0 %v785
  %862 = vmatpush.msra.mxu0 %v781
  %863 = vmatpush.msra.mxu0 %v777
  %864 = vmatpush.msra.mxu0 %v773
  %865 = vmatpush.msra.mxu0 %v769
  %866 = vmatpush.msra.mxu0 %v765
  %867 = vmatpush.msra.mxu0 %v761
  %868 = vmatpush.msra.mxu0 %v757
  %869 = vmatpush.msra.mxu0 %v753
  %870 = vmatpush.msra.mxu0 %v749
  %871 = vmatpush.msra.mxu0 %v745
  %872 = vmatpush.msra.mxu0 %v741
  %873 = vmatpush.msra.mxu0 %v737
  %874 = vmatmul.f32.gmra.mxu0 %v728
  %v875 = vpop.f32.mrf.mxu0
  %v876 = vadd.f32 0.0, %v875
  %877 = vdwg.mxu0
  %v882 = vrot.slane %v816, 4
  %v883 = vrot.slane %v836, 4
  %v884 = vrot.slane %v856, 4
  %v885 = vrot.slane %v876, 4
  %v890 = vadd.f32 %v730, %v882
  %v891 = vadd.f32 %v731, %v883
  %v892 = vadd.f32 %v732, %v884
  %v893 = vadd.f32 %v733, %v885
  %v894 = vmul.f32 %v890, 0.5
  %v895 = vtanh.pop %v894
  %v896 = vmul.f32 %v895, 0.5
  %v897 = vadd.f32 %v896, 0.5
  %v898 = vmul.f32 %v891, 0.5
  %v899 = vtanh.pop %v898
  %v900 = vmul.f32 %v899, 0.5
  %v901 = vadd.f32 %v900, 0.5
  %v902 = vtanh.pop %v892
  %v903 = vmul.f32 %v893, 0.5
  %v904 = vtanh.pop %v903
  %v905 = vmul.f32 %v904, 0.5
  %v906 = vadd.f32 %v905, 0.5
  %v908 = vrot.slane %v729, 4
  %v910 = vmul.f32 %v901, %v908
  %v911 = vmul.f32 %v897, %v902
  %v912 = vadd.f32 %v910, %v911
  %v913 = vtanh.pop %v912
  %v914 = vmul.f32 %v906, %v913
  %915 = vst [vmem:[%s8 - $0x4] sm:$0x30] %v912
  %916 = vst [vmem:[%s7 - $0x4] sm:$0x30] %v914
  %v917 = vld [vmem:[%s4] sm:$0xff]
  %v918 = vld [vmem:[%s4 + $0x8] sm:$0xff]
  %v919 = vld [vmem:[%s4 + $0x10] sm:$0xff]
  %v920 = vld [vmem:[%s4 + $0x18] sm:$0xff]
  %v921 = vld [vmem:[%s4 + $0x20] sm:$0xff]
  %v922 = vld [vmem:[%s4 + $0x28] sm:$0xff]
  %v923 = vld [vmem:[%s4 + $0x30] sm:$0xff]
  %v924 = vld [vmem:[%s4 + $0x38] sm:$0xff]
  %v925 = vld [vmem:[%s4 + $0x40] sm:$0xff]
  %v926 = vld [vmem:[%s4 + $0x48] sm:$0xff]
  %v927 = vld [vmem:[%s4 + $0x50] sm:$0xff]
  %v928 = vld [vmem:[%s4 + $0x58] sm:$0xff]
  %v929 = vld [vmem:[%s4 + $0x60] sm:$0xff]
  %v930 = vld [vmem:[%s4 + $0x68] sm:$0xff]
  %v931 = vld [vmem:[%s4 + $0x70] sm:$0xff]
  %v932 = vld [vmem:[%s4 + $0x78] sm:$0xff]
  %v933 = vld [vmem:[%s4 + $0x80] sm:$0xff]
  %v934 = vld [vmem:[%s4 + $0x88] sm:$0xff]
  %v935 = vld [vmem:[%s4 + $0x90] sm:$0xff]
  %v936 = vld [vmem:[%s4 + $0x98] sm:$0xff]
  %v937 = vld [vmem:[%s4 + $0xa0] sm:$0xff]
  %v938 = vld [vmem:[%s4 + $0xa8] sm:$0xff]
  %v939 = vld [vmem:[%s4 + $0xb0] sm:$0xff]
  %v940 = vld [vmem:[%s4 + $0xb8] sm:$0xff]
  %v941 = vld [vmem:[%s4 + $0xc0] sm:$0xff]
  %v942 = vld [vmem:[%s4 + $0xc8] sm:$0xff]
  %v943 = vld [vmem:[%s4 + $0xd0] sm:$0xff]
  %v944 = vld [vmem:[%s4 + $0xd8] sm:$0xff]
  %v945 = vld [vmem:[%s4 + $0xe0] sm:$0xff]
  %v946 = vld [vmem:[%s4 + $0xe8] sm:$0xff]
  %v947 = vld [vmem:[%s4 + $0xf0] sm:$0xff]
  %v948 = vld [vmem:[%s4 + $0xf8] sm:$0xff]
  %v949 = vld [vmem:[%s4 + $0x100] sm:$0xff]
  %v950 = vld [vmem:[%s4 + $0x108] sm:$0xff]
  %v951 = vld [vmem:[%s4 + $0x110] sm:$0xff]
  %v952 = vld [vmem:[%s4 + $0x118] sm:$0xff]
  %v953 = vld [vmem:[%s4 + $0x120] sm:$0xff]
  %v954 = vld [vmem:[%s4 + $0x128] sm:$0xff]
  %v955 = vld [vmem:[%s4 + $0x130] sm:$0xff]
  %v956 = vld [vmem:[%s4 + $0x138] sm:$0xff]
  %v957 = vld [vmem:[%s4 + $0x140] sm:$0xff]
  %v958 = vld [vmem:[%s4 + $0x148] sm:$0xff]
  %v959 = vld [vmem:[%s4 + $0x150] sm:$0xff]
  %v960 = vld [vmem:[%s4 + $0x158] sm:$0xff]
  %v961 = vld [vmem:[%s4 + $0x160] sm:$0xff]
  %v962 = vld [vmem:[%s4 + $0x168] sm:$0xff]
  %v963 = vld [vmem:[%s4 + $0x170] sm:$0xff]
  %v964 = vld [vmem:[%s4 + $0x178] sm:$0xff]
  %v965 = vld [vmem:[%s4 + $0x180] sm:$0xff]
  %v966 = vld [vmem:[%s4 + $0x188] sm:$0xff]
  %v967 = vld [vmem:[%s4 + $0x190] sm:$0xff]
  %v968 = vld [vmem:[%s4 + $0x198] sm:$0xff]
  %v969 = vld [vmem:[%s4 + $0x1a0] sm:$0xff]
  %v970 = vld [vmem:[%s4 + $0x1a8] sm:$0xff]
  %v971 = vld [vmem:[%s4 + $0x1b0] sm:$0xff]
  %v972 = vld [vmem:[%s4 + $0x1b8] sm:$0xff]
  %v973 = vld [vmem:[%s4 + $0x1c0] sm:$0xff]
  %v974 = vld [vmem:[%s4 + $0x1c8] sm:$0xff]
  %v975 = vld [vmem:[%s4 + $0x1d0] sm:$0xff]
  %v976 = vld [vmem:[%s4 + $0x1d8] sm:$0xff]
  %v977 = vld [vmem:[%s4 + $0x1e0] sm:$0xff]
  %v978 = vld [vmem:[%s4 + $0x1e8] sm:$0xff]
  %v979 = vld [vmem:[%s4 + $0x1f0] sm:$0xff]
  %v980 = vld [vmem:[%s4 + $0x1f8] sm:$0xff]
  %v981 = vld [vmem:[%s5] sm:$0xf]
  %v983 = vperm.slane %v981, 0
  %v984 = vperm.slane %v981, 1
  %v985 = vperm.slane %v981, 2
  %v986 = vperm.slane %v981, 3
  %v992 = vrot.slane %v914, 4
  %994 = vmatpush.msra.mxu0 %v977
  %995 = vmatpush.msra.mxu0 %v973
  %996 = vmatpush.msra.mxu0 %v969
  %997 = vmatpush.msra.mxu0 %v965
  %998 = vmatpush.msra.mxu0 %v961
  %999 = vmatpush.msra.mxu0 %v957
  %1000 = vmatpush.msra.mxu0 %v953
  %1001 = vmatpush.msra.mxu0 %v949
  %1002 = vmatpush.msra.mxu0 %v945
  %1003 = vmatpush.msra.mxu0 %v941
  %1004 = vmatpush.msra.mxu0 %v937
  %1005 = vmatpush.msra.mxu0 %v933
  %1006 = vmatpush.msra.mxu0 %v929
  %1007 = vmatpush.msra.mxu0 %v925
  %1008 = vmatpush.msra.mxu0 %v921
  %1009 = vmatpush.msra.mxu0 %v917
  %1010 = vmatmul.f32.gmra.mxu0 %v992
  %v1011 = vpop.f32.mrf.mxu0
  %v1012 = vadd.f32 %v983, %v1011
  %1013 = vdwg.mxu0
  %1014 = vmatpush.msra.mxu0 %v978
  %1015 = vmatpush.msra.mxu0 %v974
  %1016 = vmatpush.msra.mxu0 %v970
  %1017 = vmatpush.msra.mxu0 %v966
  %1018 = vmatpush.msra.mxu0 %v962
  %1019 = vmatpush.msra.mxu0 %v958
  %1020 = vmatpush.msra.mxu0 %v954
  %1021 = vmatpush.msra.mxu0 %v950
  %1022 = vmatpush.msra.mxu0 %v946
  %1023 = vmatpush.msra.mxu0 %v942
  %1024 = vmatpush.msra.mxu0 %v938
  %1025 = vmatpush.msra.mxu0 %v934
  %1026 = vmatpush.msra.mxu0 %v930
  %1027 = vmatpush.msra.mxu0 %v926
  %1028 = vmatpush.msra.mxu0 %v922
  %1029 = vmatpush.msra.mxu0 %v918
  %1030 = vmatmul.f32.gmra.mxu0 %v992
  %v1031 = vpop.f32.mrf.mxu0
  %v1032 = vadd.f32 %v984, %v1031
  %1033 = vdwg.mxu0
  %1034 = vmatpush.msra.mxu0 %v979
  %1035 = vmatpush.msra.mxu0 %v975
  %1036 = vmatpush.msra.mxu0 %v971
  %1037 = vmatpush.msra.mxu0 %v967
  %1038 = vmatpush.msra.mxu0 %v963
  %1039 = vmatpush.msra.mxu0 %v959
  %1040 = vmatpush.msra.mxu0 %v955
  %1041 = vmatpush.msra.mxu0 %v951
  %1042 = vmatpush.msra.mxu0 %v947
  %1043 = vmatpush.msra.mxu0 %v943
  %1044 = vmatpush.msra.mxu0 %v939
  %1045 = vmatpush.msra.mxu0 %v935
  %1046 = vmatpush.msra.mxu0 %v931
  %1047 = vmatpush.msra.mxu0 %v927
  %1048 = vmatpush.msra.mxu0 %v923
  %1049 = vmatpush.msra.mxu0 %v919
  %1050 = vmatmul.f32.gmra.mxu0 %v992
  %v1051 = vpop.f32.mrf.mxu0
  %v1052 = vadd.f32 %v985, %v1051
  %1053 = vdwg.mxu0
  %1054 = vmatpush.msra.mxu0 %v980
  %1055 = vmatpush.msra.mxu0 %v976
  %1056 = vmatpush.msra.mxu0 %v972
  %1057 = vmatpush.msra.mxu0 %v968
  %1058 = vmatpush.msra.mxu0 %v964
  %1059 = vmatpush.msra.mxu0 %v960
  %1060 = vmatpush.msra.mxu0 %v956
  %1061 = vmatpush.msra.mxu0 %v952
  %1062 = vmatpush.msra.mxu0 %v948
  %1063 = vmatpush.msra.mxu0 %v944
  %1064 = vmatpush.msra.mxu0 %v940
  %1065 = vmatpush.msra.mxu0 %v936
  %1066 = vmatpush.msra.mxu0 %v932
  %1067 = vmatpush.msra.mxu0 %v928
  %1068 = vmatpush.msra.mxu0 %v924
  %1069 = vmatpush.msra.mxu0 %v920
  %1070 = vmatmul.f32.gmra.mxu0 %v992
  %v1071 = vpop.f32.mrf.mxu0
  %v1072 = vadd.f32 %v986, %v1071
  %1073 = vdwg.mxu0
  %v1078 = vrot.slane %v1012, 4
  %v1079 = vrot.slane %v1032, 4
  %v1080 = vrot.slane %v1052, 4
  %v1081 = vrot.slane %v1072, 4
  %1086 = vst [vmem:[%s6] sm:$0x30] %v1078
  %1087 = vst [vmem:[%s6 + $0x8] sm:$0x30] %v1079
  %1088 = vst [vmem:[%s6 + $0x10] sm:$0x30] %v1080
  %1089 = vst [vmem:[%s6 + $0x18] sm:$0x30] %v1081
  %v1090 = vld [vmem:[%s7] sm:$0x3]
  %v1091 = vld [vmem:[%s8] sm:$0x3]
  %v1092 = vld [vmem:[%s0] sm:$0xc0]
  %v1093 = vld [vmem:[%s0 + $0x8] sm:$0xc0]
  %v1094 = vld [vmem:[%s0 + $0x10] sm:$0xc0]
  %v1095 = vld [vmem:[%s0 + $0x18] sm:$0xc0]
  %v1096 = vld [vmem:[%s3] sm:$0xff]
  %v1097 = vld [vmem:[%s3 + $0x8] sm:$0xff]
  %v1098 = vld [vmem:[%s3 + $0x10] sm:$0xff]
  %v1099 = vld [vmem:[%s3 + $0x18] sm:$0xff]
  %v1100 = vld [vmem:[%s3 + $0x20] sm:$0xff]
  %v1101 = vld [vmem:[%s3 + $0x28] sm:$0xff]
  %v1102 = vld [vmem:[%s3 + $0x30] sm:$0xff]
  %v1103 = vld [vmem:[%s3 + $0x38] sm:$0xff]
  %v1104 = vld [vmem:[%s3 + $0x40] sm:$0xff]
  %v1105 = vld [vmem:[%s3 + $0x48] sm:$0xff]
  %v1106 = vld [vmem:[%s3 + $0x50] sm:$0xff]
  %v1107 = vld [vmem:[%s3 + $0x58] sm:$0xff]
  %v1108 = vld [vmem:[%s3 + $0x60] sm:$0xff]
  %v1109 = vld [vmem:[%s3 + $0x68] sm:$0xff]
  %v1110 = vld [vmem:[%s3 + $0x70] sm:$0xff]
  %v1111 = vld [vmem:[%s3 + $0x78] sm:$0xff]
  %v1112 = vld [vmem:[%s3 + $0x80] sm:$0xff]
  %v1113 = vld [vmem:[%s3 + $0x88] sm:$0xff]
  %v1114 = vld [vmem:[%s3 + $0x90] sm:$0xff]
  %v1115 = vld [vmem:[%s3 + $0x98] sm:$0xff]
  %v1116 = vld [vmem:[%s3 + $0xa0] sm:$0xff]
  %v1117 = vld [vmem:[%s3 + $0xa8] sm:$0xff]
  %v1118 = vld [vmem:[%s3 + $0xb0] sm:$0xff]
  %v1119 = vld [vmem:[%s3 + $0xb8] sm:$0xff]
  %v1120 = vld [vmem:[%s3 + $0xc0] sm:$0xff]
  %v1121 = vld [vmem:[%s3 + $0xc8] sm:$0xff]
  %v1122 = vld [vmem:[%s3 + $0xd0] sm:$0xff]
  %v1123 = vld [vmem:[%s3 + $0xd8] sm:$0xff]
  %v1124 = vld [vmem:[%s3 + $0xe0] sm:$0xff]
  %v1125 = vld [vmem:[%s3 + $0xe8] sm:$0xff]
  %v1126 = vld [vmem:[%s3 + $0xf0] sm:$0xff]
  %v1127 = vld [vmem:[%s3 + $0xf8] sm:$0xff]
  %v1128 = vld [vmem:[%s3 + $0x100] sm:$0xff]
  %v1129 = vld [vmem:[%s3 + $0x108] sm:$0xff]
  %v1130 = vld [vmem:[%s3 + $0x110] sm:$0xff]
  %v1131 = vld [vmem:[%s3 + $0x118] sm:$0xff]
  %v1132 = vld [vmem:[%s3 + $0x120] sm:$0xff]
  %v1133 = vld [vmem:[%s3 + $0x128] sm:$0xff]
  %v1134 = vld [vmem:[%s3 + $0x130] sm:$0xff]
  %v1135 = vld [vmem:[%s3 + $0x138] sm:$0xff]
  %v1136 = vld [vmem:[%s3 + $0x140] sm:$0xff]
  %v1137 = vld [vmem:[%s3 + $0x148] sm:$0xff]
  %v1138 = vld [vmem:[%s3 + $0x150] sm:$0xff]
  %v1139 = vld [vmem:[%s3 + $0x158] sm:$0xff]
  %v1140 = vld [vmem:[%s3 + $0x160] sm:$0xff]
  %v1141 = vld [vmem:[%s3 + $0x168] sm:$0xff]
  %v1142 = vld [vmem:[%s3 + $0x170] sm:$0xff]
  %v1143 = vld [vmem:[%s3 + $0x178] sm:$0xff]
  %v1144 = vld [vmem:[%s3 + $0x180] sm:$0xff]
  %v1145 = vld [vmem:[%s3 + $0x188] sm:$0xff]
  %v1146 = vld [vmem:[%s3 + $0x190] sm:$0xff]
  %v1147 = vld [vmem:[%s3 + $0x198] sm:$0xff]
  %v1148 = vld [vmem:[%s3 + $0x1a0] sm:$0xff]
  %v1149 = vld [vmem:[%s3 + $0x1a8] sm:$0xff]
  %v1150 = vld [vmem:[%s3 + $0x1b0] sm:$0xff]
  %v1151 = vld [vmem:[%s3 + $0x1b8] sm:$0xff]
  %v1152 = vld [vmem:[%s3 + $0x1c0] sm:$0xff]
  %v1153 = vld [vmem:[%s3 + $0x1c8] sm:$0xff]
  %v1154 = vld [vmem:[%s3 + $0x1d0] sm:$0xff]
  %v1155 = vld [vmem:[%s3 + $0x1d8] sm:$0xff]
  %v1156 = vld [vmem:[%s3 + $0x1e0] sm:$0xff]
  %v1157 = vld [vmem:[%s3 + $0x1e8] sm:$0xff]
  %v1158 = vld [vmem:[%s3 + $0x1f0] sm:$0xff]
  %v1159 = vld [vmem:[%s3 + $0x1f8] sm:$0xff]
  %1160 = vmatpush.msra.mxu0 %v1156
  %1161 = vmatpush.msra.mxu0 %v1152
  %1162 = vmatpush.msra.mxu0 %v1148
  %1163 = vmatpush.msra.mxu0 %v1144
  %1164 = vmatpush.msra.mxu0 %v1140
  %1165 = vmatpush.msra.mxu0 %v1136
  %1166 = vmatpush.msra.mxu0 %v1132
  %1167 = vmatpush.msra.mxu0 %v1128
  %1168 = vmatpush.msra.mxu0 %v1124
  %1169 = vmatpush.msra.mxu0 %v1120
  %1170 = vmatpush.msra.mxu0 %v1116
  %1171 = vmatpush.msra.mxu0 %v1112
  %1172 = vmatpush.msra.mxu0 %v1108
  %1173 = vmatpush.msra.mxu0 %v1104
  %1174 = vmatpush.msra.mxu0 %v1100
  %1175 = vmatpush.msra.mxu0 %v1096
  %1176 = vmatmul.f32.gmra.mxu0 %v1090
  %v1177 = vpop.f32.mrf.mxu0
  %v1178 = vadd.f32 0.0, %v1177
  %1179 = vdwg.mxu0
  %1180 = vmatpush.msra.mxu0 %v1157
  %1181 = vmatpush.msra.mxu0 %v1153
  %1182 = vmatpush.msra.mxu0 %v1149
  %1183 = vmatpush.msra.mxu0 %v1145
  %1184 = vmatpush.msra.mxu0 %v1141
  %1185 = vmatpush.msra.mxu0 %v1137
  %1186 = vmatpush.msra.mxu0 %v1133
  %1187 = vmatpush.msra.mxu0 %v1129
  %1188 = vmatpush.msra.mxu0 %v1125
  %1189 = vmatpush.msra.mxu0 %v1121
  %1190 = vmatpush.msra.mxu0 %v1117
  %1191 = vmatpush.msra.mxu0 %v1113
  %1192 = vmatpush.msra.mxu0 %v1109
  %1193 = vmatpush.msra.mxu0 %v1105
  %1194 = vmatpush.msra.mxu0 %v1101
  %1195 = vmatpush.msra.mxu0 %v1097
  %1196 = vmatmul.f32.gmra.mxu0 %v1090
  %v1197 = vpop.f32.mrf.mxu0
  %v1198 = vadd.f32 0.0, %v1197
  %1199 = vdwg.mxu0
  %1200 = vmatpush.msra.mxu0 %v1158
  %1201 = vmatpush.msra.mxu0 %v1154
  %1202 = vmatpush.msra.mxu0 %v1150
  %1203 = vmatpush.msra.mxu0 %v1146
  %1204 = vmatpush.msra.mxu0 %v1142
  %1205 = vmatpush.msra.mxu0 %v1138
  %1206 = vmatpush.msra.mxu0 %v1134
  %1207 = vmatpush.msra.mxu0 %v1130
  %1208 = vmatpush.msra.mxu0 %v1126
  %1209 = vmatpush.msra.mxu0 %v1122
  %1210 = vmatpush.msra.mxu0 %v1118
  %1211 = vmatpush.msra.mxu0 %v1114
  %1212 = vmatpush.msra.mxu0 %v1110
  %1213 = vmatpush.msra.mxu0 %v1106
  %1214 = vmatpush.msra.mxu0 %v1102
  %1215 = vmatpush.msra.mxu0 %v1098
  %1216 = vmatmul.f32.gmra.mxu0 %v1090
  %v1217 = vpop.f32.mrf.mxu0
  %v1218 = vadd.f32 0.0, %v1217
  %1219 = vdwg.mxu0
  %1220 = vmatpush.msra.mxu0 %v1159
  %1221 = vmatpush.msra.mxu0 %v1155
  %1222 = vmatpush.msra.mxu0 %v1151
  %1223 = vmatpush.msra.mxu0 %v1147
  %1224 = vmatpush.msra.mxu0 %v1143
  %1225 = vmatpush.msra.mxu0 %v1139
  %1226 = vmatpush.msra.mxu0 %v1135
  %1227 = vmatpush.msra.mxu0 %v1131
  %1228 = vmatpush.msra.mxu0 %v1127
  %1229 = vmatpush.msra.mxu0 %v1123
  %1230 = vmatpush.msra.mxu0 %v1119
  %1231 = vmatpush.msra.mxu0 %v1115
  %1232 = vmatpush.msra.mxu0 %v1111
  %1233 = vmatpush.msra.mxu0 %v1107
  %1234 = vmatpush.msra.mxu0 %v1103
  %1235 = vmatpush.msra.mxu0 %v1099
  %1236 = vmatmul.f32.gmra.mxu0 %v1090
  %v1237 = vpop.f32.mrf.mxu0
  %v1238 = vadd.f32 0.0, %v1237
  %1239 = vdwg.mxu0
  %v1244 = vrot.slane %v1178, 2
  %v1245 = vrot.slane %v1198, 2
  %v1246 = vrot.slane %v1218, 2
  %v1247 = vrot.slane %v1238, 2
  %v1252 = vadd.f32 %v1092, %v1244
  %v1253 = vadd.f32 %v1093, %v1245
  %v1254 = vadd.f32 %v1094, %v1246
  %v1255 = vadd.f32 %v1095, %v1247
  %v1256 = vmul.f32 %v1252, 0.5
  %v1257 = vtanh.pop %v1256
  %v1258 = vmul.f32 %v1257, 0.5
  %v1259 = vadd.f32 %v1258, 0.5
  %v1260 = vmul.f32 %v1253, 0.5
  %v1261 = vtanh.pop %v1260
  %v1262 = vmul.f32 %v1261, 0.5
  %v1263 = vadd.f32 %v1262, 0.5
  %v1264 = vtanh.pop %v1254
  %v1265 = vmul.f32 %v1255, 0.5
  %v1266 = vtanh.pop %v1265
  %v1267 = vmul.f32 %v1266, 0.5
  %v1268 = vadd.f32 %v1267, 0.5
  %v1270 = vrot.slane %v1091, 2
  %v1272 = vmul.f32 %v1263, %v1270
  %v1273 = vmul.f32 %v1259, %v1264
  %v1274 = vadd.f32 %v1272, %v1273
  %v1275 = vtanh.pop %v1274
  %v1276 = vmul.f32 %v1268, %v1275
  %1277 = vst [vmem:[%s8 - $0x6] sm:$0xc0] %v1274
  %1278 = vst [vmem:[%s7 - $0x6] sm:$0xc0] %v1276
  %v1279 = vld [vmem:[%s4] sm:$0xff]
  %v1280 = vld [vmem:[%s4 + $0x8] sm:$0xff]
  %v1281 = vld [vmem:[%s4 + $0x10] sm:$0xff]
  %v1282 = vld [vmem:[%s4 + $0x18] sm:$0xff]
  %v1283 = vld [vmem:[%s4 + $0x20] sm:$0xff]
  %v1284 = vld [vmem:[%s4 + $0x28] sm:$0xff]
  %v1285 = vld [vmem:[%s4 + $0x30] sm:$0xff]
  %v1286 = vld [vmem:[%s4 + $0x38] sm:$0xff]
  %v1287 = vld [vmem:[%s4 + $0x40] sm:$0xff]
  %v1288 = vld [vmem:[%s4 + $0x48] sm:$0xff]
  %v1289 = vld [vmem:[%s4 + $0x50] sm:$0xff]
  %v1290 = vld [vmem:[%s4 + $0x58] sm:$0xff]
  %v1291 = vld [vmem:[%s4 + $0x60] sm:$0xff]
  %v1292 = vld [vmem:[%s4 + $0x68] sm:$0xff]
  %v1293 = vld [vmem:[%s4 + $0x70] sm:$0xff]
  %v1294 = vld [vmem:[%s4 + $0x78] sm:$0xff]
  %v1295 = vld [vmem:[%s4 + $0x80] sm:$0xff]
  %v1296 = vld [vmem:[%s4 + $0x88] sm:$0xff]
  %v1297 = vld [vmem:[%s4 + $0x90] sm:$0xff]
  %v1298 = vld [vmem:[%s4 + $0x98] sm:$0xff]
  %v1299 = vld [vmem:[%s4 + $0xa0] sm:$0xff]
  %v1300 = vld [vmem:[%s4 + $0xa8] sm:$0xff]
  %v1301 = vld [vmem:[%s4 + $0xb0] sm:$0xff]
  %v1302 = vld [vmem:[%s4 + $0xb8] sm:$0xff]
  %v1303 = vld [vmem:[%s4 + $0xc0] sm:$0xff]
  %v1304 = vld [vmem:[%s4 + $0xc8] sm:$0xff]
  %v1305 = vld [vmem:[%s4 + $0xd0] sm:$0xff]
  %v1306 = vld [vmem:[%s4 + $0xd8] sm:$0xff]
  %v1307 = vld [vmem:[%s4 + $0xe0] sm:$0xff]
  %v1308 = vld [vmem:[%s4 + $0xe8] sm:$0xff]
  %v1309 = vld [vmem:[%s4 + $0xf0] sm:$0xff]
  %v1310 = vld [vmem:[%s4 + $0xf8] sm:$0xff]
  %v1311 = vld [vmem:[%s4 + $0x100] sm:$0xff]
  %v1312 = vld [vmem:[%s4 + $0x108] sm:$0xff]
  %v1313 = vld [vmem:[%s4 + $0x110] sm:$0xff]
  %v1314 = vld [vmem:[%s4 + $0x118] sm:$0xff]
  %v1315 = vld [vmem:[%s4 + $0x120] sm:$0xff]
  %v1316 = vld [vmem:[%s4 + $0x128] sm:$0xff]
  %v1317 = vld [vmem:[%s4 + $0x130] sm:$0xff]
  %v1318 = vld [vmem:[%s4 + $0x138] sm:$0xff]
  %v1319 = vld [vmem:[%s4 + $0x140] sm:$0xff]
  %v1320 = vld [vmem:[%s4 + $0x148] sm:$0xff]
  %v1321 = vld [vmem:[%s4 + $0x150] sm:$0xff]
  %v1322 = vld [vmem:[%s4 + $0x158] sm:$0xff]
  %v1323 = vld [vmem:[%s4 + $0x160] sm:$0xff]
  %v1324 = vld [vmem:[%s4 + $0x168] sm:$0xff]
  %v1325 = vld [vmem:[%s4 + $0x170] sm:$0xff]
  %v1326 = vld [vmem:[%s4 + $0x178] sm:$0xff]
  %v1327 = vld [vmem:[%s4 + $0x180] sm:$0xff]
  %v1328 = vld [vmem:[%s4 + $0x188] sm:$0xff]
  %v1329 = vld [vmem:[%s4 + $0x190] sm:$0xff]
  %v1330 = vld [vmem:[%s4 + $0x198] sm:$0xff]
  %v1331 = vld [vmem:[%s4 + $0x1a0] sm:$0xff]
  %v1332 = vld [vmem:[%s4 + $0x1a8] sm:$0xff]
  %v1333 = vld [vmem:[%s4 + $0x1b0] sm:$0xff]
  %v1334 = vld [vmem:[%s4 + $0x1b8] sm:$0xff]
  %v1335 = vld [vmem:[%s4 + $0x1c0] sm:$0xff]
  %v1336 = vld [vmem:[%s4 + $0x1c8] sm:$0xff]
  %v1337 = vld [vmem:[%s4 + $0x1d0] sm:$0xff]
  %v1338 = vld [vmem:[%s4 + $0x1d8] sm:$0xff]
  %v1339 = vld [vmem:[%s4 + $0x1e0] sm:$0xff]
  %v1340 = vld [vmem:[%s4 + $0x1e8] sm:$0xff]
  %v1341 = vld [vmem:[%s4 + $0x1f0] sm:$0xff]
  %v1342 = vld [vmem:[%s4 + $0x1f8] sm:$0xff]
  %v1343 = vld [vmem:[%s5] sm:$0xf]
  %v1345 = vperm.slane %v1343, 0
  %v1346 = vperm.slane %v1343, 1
  %v1347 = vperm.slane %v1343, 2
  %v1348 = vperm.slane %v1343, 3
  %v1354 = vrot.slane %v1276, 6
  %1356 = vmatpush.msra.mxu0 %v1339
  %1357 = vmatpush.msra.mxu0 %v1335
  %1358 = vmatpush.msra.mxu0 %v1331
  %1359 = vmatpush.msra.mxu0 %v1327
  %1360 = vmatpush.msra.mxu0 %v1323
  %1361 = vmatpush.msra.mxu0 %v1319
  %1362 = vmatpush.msra.mxu0 %v1315
  %1363 = vmatpush.msra.mxu0 %v1311
  %1364 = vmatpush.msra.mxu0 %v1307
  %1365 = vmatpush.msra.mxu0 %v1303
  %1366 = vmatpush.msra.mxu0 %v1299
  %1367 = vmatpush.msra.mxu0 %v1295
  %1368 = vmatpush.msra.mxu0 %v1291
  %1369 = vmatpush.msra.mxu0 %v1287
  %1370 = vmatpush.msra.mxu0 %v1283
  %1371 = vmatpush.msra.mxu0 %v1279
  %1372 = vmatmul.f32.gmra.mxu0 %v1354
  %v1373 = vpop.f32.mrf.mxu0
  %v1374 = vadd.f32 %v1345, %v1373
  %1375 = vdwg.mxu0
  %1376 = vmatpush.msra.mxu0 %v1340
  %1377 = vmatpush.msra.mxu0 %v1336
  %1378 = vmatpush.msra.mxu0 %v1332
  %1379 = vmatpush.msra.mxu0 %v1328
  %1380 = vmatpush.msra.mxu0 %v1324
  %1381 = vmatpush.msra.mxu0 %v1320
  %1382 = vmatpush.msra.mxu0 %v1316
  %1383 = vmatpush.msra.mxu0 %v1312
  %1384 = vmatpush.msra.mxu0 %v1308
  %1385 = vmatpush.msra.mxu0 %v1304
  %1386 = vmatpush.msra.mxu0 %v1300
  %1387 = vmatpush.msra.mxu0 %v1296
  %1388 = vmatpush.msra.mxu0 %v1292
  %1389 = vmatpush.msra.mxu0 %v1288
  %1390 = vmatpush.msra.mxu0 %v1284
  %1391 = vmatpush.msra.mxu0 %v1280
  %1392 = vmatmul.f32.gmra.mxu0 %v1354
  %v1393 = vpop.f32.mrf.mxu0
  %v1394 = vadd.f32 %v1346, %v1393
  %1395 = vdwg.mxu0
  %1396 = vmatpush.msra.mxu0 %v1341
  %1397 = vmatpush.msra.mxu0 %v1337
  %1398 = vmatpush.msra.mxu0 %v1333
  %1399 = vmatpush.msra.mxu0 %v1329
  %1400 = vmatpush.msra.mxu0 %v1325
  %1401 = vmatpush.msra.mxu0 %v1321
  %1402 = vmatpush.msra.mxu0 %v1317
  %1403 = vmatpush.msra.mxu0 %v1313
  %1404 = vmatpush.msra.mxu0 %v1309
  %1405 = vmatpush.msra.mxu0 %v1305
  %1406 = vmatpush.msra.mxu0 %v1301
  %1407 = vmatpush.msra.mxu0 %v1297
  %1408 = vmatpush.msra.mxu0 %v1293
  %1409 = vmatpush.msra.mxu0 %v1289
  %1410 = vmatpush.msra.mxu0 %v1285
  %1411 = vmatpush.msra.mxu0 %v1281
  %1412 = vmatmul.f32.gmra.mxu0 %v1354
  %v1413 = vpop.f32.mrf.mxu0
  %v1414 = vadd.f32 %v1347, %v1413
  %1415 = vdwg.mxu0
  %1416 = vmatpush.msra.mxu0 %v1342
  %1417 = vmatpush.msra.mxu0 %v1338
  %1418 = vmatpush.msra.mxu0 %v1334
  %1419 = vmatpush.msra.mxu0 %v1330
  %1420 = vmatpush.msra.mxu0 %v1326
  %1421 = vmatpush.msra.mxu0 %v1322
  %1422 = vmatpush.msra.mxu0 %v1318
  %1423 = vmatpush.msra.mxu0 %v1314
  %1424 = vmatpush.msra.mxu0 %v1310
  %1425 = vmatpush.msra.mxu0 %v1306
  %1426 = vmatpush.msra.mxu0 %v1302
  %1427 = vmatpush.msra.mxu0 %v1298
  %1428 = vmatpush.msra.mxu0 %v1294
  %1429 = vmatpush.msra.mxu0 %v1290
  %1430 = vmatpush.msra.mxu0 %v1286
  %1431 = vmatpush.msra.mxu0 %v1282
  %1432 = vmatmul.f32.gmra.mxu0 %v1354
  %v1433 = vpop.f32.mrf.mxu0
  %v1434 = vadd.f32 %v1348, %v1433
  %1435 = vdwg.mxu0
  %v1440 = vrot.slane %v1374, 2
  %v1441 = vrot.slane %v1394, 2
  %v1442 = vrot.slane %v1414, 2
  %v1443 = vrot.slane %v1434, 2
  %1448 = vst [vmem:[%s6] sm:$0xc0] %v1440
  %1449 = vst [vmem:[%s6 + $0x8] sm:$0xc0] %v1441
  %1450 = vst [vmem:[%s6 + $0x10] sm:$0xc0] %v1442
  %1451 = vst [vmem:[%s6 + $0x18] sm:$0xc0] %v1443
  %v1452 = vld [vmem:[%s7] sm:$0x3]
  %v1453 = vld [vmem:[%s8] sm:$0x3]
  %v1454 = vld [vmem:[%s0 + $0x20] sm:$0x3]
  %v1455 = vld [vmem:[%s0 + $0x28] sm:$0x3]
  %v1456 = vld [vmem:[%s0 + $0x30] sm:$0x3]
  %v1457 = vld [vmem:[%s0 + $0x38] sm:$0x3]
  %v1458 = vld [vmem:[%s3] sm:$0xff]
  %v1459 = vld [vmem:[%s3 + $0x8] sm:$0xff]
  %v1460 = vld [vmem:[%s3 + $0x10] sm:$0xff]
  %v1461 = vld [vmem:[%s3 + $0x18] sm:$0xff]
  %v1462 = vld [vmem:[%s3 + $0x20] sm:$0xff]
  %v1463 = vld [vmem:[%s3 + $0x28] sm:$0xff]
  %v1464 = vld [vmem:[%s3 + $0x30] sm:$0xff]
  %v1465 = vld [vmem:[%s3 + $0x38] sm:$0xff]
  %v1466 = vld [vmem:[%s3 + $0x40] sm:$0xff]
  %v1467 = vld [vmem:[%s3 + $0x48] sm:$0xff]
  %v1468 = vld [vmem:[%s3 + $0x50] sm:$0xff]
  %v1469 = vld [vmem:[%s3 + $0x58] sm:$0xff]
  %v1470 = vld [vmem:[%s3 + $0x60] sm:$0xff]
  %v1471 = vld [vmem:[%s3 + $0x68] sm:$0xff]
  %v1472 = vld [vmem:[%s3 + $0x70] sm:$0xff]
  %v1473 = vld [vmem:[%s3 + $0x78] sm:$0xff]
  %v1474 = vld [vmem:[%s3 + $0x80] sm:$0xff]
  %v1475 = vld [vmem:[%s3 + $0x88] sm:$0xff]
  %v1476 = vld [vmem:[%s3 + $0x90] sm:$0xff]
  %v1477 = vld [vmem:[%s3 + $0x98] sm:$0xff]
  %v1478 = vld [vmem:[%s3 + $0xa0] sm:$0xff]
  %v1479 = vld [vmem:[%s3 + $0xa8] sm:$0xff]
  %v1480 = vld [vmem:[%s3 + $0xb0] sm:$0xff]
  %v1481 = vld [vmem:[%s3 + $0xb8] sm:$0xff]
  %v1482 = vld [vmem:[%s3 + $0xc0] sm:$0xff]
  %v1483 = vld [vmem:[%s3 + $0xc8] sm:$0xff]
  %v1484 = vld [vmem:[%s3 + $0xd0] sm:$0xff]
  %v1485 = vld [vmem:[%s3 + $0xd8] sm:$0xff]
  %v1486 = vld [vmem:[%s3 + $0xe0] sm:$0xff]
  %v1487 = vld [vmem:[%s3 + $0xe8] sm:$0xff]
  %v1488 = vld [vmem:[%s3 + $0xf0] sm:$0xff]
  %v1489 = vld [vmem:[%s3 + $0xf8] sm:$0xff]
  %v1490 = vld [vmem:[%s3 + $0x100] sm:$0xff]
  %v1491 = vld [vmem:[%s3 + $0x108] sm:$0xff]
  %v1492 = vld [vmem:[%s3 + $0x110] sm:$0xff]
  %v1493 = vld [vmem:[%s3 + $0x118] sm:$0xff]
  %v1494 = vld [vmem:[%s3 + $0x120] sm:$0xff]
  %v1495 = vld [vmem:[%s3 + $0x128] sm:$0xff]
  %v1496 = vld [vmem:[%s3 + $0x130] sm:$0xff]
  %v1497 = vld [vmem:[%s3 + $0x138] sm:$0xff]
  %v1498 = vld [vmem:[%s3 + $0x140] sm:$0xff]
  %v1499 = vld [vmem:[%s3 + $0x148] sm:$0xff]
  %v1500 = vld [vmem:[%s3 + $0x150] sm:$0xff]
  %v1501 = vld [vmem:[%s3 + $0x158] sm:$0xff]
  %v1502 = vld [vmem:[%s3 + $0x160] sm:$0xff]
  %v1503 = vld [vmem:[%s3 + $0x168] sm:$0xff]
  %v1504 = vld [vmem:[%s3 + $0x170] sm:$0xff]
  %v1505 = vld [vmem:[%s3 + $0x178] sm:$0xff]
  %v1506 = vld [vmem:[%s3 + $0x180] sm:$0xff]
  %v1507 = vld [vmem:[%s3 + $0x188] sm:$0xff]
  %v1508 = vld [vmem:[%s3 + $0x190] sm:$0xff]
  %v1509 = vld [vmem:[%s3 + $0x198] sm:$0xff]
  %v1510 = vld [vmem:[%s3 + $0x1a0] sm:$0xff]
  %v1511 = vld [vmem:[%s3 + $0x1a8] sm:$0xff]
  %v1512 = vld [vmem:[%s3 + $0x1b0] sm:$0xff]
  %v1513 = vld [vmem:[%s3 + $0x1b8] sm:$0xff]
  %v1514 = vld [vmem:[%s3 + $0x1c0] sm:$0xff]
  %v1515 = vld [vmem:[%s3 + $0x1c8] sm:$0xff]
  %v1516 = vld [vmem:[%s3 + $0x1d0] sm:$0xff]
  %v1517 = vld [vmem:[%s3 + $0x1d8] sm:$0xff]
  %v1518 = vld [vmem:[%s3 + $0x1e0] sm:$0xff]
  %v1519 = vld [vmem:[%s3 + $0x1e8] sm:$0xff]
  %v1520 = vld [vmem:[%s3 + $0x1f0] sm:$0xff]
  %v1521 = vld [vmem:[%s3 + $0x1f8] sm:$0xff]
  %1522 = vmatpush.msra.mxu0 %v1518
  %1523 = vmatpush.msra.mxu0 %v1514
  %1524 = vmatpush.msra.mxu0 %v1510
  %1525 = vmatpush.msra.mxu0 %v1506
  %1526 = vmatpush.msra.mxu0 %v1502
  %1527 = vmatpush.msra.mxu0 %v1498
  %1528 = vmatpush.msra.mxu0 %v1494
  %1529 = vmatpush.msra.mxu0 %v1490
  %1530 = vmatpush.msra.mxu0 %v1486
  %1531 = vmatpush.msra.mxu0 %v1482
  %1532 = vmatpush.msra.mxu0 %v1478
  %1533 = vmatpush.msra.mxu0 %v1474
  %1534 = vmatpush.msra.mxu0 %v1470
  %1535 = vmatpush.msra.mxu0 %v1466
  %1536 = vmatpush.msra.mxu0 %v1462
  %1537 = vmatpush.msra.mxu0 %v1458
  %1538 = vmatmul.f32.gmra.mxu0 %v1452
  %v1539 = vpop.f32.mrf.mxu0
  %v1540 = vadd.f32 0.0, %v1539
  %1541 = vdwg.mxu0
  %1542 = vmatpush.msra.mxu0 %v1519
  %1543 = vmatpush.msra.mxu0 %v1515
  %1544 = vmatpush.msra.mxu0 %v1511
  %1545 = vmatpush.msra.mxu0 %v1507
  %1546 = vmatpush.msra.mxu0 %v1503
  %1547 = vmatpush.msra.mxu0 %v1499
  %1548 = vmatpush.msra.mxu0 %v1495
  %1549 = vmatpush.msra.mxu0 %v1491
  %1550 = vmatpush.msra.mxu0 %v1487
  %1551 = vmatpush.msra.mxu0 %v1483
  %1552 = vmatpush.msra.mxu0 %v1479
  %1553 = vmatpush.msra.mxu0 %v1475
  %1554 = vmatpush.msra.mxu0 %v1471
  %1555 = vmatpush.msra.mxu0 %v1467
  %1556 = vmatpush.msra.mxu0 %v1463
  %1557 = vmatpush.msra.mxu0 %v1459
  %1558 = vmatmul.f32.gmra.mxu0 %v1452
  %v1559 = vpop.f32.mrf.mxu0
  %v1560 = vadd.f32 0.0, %v1559
  %1561 = vdwg.mxu0
  %1562 = vmatpush.msra.mxu0 %v1520
  %1563 = vmatpush.msra.mxu0 %v1516
  %1564 = vmatpush.msra.mxu0 %v1512
  %1565 = vmatpush.msra.mxu0 %v1508
  %1566 = vmatpush.msra.mxu0 %v1504
  %1567 = vmatpush.msra.mxu0 %v1500
  %1568 = vmatpush.msra.mxu0 %v1496
  %1569 = vmatpush.msra.mxu0 %v1492
  %1570 = vmatpush.msra.mxu0 %v1488
  %1571 = vmatpush.msra.mxu0 %v1484
  %1572 = vmatpush.msra.mxu0 %v1480
  %1573 = vmatpush.msra.mxu0 %v1476
  %1574 = vmatpush.msra.mxu0 %v1472
  %1575 = vmatpush.msra.mxu0 %v1468
  %1576 = vmatpush.msra.mxu0 %v1464
  %1577 = vmatpush.msra.mxu0 %v1460
  %1578 = vmatmul.f32.gmra.mxu0 %v1452
  %v1579 = vpop.f32.mrf.mxu0
  %v1580 = vadd.f32 0.0, %v1579
  %1581 = vdwg.mxu0
  %1582 = vmatpush.msra.mxu0 %v1521
  %1583 = vmatpush.msra.mxu0 %v1517
  %1584 = vmatpush.msra.mxu0 %v1513
  %1585 = vmatpush.msra.mxu0 %v1509
  %1586 = vmatpush.msra.mxu0 %v1505
  %1587 = vmatpush.msra.mxu0 %v1501
  %1588 = vmatpush.msra.mxu0 %v1497
  %1589 = vmatpush.msra.mxu0 %v1493
  %1590 = vmatpush.msra.mxu0 %v1489
  %1591 = vmatpush.msra.mxu0 %v1485
  %1592 = vmatpush.msra.mxu0 %v1481
  %1593 = vmatpush.msra.mxu0 %v1477
  %1594 = vmatpush.msra.mxu0 %v1473
  %1595 = vmatpush.msra.mxu0 %v1469
  %1596 = vmatpush.msra.mxu0 %v1465
  %1597 = vmatpush.msra.mxu0 %v1461
  %1598 = vmatmul.f32.gmra.mxu0 %v1452
  %v1599 = vpop.f32.mrf.mxu0
  %v1600 = vadd.f32 0.0, %v1599
  %1601 = vdwg.mxu0
  %v1602 = vadd.f32 %v1454, %v1540
  %v1603 = vadd.f32 %v1455, %v1560
  %v1604 = vadd.f32 %v1456, %v1580
  %v1605 = vadd.f32 %v1457, %v1600
  %v1606 = vmul.f32 %v1602, 0.5
  %v1607 = vtanh.pop %v1606
  %v1608 = vmul.f32 %v1607, 0.5
  %v1609 = vadd.f32 %v1608, 0.5
  %v1610 = vmul.f32 %v1603, 0.5
  %v1611 = vtanh.pop %v1610
  %v1612 = vmul.f32 %v1611, 0.5
  %v1613 = vadd.f32 %v1612, 0.5
  %v1614 = vtanh.pop %v1604
  %v1615 = vmul.f32 %v1605, 0.5
  %v1616 = vtanh.pop %v1615
  %v1617 = vmul.f32 %v1616, 0.5
  %v1618 = vadd.f32 %v1617, 0.5
  %v1619 = vmul.f32 %v1613, %v1453
  %v1620 = vmul.f32 %v1609, %v1614
  %v1621 = vadd.f32 %v1619, %v1620
  %v1622 = vtanh.pop %v1621
  %v1623 = vmul.f32 %v1618, %v1622
  %1624 = vst [vmem:[%s8] sm:$0x3] %v1621
  %1625 = vst [vmem:[%s7] sm:$0x3] %v1623
  %v1626 = vld [vmem:[%s4] sm:$0xff]
  %v1627 = vld [vmem:[%s4 + $0x8] sm:$0xff]
  %v1628 = vld [vmem:[%s4 + $0x10] sm:$0xff]
  %v1629 = vld [vmem:[%s4 + $0x18] sm:$0xff]
  %v1630 = vld [vmem:[%s4 + $0x20] sm:$0xff]
  %v1631 = vld [vmem:[%s4 + $0x28] sm:$0xff]
  %v1632 = vld [vmem:[%s4 + $0x30] sm:$0xff]
  %v1633 = vld [vmem:[%s4 + $0x38] sm:$0xff]
  %v1634 = vld [vmem:[%s4 + $0x40] sm:$0xff]
  %v1635 = vld [vmem:[%s4 + $0x48] sm:$0xff]
  %v1636 = vld [vmem:[%s4 + $0x50] sm:$0xff]
  %v1637 = vld [vmem:[%s4 + $0x58] sm:$0xff]
  %v1638 = vld [vmem:[%s4 + $0x60] sm:$0xff]
  %v1639 = vld [vmem:[%s4 + $0x68] sm:$0xff]
  %v1640 = vld [vmem:[%s4 + $0x70] sm:$0xff]
  %v1641 = vld [vmem:[%s4 + $0x78] sm:$0xff]
  %v1642 = vld [vmem:[%s4 + $0x80] sm:$0xff]
  %v1643 = vld [vmem:[%s4 + $0x88] sm:$0xff]
  %v1644 = vld [vmem:[%s4 + $0x90] sm:$0xff]
  %v1645 = vld [vmem:[%s4 + $0x98] sm:$0xff]
  %v1646 = vld [vmem:[%s4 + $0xa0] sm:$0xff]
  %v1647 = vld [vmem:[%s4 + $0xa8] sm:$0xff]
  %v1648 = vld [vmem:[%s4 + $0xb0] sm:$0xff]
  %v1649 = vld [vmem:[%s4 + $0xb8] sm:$0xff]
  %v1650 = vld [vmem:[%s4 + $0xc0] sm:$0xff]
  %v1651 = vld [vmem:[%s4 + $0xc8] sm:$0xff]
  %v1652 = vld [vmem:[%s4 + $0xd0] sm:$0xff]
  %v1653 = vld [vmem:[%s4 + $0xd8] sm:$0xff]
  %v1654 = vld [vmem:[%s4 + $0xe0] sm:$0xff]
  %v1655 = vld [vmem:[%s4 + $0xe8] sm:$0xff]
  %v1656 = vld [vmem:[%s4 + $0xf0] sm:$0xff]
  %v1657 = vld [vmem:[%s4 + $0xf8] sm:$0xff]
  %v1658 = vld [vmem:[%s4 + $0x100] sm:$0xff]
  %v1659 = vld [vmem:[%s4 + $0x108] sm:$0xff]
  %v1660 = vld [vmem:[%s4 + $0x110] sm:$0xff]
  %v1661 = vld [vmem:[%s4 + $0x118] sm:$0xff]
  %v1662 = vld [vmem:[%s4 + $0x120] sm:$0xff]
  %v1663 = vld [vmem:[%s4 + $0x128] sm:$0xff]
  %v1664 = vld [vmem:[%s4 + $0x130] sm:$0xff]
  %v1665 = vld [vmem:[%s4 + $0x138] sm:$0xff]
  %v1666 = vld [vmem:[%s4 + $0x140] sm:$0xff]
  %v1667 = vld [vmem:[%s4 + $0x148] sm:$0xff]
  %v1668 = vld [vmem:[%s4 + $0x150] sm:$0xff]
  %v1669 = vld [vmem:[%s4 + $0x158] sm:$0xff]
  %v1670 = vld [vmem:[%s4 + $0x160] sm:$0xff]
  %v1671 = vld [vmem:[%s4 + $0x168] sm:$0xff]
  %v1672 = vld [vmem:[%s4 + $0x170] sm:$0xff]
  %v1673 = vld [vmem:[%s4 + $0x178] sm:$0xff]
  %v1674 = vld [vmem:[%s4 + $0x180] sm:$0xff]
  %v1675 = vld [vmem:[%s4 + $0x188] sm:$0xff]
  %v1676 = vld [vmem:[%s4 + $0x190] sm:$0xff]
  %v1677 = vld [vmem:[%s4 + $0x198] sm:$0xff]
  %v1678 = vld [vmem:[%s4 + $0x1a0] sm:$0xff]
  %v1679 = vld [vmem:[%s4 + $0x1a8] sm:$0xff]
  %v1680 = vld [vmem:[%s4 + $0x1b0] sm:$0xff]
  %v1681 = vld [vmem:[%s4 + $0x1b8] sm:$0xff]
  %v1682 = vld [vmem:[%s4 + $0x1c0] sm:$0xff]
  %v1683 = vld [vmem:[%s4 + $0x1c8] sm:$0xff]
  %v1684 = vld [vmem:[%s4 + $0x1d0] sm:$0xff]
  %v1685 = vld [vmem:[%s4 + $0x1d8] sm:$0xff]
  %v1686 = vld [vmem:[%s4 + $0x1e0] sm:$0xff]
  %v1687 = vld [vmem:[%s4 + $0x1e8] sm:$0xff]
  %v1688 = vld [vmem:[%s4 + $0x1f0] sm:$0xff]
  %v1689 = vld [vmem:[%s4 + $0x1f8] sm:$0xff]
  %v1690 = vld [vmem:[%s5] sm:$0xf]
  %v1692 = vperm.slane %v1690, 0
  %v1693 = vperm.slane %v1690, 1
  %v1694 = vperm.slane %v1690, 2
  %v1695 = vperm.slane %v1690, 3
  %1700 = vmatpush.msra.mxu0 %v1686
  %1701 = vmatpush.msra.mxu0 %v1682
  %1702 = vmatpush.msra.mxu0 %v1678
  %1703 = vmatpush.msra.mxu0 %v1674
  %1704 = vmatpush.msra.mxu0 %v1670
  %1705 = vmatpush.msra.mxu0 %v1666
  %1706 = vmatpush.msra.mxu0 %v1662
  %1707 = vmatpush.msra.mxu0 %v1658
  %1708 = vmatpush.msra.mxu0 %v1654
  %1709 = vmatpush.msra.mxu0 %v1650
  %1710 = vmatpush.msra.mxu0 %v1646
  %1711 = vmatpush.msra.mxu0 %v1642
  %1712 = vmatpush.msra.mxu0 %v1638
  %1713 = vmatpush.msra.mxu0 %v1634
  %1714 = vmatpush.msra.mxu0 %v1630
  %1715 = vmatpush.msra.mxu0 %v1626
  %1716 = vmatmul.f32.gmra.mxu0 %v1623
  %v1717 = vpop.f32.mrf.mxu0
  %v1718 = vadd.f32 %v1692, %v1717
  %1719 = vdwg.mxu0
  %1720 = vmatpush.msra.mxu0 %v1687
  %1721 = vmatpush.msra.mxu0 %v1683
  %1722 = vmatpush.msra.mxu0 %v1679
  %1723 = vmatpush.msra.mxu0 %v1675
  %1724 = vmatpush.msra.mxu0 %v1671
  %1725 = vmatpush.msra.mxu0 %v1667
  %1726 = vmatpush.msra.mxu0 %v1663
  %1727 = vmatpush.msra.mxu0 %v1659
  %1728 = vmatpush.msra.mxu0 %v1655
  %1729 = vmatpush.msra.mxu0 %v1651
  %1730 = vmatpush.msra.mxu0 %v1647
  %1731 = vmatpush.msra.mxu0 %v1643
  %1732 = vmatpush.msra.mxu0 %v1639
  %1733 = vmatpush.msra.mxu0 %v1635
  %1734 = vmatpush.msra.mxu0 %v1631
  %1735 = vmatpush.msra.mxu0 %v1627
  %1736 = vmatmul.f32.gmra.mxu0 %v1623
  %v1737 = vpop.f32.mrf.mxu0
  %v1738 = vadd.f32 %v1693, %v1737
  %1739 = vdwg.mxu0
  %1740 = vmatpush.msra.mxu0 %v1688
  %1741 = vmatpush.msra.mxu0 %v1684
  %1742 = vmatpush.msra.mxu0 %v1680
  %1743 = vmatpush.msra.mxu0 %v1676
  %1744 = vmatpush.msra.mxu0 %v1672
  %1745 = vmatpush.msra.mxu0 %v1668
  %1746 = vmatpush.msra.mxu0 %v1664
  %1747 = vmatpush.msra.mxu0 %v1660
  %1748 = vmatpush.msra.mxu0 %v1656
  %1749 = vmatpush.msra.mxu0 %v1652
  %1750 = vmatpush.msra.mxu0 %v1648
  %1751 = vmatpush.msra.mxu0 %v1644
  %1752 = vmatpush.msra.mxu0 %v1640
  %1753 = vmatpush.msra.mxu0 %v1636
  %1754 = vmatpush.msra.mxu0 %v1632
  %1755 = vmatpush.msra.mxu0 %v1628
  %1756 = vmatmul.f32.gmra.mxu0 %v1623
  %v1757 = vpop.f32.mrf.mxu0
  %v1758 = vadd.f32 %v1694, %v1757
  %1759 = vdwg.mxu0
  %1760 = vmatpush.msra.mxu0 %v1689
  %1761 = vmatpush.msra.mxu0 %v1685
  %1762 = vmatpush.msra.mxu0 %v1681
  %1763 = vmatpush.msra.mxu0 %v1677
  %1764 = vmatpush.msra.mxu0 %v1673
  %1765 = vmatpush.msra.mxu0 %v1669
  %1766 = vmatpush.msra.mxu0 %v1665
  %1767 = vmatpush.msra.mxu0 %v1661
  %1768 = vmatpush.msra.mxu0 %v1657
  %1769 = vmatpush.msra.mxu0 %v1653
  %1770 = vmatpush.msra.mxu0 %v1649
  %1771 = vmatpush.msra.mxu0 %v1645
  %1772 = vmatpush.msra.mxu0 %v1641
  %1773 = vmatpush.msra.mxu0 %v1637
  %1774 = vmatpush.msra.mxu0 %v1633
  %1775 = vmatpush.msra.mxu0 %v1629
  %1776 = vmatmul.f32.gmra.mxu0 %v1623
  %v1777 = vpop.f32.mrf.mxu0
  %v1778 = vadd.f32 %v1695, %v1777
  %1779 = vdwg.mxu0
  %1780 = vst [vmem:[%s6 + $0x20] sm:$0x3] %v1718
  %1781 = vst [vmem:[%s6 + $0x28] sm:$0x3] %v1738
  %1782 = vst [vmem:[%s6 + $0x30] sm:$0x3] %v1758
  %1783 = vst [vmem:[%s6 + $0x38] sm:$0x3] %v1778
  %v1784 = vld [vmem:[%s7] sm:$0x3]
  %v1785 = vld [vmem:[%s8] sm:$0x3]
  %v1786 = vld [vmem:[%s0 + $0x20] sm:$0xc]
  %v1787 = vld [vmem:[%s0 + $0x28] sm:$0xc]
  %v1788 = vld [vmem:[%s0 + $0x30] sm:$0xc]
  %v1789 = vld [vmem:[%s0 + $0x38] sm:$0xc]
  %v1790 = vld [vmem:[%s3] sm:$0xff]
  %v1791 = vld [vmem:[%s3 + $0x8] sm:$0xff]
  %v1792 = vld [vmem:[%s3 + $0x10] sm:$0xff]
  %v1793 = vld [vmem:[%s3 + $0x18] sm:$0xff]
  %v1794 = vld [vmem:[%s3 + $0x20] sm:$0xff]
  %v1795 = vld [vmem:[%s3 + $0x28] sm:$0xff]
  %v1796 = vld [vmem:[%s3 + $0x30] sm:$0xff]
  %v1797 = vld [vmem:[%s3 + $0x38] sm:$0xff]
  %v1798 = vld [vmem:[%s3 + $0x40] sm:$0xff]
  %v1799 = vld [vmem:[%s3 + $0x48] sm:$0xff]
  %v1800 = vld [vmem:[%s3 + $0x50] sm:$0xff]
  %v1801 = vld [vmem:[%s3 + $0x58] sm:$0xff]
  %v1802 = vld [vmem:[%s3 + $0x60] sm:$0xff]
  %v1803 = vld [vmem:[%s3 + $0x68] sm:$0xff]
  %v1804 = vld [vmem:[%s3 + $0x70] sm:$0xff]
  %v1805 = vld [vmem:[%s3 + $0x78] sm:$0xff]
  %v1806 = vld [vmem:[%s3 + $0x80] sm:$0xff]
  %v1807 = vld [vmem:[%s3 + $0x88] sm:$0xff]
  %v1808 = vld [vmem:[%s3 + $0x90] sm:$0xff]
  %v1809 = vld [vmem:[%s3 + $0x98] sm:$0xff]
  %v1810 = vld [vmem:[%s3 + $0xa0] sm:$0xff]
  %v1811 = vld [vmem:[%s3 + $0xa8] sm:$0xff]
  %v1812 = vld [vmem:[%s3 + $0xb0] sm:$0xff]
  %v1813 = vld [vmem:[%s3 + $0xb8] sm:$0xff]
  %v1814 = vld [vmem:[%s3 + $0xc0] sm:$0xff]
  %v1815 = vld [vmem:[%s3 + $0xc8] sm:$0xff]
  %v1816 = vld [vmem:[%s3 + $0xd0] sm:$0xff]
  %v1817 = vld [vmem:[%s3 + $0xd8] sm:$0xff]
  %v1818 = vld [vmem:[%s3 + $0xe0] sm:$0xff]
  %v1819 = vld [vmem:[%s3 + $0xe8] sm:$0xff]
  %v1820 = vld [vmem:[%s3 + $0xf0] sm:$0xff]
  %v1821 = vld [vmem:[%s3 + $0xf8] sm:$0xff]
  %v1822 = vld [vmem:[%s3 + $0x100] sm:$0xff]
  %v1823 = vld [vmem:[%s3 + $0x108] sm:$0xff]
  %v1824 = vld [vmem:[%s3 + $0x110] sm:$0xff]
  %v1825 = vld [vmem:[%s3 + $0x118] sm:$0xff]
  %v1826 = vld [vmem:[%s3 + $0x120] sm:$0xff]
  %v1827 = vld [vmem:[%s3 + $0x128] sm:$0xff]
  %v1828 = vld [vmem:[%s3 + $0x130] sm:$0xff]
  %v1829 = vld [vmem:[%s3 + $0x138] sm:$0xff]
  %v1830 = vld [vmem:[%s3 + $0x140] sm:$0xff]
  %v1831 = vld [vmem:[%s3 + $0x148] sm:$0xff]
  %v1832 = vld [vmem:[%s3 + $0x150] sm:$0xff]
  %v1833 = vld [vmem:[%s3 + $0x158] sm:$0xff]
  %v1834 = vld [vmem:[%s3 + $0x160] sm:$0xff]
  %v1835 = vld [vmem:[%s3 + $0x168] sm:$0xff]
  %v1836 = vld [vmem:[%s3 + $0x170] sm:$0xff]
  %v1837 = vld [vmem:[%s3 + $0x178] sm:$0xff]
  %v1838 = vld [vmem:[%s3 + $0x180] sm:$0xff]
  %v1839 = vld [vmem:[%s3 + $0x188] sm:$0xff]
  %v1840 = vld [vmem:[%s3 + $0x190] sm:$0xff]
  %v1841 = vld [vmem:[%s3 + $0x198] sm:$0xff]
  %v1842 = vld [vmem:[%s3 + $0x1a0] sm:$0xff]
  %v1843 = vld [vmem:[%s3 + $0x1a8] sm:$0xff]
  %v1844 = vld [vmem:[%s3 + $0x1b0] sm:$0xff]
  %v1845 = vld [vmem:[%s3 + $0x1b8] sm:$0xff]
  %v1846 = vld [vmem:[%s3 + $0x1c0] sm:$0xff]
  %v1847 = vld [vmem:[%s3 + $0x1c8] sm:$0xff]
  %v1848 = vld [vmem:[%s3 + $0x1d0] sm:$0xff]
  %v1849 = vld [vmem:[%s3 + $0x1d8] sm:$0xff]
  %v1850 = vld [vmem:[%s3 + $0x1e0] sm:$0xff]
  %v1851 = vld [vmem:[%s3 + $0x1e8] sm:$0xff]
  %v1852 = vld [vmem:[%s3 + $0x1f0] sm:$0xff]
  %v1853 = vld [vmem:[%s3 + $0x1f8] sm:$0xff]
  %1854 = vmatpush.msra.mxu0 %v1850
  %1855 = vmatpush.msra.mxu0 %v1846
  %1856 = vmatpush.msra.mxu0 %v1842
  %1857 = vmatpush.msra.mxu0 %v1838
  %1858 = vmatpush.msra.mxu0 %v1834
  %1859 = vmatpush.msra.mxu0 %v1830
  %1860 = vmatpush.msra.mxu0 %v1826
  %1861 = vmatpush.msra.mxu0 %v1822
  %1862 = vmatpush.msra.mxu0 %v1818
  %1863 = vmatpush.msra.mxu0 %v1814
  %1864 = vmatpush.msra.mxu0 %v1810
  %1865 = vmatpush.msra.mxu0 %v1806
  %1866 = vmatpush.msra.mxu0 %v1802
  %1867 = vmatpush.msra.mxu0 %v1798
  %1868 = vmatpush.msra.mxu0 %v1794
  %1869 = vmatpush.msra.mxu0 %v1790
  %1870 = vmatmul.f32.gmra.mxu0 %v1784
  %v1871 = vpop.f32.mrf.mxu0
  %v1872 = vadd.f32 0.0, %v1871
  %1873 = vdwg.mxu0
  %1874 = vmatpush.msra.mxu0 %v1851
  %1875 = vmatpush.msra.mxu0 %v1847
  %1876 = vmatpush.msra.mxu0 %v1843
  %1877 = vmatpush.msra.mxu0 %v1839
  %1878 = vmatpush.msra.mxu0 %v1835
  %1879 = vmatpush.msra.mxu0 %v1831
  %1880 = vmatpush.msra.mxu0 %v1827
  %1881 = vmatpush.msra.mxu0 %v1823
  %1882 = vmatpush.msra.mxu0 %v1819
  %1883 = vmatpush.msra.mxu0 %v1815
  %1884 = vmatpush.msra.mxu0 %v1811
  %1885 = vmatpush.msra.mxu0 %v1807
  %1886 = vmatpush.msra.mxu0 %v1803
  %1887 = vmatpush.msra.mxu0 %v1799
  %1888 = vmatpush.msra.mxu0 %v1795
  %1889 = vmatpush.msra.mxu0 %v1791
  %1890 = vmatmul.f32.gmra.mxu0 %v1784
  %v1891 = vpop.f32.mrf.mxu0
  %v1892 = vadd.f32 0.0, %v1891
  %1893 = vdwg.mxu0
  %1894 = vmatpush.msra.mxu0 %v1852
  %1895 = vmatpush.msra.mxu0 %v1848
  %1896 = vmatpush.msra.mxu0 %v1844
  %1897 = vmatpush.msra.mxu0 %v1840
  %1898 = vmatpush.msra.mxu0 %v1836
  %1899 = vmatpush.msra.mxu0 %v1832
  %1900 = vmatpush.msra.mxu0 %v1828
  %1901 = vmatpush.msra.mxu0 %v1824
  %1902 = vmatpush.msra.mxu0 %v1820
  %1903 = vmatpush.msra.mxu0 %v1816
  %1904 = vmatpush.msra.mxu0 %v1812
  %1905 = vmatpush.msra.mxu0 %v1808
  %1906 = vmatpush.msra.mxu0 %v1804
  %1907 = vmatpush.msra.mxu0 %v1800
  %1908 = vmatpush.msra.mxu0 %v1796
  %1909 = vmatpush.msra.mxu0 %v1792
  %1910 = vmatmul.f32.gmra.mxu0 %v1784
  %v1911 = vpop.f32.mrf.mxu0
  %v1912 = vadd.f32 0.0, %v1911
  %1913 = vdwg.mxu0
  %1914 = vmatpush.msra.mxu0 %v1853
  %1915 = vmatpush.msra.mxu0 %v1849
  %1916 = vmatpush.msra.mxu0 %v1845
  %1917 = vmatpush.msra.mxu0 %v1841
  %1918 = vmatpush.msra.mxu0 %v1837
  %1919 = vmatpush.msra.mxu0 %v1833
  %1920 = vmatpush.msra.mxu0 %v1829
  %1921 = vmatpush.msra.mxu0 %v1825
  %1922 = vmatpush.msra.mxu0 %v1821
  %1923 = vmatpush.msra.mxu0 %v1817
  %1924 = vmatpush.msra.mxu0 %v1813
  %1925 = vmatpush.msra.mxu0 %v1809
  %1926 = vmatpush.msra.mxu0 %v1805
  %1927 = vmatpush.msra.mxu0 %v1801
  %1928 = vmatpush.msra.mxu0 %v1797
  %1929 = vmatpush.msra.mxu0 %v1793
  %1930 = vmatmul.f32.gmra.mxu0 %v1784
  %v1931 = vpop.f32.mrf.mxu0
  %v1932 = vadd.f32 0.0, %v1931
  %1933 = vdwg.mxu0
  %v1938 = vrot.slane %v1872, 6
  %v1939 = vrot.slane %v1892, 6
  %v1940 = vrot.slane %v1912, 6
  %v1941 = vrot.slane %v1932, 6
  %v1946 = vadd.f32 %v1786, %v1938
  %v1947 = vadd.f32 %v1787, %v1939
  %v1948 = vadd.f32 %v1788, %v1940
  %v1949 = vadd.f32 %v1789, %v1941
  %v1950 = vmul.f32 %v1946, 0.5
  %v1951 = vtanh.pop %v1950
  %v1952 = vmul.f32 %v1951, 0.5
  %v1953 = vadd.f32 %v1952, 0.5
  %v1954 = vmul.f32 %v1947, 0.5
  %v1955 = vtanh.pop %v1954
  %v1956 = vmul.f32 %v1955, 0.5
  %v1957 = vadd.f32 %v1956, 0.5
  %v1958 = vtanh.pop %v1948
  %v1959 = vmul.f32 %v1949, 0.5
  %v1960 = vtanh.pop %v1959
  %v1961 = vmul.f32 %v1960, 0.5
  %v1962 = vadd.f32 %v1961, 0.5
  %v1964 = vrot.slane %v1785, 6
  %v1966 = vmul.f32 %v1957, %v1964
  %v1967 = vmul.f32 %v1953, %v1958
  %v1968 = vadd.f32 %v1966, %v1967
  %v1969 = vtanh.pop %v1968
  %v1970 = vmul.f32 %v1962, %v1969
  %1971 = vst [vmem:[%s8 - $0x2] sm:$0xc] %v1968
  %1972 = vst [vmem:[%s7 - $0x2] sm:$0xc] %v1970
  %v1973 = vld [vmem:[%s4] sm:$0xff]
  %v1974 = vld [vmem:[%s4 + $0x8] sm:$0xff]
  %v1975 = vld [vmem:[%s4 + $0x10] sm:$0xff]
  %v1976 = vld [vmem:[%s4 + $0x18] sm:$0xff]
  %v1977 = vld [vmem:[%s4 + $0x20] sm:$0xff]
  %v1978 = vld [vmem:[%s4 + $0x28] sm:$0xff]
  %v1979 = vld [vmem:[%s4 + $0x30] sm:$0xff]
  %v1980 = vld [vmem:[%s4 + $0x38] sm:$0xff]
  %v1981 = vld [vmem:[%s4 + $0x40] sm:$0xff]
  %v1982 = vld [vmem:[%s4 + $0x48] sm:$0xff]
  %v1983 = vld [vmem:[%s4 + $0x50] sm:$0xff]
  %v1984 = vld [vmem:[%s4 + $0x58] sm:$0xff]
  %v1985 = vld [vmem:[%s4 + $0x60] sm:$0xff]
  %v1986 = vld [vmem:[%s4 + $0x68] sm:$0xff]
  %v1987 = vld [vmem:[%s4 + $0x70] sm:$0xff]
  %v1988 = vld [vmem:[%s4 + $0x78] sm:$0xff]
  %v1989 = vld [vmem:[%s4 + $0x80] sm:$0xff]
  %v1990 = vld [vmem:[%s4 + $0x88] sm:$0xff]
  %v1991 = vld [vmem:[%s4 + $0x90] sm:$0xff]
  %v1992 = vld [vmem:[%s4 + $0x98] sm:$0xff]
  %v1993 = vld [vmem:[%s4 + $0xa0] sm:$0xff]
  %v1994 = vld [vmem:[%s4 + $0xa8] sm:$0xff]
  %v1995 = vld [vmem:[%s4 + $0xb0] sm:$0xff]
  %v1996 = vld [vmem:[%s4 + $0xb8] sm:$0xff]
  %v1997 = vld [vmem:[%s4 + $0xc0] sm:$0xff]
  %v1998 = vld [vmem:[%s4 + $0xc8] sm:$0xff]
  %v1999 = vld [vmem:[%s4 + $0xd0] sm:$0xff]
  %v2000 = vld [vmem:[%s4 + $0xd8] sm:$0xff]
  %v2001 = vld [vmem:[%s4 + $0xe0] sm:$0xff]
  %v2002 = vld [vmem:[%s4 + $0xe8] sm:$0xff]
  %v2003 = vld [vmem:[%s4 + $0xf0] sm:$0xff]
  %v2004 = vld [vmem:[%s4 + $0xf8] sm:$0xff]
  %v2005 = vld [vmem:[%s4 + $0x100] sm:$0xff]
  %v2006 = vld [vmem:[%s4 + $0x108] sm:$0xff]
  %v2007 = vld [vmem:[%s4 + $0x110] sm:$0xff]
  %v2008 = vld [vmem:[%s4 + $0x118] sm:$0xff]
  %v2009 = vld [vmem:[%s4 + $0x120] sm:$0xff]
  %v2010 = vld [vmem:[%s4 + $0x128] sm:$0xff]
  %v2011 = vld [vmem:[%s4 + $0x130] sm:$0xff]
  %v2012 = vld [vmem:[%s4 + $0x138] sm:$0xff]
  %v2013 = vld [vmem:[%s4 + $0x140] sm:$0xff]
  %v2014 = vld [vmem:[%s4 + $0x148] sm:$0xff]
  %v2015 = vld [vmem:[%s4 + $0x150] sm:$0xff]
  %v2016 = vld [vmem:[%s4 + $0x158] sm:$0xff]
  %v2017 = vld [vmem:[%s4 + $0x160] sm:$0xff]
  %v2018 = vld [vmem:[%s4 + $0x168] sm:$0xff]
  %v2019 = vld [vmem:[%s4 + $0x170] sm:$0xff]
  %v2020 = vld [vmem:[%s4 + $0x178] sm:$0xff]
  %v2021 = vld [vmem:[%s4 + $0x180] sm:$0xff]
  %v2022 = vld [vmem:[%s4 + $0x188] sm:$0xff]
  %v2023 = vld [vmem:[%s4 + $0x190] sm:$0xff]
  %v2024 = vld [vmem:[%s4 + $0x198] sm:$0xff]
  %v2025 = vld [vmem:[%s4 + $0x1a0] sm:$0xff]
  %v2026 = vld [vmem:[%s4 + $0x1a8] sm:$0xff]
  %v2027 = vld [vmem:[%s4 + $0x1b0] sm:$0xff]
  %v2028 = vld [vmem:[%s4 + $0x1b8] sm:$0xff]
  %v2029 = vld [vmem:[%s4 + $0x1c0] sm:$0xff]
  %v2030 = vld [vmem:[%s4 + $0x1c8] sm:$0xff]
  %v2031 = vld [vmem:[%s4 + $0x1d0] sm:$0xff]
  %v2032 = vld [vmem:[%s4 + $0x1d8] sm:$0xff]
  %v2033 = vld [vmem:[%s4 + $0x1e0] sm:$0xff]
  %v2034 = vld [vmem:[%s4 + $0x1e8] sm:$0xff]
  %v2035 = vld [vmem:[%s4 + $0x1f0] sm:$0xff]
  %v2036 = vld [vmem:[%s4 + $0x1f8] sm:$0xff]
  %v2037 = vld [vmem:[%s5] sm:$0xf]
  %v2039 = vperm.slane %v2037, 0
  %v2040 = vperm.slane %v2037, 1
  %v2041 = vperm.slane %v2037, 2
  %v2042 = vperm.slane %v2037, 3
  %v2048 = vrot.slane %v1970, 2
  %2050 = vmatpush.msra.mxu0 %v2033
  %2051 = vmatpush.msra.mxu0 %v2029
  %2052 = vmatpush.msra.mxu0 %v2025
  %2053 = vmatpush.msra.mxu0 %v2021
  %2054 = vmatpush.msra.mxu0 %v2017
  %2055 = vmatpush.msra.mxu0 %v2013
  %2056 = vmatpush.msra.mxu0 %v2009
  %2057 = vmatpush.msra.mxu0 %v2005
  %2058 = vmatpush.msra.mxu0 %v2001
  %2059 = vmatpush.msra.mxu0 %v1997
  %2060 = vmatpush.msra.mxu0 %v1993
  %2061 = vmatpush.msra.mxu0 %v1989
  %2062 = vmatpush.msra.mxu0 %v1985
  %2063 = vmatpush.msra.mxu0 %v1981
  %2064 = vmatpush.msra.mxu0 %v1977
  %2065 = vmatpush.msra.mxu0 %v1973
  %2066 = vmatmul.f32.gmra.mxu0 %v2048
  %v2067 = vpop.f32.mrf.mxu0
  %v2068 = vadd.f32 %v2039, %v2067
  %2069 = vdwg.mxu0
  %2070 = vmatpush.msra.mxu0 %v2034
  %2071 = vmatpush.msra.mxu0 %v2030
  %2072 = vmatpush.msra.mxu0 %v2026
  %2073 = vmatpush.msra.mxu0 %v2022
  %2074 = vmatpush.msra.mxu0 %v2018
  %2075 = vmatpush.msra.mxu0 %v2014
  %2076 = vmatpush.msra.mxu0 %v2010
  %2077 = vmatpush.msra.mxu0 %v2006
  %2078 = vmatpush.msra.mxu0 %v2002
  %2079 = vmatpush.msra.mxu0 %v1998
  %2080 = vmatpush.msra.mxu0 %v1994
  %2081 = vmatpush.msra.mxu0 %v1990
  %2082 = vmatpush.msra.mxu0 %v1986
  %2083 = vmatpush.msra.mxu0 %v1982
  %2084 = vmatpush.msra.mxu0 %v1978
  %2085 = vmatpush.msra.mxu0 %v1974
  %2086 = vmatmul.f32.gmra.mxu0 %v2048
  %v2087 = vpop.f32.mrf.mxu0
  %v2088 = vadd.f32 %v2040, %v2087
  %2089 = vdwg.mxu0
  %2090 = vmatpush.msra.mxu0 %v2035
  %2091 = vmatpush.msra.mxu0 %v2031
  %2092 = vmatpush.msra.mxu0 %v2027
  %2093 = vmatpush.msra.mxu0 %v2023
  %2094 = vmatpush.msra.mxu0 %v2019
  %2095 = vmatpush.msra.mxu0 %v2015
  %2096 = vmatpush.msra.mxu0 %v2011
  %2097 = vmatpush.msra.mxu0 %v2007
  %2098 = vmatpush.msra.mxu0 %v2003
  %2099 = vmatpush.msra.mxu0 %v1999
  %2100 = vmatpush.msra.mxu0 %v1995
  %2101 = vmatpush.msra.mxu0 %v1991
  %2102 = vmatpush.msra.mxu0 %v1987
  %2103 = vmatpush.msra.mxu0 %v1983
  %2104 = vmatpush.msra.mxu0 %v1979
  %2105 = vmatpush.msra.mxu0 %v1975
  %2106 = vmatmul.f32.gmra.mxu0 %v2048
  %v2107 = vpop.f32.mrf.mxu0
  %v2108 = vadd.f32 %v2041, %v2107
  %2109 = vdwg.mxu0
  %2110 = vmatpush.msra.mxu0 %v2036
  %2111 = vmatpush.msra.mxu0 %v2032
  %2112 = vmatpush.msra.mxu0 %v2028
  %2113 = vmatpush.msra.mxu0 %v2024
  %2114 = vmatpush.msra.mxu0 %v2020
  %2115 = vmatpush.msra.mxu0 %v2016
  %2116 = vmatpush.msra.mxu0 %v2012
  %2117 = vmatpush.msra.mxu0 %v2008
  %2118 = vmatpush.msra.mxu0 %v2004
  %2119 = vmatpush.msra.mxu0 %v2000
  %2120 = vmatpush.msra.mxu0 %v1996
  %2121 = vmatpush.msra.mxu0 %v1992
  %2122 = vmatpush.msra.mxu0 %v1988
  %2123 = vmatpush.msra.mxu0 %v1984
  %2124 = vmatpush.msra.mxu0 %v1980
  %2125 = vmatpush.msra.mxu0 %v1976
  %2126 = vmatmul.f32.gmra.mxu0 %v2048
  %v2127 = vpop.f32.mrf.mxu0
  %v2128 = vadd.f32 %v2042, %v2127
  %2129 = vdwg.mxu0
  %v2134 = vrot.slane %v2068, 6
  %v2135 = vrot.slane %v2088, 6
  %v2136 = vrot.slane %v2108, 6
  %v2137 = vrot.slane %v2128, 6
  %2142 = vst [vmem:[%s6 + $0x20] sm:$0xc] %v2134
  %2143 = vst [vmem:[%s6 + $0x28] sm:$0xc] %v2135
  %2144 = vst [vmem:[%s6 + $0x30] sm:$0xc] %v2136
  %2145 = vst [vmem:[%s6 + $0x38] sm:$0xc] %v2137
  %v2146 = vld [vmem:[%s7] sm:$0x3]
  %v2147 = vld [vmem:[%s8] sm:$0x3]
  %v2148 = vld [vmem:[%s0 + $0x20] sm:$0x30]
  %v2149 = vld [vmem:[%s0 + $0x28] sm:$0x30]
  %v2150 = vld [vmem:[%s0 + $0x30] sm:$0x30]
  %v2151 = vld [vmem:[%s0 + $0x38] sm:$0x30]
  %v2152 = vld [vmem:[%s3] sm:$0xff]
  %v2153 = vld [vmem:[%s3 + $0x8] sm:$0xff]
  %v2154 = vld [vmem:[%s3 + $0x10] sm:$0xff]
  %v2155 = vld [vmem:[%s3 + $0x18] sm:$0xff]
  %v2156 = vld [vmem:[%s3 + $0x20] sm:$0xff]
  %v2157 = vld [vmem:[%s3 + $0x28] sm:$0xff]
  %v2158 = vld [vmem:[%s3 + $0x30] sm:$0xff]
  %v2159 = vld [vmem:[%s3 + $0x38] sm:$0xff]
  %v2160 = vld [vmem:[%s3 + $0x40] sm:$0xff]
  %v2161 = vld [vmem:[%s3 + $0x48] sm:$0xff]
  %v2162 = vld [vmem:[%s3 + $0x50] sm:$0xff]
  %v2163 = vld [vmem:[%s3 + $0x58] sm:$0xff]
  %v2164 = vld [vmem:[%s3 + $0x60] sm:$0xff]
  %v2165 = vld [vmem:[%s3 + $0x68] sm:$0xff]
  %v2166 = vld [vmem:[%s3 + $0x70] sm:$0xff]
  %v2167 = vld [vmem:[%s3 + $0x78] sm:$0xff]
  %v2168 = vld [vmem:[%s3 + $0x80] sm:$0xff]
  %v2169 = vld [vmem:[%s3 + $0x88] sm:$0xff]
  %v2170 = vld [vmem:[%s3 + $0x90] sm:$0xff]
  %v2171 = vld [vmem:[%s3 + $0x98] sm:$0xff]
  %v2172 = vld [vmem:[%s3 + $0xa0] sm:$0xff]
  %v2173 = vld [vmem:[%s3 + $0xa8] sm:$0xff]
  %v2174 = vld [vmem:[%s3 + $0xb0] sm:$0xff]
  %v2175 = vld [vmem:[%s3 + $0xb8] sm:$0xff]
  %v2176 = vld [vmem:[%s3 + $0xc0] sm:$0xff]
  %v2177 = vld [vmem:[%s3 + $0xc8] sm:$0xff]
  %v2178 = vld [vmem:[%s3 + $0xd0] sm:$0xff]
  %v2179 = vld [vmem:[%s3 + $0xd8] sm:$0xff]
  %v2180 = vld [vmem:[%s3 + $0xe0] sm:$0xff]
  %v2181 = vld [vmem:[%s3 + $0xe8] sm:$0xff]
  %v2182 = vld [vmem:[%s3 + $0xf0] sm:$0xff]
  %v2183 = vld [vmem:[%s3 + $0xf8] sm:$0xff]
  %v2184 = vld [vmem:[%s3 + $0x100] sm:$0xff]
  %v2185 = vld [vmem:[%s3 + $0x108] sm:$0xff]
  %v2186 = vld [vmem:[%s3 + $0x110] sm:$0xff]
  %v2187 = vld [vmem:[%s3 + $0x118] sm:$0xff]
  %v2188 = vld [vmem:[%s3 + $0x120] sm:$0xff]
  %v2189 = vld [vmem:[%s3 + $0x128] sm:$0xff]
  %v2190 = vld [vmem:[%s3 + $0x130] sm:$0xff]
  %v2191 = vld [vmem:[%s3 + $0x138] sm:$0xff]
  %v2192 = vld [vmem:[%s3 + $0x140] sm:$0xff]
  %v2193 = vld [vmem:[%s3 + $0x148] sm:$0xff]
  %v2194 = vld [vmem:[%s3 + $0x150] sm:$0xff]
  %v2195 = vld [vmem:[%s3 + $0x158] sm:$0xff]
  %v2196 = vld [vmem:[%s3 + $0x160] sm:$0xff]
  %v2197 = vld [vmem:[%s3 + $0x168] sm:$0xff]
  %v2198 = vld [vmem:[%s3 + $0x170] sm:$0xff]
  %v2199 = vld [vmem:[%s3 + $0x178] sm:$0xff]
  %v2200 = vld [vmem:[%s3 + $0x180] sm:$0xff]
  %v2201 = vld [vmem:[%s3 + $0x188] sm:$0xff]
  %v2202 = vld [vmem:[%s3 + $0x190] sm:$0xff]
  %v2203 = vld [vmem:[%s3 + $0x198] sm:$0xff]
  %v2204 = vld [vmem:[%s3 + $0x1a0] sm:$0xff]
  %v2205 = vld [vmem:[%s3 + $0x1a8] sm:$0xff]
  %v2206 = vld [vmem:[%s3 + $0x1b0] sm:$0xff]
  %v2207 = vld [vmem:[%s3 + $0x1b8] sm:$0xff]
  %v2208 = vld [vmem:[%s3 + $0x1c0] sm:$0xff]
  %v2209 = vld [vmem:[%s3 + $0x1c8] sm:$0xff]
  %v2210 = vld [vmem:[%s3 + $0x1d0] sm:$0xff]
  %v2211 = vld [vmem:[%s3 + $0x1d8] sm:$0xff]
  %v2212 = vld [vmem:[%s3 + $0x1e0] sm:$0xff]
  %v2213 = vld [vmem:[%s3 + $0x1e8] sm:$0xff]
  %v2214 = vld [vmem:[%s3 + $0x1f0] sm:$0xff]
  %v2215 = vld [vmem:[%s3 + $0x1f8] sm:$0xff]
  %2216 = vmatpush.msra.mxu0 %v2212
  %2217 = vmatpush.msra.mxu0 %v2208
  %2218 = vmatpush.msra.mxu0 %v2204
  %2219 = vmatpush.msra.mxu0 %v2200
  %2220 = vmatpush.msra.mxu0 %v2196
  %2221 = vmatpush.msra.mxu0 %v2192
  %2222 = vmatpush.msra.mxu0 %v2188
  %2223 = vmatpush.msra.mxu0 %v2184
  %2224 = vmatpush.msra.mxu0 %v2180
  %2225 = vmatpush.msra.mxu0 %v2176
  %2226 = vmatpush.msra.mxu0 %v2172
  %2227 = vmatpush.msra.mxu0 %v2168
  %2228 = vmatpush.msra.mxu0 %v2164
  %2229 = vmatpush.msra.mxu0 %v2160
  %2230 = vmatpush.msra.mxu0 %v2156
  %2231 = vmatpush.msra.mxu0 %v2152
  %2232 = vmatmul.f32.gmra.mxu0 %v2146
  %v2233 = vpop.f32.mrf.mxu0
  %v2234 = vadd.f32 0.0, %v2233
  %2235 = vdwg.mxu0
  %2236 = vmatpush.msra.mxu0 %v2213
  %2237 = vmatpush.msra.mxu0 %v2209
  %2238 = vmatpush.msra.mxu0 %v2205
  %2239 = vmatpush.msra.mxu0 %v2201
  %2240 = vmatpush.msra.mxu0 %v2197
  %2241 = vmatpush.msra.mxu0 %v2193
  %2242 = vmatpush.msra.mxu0 %v2189
  %2243 = vmatpush.msra.mxu0 %v2185
  %2244 = vmatpush.msra.mxu0 %v2181
  %2245 = vmatpush.msra.mxu0 %v2177
  %2246 = vmatpush.msra.mxu0 %v2173
  %2247 = vmatpush.msra.mxu0 %v2169
  %2248 = vmatpush.msra.mxu0 %v2165
  %2249 = vmatpush.msra.mxu0 %v2161
  %2250 = vmatpush.msra.mxu0 %v2157
  %2251 = vmatpush.msra.mxu0 %v2153
  %2252 = vmatmul.f32.gmra.mxu0 %v2146
  %v2253 = vpop.f32.mrf.mxu0
  %v2254 = vadd.f32 0.0, %v2253
  %2255 = vdwg.mxu0
  %2256 = vmatpush.msra.mxu0 %v2214
  %2257 = vmatpush.msra.mxu0 %v2210
  %2258 = vmatpush.msra.mxu0 %v2206
  %2259 = vmatpush.msra.mxu0 %v2202
  %2260 = vmatpush.msra.mxu0 %v2198
  %2261 = vmatpush.msra.mxu0 %v2194
  %2262 = vmatpush.msra.mxu0 %v2190
  %2263 = vmatpush.msra.mxu0 %v2186
  %2264 = vmatpush.msra.mxu0 %v2182
  %2265 = vmatpush.msra.mxu0 %v2178
  %2266 = vmatpush.msra.mxu0 %v2174
  %2267 = vmatpush.msra.mxu0 %v2170
  %2268 = vmatpush.msra.mxu0 %v2166
  %2269 = vmatpush.msra.mxu0 %v2162
  %2270 = vmatpush.msra.mxu0 %v2158
  %2271 = vmatpush.msra.mxu0 %v2154
  %2272 = vmatmul.f32.gmra.mxu0 %v2146
  %v2273 = vpop.f32.mrf.mxu0
  %v2274 = vadd.f32 0.0, %v2273
  %2275 = vdwg.mxu0
  %2276 = vmatpush.msra.mxu0 %v2215
  %2277 = vmatpush.msra.mxu0 %v2211
  %2278 = vmatpush.msra.mxu0 %v2207
  %2279 = vmatpush.msra.mxu0 %v2203
  %2280 = vmatpush.msra.mxu0 %v2199
  %2281 = vmatpush.msra.mxu0 %v2195
  %2282 = vmatpush.msra.mxu0 %v2191
  %2283 = vmatpush.msra.mxu0 %v2187
  %2284 = vmatpush.msra.mxu0 %v2183
  %2285 = vmatpush.msra.mxu0 %v2179
  %2286 = vmatpush.msra.mxu0 %v2175
  %2287 = vmatpush.msra.mxu0 %v2171
  %2288 = vmatpush.msra.mxu0 %v2167
  %2289 = vmatpush.msra.mxu0 %v2163
  %2290 = vmatpush.msra.mxu0 %v2159
  %2291 = vmatpush.msra.mxu0 %v2155
  %2292 = vmatmul.f32.gmra.mxu0 %v2146
  %v2293 = vpop.f32.mrf.mxu0
  %v2294 = vadd.f32 0.0, %v2293
  %2295 = vdwg.mxu0
  %v2300 = vrot.slane %v2234, 4
  %v2301 = vrot.slane %v2254, 4
  %v2302 = vrot.slane %v2274, 4
  %v2303 = vrot.slane %v2294, 4
  %v2308 = vadd.f32 %v2148, %v2300
  %v2309 = vadd.f32 %v2149, %v2301
  %v2310 = vadd.f32 %v2150, %v2302
  %v2311 = vadd.f32 %v2151, %v2303
  %v2312 = vmul.f32 %v2308, 0.5
  %v2313 = vtanh.pop %v2312
  %v2314 = vmul.f32 %v2313, 0.5
  %v2315 = vadd.f32 %v2314, 0.5
  %v2316 = vmul.f32 %v2309, 0.5
  %v2317 = vtanh.pop %v2316
  %v2318 = vmul.f32 %v2317, 0.5
  %v2319 = vadd.f32 %v2318, 0.5
  %v2320 = vtanh.pop %v2310
  %v2321 = vmul.f32 %v2311, 0.5
  %v2322 = vtanh.pop %v2321
  %v2323 = vmul.f32 %v2322, 0.5
  %v2324 = vadd.f32 %v2323, 0.5
  %v2326 = vrot.slane %v2147, 4
  %v2328 = vmul.f32 %v2319, %v2326
  %v2329 = vmul.f32 %v2315, %v2320
  %v2330 = vadd.f32 %v2328, %v2329
  %v2331 = vtanh.pop %v2330
  %v2332 = vmul.f32 %v2324, %v2331
  %2333 = vst [vmem:[%s8 - $0x4] sm:$0x30] %v2330
  %2334 = vst [vmem:[%s7 - $0x4] sm:$0x30] %v2332
  %v2335 = vld [vmem:[%s4] sm:$0xff]
  %v2336 = vld [vmem:[%s4 + $0x8] sm:$0xff]
  %v2337 = vld [vmem:[%s4 + $0x10] sm:$0xff]
  %v2338 = vld [vmem:[%s4 + $0x18] sm:$0xff]
  %v2339 = vld [vmem:[%s4 + $0x20] sm:$0xff]
  %v2340 = vld [vmem:[%s4 + $0x28] sm:$0xff]
  %v2341 = vld [vmem:[%s4 + $0x30] sm:$0xff]
  %v2342 = vld [vmem:[%s4 + $0x38] sm:$0xff]
  %v2343 = vld [vmem:[%s4 + $0x40] sm:$0xff]
  %v2344 = vld [vmem:[%s4 + $0x48] sm:$0xff]
  %v2345 = vld [vmem:[%s4 + $0x50] sm:$0xff]
  %v2346 = vld [vmem:[%s4 + $0x58] sm:$0xff]
  %v2347 = vld [vmem:[%s4 + $0x60] sm:$0xff]
  %v2348 = vld [vmem:[%s4 + $0x68] sm:$0xff]
  %v2349 = vld [vmem:[%s4 + $0x70] sm:$0xff]
  %v2350 = vld [vmem:[%s4 + $0x78] sm:$0xff]
  %v2351 = vld [vmem:[%s4 + $0x80] sm:$0xff]
  %v2352 = vld [vmem:[%s4 + $0x88] sm:$0xff]
  %v2353 = vld [vmem:[%s4 + $0x90] sm:$0xff]
  %v2354 = vld [vmem:[%s4 + $0x98] sm:$0xff]
  %v2355 = vld [vmem:[%s4 + $0xa0] sm:$0xff]
  %v2356 = vld [vmem:[%s4 + $0xa8] sm:$0xff]
  %v2357 = vld [vmem:[%s4 + $0xb0] sm:$0xff]
  %v2358 = vld [vmem:[%s4 + $0xb8] sm:$0xff]
  %v2359 = vld [vmem:[%s4 + $0xc0] sm:$0xff]
  %v2360 = vld [vmem:[%s4 + $0xc8] sm:$0xff]
  %v2361 = vld [vmem:[%s4 + $0xd0] sm:$0xff]
  %v2362 = vld [vmem:[%s4 + $0xd8] sm:$0xff]
  %v2363 = vld [vmem:[%s4 + $0xe0] sm:$0xff]
  %v2364 = vld [vmem:[%s4 + $0xe8] sm:$0xff]
  %v2365 = vld [vmem:[%s4 + $0xf0] sm:$0xff]
  %v2366 = vld [vmem:[%s4 + $0xf8] sm:$0xff]
  %v2367 = vld [vmem:[%s4 + $0x100] sm:$0xff]
  %v2368 = vld [vmem:[%s4 + $0x108] sm:$0xff]
  %v2369 = vld [vmem:[%s4 + $0x110] sm:$0xff]
  %v2370 = vld [vmem:[%s4 + $0x118] sm:$0xff]
  %v2371 = vld [vmem:[%s4 + $0x120] sm:$0xff]
  %v2372 = vld [vmem:[%s4 + $0x128] sm:$0xff]
  %v2373 = vld [vmem:[%s4 + $0x130] sm:$0xff]
  %v2374 = vld [vmem:[%s4 + $0x138] sm:$0xff]
  %v2375 = vld [vmem:[%s4 + $0x140] sm:$0xff]
  %v2376 = vld [vmem:[%s4 + $0x148] sm:$0xff]
  %v2377 = vld [vmem:[%s4 + $0x150] sm:$0xff]
  %v2378 = vld [vmem:[%s4 + $0x158] sm:$0xff]
  %v2379 = vld [vmem:[%s4 + $0x160] sm:$0xff]
  %v2380 = vld [vmem:[%s4 + $0x168] sm:$0xff]
  %v2381 = vld [vmem:[%s4 + $0x170] sm:$0xff]
  %v2382 = vld [vmem:[%s4 + $0x178] sm:$0xff]
  %v2383 = vld [vmem:[%s4 + $0x180] sm:$0xff]
  %v2384 = vld [vmem:[%s4 + $0x188] sm:$0xff]
  %v2385 = vld [vmem:[%s4 + $0x190] sm:$0xff]
  %v2386 = vld [vmem:[%s4 + $0x198] sm:$0xff]
  %v2387 = vld [vmem:[%s4 + $0x1a0] sm:$0xff]
  %v2388 = vld [vmem:[%s4 + $0x1a8] sm:$0xff]
  %v2389 = vld [vmem:[%s4 + $0x1b0] sm:$0xff]
  %v2390 = vld [vmem:[%s4 + $0x1b8] sm:$0xff]
  %v2391 = vld [vmem:[%s4 + $0x1c0] sm:$0xff]
  %v2392 = vld [vmem:[%s4 + $0x1c8] sm:$0xff]
  %v2393 = vld [vmem:[%s4 + $0x1d0] sm:$0xff]
  %v2394 = vld [vmem:[%s4 + $0x1d8] sm:$0xff]
  %v2395 = vld [vmem:[%s4 + $0x1e0] sm:$0xff]
  %v2396 = vld [vmem:[%s4 + $0x1e8] sm:$0xff]
  %v2397 = vld [vmem:[%s4 + $0x1f0] sm:$0xff]
  %v2398 = vld [vmem:[%s4 + $0x1f8] sm:$0xff]
  %v2399 = vld [vmem:[%s5] sm:$0xf]
  %v2401 = vperm.slane %v2399, 0
  %v2402 = vperm.slane %v2399, 1
  %v2403 = vperm.slane %v2399, 2
  %v2404 = vperm.slane %v2399, 3
  %v2410 = vrot.slane %v2332, 4
  %2412 = vmatpush.msra.mxu0 %v2395
  %2413 = vmatpush.msra.mxu0 %v2391
  %2414 = vmatpush.msra.mxu0 %v2387
  %2415 = vmatpush.msra.mxu0 %v2383
  %2416 = vmatpush.msra.mxu0 %v2379
  %2417 = vmatpush.msra.mxu0 %v2375
  %2418 = vmatpush.msra.mxu0 %v2371
  %2419 = vmatpush.msra.mxu0 %v2367
  %2420 = vmatpush.msra.mxu0 %v2363
  %2421 = vmatpush.msra.mxu0 %v2359
  %2422 = vmatpush.msra.mxu0 %v2355
  %2423 = vmatpush.msra.mxu0 %v2351
  %2424 = vmatpush.msra.mxu0 %v2347
  %2425 = vmatpush.msra.mxu0 %v2343
  %2426 = vmatpush.msra.mxu0 %v2339
  %2427 = vmatpush.msra.mxu0 %v2335
  %2428 = vmatmul.f32.gmra.mxu0 %v2410
  %v2429 = vpop.f32.mrf.mxu0
  %v2430 = vadd.f32 %v2401, %v2429
  %2431 = vdwg.mxu0
  %2432 = vmatpush.msra.mxu0 %v2396
  %2433 = vmatpush.msra.mxu0 %v2392
  %2434 = vmatpush.msra.mxu0 %v2388
  %2435 = vmatpush.msra.mxu0 %v2384
  %2436 = vmatpush.msra.mxu0 %v2380
  %2437 = vmatpush.msra.mxu0 %v2376
  %2438 = vmatpush.msra.mxu0 %v2372
  %2439 = vmatpush.msra.mxu0 %v2368
  %2440 = vmatpush.msra.mxu0 %v2364
  %2441 = vmatpush.msra.mxu0 %v2360
  %2442 = vmatpush.msra.mxu0 %v2356
  %2443 = vmatpush.msra.mxu0 %v2352
  %2444 = vmatpush.msra.mxu0 %v2348
  %2445 = vmatpush.msra.mxu0 %v2344
  %2446 = vmatpush.msra.mxu0 %v2340
  %2447 = vmatpush.msra.mxu0 %v2336
  %2448 = vmatmul.f32.gmra.mxu0 %v2410
  %v2449 = vpop.f32.mrf.mxu0
  %v2450 = vadd.f32 %v2402, %v2449
  %2451 = vdwg.mxu0
  %2452 = vmatpush.msra.mxu0 %v2397
  %2453 = vmatpush.msra.mxu0 %v2393
  %2454 = vmatpush.msra.mxu0 %v2389
  %2455 = vmatpush.msra.mxu0 %v2385
  %2456 = vmatpush.msra.mxu0 %v2381
  %2457 = vmatpush.msra.mxu0 %v2377
  %2458 = vmatpush.msra.mxu0 %v2373
  %2459 = vmatpush.msra.mxu0 %v2369
  %2460 = vmatpush.msra.mxu0 %v2365
  %2461 = vmatpush.msra.mxu0 %v2361
  %2462 = vmatpush.msra.mxu0 %v2357
  %2463 = vmatpush.msra.mxu0 %v2353
  %2464 = vmatpush.msra.mxu0 %v2349
  %2465 = vmatpush.msra.mxu0 %v2345
  %2466 = vmatpush.msra.mxu0 %v2341
  %2467 = vmatpush.msra.mxu0 %v2337
  %2468 = vmatmul.f32.gmra.mxu0 %v2410
  %v2469 = vpop.f32.mrf.mxu0
  %v2470 = vadd.f32 %v2403, %v2469
  %2471 = vdwg.mxu0
  %2472 = vmatpush.msra.mxu0 %v2398
  %2473 = vmatpush.msra.mxu0 %v2394
  %2474 = vmatpush.msra.mxu0 %v2390
  %2475 = vmatpush.msra.mxu0 %v2386
  %2476 = vmatpush.msra.mxu0 %v2382
  %2477 = vmatpush.msra.mxu0 %v2378
  %2478 = vmatpush.msra.mxu0 %v2374
  %2479 = vmatpush.msra.mxu0 %v2370
  %2480 = vmatpush.msra.mxu0 %v2366
  %2481 = vmatpush.msra.mxu0 %v2362
  %2482 = vmatpush.msra.mxu0 %v2358
  %2483 = vmatpush.msra.mxu0 %v2354
  %2484 = vmatpush.msra.mxu0 %v2350
  %2485 = vmatpush.msra.mxu0 %v2346
  %2486 = vmatpush.msra.mxu0 %v2342
  %2487 = vmatpush.msra.mxu0 %v2338
  %2488 = vmatmul.f32.gmra.mxu0 %v2410
  %v2489 = vpop.f32.mrf.mxu0
  %v2490 = vadd.f32 %v2404, %v2489
  %2491 = vdwg.mxu0
  %v2496 = vrot.slane %v2430, 4
  %v2497 = vrot.slane %v2450, 4
  %v2498 = vrot.slane %v2470, 4
  %v2499 = vrot.slane %v2490, 4
  %2504 = vst [vmem:[%s6 + $0x20] sm:$0x30] %v2496
  %2505 = vst [vmem:[%s6 + $0x28] sm:$0x30] %v2497
  %2506 = vst [vmem:[%s6 + $0x30] sm:$0x30] %v2498
  %2507 = vst [vmem:[%s6 + $0x38] sm:$0x30] %v2499
  %v2508 = vld [vmem:[%s7] sm:$0x3]
  %v2509 = vld [vmem:[%s8] sm:$0x3]
  %v2510 = vld [vmem:[%s0 + $0x20] sm:$0xc0]
  %v2511 = vld [vmem:[%s0 + $0x28] sm:$0xc0]
  %v2512 = vld [vmem:[%s0 + $0x30] sm:$0xc0]
  %v2513 = vld [vmem:[%s0 + $0x38] sm:$0xc0]
  %v2514 = vld [vmem:[%s3] sm:$0xff]
  %v2515 = vld [vmem:[%s3 + $0x8] sm:$0xff]
  %v2516 = vld [vmem:[%s3 + $0x10] sm:$0xff]
  %v2517 = vld [vmem:[%s3 + $0x18] sm:$0xff]
  %v2518 = vld [vmem:[%s3 + $0x20] sm:$0xff]
  %v2519 = vld [vmem:[%s3 + $0x28] sm:$0xff]
  %v2520 = vld [vmem:[%s3 + $0x30] sm:$0xff]
  %v2521 = vld [vmem:[%s3 + $0x38] sm:$0xff]
  %v2522 = vld [vmem:[%s3 + $0x40] sm:$0xff]
  %v2523 = vld [vmem:[%s3 + $0x48] sm:$0xff]
  %v2524 = vld [vmem:[%s3 + $0x50] sm:$0xff]
  %v2525 = vld [vmem:[%s3 + $0x58] sm:$0xff]
  %v2526 = vld [vmem:[%s3 + $0x60] sm:$0xff]
  %v2527 = vld [vmem:[%s3 + $0x68] sm:$0xff]
  %v2528 = vld [vmem:[%s3 + $0x70] sm:$0xff]
  %v2529 = vld [vmem:[%s3 + $0x78] sm:$0xff]
  %v2530 = vld [vmem:[%s3 + $0x80] sm:$0xff]
  %v2531 = vld [vmem:[%s3 + $0x88] sm:$0xff]
  %v2532 = vld [vmem:[%s3 + $0x90] sm:$0xff]
  %v2533 = vld [vmem:[%s3 + $0x98] sm:$0xff]
  %v2534 = vld [vmem:[%s3 + $0xa0] sm:$0xff]
  %v2535 = vld [vmem:[%s3 + $0xa8] sm:$0xff]
  %v2536 = vld [vmem:[%s3 + $0xb0] sm:$0xff]
  %v2537 = vld [vmem:[%s3 + $0xb8] sm:$0xff]
  %v2538 = vld [vmem:[%s3 + $0xc0] sm:$0xff]
  %v2539 = vld [vmem:[%s3 + $0xc8] sm:$0xff]
  %v2540 = vld [vmem:[%s3 + $0xd0] sm:$0xff]
  %v2541 = vld [vmem:[%s3 + $0xd8] sm:$0xff]
  %v2542 = vld [vmem:[%s3 + $0xe0] sm:$0xff]
  %v2543 = vld [vmem:[%s3 + $0xe8] sm:$0xff]
  %v2544 = vld [vmem:[%s3 + $0xf0] sm:$0xff]
  %v2545 = vld [vmem:[%s3 + $0xf8] sm:$0xff]
  %v2546 = vld [vmem:[%s3 + $0x100] sm:$0xff]
  %v2547 = vld [vmem:[%s3 + $0x108] sm:$0xff]
  %v2548 = vld [vmem:[%s3 + $0x110] sm:$0xff]
  %v2549 = vld [vmem:[%s3 + $0x118] sm:$0xff]
  %v2550 = vld [vmem:[%s3 + $0x120] sm:$0xff]
  %v2551 = vld [vmem:[%s3 + $0x128] sm:$0xff]
  %v2552 = vld [vmem:[%s3 + $0x130] sm:$0xff]
  %v2553 = vld [vmem:[%s3 + $0x138] sm:$0xff]
  %v2554 = vld [vmem:[%s3 + $0x140] sm:$0xff]
  %v2555 = vld [vmem:[%s3 + $0x148] sm:$0xff]
  %v2556 = vld [vmem:[%s3 + $0x150] sm:$0xff]
  %v2557 = vld [vmem:[%s3 + $0x158] sm:$0xff]
  %v2558 = vld [vmem:[%s3 + $0x160] sm:$0xff]
  %v2559 = vld [vmem:[%s3 + $0x168] sm:$0xff]
  %v2560 = vld [vmem:[%s3 + $0x170] sm:$0xff]
  %v2561 = vld [vmem:[%s3 + $0x178] sm:$0xff]
  %v2562 = vld [vmem:[%s3 + $0x180] sm:$0xff]
  %v2563 = vld [vmem:[%s3 + $0x188] sm:$0xff]
  %v2564 = vld [vmem:[%s3 + $0x190] sm:$0xff]
  %v2565 = vld [vmem:[%s3 + $0x198] sm:$0xff]
  %v2566 = vld [vmem:[%s3 + $0x1a0] sm:$0xff]
  %v2567 = vld [vmem:[%s3 + $0x1a8] sm:$0xff]
  %v2568 = vld [vmem:[%s3 + $0x1b0] sm:$0xff]
  %v2569 = vld [vmem:[%s3 + $0x1b8] sm:$0xff]
  %v2570 = vld [vmem:[%s3 + $0x1c0] sm:$0xff]
  %v2571 = vld [vmem:[%s3 + $0x1c8] sm:$0xff]
  %v2572 = vld [vmem:[%s3 + $0x1d0] sm:$0xff]
  %v2573 = vld [vmem:[%s3 + $0x1d8] sm:$0xff]
  %v2574 = vld [vmem:[%s3 + $0x1e0] sm:$0xff]
  %v2575 = vld [vmem:[%s3 + $0x1e8] sm:$0xff]
  %v2576 = vld [vmem:[%s3 + $0x1f0] sm:$0xff]
  %v2577 = vld [vmem:[%s3 + $0x1f8] sm:$0xff]
  %2578 = vmatpush.msra.mxu0 %v2574
  %2579 = vmatpush.msra.mxu0 %v2570
  %2580 = vmatpush.msra.mxu0 %v2566
  %2581 = vmatpush.msra.mxu0 %v2562
  %2582 = vmatpush.msra.mxu0 %v2558
  %2583 = vmatpush.msra.mxu0 %v2554
  %2584 = vmatpush.msra.mxu0 %v2550
  %2585 = vmatpush.msra.mxu0 %v2546
  %2586 = vmatpush.msra.mxu0 %v2542
  %2587 = vmatpush.msra.mxu0 %v2538
  %2588 = vmatpush.msra.mxu0 %v2534
  %2589 = vmatpush.msra.mxu0 %v2530
  %2590 = vmatpush.msra.mxu0 %v2526
  %2591 = vmatpush.msra.mxu0 %v2522
  %2592 = vmatpush.msra.mxu0 %v2518
  %2593 = vmatpush.msra.mxu0 %v2514
  %2594 = vmatmul.f32.gmra.mxu0 %v2508
  %v2595 = vpop.f32.mrf.mxu0
  %v2596 = vadd.f32 0.0, %v2595
  %2597 = vdwg.mxu0
  %2598 = vmatpush.msra.mxu0 %v2575
  %2599 = vmatpush.msra.mxu0 %v2571
  %2600 = vmatpush.msra.mxu0 %v2567
  %2601 = vmatpush.msra.mxu0 %v2563
  %2602 = vmatpush.msra.mxu0 %v2559
  %2603 = vmatpush.msra.mxu0 %v2555
  %2604 = vmatpush.msra.mxu0 %v2551
  %2605 = vmatpush.msra.mxu0 %v2547
  %2606 = vmatpush.msra.mxu0 %v2543
  %2607 = vmatpush.msra.mxu0 %v2539
  %2608 = vmatpush.msra.mxu0 %v2535
  %2609 = vmatpush.msra.mxu0 %v2531
  %2610 = vmatpush.msra.mxu0 %v2527
  %2611 = vmatpush.msra.mxu0 %v2523
  %2612 = vmatpush.msra.mxu0 %v2519
  %2613 = vmatpush.msra.mxu0 %v2515
  %2614 = vmatmul.f32.gmra.mxu0 %v2508
  %v2615 = vpop.f32.mrf.mxu0
  %v2616 = vadd.f32 0.0, %v2615
  %2617 = vdwg.mxu0
  %2618 = vmatpush.msra.mxu0 %v2576
  %2619 = vmatpush.msra.mxu0 %v2572
  %2620 = vmatpush.msra.mxu0 %v2568
  %2621 = vmatpush.msra.mxu0 %v2564
  %2622 = vmatpush.msra.mxu0 %v2560
  %2623 = vmatpush.msra.mxu0 %v2556
  %2624 = vmatpush.msra.mxu0 %v2552
  %2625 = vmatpush.msra.mxu0 %v2548
  %2626 = vmatpush.msra.mxu0 %v2544
  %2627 = vmatpush.msra.mxu0 %v2540
  %2628 = vmatpush.msra.mxu0 %v2536
  %2629 = vmatpush.msra.mxu0 %v2532
  %2630 = vmatpush.msra.mxu0 %v2528
  %2631 = vmatpush.msra.mxu0 %v2524
  %2632 = vmatpush.msra.mxu0 %v2520
  %2633 = vmatpush.msra.mxu0 %v2516
  %2634 = vmatmul.f32.gmra.mxu0 %v2508
  %v2635 = vpop.f32.mrf.mxu0
  %v2636 = vadd.f32 0.0, %v2635
  %2637 = vdwg.mxu0
  %2638 = vmatpush.msra.mxu0 %v2577
  %2639 = vmatpush.msra.mxu0 %v2573
  %2640 = vmatpush.msra.mxu0 %v2569
  %2641 = vmatpush.msra.mxu0 %v2565
  %2642 = vmatpush.msra.mxu0 %v2561
  %2643 = vmatpush.msra.mxu0 %v2557
  %2644 = vmatpush.msra.mxu0 %v2553
  %2645 = vmatpush.msra.mxu0 %v2549
  %2646 = vmatpush.msra.mxu0 %v2545
  %2647 = vmatpush.msra.mxu0 %v2541
  %2648 = vmatpush.msra.mxu0 %v2537
  %2649 = vmatpush.msra.mxu0 %v2533
  %2650 = vmatpush.msra.mxu0 %v2529
  %2651 = vmatpush.msra.mxu0 %v2525
  %2652 = vmatpush.msra.mxu0 %v2521
  %2653 = vmatpush.msra.mxu0 %v2517
  %2654 = vmatmul.f32.gmra.mxu0 %v2508
  %v2655 = vpop.f32.mrf.mxu0
  %v2656 = vadd.f32 0.0, %v2655
  %2657 = vdwg.mxu0
  %v2662 = vrot.slane %v2596, 2
  %v2663 = vrot.slane %v2616, 2
  %v2664 = vrot.slane %v2636, 2
  %v2665 = vrot.slane %v2656, 2
  %v2670 = vadd.f32 %v2510, %v2662
  %v2671 = vadd.f32 %v2511, %v2663
  %v2672 = vadd.f32 %v2512, %v2664
  %v2673 = vadd.f32 %v2513, %v2665
  %v2674 = vmul.f32 %v2670, 0.5
  %v2675 = vtanh.pop %v2674
  %v2676 = vmul.f32 %v2675, 0.5
  %v2677 = vadd.f32 %v2676, 0.5
  %v2678 = vmul.f32 %v2671, 0.5
  %v2679 = vtanh.pop %v2678
  %v2680 = vmul.f32 %v2679, 0.5
  %v2681 = vadd.f32 %v2680, 0.5
  %v2682 = vtanh.pop %v2672
  %v2683 = vmul.f32 %v2673, 0.5
  %v2684 = vtanh.pop %v2683
  %v2685 = vmul.f32 %v2684, 0.5
  %v2686 = vadd.f32 %v2685, 0.5
  %v2688 = vrot.slane %v2509, 2
  %v2690 = vmul.f32 %v2681, %v2688
  %v2691 = vmul.f32 %v2677, %v2682
  %v2692 = vadd.f32 %v2690, %v2691
  %v2693 = vtanh.pop %v2692
  %v2694 = vmul.f32 %v2686, %v2693
  %2695 = vst [vmem:[%s8 - $0x6] sm:$0xc0] %v2692
  %2696 = vst [vmem:[%s7 - $0x6] sm:$0xc0] %v2694
  %v2697 = vld [vmem:[%s4] sm:$0xff]
  %v2698 = vld [vmem:[%s4 + $0x8] sm:$0xff]
  %v2699 = vld [vmem:[%s4 + $0x10] sm:$0xff]
  %v2700 = vld [vmem:[%s4 + $0x18] sm:$0xff]
  %v2701 = vld [vmem:[%s4 + $0x20] sm:$0xff]
  %v2702 = vld [vmem:[%s4 + $0x28] sm:$0xff]
  %v2703 = vld [vmem:[%s4 + $0x30] sm:$0xff]
  %v2704 = vld [vmem:[%s4 + $0x38] sm:$0xff]
  %v2705 = vld [vmem:[%s4 + $0x40] sm:$0xff]
  %v2706 = vld [vmem:[%s4 + $0x48] sm:$0xff]
  %v2707 = vld [vmem:[%s4 + $0x50] sm:$0xff]
  %v2708 = vld [vmem:[%s4 + $0x58] sm:$0xff]
  %v2709 = vld [vmem:[%s4 + $0x60] sm:$0xff]
  %v2710 = vld [vmem:[%s4 + $0x68] sm:$0xff]
  %v2711 = vld [vmem:[%s4 + $0x70] sm:$0xff]
  %v2712 = vld [vmem:[%s4 + $0x78] sm:$0xff]
  %v2713 = vld [vmem:[%s4 + $0x80] sm:$0xff]
  %v2714 = vld [vmem:[%s4 + $0x88] sm:$0xff]
  %v2715 = vld [vmem:[%s4 + $0x90] sm:$0xff]
  %v2716 = vld [vmem:[%s4 + $0x98] sm:$0xff]
  %v2717 = vld [vmem:[%s4 + $0xa0] sm:$0xff]
  %v2718 = vld [vmem:[%s4 + $0xa8] sm:$0xff]
  %v2719 = vld [vmem:[%s4 + $0xb0] sm:$0xff]
  %v2720 = vld [vmem:[%s4 + $0xb8] sm:$0xff]
  %v2721 = vld [vmem:[%s4 + $0xc0] sm:$0xff]
  %v2722 = vld [vmem:[%s4 + $0xc8] sm:$0xff]
  %v2723 = vld [vmem:[%s4 + $0xd0] sm:$0xff]
  %v2724 = vld [vmem:[%s4 + $0xd8] sm:$0xff]
  %v2725 = vld [vmem:[%s4 + $0xe0] sm:$0xff]
  %v2726 = vld [vmem:[%s4 + $0xe8] sm:$0xff]
  %v2727 = vld [vmem:[%s4 + $0xf0] sm:$0xff]
  %v2728 = vld [vmem:[%s4 + $0xf8] sm:$0xff]
  %v2729 = vld [vmem:[%s4 + $0x100] sm:$0xff]
  %v2730 = vld [vmem:[%s4 + $0x108] sm:$0xff]
  %v2731 = vld [vmem:[%s4 + $0x110] sm:$0xff]
  %v2732 = vld [vmem:[%s4 + $0x118] sm:$0xff]
  %v2733 = vld [vmem:[%s4 + $0x120] sm:$0xff]
  %v2734 = vld [vmem:[%s4 + $0x128] sm:$0xff]
  %v2735 = vld [vmem:[%s4 + $0x130] sm:$0xff]
  %v2736 = vld [vmem:[%s4 + $0x138] sm:$0xff]
  %v2737 = vld [vmem:[%s4 + $0x140] sm:$0xff]
  %v2738 = vld [vmem:[%s4 + $0x148] sm:$0xff]
  %v2739 = vld [vmem:[%s4 + $0x150] sm:$0xff]
  %v2740 = vld [vmem:[%s4 + $0x158] sm:$0xff]
  %v2741 = vld [vmem:[%s4 + $0x160] sm:$0xff]
  %v2742 = vld [vmem:[%s4 + $0x168] sm:$0xff]
  %v2743 = vld [vmem:[%s4 + $0x170] sm:$0xff]
  %v2744 = vld [vmem:[%s4 + $0x178] sm:$0xff]
  %v2745 = vld [vmem:[%s4 + $0x180] sm:$0xff]
  %v2746 = vld [vmem:[%s4 + $0x188] sm:$0xff]
  %v2747 = vld [vmem:[%s4 + $0x190] sm:$0xff]
  %v2748 = vld [vmem:[%s4 + $0x198] sm:$0xff]
  %v2749 = vld [vmem:[%s4 + $0x1a0] sm:$0xff]
  %v2750 = vld [vmem:[%s4 + $0x1a8] sm:$0xff]
  %v2751 = vld [vmem:[%s4 + $0x1b0] sm:$0xff]
  %v2752 = vld [vmem:[%s4 + $0x1b8] sm:$0xff]
  %v2753 = vld [vmem:[%s4 + $0x1c0] sm:$0xff]
  %v2754 = vld [vmem:[%s4 + $0x1c8] sm:$0xff]
  %v2755 = vld [vmem:[%s4 + $0x1d0] sm:$0xff]
  %v2756 = vld [vmem:[%s4 + $0x1d8] sm:$0xff]
  %v2757 = vld [vmem:[%s4 + $0x1e0] sm:$0xff]
  %v2758 = vld [vmem:[%s4 + $0x1e8] sm:$0xff]
  %v2759 = vld [vmem:[%s4 + $0x1f0] sm:$0xff]
  %v2760 = vld [vmem:[%s4 + $0x1f8] sm:$0xff]
  %v2761 = vld [vmem:[%s5] sm:$0xf]
  %v2763 = vperm.slane %v2761, 0
  %v2764 = vperm.slane %v2761, 1
  %v2765 = vperm.slane %v2761, 2
  %v2766 = vperm.slane %v2761, 3
  %v2772 = vrot.slane %v2694, 6
  %2774 = vmatpush.msra.mxu0 %v2757
  %2775 = vmatpush.msra.mxu0 %v2753
  %2776 = vmatpush.msra.mxu0 %v2749
  %2777 = vmatpush.msra.mxu0 %v2745
  %2778 = vmatpush.msra.mxu0 %v2741
  %2779 = vmatpush.msra.mxu0 %v2737
  %2780 = vmatpush.msra.mxu0 %v2733
  %2781 = vmatpush.msra.mxu0 %v2729
  %2782 = vmatpush.msra.mxu0 %v2725
  %2783 = vmatpush.msra.mxu0 %v2721
  %2784 = vmatpush.msra.mxu0 %v2717
  %2785 = vmatpush.msra.mxu0 %v2713
  %2786 = vmatpush.msra.mxu0 %v2709
  %2787 = vmatpush.msra.mxu0 %v2705
  %2788 = vmatpush.msra.mxu0 %v2701
  %2789 = vmatpush.msra.mxu0 %v2697
  %2790 = vmatmul.f32.gmra.mxu0 %v2772
  %v2791 = vpop.f32.mrf.mxu0
  %v2792 = vadd.f32 %v2763, %v2791
  %2793 = vdwg.mxu0
  %2794 = vmatpush.msra.mxu0 %v2758
  %2795 = vmatpush.msra.mxu0 %v2754
  %2796 = vmatpush.msra.mxu0 %v2750
  %2797 = vmatpush.msra.mxu0 %v2746
  %2798 = vmatpush.msra.mxu0 %v2742
  %2799 = vmatpush.msra.mxu0 %v2738
  %2800 = vmatpush.msra.mxu0 %v2734
  %2801 = vmatpush.msra.mxu0 %v2730
  %2802 = vmatpush.msra.mxu0 %v2726
  %2803 = vmatpush.msra.mxu0 %v2722
  %2804 = vmatpush.msra.mxu0 %v2718
  %2805 = vmatpush.msra.mxu0 %v2714
  %2806 = vmatpush.msra.mxu0 %v2710
  %2807 = vmatpush.msra.mxu0 %v2706
  %2808 = vmatpush.msra.mxu0 %v2702
  %2809 = vmatpush.msra.mxu0 %v2698
  %2810 = vmatmul.f32.gmra.mxu0 %v2772
  %v2811 = vpop.f32.mrf.mxu0
  %v2812 = vadd.f32 %v2764, %v2811
  %2813 = vdwg.mxu0
  %2814 = vmatpush.msra.mxu0 %v2759
  %2815 = vmatpush.msra.mxu0 %v2755
  %2816 = vmatpush.msra.mxu0 %v2751
  %2817 = vmatpush.msra.mxu0 %v2747
  %2818 = vmatpush.msra.mxu0 %v2743
  %2819 = vmatpush.msra.mxu0 %v2739
  %2820 = vmatpush.msra.mxu0 %v2735
  %2821 = vmatpush.msra.mxu0 %v2731
  %2822 = vmatpush.msra.mxu0 %v2727
  %2823 = vmatpush.msra.mxu0 %v2723
  %2824 = vmatpush.msra.mxu0 %v2719
  %2825 = vmatpush.msra.mxu0 %v2715
  %2826 = vmatpush.msra.mxu0 %v2711
  %2827 = vmatpush.msra.mxu0 %v2707
  %2828 = vmatpush.msra.mxu0 %v2703
  %2829 = vmatpush.msra.mxu0 %v2699
  %2830 = vmatmul.f32.gmra.mxu0 %v2772
  %v2831 = vpop.f32.mrf.mxu0
  %v2832 = vadd.f32 %v2765, %v2831
  %2833 = vdwg.mxu0
  %2834 = vmatpush.msra.mxu0 %v2760
  %2835 = vmatpush.msra.mxu0 %v2756
  %2836 = vmatpush.msra.mxu0 %v2752
  %2837 = vmatpush.msra.mxu0 %v2748
  %2838 = vmatpush.msra.mxu0 %v2744
  %2839 = vmatpush.msra.mxu0 %v2740
  %2840 = vmatpush.msra.mxu0 %v2736
  %2841 = vmatpush.msra.mxu0 %v2732
  %2842 = vmatpush.msra.mxu0 %v2728
  %2843 = vmatpush.msra.mxu0 %v2724
  %2844 = vmatpush.msra.mxu0 %v2720
  %2845 = vmatpush.msra.mxu0 %v2716
  %2846 = vmatpush.msra.mxu0 %v2712
  %2847 = vmatpush.msra.mxu0 %v2708
  %2848 = vmatpush.msra.mxu0 %v2704
  %2849 = vmatpush.msra.mxu0 %v2700
  %2850 = vmatmul.f32.gmra.mxu0 %v2772
  %v2851 = vpop.f32.mrf.mxu0
  %v2852 = vadd.f32 %v2766, %v2851
  %2853 = vdwg.mxu0
  %v2858 = vrot.slane %v2792, 2
  %v2859 = vrot.slane %v2812, 2
  %v2860 = vrot.slane %v2832, 2
  %v2861 = vrot.slane %v2852, 2
  %2866 = vst [vmem:[%s6 + $0x20] sm:$0xc0] %v2858
  %2867 = vst [vmem:[%s6 + $0x28] sm:$0xc0] %v2859
  %2868 = vst [vmem:[%s6 + $0x30] sm:$0xc0] %v2860
  %2869 = vst [vmem:[%s6 + $0x38] sm:$0xc0] %v2861
  // Predicated region
  $region30: #{lstm_module_forward.4} parent=0 // pred_check
    _
  $region31: #{lstm_module_forward.4} parent=0 // pred_check_branch
    %2871 = sbr.rel (0) target = $region33
  $region32: #{lstm_module_forward.4} parent=0 // pred_region
    _
  $region33: #{lstm_module_forward.4} parent=0 // pred_fallthru
    _
  // Predicated region
  $region34: #{lstm_module_forward.4} parent=0 // pred_check
    _
  $region35: #{lstm_module_forward.4} parent=0 // pred_check_branch
    %2873 = sbr.rel (0) target = $region37
  $region36: #{lstm_module_forward.4} parent=0 // pred_region
    _
  $region37: #{lstm_module_forward.4} parent=0 // pred_fallthru
    _
  // Predicated region
  $region38: #{lstm_module_forward.4} parent=0 // pred_check
    _
  $region39: #{lstm_module_forward.4} parent=0 // pred_check_branch
    %2875 = sbr.rel (0) target = $region41
  $region40: #{lstm_module_forward.4} parent=0 // pred_region
    _
  $region41: #{lstm_module_forward.4} parent=0 // pred_fallthru
    _
  // Predicated region
  $region42: #{lstm_module_forward.4} parent=0 // pred_check
    _
  $region43: #{lstm_module_forward.4} parent=0 // pred_check_branch
    %2877 = sbr.rel (0) target = $region45
  $region44: #{lstm_module_forward.4} parent=0 // pred_region
    _
  $region45: #{lstm_module_forward.4} parent=0 // pred_fallthru
    _
  // Predicated region
  $region46: #{lstm_module_forward.4} parent=0 // pred_check
    _
  $region47: #{lstm_module_forward.4} parent=0 // pred_check_branch
    %2879 = sbr.rel (0) target = $region49
  $region48: #{lstm_module_forward.4} parent=0 // pred_region
    _
  $region49: #{lstm_module_forward.4} parent=0 // pred_fallthru
    _
  // Predicated region
  $region50: #{lstm_module_forward.4} parent=0 // pred_check
    _
  $region51: #{lstm_module_forward.4} parent=0 // pred_check_branch
    %2881 = sbr.rel (0) target = $region53
  $region52: #{lstm_module_forward.4} parent=0 // pred_region
    _
  $region53: #{lstm_module_forward.4} parent=0 // pred_fallthru
    _

// kernel: lstm_module_forward.5
$region0: #{lstm_module_forward.5}
  #allocation0 [shape = 'u32[]', space=smem, size = 0x4, offset = 0x4, fixed_abs, tag = 'smem constant byte address 0x4 - core index']
  #allocation1 [shape = 'u32[72,128]{1,0:T(1,128)}', space=vmem, size = 0x9000, scoped, tag = 'internal scratch']
  #allocation2 [shape = 'f32[1]{0:T(128)S(6)}', space=smem, size = 0x200, scoped, tag = 'scoped memory for lstm_module_forward.5']
  %s0 = inlined_call_operand.vmem [shape: f32[16,512], index: 0, kind: input, shape index: {}]
  %s1 = inlined_call_operand.vmem [shape: f32[2,128], index: 1, kind: input, shape index: {}]
  %s2 = inlined_call_operand.vmem [shape: f32[2,128], index: 2, kind: input, shape index: {}]
  %s3 = inlined_call_operand.vmem [shape: f32[128,512], index: 3, kind: input, shape index: {}]
  %s4 = inlined_call_operand.vmem [shape: f32[1,128], index: 4, kind: input, shape index: {}]
  %s5 = inlined_call_operand.<no memory space> [shape: f32[1], index: 5, kind: input, shape index: {}]
  %s6 = inlined_call_operand.vmem [shape: f32[2,128], index: 6, kind: output, shape index: {0}]
  %s7 = inlined_call_operand.vmem [shape: f32[2,128], index: 7, kind: output, shape index: {1}]
  %s8 = inlined_call_operand.vmem [shape: f32[2,1], index: 8, kind: output, shape index: {2}]
  %9 = xla_tuple %s6, %s7, %s8
  %s10 = sld [smem:[#allocation0]]
  $region58: #{lstm_module_forward.5} parent=0
    _
  %s12 = ssub.s32 1, %s10
  %s13 = scalar_select 0, %s12, %s10
  %14 = sst [smem:[#allocation2]] %s5
  // Predicated region
  $region2: #{lstm_module_forward.5} parent=0 // pred_check
    _
  $region3: #{lstm_module_forward.5} parent=0 // pred_check_branch
    %16 = sbr.rel (0) target = $region5
  $region4: #{lstm_module_forward.5} parent=0 // pred_region
    _
  $region5: #{lstm_module_forward.5} parent=0 // pred_fallthru
    _
  // Predicated region
  $region6: #{lstm_module_forward.5} parent=0 // pred_check
    _
  $region7: #{lstm_module_forward.5} parent=0 // pred_check_branch
    %18 = sbr.rel (0) target = $region9
  $region8: #{lstm_module_forward.5} parent=0 // pred_region
    _
  $region9: #{lstm_module_forward.5} parent=0 // pred_fallthru
    _
  // Predicated region
  $region10: #{lstm_module_forward.5} parent=0 // pred_check
    _
  $region11: #{lstm_module_forward.5} parent=0 // pred_check_branch
    %20 = sbr.rel (0) target = $region13
  $region12: #{lstm_module_forward.5} parent=0 // pred_region
    _
  $region13: #{lstm_module_forward.5} parent=0 // pred_fallthru
    _
  // Predicated region
  $region14: #{lstm_module_forward.5} parent=0 // pred_check
    _
  $region15: #{lstm_module_forward.5} parent=0 // pred_check_branch
    %22 = sbr.rel (0) target = $region17
  $region16: #{lstm_module_forward.5} parent=0 // pred_region
    _
  $region17: #{lstm_module_forward.5} parent=0 // pred_fallthru
    _
  // Predicated region
  $region18: #{lstm_module_forward.5} parent=0 // pred_check
    _
  $region19: #{lstm_module_forward.5} parent=0 // pred_check_branch
    %24 = sbr.rel (0) target = $region21
  $region20: #{lstm_module_forward.5} parent=0 // pred_region
    _
  $region21: #{lstm_module_forward.5} parent=0 // pred_fallthru
    _
  // Predicated region
  $region22: #{lstm_module_forward.5} parent=0 // pred_check
    _
  $region23: #{lstm_module_forward.5} parent=0 // pred_check_branch
    %26 = sbr.rel (0) target = $region25
  $region24: #{lstm_module_forward.5} parent=0 // pred_region
    _
  $region25: #{lstm_module_forward.5} parent=0 // pred_fallthru
    _
  %p27 = scmp.eq.s32.totalorder 0, 0
  // Predicated region
  $region26: #{lstm_module_forward.5} parent=0 // pred_check
    %p28 = pneg %p27
  $region27: #{lstm_module_forward.5} parent=0 // pred_check_branch
    %30 = sbr.rel (%p28) target = $region29
  $region28: #{lstm_module_forward.5} parent=0 // pred_region
    %v31 = vld [vmem:[%s1] sm:$0x3]
    %32 = vst [vmem:[%s6] sm:$0x3] %v31
    %v33 = vld [vmem:[%s2] sm:$0x3]
    %34 = vst [vmem:[%s7] sm:$0x3] %v33
  $region29: #{lstm_module_forward.5} parent=0 // pred_fallthru
    _
  %v35 = vld [vmem:[%s6] sm:$0x3]
  %v36 = vld [vmem:[%s7] sm:$0x3]
  %v37 = vld [vmem:[%s0] sm:$0x3]
  %v38 = vld [vmem:[%s0 + $0x8] sm:$0x3]
  %v39 = vld [vmem:[%s0 + $0x10] sm:$0x3]
  %v40 = vld [vmem:[%s0 + $0x18] sm:$0x3]
  %v41 = vld [vmem:[%s3] sm:$0xff]
  %v42 = vld [vmem:[%s3 + $0x8] sm:$0xff]
  %v43 = vld [vmem:[%s3 + $0x10] sm:$0xff]
  %v44 = vld [vmem:[%s3 + $0x18] sm:$0xff]
  %v45 = vld [vmem:[%s3 + $0x20] sm:$0xff]
  %v46 = vld [vmem:[%s3 + $0x28] sm:$0xff]
  %v47 = vld [vmem:[%s3 + $0x30] sm:$0xff]
  %v48 = vld [vmem:[%s3 + $0x38] sm:$0xff]
  %v49 = vld [vmem:[%s3 + $0x40] sm:$0xff]
  %v50 = vld [vmem:[%s3 + $0x48] sm:$0xff]
  %v51 = vld [vmem:[%s3 + $0x50] sm:$0xff]
  %v52 = vld [vmem:[%s3 + $0x58] sm:$0xff]
  %v53 = vld [vmem:[%s3 + $0x60] sm:$0xff]
  %v54 = vld [vmem:[%s3 + $0x68] sm:$0xff]
  %v55 = vld [vmem:[%s3 + $0x70] sm:$0xff]
  %v56 = vld [vmem:[%s3 + $0x78] sm:$0xff]
  %v57 = vld [vmem:[%s3 + $0x80] sm:$0xff]
  %v58 = vld [vmem:[%s3 + $0x88] sm:$0xff]
  %v59 = vld [vmem:[%s3 + $0x90] sm:$0xff]
  %v60 = vld [vmem:[%s3 + $0x98] sm:$0xff]
  %v61 = vld [vmem:[%s3 + $0xa0] sm:$0xff]
  %v62 = vld [vmem:[%s3 + $0xa8] sm:$0xff]
  %v63 = vld [vmem:[%s3 + $0xb0] sm:$0xff]
  %v64 = vld [vmem:[%s3 + $0xb8] sm:$0xff]
  %v65 = vld [vmem:[%s3 + $0xc0] sm:$0xff]
  %v66 = vld [vmem:[%s3 + $0xc8] sm:$0xff]
  %v67 = vld [vmem:[%s3 + $0xd0] sm:$0xff]
  %v68 = vld [vmem:[%s3 + $0xd8] sm:$0xff]
  %v69 = vld [vmem:[%s3 + $0xe0] sm:$0xff]
  %v70 = vld [vmem:[%s3 + $0xe8] sm:$0xff]
  %v71 = vld [vmem:[%s3 + $0xf0] sm:$0xff]
  %v72 = vld [vmem:[%s3 + $0xf8] sm:$0xff]
  %v73 = vld [vmem:[%s3 + $0x100] sm:$0xff]
  %v74 = vld [vmem:[%s3 + $0x108] sm:$0xff]
  %v75 = vld [vmem:[%s3 + $0x110] sm:$0xff]
  %v76 = vld [vmem:[%s3 + $0x118] sm:$0xff]
  %v77 = vld [vmem:[%s3 + $0x120] sm:$0xff]
  %v78 = vld [vmem:[%s3 + $0x128] sm:$0xff]
  %v79 = vld [vmem:[%s3 + $0x130] sm:$0xff]
  %v80 = vld [vmem:[%s3 + $0x138] sm:$0xff]
  %v81 = vld [vmem:[%s3 + $0x140] sm:$0xff]
  %v82 = vld [vmem:[%s3 + $0x148] sm:$0xff]
  %v83 = vld [vmem:[%s3 + $0x150] sm:$0xff]
  %v84 = vld [vmem:[%s3 + $0x158] sm:$0xff]
  %v85 = vld [vmem:[%s3 + $0x160] sm:$0xff]
  %v86 = vld [vmem:[%s3 + $0x168] sm:$0xff]
  %v87 = vld [vmem:[%s3 + $0x170] sm:$0xff]
  %v88 = vld [vmem:[%s3 + $0x178] sm:$0xff]
  %v89 = vld [vmem:[%s3 + $0x180] sm:$0xff]
  %v90 = vld [vmem:[%s3 + $0x188] sm:$0xff]
  %v91 = vld [vmem:[%s3 + $0x190] sm:$0xff]
  %v92 = vld [vmem:[%s3 + $0x198] sm:$0xff]
  %v93 = vld [vmem:[%s3 + $0x1a0] sm:$0xff]
  %v94 = vld [vmem:[%s3 + $0x1a8] sm:$0xff]
  %v95 = vld [vmem:[%s3 + $0x1b0] sm:$0xff]
  %v96 = vld [vmem:[%s3 + $0x1b8] sm:$0xff]
  %v97 = vld [vmem:[%s3 + $0x1c0] sm:$0xff]
  %v98 = vld [vmem:[%s3 + $0x1c8] sm:$0xff]
  %v99 = vld [vmem:[%s3 + $0x1d0] sm:$0xff]
  %v100 = vld [vmem:[%s3 + $0x1d8] sm:$0xff]
  %v101 = vld [vmem:[%s3 + $0x1e0] sm:$0xff]
  %v102 = vld [vmem:[%s3 + $0x1e8] sm:$0xff]
  %v103 = vld [vmem:[%s3 + $0x1f0] sm:$0xff]
  %v104 = vld [vmem:[%s3 + $0x1f8] sm:$0xff]
  %105 = vmatpush.msra.mxu0 %v101
  %106 = vmatpush.msra.mxu0 %v97
  %107 = vmatpush.msra.mxu0 %v93
  %108 = vmatpush.msra.mxu0 %v89
  %109 = vmatpush.msra.mxu0 %v85
  %110 = vmatpush.msra.mxu0 %v81
  %111 = vmatpush.msra.mxu0 %v77
  %112 = vmatpush.msra.mxu0 %v73
  %113 = vmatpush.msra.mxu0 %v69
  %114 = vmatpush.msra.mxu0 %v65
  %115 = vmatpush.msra.mxu0 %v61
  %116 = vmatpush.msra.mxu0 %v57
  %117 = vmatpush.msra.mxu0 %v53
  %118 = vmatpush.msra.mxu0 %v49
  %119 = vmatpush.msra.mxu0 %v45
  %120 = vmatpush.msra.mxu0 %v41
  %121 = vmatmul.f32.gmra.mxu0 %v35
  %v122 = vpop.f32.mrf.mxu0
  %v123 = vadd.f32 0.0, %v122
  %124 = vdwg.mxu0
  %125 = vmatpush.msra.mxu0 %v102
  %126 = vmatpush.msra.mxu0 %v98
  %127 = vmatpush.msra.mxu0 %v94
  %128 = vmatpush.msra.mxu0 %v90
  %129 = vmatpush.msra.mxu0 %v86
  %130 = vmatpush.msra.mxu0 %v82
  %131 = vmatpush.msra.mxu0 %v78
  %132 = vmatpush.msra.mxu0 %v74
  %133 = vmatpush.msra.mxu0 %v70
  %134 = vmatpush.msra.mxu0 %v66
  %135 = vmatpush.msra.mxu0 %v62
  %136 = vmatpush.msra.mxu0 %v58
  %137 = vmatpush.msra.mxu0 %v54
  %138 = vmatpush.msra.mxu0 %v50
  %139 = vmatpush.msra.mxu0 %v46
  %140 = vmatpush.msra.mxu0 %v42
  %141 = vmatmul.f32.gmra.mxu0 %v35
  %v142 = vpop.f32.mrf.mxu0
  %v143 = vadd.f32 0.0, %v142
  %144 = vdwg.mxu0
  %145 = vmatpush.msra.mxu0 %v103
  %146 = vmatpush.msra.mxu0 %v99
  %147 = vmatpush.msra.mxu0 %v95
  %148 = vmatpush.msra.mxu0 %v91
  %149 = vmatpush.msra.mxu0 %v87
  %150 = vmatpush.msra.mxu0 %v83
  %151 = vmatpush.msra.mxu0 %v79
  %152 = vmatpush.msra.mxu0 %v75
  %153 = vmatpush.msra.mxu0 %v71
  %154 = vmatpush.msra.mxu0 %v67
  %155 = vmatpush.msra.mxu0 %v63
  %156 = vmatpush.msra.mxu0 %v59
  %157 = vmatpush.msra.mxu0 %v55
  %158 = vmatpush.msra.mxu0 %v51
  %159 = vmatpush.msra.mxu0 %v47
  %160 = vmatpush.msra.mxu0 %v43
  %161 = vmatmul.f32.gmra.mxu0 %v35
  %v162 = vpop.f32.mrf.mxu0
  %v163 = vadd.f32 0.0, %v162
  %164 = vdwg.mxu0
  %165 = vmatpush.msra.mxu0 %v104
  %166 = vmatpush.msra.mxu0 %v100
  %167 = vmatpush.msra.mxu0 %v96
  %168 = vmatpush.msra.mxu0 %v92
  %169 = vmatpush.msra.mxu0 %v88
  %170 = vmatpush.msra.mxu0 %v84
  %171 = vmatpush.msra.mxu0 %v80
  %172 = vmatpush.msra.mxu0 %v76
  %173 = vmatpush.msra.mxu0 %v72
  %174 = vmatpush.msra.mxu0 %v68
  %175 = vmatpush.msra.mxu0 %v64
  %176 = vmatpush.msra.mxu0 %v60
  %177 = vmatpush.msra.mxu0 %v56
  %178 = vmatpush.msra.mxu0 %v52
  %179 = vmatpush.msra.mxu0 %v48
  %180 = vmatpush.msra.mxu0 %v44
  %181 = vmatmul.f32.gmra.mxu0 %v35
  %v182 = vpop.f32.mrf.mxu0
  %v183 = vadd.f32 0.0, %v182
  %184 = vdwg.mxu0
  %v185 = vadd.f32 %v37, %v123
  %v186 = vadd.f32 %v38, %v143
  %v187 = vadd.f32 %v39, %v163
  %v188 = vadd.f32 %v40, %v183
  %v189 = vmul.f32 %v185, 0.5
  %v190 = vtanh.pop %v189
  %v191 = vmul.f32 %v190, 0.5
  %v192 = vadd.f32 %v191, 0.5
  %v193 = vmul.f32 %v186, 0.5
  %v194 = vtanh.pop %v193
  %v195 = vmul.f32 %v194, 0.5
  %v196 = vadd.f32 %v195, 0.5
  %v197 = vtanh.pop %v187
  %v198 = vmul.f32 %v188, 0.5
  %v199 = vtanh.pop %v198
  %v200 = vmul.f32 %v199, 0.5
  %v201 = vadd.f32 %v200, 0.5
  %v202 = vmul.f32 %v196, %v36
  %v203 = vmul.f32 %v192, %v197
  %v204 = vadd.f32 %v202, %v203
  %v205 = vtanh.pop %v204
  %v206 = vmul.f32 %v201, %v205
  %207 = vst [vmem:[%s7] sm:$0x3] %v204
  %208 = vst [vmem:[%s6] sm:$0x3] %v206
  %v209 = vld [vmem:[%s6] sm:$0x3]
  %v210 = vld [vmem:[%s7] sm:$0x3]
  %v211 = vld [vmem:[%s0] sm:$0xc]
  %v212 = vld [vmem:[%s0 + $0x8] sm:$0xc]
  %v213 = vld [vmem:[%s0 + $0x10] sm:$0xc]
  %v214 = vld [vmem:[%s0 + $0x18] sm:$0xc]
  %v215 = vld [vmem:[%s3] sm:$0xff]
  %v216 = vld [vmem:[%s3 + $0x8] sm:$0xff]
  %v217 = vld [vmem:[%s3 + $0x10] sm:$0xff]
  %v218 = vld [vmem:[%s3 + $0x18] sm:$0xff]
  %v219 = vld [vmem:[%s3 + $0x20] sm:$0xff]
  %v220 = vld [vmem:[%s3 + $0x28] sm:$0xff]
  %v221 = vld [vmem:[%s3 + $0x30] sm:$0xff]
  %v222 = vld [vmem:[%s3 + $0x38] sm:$0xff]
  %v223 = vld [vmem:[%s3 + $0x40] sm:$0xff]
  %v224 = vld [vmem:[%s3 + $0x48] sm:$0xff]
  %v225 = vld [vmem:[%s3 + $0x50] sm:$0xff]
  %v226 = vld [vmem:[%s3 + $0x58] sm:$0xff]
  %v227 = vld [vmem:[%s3 + $0x60] sm:$0xff]
  %v228 = vld [vmem:[%s3 + $0x68] sm:$0xff]
  %v229 = vld [vmem:[%s3 + $0x70] sm:$0xff]
  %v230 = vld [vmem:[%s3 + $0x78] sm:$0xff]
  %v231 = vld [vmem:[%s3 + $0x80] sm:$0xff]
  %v232 = vld [vmem:[%s3 + $0x88] sm:$0xff]
  %v233 = vld [vmem:[%s3 + $0x90] sm:$0xff]
  %v234 = vld [vmem:[%s3 + $0x98] sm:$0xff]
  %v235 = vld [vmem:[%s3 + $0xa0] sm:$0xff]
  %v236 = vld [vmem:[%s3 + $0xa8] sm:$0xff]
  %v237 = vld [vmem:[%s3 + $0xb0] sm:$0xff]
  %v238 = vld [vmem:[%s3 + $0xb8] sm:$0xff]
  %v239 = vld [vmem:[%s3 + $0xc0] sm:$0xff]
  %v240 = vld [vmem:[%s3 + $0xc8] sm:$0xff]
  %v241 = vld [vmem:[%s3 + $0xd0] sm:$0xff]
  %v242 = vld [vmem:[%s3 + $0xd8] sm:$0xff]
  %v243 = vld [vmem:[%s3 + $0xe0] sm:$0xff]
  %v244 = vld [vmem:[%s3 + $0xe8] sm:$0xff]
  %v245 = vld [vmem:[%s3 + $0xf0] sm:$0xff]
  %v246 = vld [vmem:[%s3 + $0xf8] sm:$0xff]
  %v247 = vld [vmem:[%s3 + $0x100] sm:$0xff]
  %v248 = vld [vmem:[%s3 + $0x108] sm:$0xff]
  %v249 = vld [vmem:[%s3 + $0x110] sm:$0xff]
  %v250 = vld [vmem:[%s3 + $0x118] sm:$0xff]
  %v251 = vld [vmem:[%s3 + $0x120] sm:$0xff]
  %v252 = vld [vmem:[%s3 + $0x128] sm:$0xff]
  %v253 = vld [vmem:[%s3 + $0x130] sm:$0xff]
  %v254 = vld [vmem:[%s3 + $0x138] sm:$0xff]
  %v255 = vld [vmem:[%s3 + $0x140] sm:$0xff]
  %v256 = vld [vmem:[%s3 + $0x148] sm:$0xff]
  %v257 = vld [vmem:[%s3 + $0x150] sm:$0xff]
  %v258 = vld [vmem:[%s3 + $0x158] sm:$0xff]
  %v259 = vld [vmem:[%s3 + $0x160] sm:$0xff]
  %v260 = vld [vmem:[%s3 + $0x168] sm:$0xff]
  %v261 = vld [vmem:[%s3 + $0x170] sm:$0xff]
  %v262 = vld [vmem:[%s3 + $0x178] sm:$0xff]
  %v263 = vld [vmem:[%s3 + $0x180] sm:$0xff]
  %v264 = vld [vmem:[%s3 + $0x188] sm:$0xff]
  %v265 = vld [vmem:[%s3 + $0x190] sm:$0xff]
  %v266 = vld [vmem:[%s3 + $0x198] sm:$0xff]
  %v267 = vld [vmem:[%s3 + $0x1a0] sm:$0xff]
  %v268 = vld [vmem:[%s3 + $0x1a8] sm:$0xff]
  %v269 = vld [vmem:[%s3 + $0x1b0] sm:$0xff]
  %v270 = vld [vmem:[%s3 + $0x1b8] sm:$0xff]
  %v271 = vld [vmem:[%s3 + $0x1c0] sm:$0xff]
  %v272 = vld [vmem:[%s3 + $0x1c8] sm:$0xff]
  %v273 = vld [vmem:[%s3 + $0x1d0] sm:$0xff]
  %v274 = vld [vmem:[%s3 + $0x1d8] sm:$0xff]
  %v275 = vld [vmem:[%s3 + $0x1e0] sm:$0xff]
  %v276 = vld [vmem:[%s3 + $0x1e8] sm:$0xff]
  %v277 = vld [vmem:[%s3 + $0x1f0] sm:$0xff]
  %v278 = vld [vmem:[%s3 + $0x1f8] sm:$0xff]
  %279 = vmatpush.msra.mxu0 %v275
  %280 = vmatpush.msra.mxu0 %v271
  %281 = vmatpush.msra.mxu0 %v267
  %282 = vmatpush.msra.mxu0 %v263
  %283 = vmatpush.msra.mxu0 %v259
  %284 = vmatpush.msra.mxu0 %v255
  %285 = vmatpush.msra.mxu0 %v251
  %286 = vmatpush.msra.mxu0 %v247
  %287 = vmatpush.msra.mxu0 %v243
  %288 = vmatpush.msra.mxu0 %v239
  %289 = vmatpush.msra.mxu0 %v235
  %290 = vmatpush.msra.mxu0 %v231
  %291 = vmatpush.msra.mxu0 %v227
  %292 = vmatpush.msra.mxu0 %v223
  %293 = vmatpush.msra.mxu0 %v219
  %294 = vmatpush.msra.mxu0 %v215
  %295 = vmatmul.f32.gmra.mxu0 %v209
  %v296 = vpop.f32.mrf.mxu0
  %v297 = vadd.f32 0.0, %v296
  %298 = vdwg.mxu0
  %299 = vmatpush.msra.mxu0 %v276
  %300 = vmatpush.msra.mxu0 %v272
  %301 = vmatpush.msra.mxu0 %v268
  %302 = vmatpush.msra.mxu0 %v264
  %303 = vmatpush.msra.mxu0 %v260
  %304 = vmatpush.msra.mxu0 %v256
  %305 = vmatpush.msra.mxu0 %v252
  %306 = vmatpush.msra.mxu0 %v248
  %307 = vmatpush.msra.mxu0 %v244
  %308 = vmatpush.msra.mxu0 %v240
  %309 = vmatpush.msra.mxu0 %v236
  %310 = vmatpush.msra.mxu0 %v232
  %311 = vmatpush.msra.mxu0 %v228
  %312 = vmatpush.msra.mxu0 %v224
  %313 = vmatpush.msra.mxu0 %v220
  %314 = vmatpush.msra.mxu0 %v216
  %315 = vmatmul.f32.gmra.mxu0 %v209
  %v316 = vpop.f32.mrf.mxu0
  %v317 = vadd.f32 0.0, %v316
  %318 = vdwg.mxu0
  %319 = vmatpush.msra.mxu0 %v277
  %320 = vmatpush.msra.mxu0 %v273
  %321 = vmatpush.msra.mxu0 %v269
  %322 = vmatpush.msra.mxu0 %v265
  %323 = vmatpush.msra.mxu0 %v261
  %324 = vmatpush.msra.mxu0 %v257
  %325 = vmatpush.msra.mxu0 %v253
  %326 = vmatpush.msra.mxu0 %v249
  %327 = vmatpush.msra.mxu0 %v245
  %328 = vmatpush.msra.mxu0 %v241
  %329 = vmatpush.msra.mxu0 %v237
  %330 = vmatpush.msra.mxu0 %v233
  %331 = vmatpush.msra.mxu0 %v229
  %332 = vmatpush.msra.mxu0 %v225
  %333 = vmatpush.msra.mxu0 %v221
  %334 = vmatpush.msra.mxu0 %v217
  %335 = vmatmul.f32.gmra.mxu0 %v209
  %v336 = vpop.f32.mrf.mxu0
  %v337 = vadd.f32 0.0, %v336
  %338 = vdwg.mxu0
  %339 = vmatpush.msra.mxu0 %v278
  %340 = vmatpush.msra.mxu0 %v274
  %341 = vmatpush.msra.mxu0 %v270
  %342 = vmatpush.msra.mxu0 %v266
  %343 = vmatpush.msra.mxu0 %v262
  %344 = vmatpush.msra.mxu0 %v258
  %345 = vmatpush.msra.mxu0 %v254
  %346 = vmatpush.msra.mxu0 %v250
  %347 = vmatpush.msra.mxu0 %v246
  %348 = vmatpush.msra.mxu0 %v242
  %349 = vmatpush.msra.mxu0 %v238
  %350 = vmatpush.msra.mxu0 %v234
  %351 = vmatpush.msra.mxu0 %v230
  %352 = vmatpush.msra.mxu0 %v226
  %353 = vmatpush.msra.mxu0 %v222
  %354 = vmatpush.msra.mxu0 %v218
  %355 = vmatmul.f32.gmra.mxu0 %v209
  %v356 = vpop.f32.mrf.mxu0
  %v357 = vadd.f32 0.0, %v356
  %358 = vdwg.mxu0
  %v363 = vrot.slane %v297, 6
  %v364 = vrot.slane %v317, 6
  %v365 = vrot.slane %v337, 6
  %v366 = vrot.slane %v357, 6
  %v371 = vadd.f32 %v211, %v363
  %v372 = vadd.f32 %v212, %v364
  %v373 = vadd.f32 %v213, %v365
  %v374 = vadd.f32 %v214, %v366
  %v375 = vmul.f32 %v371, 0.5
  %v376 = vtanh.pop %v375
  %v377 = vmul.f32 %v376, 0.5
  %v378 = vadd.f32 %v377, 0.5
  %v379 = vmul.f32 %v372, 0.5
  %v380 = vtanh.pop %v379
  %v381 = vmul.f32 %v380, 0.5
  %v382 = vadd.f32 %v381, 0.5
  %v383 = vtanh.pop %v373
  %v384 = vmul.f32 %v374, 0.5
  %v385 = vtanh.pop %v384
  %v386 = vmul.f32 %v385, 0.5
  %v387 = vadd.f32 %v386, 0.5
  %v389 = vrot.slane %v210, 6
  %v391 = vmul.f32 %v382, %v389
  %v392 = vmul.f32 %v378, %v383
  %v393 = vadd.f32 %v391, %v392
  %v394 = vtanh.pop %v393
  %v395 = vmul.f32 %v387, %v394
  %396 = vst [vmem:[%s7 - $0x2] sm:$0xc] %v393
  %397 = vst [vmem:[%s6 - $0x2] sm:$0xc] %v395
  %v398 = vld [vmem:[%s6] sm:$0x3]
  %v399 = vld [vmem:[%s7] sm:$0x3]
  %v400 = vld [vmem:[%s0] sm:$0x30]
  %v401 = vld [vmem:[%s0 + $0x8] sm:$0x30]
  %v402 = vld [vmem:[%s0 + $0x10] sm:$0x30]
  %v403 = vld [vmem:[%s0 + $0x18] sm:$0x30]
  %v404 = vld [vmem:[%s3] sm:$0xff]
  %v405 = vld [vmem:[%s3 + $0x8] sm:$0xff]
  %v406 = vld [vmem:[%s3 + $0x10] sm:$0xff]
  %v407 = vld [vmem:[%s3 + $0x18] sm:$0xff]
  %v408 = vld [vmem:[%s3 + $0x20] sm:$0xff]
  %v409 = vld [vmem:[%s3 + $0x28] sm:$0xff]
  %v410 = vld [vmem:[%s3 + $0x30] sm:$0xff]
  %v411 = vld [vmem:[%s3 + $0x38] sm:$0xff]
  %v412 = vld [vmem:[%s3 + $0x40] sm:$0xff]
  %v413 = vld [vmem:[%s3 + $0x48] sm:$0xff]
  %v414 = vld [vmem:[%s3 + $0x50] sm:$0xff]
  %v415 = vld [vmem:[%s3 + $0x58] sm:$0xff]
  %v416 = vld [vmem:[%s3 + $0x60] sm:$0xff]
  %v417 = vld [vmem:[%s3 + $0x68] sm:$0xff]
  %v418 = vld [vmem:[%s3 + $0x70] sm:$0xff]
  %v419 = vld [vmem:[%s3 + $0x78] sm:$0xff]
  %v420 = vld [vmem:[%s3 + $0x80] sm:$0xff]
  %v421 = vld [vmem:[%s3 + $0x88] sm:$0xff]
  %v422 = vld [vmem:[%s3 + $0x90] sm:$0xff]
  %v423 = vld [vmem:[%s3 + $0x98] sm:$0xff]
  %v424 = vld [vmem:[%s3 + $0xa0] sm:$0xff]
  %v425 = vld [vmem:[%s3 + $0xa8] sm:$0xff]
  %v426 = vld [vmem:[%s3 + $0xb0] sm:$0xff]
  %v427 = vld [vmem:[%s3 + $0xb8] sm:$0xff]
  %v428 = vld [vmem:[%s3 + $0xc0] sm:$0xff]
  %v429 = vld [vmem:[%s3 + $0xc8] sm:$0xff]
  %v430 = vld [vmem:[%s3 + $0xd0] sm:$0xff]
  %v431 = vld [vmem:[%s3 + $0xd8] sm:$0xff]
  %v432 = vld [vmem:[%s3 + $0xe0] sm:$0xff]
  %v433 = vld [vmem:[%s3 + $0xe8] sm:$0xff]
  %v434 = vld [vmem:[%s3 + $0xf0] sm:$0xff]
  %v435 = vld [vmem:[%s3 + $0xf8] sm:$0xff]
  %v436 = vld [vmem:[%s3 + $0x100] sm:$0xff]
  %v437 = vld [vmem:[%s3 + $0x108] sm:$0xff]
  %v438 = vld [vmem:[%s3 + $0x110] sm:$0xff]
  %v439 = vld [vmem:[%s3 + $0x118] sm:$0xff]
  %v440 = vld [vmem:[%s3 + $0x120] sm:$0xff]
  %v441 = vld [vmem:[%s3 + $0x128] sm:$0xff]
  %v442 = vld [vmem:[%s3 + $0x130] sm:$0xff]
  %v443 = vld [vmem:[%s3 + $0x138] sm:$0xff]
  %v444 = vld [vmem:[%s3 + $0x140] sm:$0xff]
  %v445 = vld [vmem:[%s3 + $0x148] sm:$0xff]
  %v446 = vld [vmem:[%s3 + $0x150] sm:$0xff]
  %v447 = vld [vmem:[%s3 + $0x158] sm:$0xff]
  %v448 = vld [vmem:[%s3 + $0x160] sm:$0xff]
  %v449 = vld [vmem:[%s3 + $0x168] sm:$0xff]
  %v450 = vld [vmem:[%s3 + $0x170] sm:$0xff]
  %v451 = vld [vmem:[%s3 + $0x178] sm:$0xff]
  %v452 = vld [vmem:[%s3 + $0x180] sm:$0xff]
  %v453 = vld [vmem:[%s3 + $0x188] sm:$0xff]
  %v454 = vld [vmem:[%s3 + $0x190] sm:$0xff]
  %v455 = vld [vmem:[%s3 + $0x198] sm:$0xff]
  %v456 = vld [vmem:[%s3 + $0x1a0] sm:$0xff]
  %v457 = vld [vmem:[%s3 + $0x1a8] sm:$0xff]
  %v458 = vld [vmem:[%s3 + $0x1b0] sm:$0xff]
  %v459 = vld [vmem:[%s3 + $0x1b8] sm:$0xff]
  %v460 = vld [vmem:[%s3 + $0x1c0] sm:$0xff]
  %v461 = vld [vmem:[%s3 + $0x1c8] sm:$0xff]
  %v462 = vld [vmem:[%s3 + $0x1d0] sm:$0xff]
  %v463 = vld [vmem:[%s3 + $0x1d8] sm:$0xff]
  %v464 = vld [vmem:[%s3 + $0x1e0] sm:$0xff]
  %v465 = vld [vmem:[%s3 + $0x1e8] sm:$0xff]
  %v466 = vld [vmem:[%s3 + $0x1f0] sm:$0xff]
  %v467 = vld [vmem:[%s3 + $0x1f8] sm:$0xff]
  %468 = vmatpush.msra.mxu0 %v464
  %469 = vmatpush.msra.mxu0 %v460
  %470 = vmatpush.msra.mxu0 %v456
  %471 = vmatpush.msra.mxu0 %v452
  %472 = vmatpush.msra.mxu0 %v448
  %473 = vmatpush.msra.mxu0 %v444
  %474 = vmatpush.msra.mxu0 %v440
  %475 = vmatpush.msra.mxu0 %v436
  %476 = vmatpush.msra.mxu0 %v432
  %477 = vmatpush.msra.mxu0 %v428
  %478 = vmatpush.msra.mxu0 %v424
  %479 = vmatpush.msra.mxu0 %v420
  %480 = vmatpush.msra.mxu0 %v416
  %481 = vmatpush.msra.mxu0 %v412
  %482 = vmatpush.msra.mxu0 %v408
  %483 = vmatpush.msra.mxu0 %v404
  %484 = vmatmul.f32.gmra.mxu0 %v398
  %v485 = vpop.f32.mrf.mxu0
  %v486 = vadd.f32 0.0, %v485
  %487 = vdwg.mxu0
  %488 = vmatpush.msra.mxu0 %v465
  %489 = vmatpush.msra.mxu0 %v461
  %490 = vmatpush.msra.mxu0 %v457
  %491 = vmatpush.msra.mxu0 %v453
  %492 = vmatpush.msra.mxu0 %v449
  %493 = vmatpush.msra.mxu0 %v445
  %494 = vmatpush.msra.mxu0 %v441
  %495 = vmatpush.msra.mxu0 %v437
  %496 = vmatpush.msra.mxu0 %v433
  %497 = vmatpush.msra.mxu0 %v429
  %498 = vmatpush.msra.mxu0 %v425
  %499 = vmatpush.msra.mxu0 %v421
  %500 = vmatpush.msra.mxu0 %v417
  %501 = vmatpush.msra.mxu0 %v413
  %502 = vmatpush.msra.mxu0 %v409
  %503 = vmatpush.msra.mxu0 %v405
  %504 = vmatmul.f32.gmra.mxu0 %v398
  %v505 = vpop.f32.mrf.mxu0
  %v506 = vadd.f32 0.0, %v505
  %507 = vdwg.mxu0
  %508 = vmatpush.msra.mxu0 %v466
  %509 = vmatpush.msra.mxu0 %v462
  %510 = vmatpush.msra.mxu0 %v458
  %511 = vmatpush.msra.mxu0 %v454
  %512 = vmatpush.msra.mxu0 %v450
  %513 = vmatpush.msra.mxu0 %v446
  %514 = vmatpush.msra.mxu0 %v442
  %515 = vmatpush.msra.mxu0 %v438
  %516 = vmatpush.msra.mxu0 %v434
  %517 = vmatpush.msra.mxu0 %v430
  %518 = vmatpush.msra.mxu0 %v426
  %519 = vmatpush.msra.mxu0 %v422
  %520 = vmatpush.msra.mxu0 %v418
  %521 = vmatpush.msra.mxu0 %v414
  %522 = vmatpush.msra.mxu0 %v410
  %523 = vmatpush.msra.mxu0 %v406
  %524 = vmatmul.f32.gmra.mxu0 %v398
  %v525 = vpop.f32.mrf.mxu0
  %v526 = vadd.f32 0.0, %v525
  %527 = vdwg.mxu0
  %528 = vmatpush.msra.mxu0 %v467
  %529 = vmatpush.msra.mxu0 %v463
  %530 = vmatpush.msra.mxu0 %v459
  %531 = vmatpush.msra.mxu0 %v455
  %532 = vmatpush.msra.mxu0 %v451
  %533 = vmatpush.msra.mxu0 %v447
  %534 = vmatpush.msra.mxu0 %v443
  %535 = vmatpush.msra.mxu0 %v439
  %536 = vmatpush.msra.mxu0 %v435
  %537 = vmatpush.msra.mxu0 %v431
  %538 = vmatpush.msra.mxu0 %v427
  %539 = vmatpush.msra.mxu0 %v423
  %540 = vmatpush.msra.mxu0 %v419
  %541 = vmatpush.msra.mxu0 %v415
  %542 = vmatpush.msra.mxu0 %v411
  %543 = vmatpush.msra.mxu0 %v407
  %544 = vmatmul.f32.gmra.mxu0 %v398
  %v545 = vpop.f32.mrf.mxu0
  %v546 = vadd.f32 0.0, %v545
  %547 = vdwg.mxu0
  %v552 = vrot.slane %v486, 4
  %v553 = vrot.slane %v506, 4
  %v554 = vrot.slane %v526, 4
  %v555 = vrot.slane %v546, 4
  %v560 = vadd.f32 %v400, %v552
  %v561 = vadd.f32 %v401, %v553
  %v562 = vadd.f32 %v402, %v554
  %v563 = vadd.f32 %v403, %v555
  %v564 = vmul.f32 %v560, 0.5
  %v565 = vtanh.pop %v564
  %v566 = vmul.f32 %v565, 0.5
  %v567 = vadd.f32 %v566, 0.5
  %v568 = vmul.f32 %v561, 0.5
  %v569 = vtanh.pop %v568
  %v570 = vmul.f32 %v569, 0.5
  %v571 = vadd.f32 %v570, 0.5
  %v572 = vtanh.pop %v562
  %v573 = vmul.f32 %v563, 0.5
  %v574 = vtanh.pop %v573
  %v575 = vmul.f32 %v574, 0.5
  %v576 = vadd.f32 %v575, 0.5
  %v578 = vrot.slane %v399, 4
  %v580 = vmul.f32 %v571, %v578
  %v581 = vmul.f32 %v567, %v572
  %v582 = vadd.f32 %v580, %v581
  %v583 = vtanh.pop %v582
  %v584 = vmul.f32 %v576, %v583
  %585 = vst [vmem:[%s7 - $0x4] sm:$0x30] %v582
  %586 = vst [vmem:[%s6 - $0x4] sm:$0x30] %v584
  %v587 = vld [vmem:[%s6] sm:$0x3]
  %v588 = vld [vmem:[%s7] sm:$0x3]
  %v589 = vld [vmem:[%s0] sm:$0xc0]
  %v590 = vld [vmem:[%s0 + $0x8] sm:$0xc0]
  %v591 = vld [vmem:[%s0 + $0x10] sm:$0xc0]
  %v592 = vld [vmem:[%s0 + $0x18] sm:$0xc0]
  %v593 = vld [vmem:[%s3] sm:$0xff]
  %v594 = vld [vmem:[%s3 + $0x8] sm:$0xff]
  %v595 = vld [vmem:[%s3 + $0x10] sm:$0xff]
  %v596 = vld [vmem:[%s3 + $0x18] sm:$0xff]
  %v597 = vld [vmem:[%s3 + $0x20] sm:$0xff]
  %v598 = vld [vmem:[%s3 + $0x28] sm:$0xff]
  %v599 = vld [vmem:[%s3 + $0x30] sm:$0xff]
  %v600 = vld [vmem:[%s3 + $0x38] sm:$0xff]
  %v601 = vld [vmem:[%s3 + $0x40] sm:$0xff]
  %v602 = vld [vmem:[%s3 + $0x48] sm:$0xff]
  %v603 = vld [vmem:[%s3 + $0x50] sm:$0xff]
  %v604 = vld [vmem:[%s3 + $0x58] sm:$0xff]
  %v605 = vld [vmem:[%s3 + $0x60] sm:$0xff]
  %v606 = vld [vmem:[%s3 + $0x68] sm:$0xff]
  %v607 = vld [vmem:[%s3 + $0x70] sm:$0xff]
  %v608 = vld [vmem:[%s3 + $0x78] sm:$0xff]
  %v609 = vld [vmem:[%s3 + $0x80] sm:$0xff]
  %v610 = vld [vmem:[%s3 + $0x88] sm:$0xff]
  %v611 = vld [vmem:[%s3 + $0x90] sm:$0xff]
  %v612 = vld [vmem:[%s3 + $0x98] sm:$0xff]
  %v613 = vld [vmem:[%s3 + $0xa0] sm:$0xff]
  %v614 = vld [vmem:[%s3 + $0xa8] sm:$0xff]
  %v615 = vld [vmem:[%s3 + $0xb0] sm:$0xff]
  %v616 = vld [vmem:[%s3 + $0xb8] sm:$0xff]
  %v617 = vld [vmem:[%s3 + $0xc0] sm:$0xff]
  %v618 = vld [vmem:[%s3 + $0xc8] sm:$0xff]
  %v619 = vld [vmem:[%s3 + $0xd0] sm:$0xff]
  %v620 = vld [vmem:[%s3 + $0xd8] sm:$0xff]
  %v621 = vld [vmem:[%s3 + $0xe0] sm:$0xff]
  %v622 = vld [vmem:[%s3 + $0xe8] sm:$0xff]
  %v623 = vld [vmem:[%s3 + $0xf0] sm:$0xff]
  %v624 = vld [vmem:[%s3 + $0xf8] sm:$0xff]
  %v625 = vld [vmem:[%s3 + $0x100] sm:$0xff]
  %v626 = vld [vmem:[%s3 + $0x108] sm:$0xff]
  %v627 = vld [vmem:[%s3 + $0x110] sm:$0xff]
  %v628 = vld [vmem:[%s3 + $0x118] sm:$0xff]
  %v629 = vld [vmem:[%s3 + $0x120] sm:$0xff]
  %v630 = vld [vmem:[%s3 + $0x128] sm:$0xff]
  %v631 = vld [vmem:[%s3 + $0x130] sm:$0xff]
  %v632 = vld [vmem:[%s3 + $0x138] sm:$0xff]
  %v633 = vld [vmem:[%s3 + $0x140] sm:$0xff]
  %v634 = vld [vmem:[%s3 + $0x148] sm:$0xff]
  %v635 = vld [vmem:[%s3 + $0x150] sm:$0xff]
  %v636 = vld [vmem:[%s3 + $0x158] sm:$0xff]
  %v637 = vld [vmem:[%s3 + $0x160] sm:$0xff]
  %v638 = vld [vmem:[%s3 + $0x168] sm:$0xff]
  %v639 = vld [vmem:[%s3 + $0x170] sm:$0xff]
  %v640 = vld [vmem:[%s3 + $0x178] sm:$0xff]
  %v641 = vld [vmem:[%s3 + $0x180] sm:$0xff]
  %v642 = vld [vmem:[%s3 + $0x188] sm:$0xff]
  %v643 = vld [vmem:[%s3 + $0x190] sm:$0xff]
  %v644 = vld [vmem:[%s3 + $0x198] sm:$0xff]
  %v645 = vld [vmem:[%s3 + $0x1a0] sm:$0xff]
  %v646 = vld [vmem:[%s3 + $0x1a8] sm:$0xff]
  %v647 = vld [vmem:[%s3 + $0x1b0] sm:$0xff]
  %v648 = vld [vmem:[%s3 + $0x1b8] sm:$0xff]
  %v649 = vld [vmem:[%s3 + $0x1c0] sm:$0xff]
  %v650 = vld [vmem:[%s3 + $0x1c8] sm:$0xff]
  %v651 = vld [vmem:[%s3 + $0x1d0] sm:$0xff]
  %v652 = vld [vmem:[%s3 + $0x1d8] sm:$0xff]
  %v653 = vld [vmem:[%s3 + $0x1e0] sm:$0xff]
  %v654 = vld [vmem:[%s3 + $0x1e8] sm:$0xff]
  %v655 = vld [vmem:[%s3 + $0x1f0] sm:$0xff]
  %v656 = vld [vmem:[%s3 + $0x1f8] sm:$0xff]
  %657 = vmatpush.msra.mxu0 %v653
  %658 = vmatpush.msra.mxu0 %v649
  %659 = vmatpush.msra.mxu0 %v645
  %660 = vmatpush.msra.mxu0 %v641
  %661 = vmatpush.msra.mxu0 %v637
  %662 = vmatpush.msra.mxu0 %v633
  %663 = vmatpush.msra.mxu0 %v629
  %664 = vmatpush.msra.mxu0 %v625
  %665 = vmatpush.msra.mxu0 %v621
  %666 = vmatpush.msra.mxu0 %v617
  %667 = vmatpush.msra.mxu0 %v613
  %668 = vmatpush.msra.mxu0 %v609
  %669 = vmatpush.msra.mxu0 %v605
  %670 = vmatpush.msra.mxu0 %v601
  %671 = vmatpush.msra.mxu0 %v597
  %672 = vmatpush.msra.mxu0 %v593
  %673 = vmatmul.f32.gmra.mxu0 %v587
  %v674 = vpop.f32.mrf.mxu0
  %v675 = vadd.f32 0.0, %v674
  %676 = vdwg.mxu0
  %677 = vmatpush.msra.mxu0 %v654
  %678 = vmatpush.msra.mxu0 %v650
  %679 = vmatpush.msra.mxu0 %v646
  %680 = vmatpush.msra.mxu0 %v642
  %681 = vmatpush.msra.mxu0 %v638
  %682 = vmatpush.msra.mxu0 %v634
  %683 = vmatpush.msra.mxu0 %v630
  %684 = vmatpush.msra.mxu0 %v626
  %685 = vmatpush.msra.mxu0 %v622
  %686 = vmatpush.msra.mxu0 %v618
  %687 = vmatpush.msra.mxu0 %v614
  %688 = vmatpush.msra.mxu0 %v610
  %689 = vmatpush.msra.mxu0 %v606
  %690 = vmatpush.msra.mxu0 %v602
  %691 = vmatpush.msra.mxu0 %v598
  %692 = vmatpush.msra.mxu0 %v594
  %693 = vmatmul.f32.gmra.mxu0 %v587
  %v694 = vpop.f32.mrf.mxu0
  %v695 = vadd.f32 0.0, %v694
  %696 = vdwg.mxu0
  %697 = vmatpush.msra.mxu0 %v655
  %698 = vmatpush.msra.mxu0 %v651
  %699 = vmatpush.msra.mxu0 %v647
  %700 = vmatpush.msra.mxu0 %v643
  %701 = vmatpush.msra.mxu0 %v639
  %702 = vmatpush.msra.mxu0 %v635
  %703 = vmatpush.msra.mxu0 %v631
  %704 = vmatpush.msra.mxu0 %v627
  %705 = vmatpush.msra.mxu0 %v623
  %706 = vmatpush.msra.mxu0 %v619
  %707 = vmatpush.msra.mxu0 %v615
  %708 = vmatpush.msra.mxu0 %v611
  %709 = vmatpush.msra.mxu0 %v607
  %710 = vmatpush.msra.mxu0 %v603
  %711 = vmatpush.msra.mxu0 %v599
  %712 = vmatpush.msra.mxu0 %v595
  %713 = vmatmul.f32.gmra.mxu0 %v587
  %v714 = vpop.f32.mrf.mxu0
  %v715 = vadd.f32 0.0, %v714
  %716 = vdwg.mxu0
  %717 = vmatpush.msra.mxu0 %v656
  %718 = vmatpush.msra.mxu0 %v652
  %719 = vmatpush.msra.mxu0 %v648
  %720 = vmatpush.msra.mxu0 %v644
  %721 = vmatpush.msra.mxu0 %v640
  %722 = vmatpush.msra.mxu0 %v636
  %723 = vmatpush.msra.mxu0 %v632
  %724 = vmatpush.msra.mxu0 %v628
  %725 = vmatpush.msra.mxu0 %v624
  %726 = vmatpush.msra.mxu0 %v620
  %727 = vmatpush.msra.mxu0 %v616
  %728 = vmatpush.msra.mxu0 %v612
  %729 = vmatpush.msra.mxu0 %v608
  %730 = vmatpush.msra.mxu0 %v604
  %731 = vmatpush.msra.mxu0 %v600
  %732 = vmatpush.msra.mxu0 %v596
  %733 = vmatmul.f32.gmra.mxu0 %v587
  %v734 = vpop.f32.mrf.mxu0
  %v735 = vadd.f32 0.0, %v734
  %736 = vdwg.mxu0
  %v741 = vrot.slane %v675, 2
  %v742 = vrot.slane %v695, 2
  %v743 = vrot.slane %v715, 2
  %v744 = vrot.slane %v735, 2
  %v749 = vadd.f32 %v589, %v741
  %v750 = vadd.f32 %v590, %v742
  %v751 = vadd.f32 %v591, %v743
  %v752 = vadd.f32 %v592, %v744
  %v753 = vmul.f32 %v749, 0.5
  %v754 = vtanh.pop %v753
  %v755 = vmul.f32 %v754, 0.5
  %v756 = vadd.f32 %v755, 0.5
  %v757 = vmul.f32 %v750, 0.5
  %v758 = vtanh.pop %v757
  %v759 = vmul.f32 %v758, 0.5
  %v760 = vadd.f32 %v759, 0.5
  %v761 = vtanh.pop %v751
  %v762 = vmul.f32 %v752, 0.5
  %v763 = vtanh.pop %v762
  %v764 = vmul.f32 %v763, 0.5
  %v765 = vadd.f32 %v764, 0.5
  %v767 = vrot.slane %v588, 2
  %v769 = vmul.f32 %v760, %v767
  %v770 = vmul.f32 %v756, %v761
  %v771 = vadd.f32 %v769, %v770
  %v772 = vtanh.pop %v771
  %v773 = vmul.f32 %v765, %v772
  %774 = vst [vmem:[%s7 - $0x6] sm:$0xc0] %v771
  %775 = vst [vmem:[%s6 - $0x6] sm:$0xc0] %v773
  %v776 = vld [vmem:[%s6] sm:$0x3]
  %v777 = vld [vmem:[%s7] sm:$0x3]
  %v778 = vld [vmem:[%s0 + $0x20] sm:$0x3]
  %v779 = vld [vmem:[%s0 + $0x28] sm:$0x3]
  %v780 = vld [vmem:[%s0 + $0x30] sm:$0x3]
  %v781 = vld [vmem:[%s0 + $0x38] sm:$0x3]
  %v782 = vld [vmem:[%s3] sm:$0xff]
  %v783 = vld [vmem:[%s3 + $0x8] sm:$0xff]
  %v784 = vld [vmem:[%s3 + $0x10] sm:$0xff]
  %v785 = vld [vmem:[%s3 + $0x18] sm:$0xff]
  %v786 = vld [vmem:[%s3 + $0x20] sm:$0xff]
  %v787 = vld [vmem:[%s3 + $0x28] sm:$0xff]
  %v788 = vld [vmem:[%s3 + $0x30] sm:$0xff]
  %v789 = vld [vmem:[%s3 + $0x38] sm:$0xff]
  %v790 = vld [vmem:[%s3 + $0x40] sm:$0xff]
  %v791 = vld [vmem:[%s3 + $0x48] sm:$0xff]
  %v792 = vld [vmem:[%s3 + $0x50] sm:$0xff]
  %v793 = vld [vmem:[%s3 + $0x58] sm:$0xff]
  %v794 = vld [vmem:[%s3 + $0x60] sm:$0xff]
  %v795 = vld [vmem:[%s3 + $0x68] sm:$0xff]
  %v796 = vld [vmem:[%s3 + $0x70] sm:$0xff]
  %v797 = vld [vmem:[%s3 + $0x78] sm:$0xff]
  %v798 = vld [vmem:[%s3 + $0x80] sm:$0xff]
  %v799 = vld [vmem:[%s3 + $0x88] sm:$0xff]
  %v800 = vld [vmem:[%s3 + $0x90] sm:$0xff]
  %v801 = vld [vmem:[%s3 + $0x98] sm:$0xff]
  %v802 = vld [vmem:[%s3 + $0xa0] sm:$0xff]
  %v803 = vld [vmem:[%s3 + $0xa8] sm:$0xff]
  %v804 = vld [vmem:[%s3 + $0xb0] sm:$0xff]
  %v805 = vld [vmem:[%s3 + $0xb8] sm:$0xff]
  %v806 = vld [vmem:[%s3 + $0xc0] sm:$0xff]
  %v807 = vld [vmem:[%s3 + $0xc8] sm:$0xff]
  %v808 = vld [vmem:[%s3 + $0xd0] sm:$0xff]
  %v809 = vld [vmem:[%s3 + $0xd8] sm:$0xff]
  %v810 = vld [vmem:[%s3 + $0xe0] sm:$0xff]
  %v811 = vld [vmem:[%s3 + $0xe8] sm:$0xff]
  %v812 = vld [vmem:[%s3 + $0xf0] sm:$0xff]
  %v813 = vld [vmem:[%s3 + $0xf8] sm:$0xff]
  %v814 = vld [vmem:[%s3 + $0x100] sm:$0xff]
  %v815 = vld [vmem:[%s3 + $0x108] sm:$0xff]
  %v816 = vld [vmem:[%s3 + $0x110] sm:$0xff]
  %v817 = vld [vmem:[%s3 + $0x118] sm:$0xff]
  %v818 = vld [vmem:[%s3 + $0x120] sm:$0xff]
  %v819 = vld [vmem:[%s3 + $0x128] sm:$0xff]
  %v820 = vld [vmem:[%s3 + $0x130] sm:$0xff]
  %v821 = vld [vmem:[%s3 + $0x138] sm:$0xff]
  %v822 = vld [vmem:[%s3 + $0x140] sm:$0xff]
  %v823 = vld [vmem:[%s3 + $0x148] sm:$0xff]
  %v824 = vld [vmem:[%s3 + $0x150] sm:$0xff]
  %v825 = vld [vmem:[%s3 + $0x158] sm:$0xff]
  %v826 = vld [vmem:[%s3 + $0x160] sm:$0xff]
  %v827 = vld [vmem:[%s3 + $0x168] sm:$0xff]
  %v828 = vld [vmem:[%s3 + $0x170] sm:$0xff]
  %v829 = vld [vmem:[%s3 + $0x178] sm:$0xff]
  %v830 = vld [vmem:[%s3 + $0x180] sm:$0xff]
  %v831 = vld [vmem:[%s3 + $0x188] sm:$0xff]
  %v832 = vld [vmem:[%s3 + $0x190] sm:$0xff]
  %v833 = vld [vmem:[%s3 + $0x198] sm:$0xff]
  %v834 = vld [vmem:[%s3 + $0x1a0] sm:$0xff]
  %v835 = vld [vmem:[%s3 + $0x1a8] sm:$0xff]
  %v836 = vld [vmem:[%s3 + $0x1b0] sm:$0xff]
  %v837 = vld [vmem:[%s3 + $0x1b8] sm:$0xff]
  %v838 = vld [vmem:[%s3 + $0x1c0] sm:$0xff]
  %v839 = vld [vmem:[%s3 + $0x1c8] sm:$0xff]
  %v840 = vld [vmem:[%s3 + $0x1d0] sm:$0xff]
  %v841 = vld [vmem:[%s3 + $0x1d8] sm:$0xff]
  %v842 = vld [vmem:[%s3 + $0x1e0] sm:$0xff]
  %v843 = vld [vmem:[%s3 + $0x1e8] sm:$0xff]
  %v844 = vld [vmem:[%s3 + $0x1f0] sm:$0xff]
  %v845 = vld [vmem:[%s3 + $0x1f8] sm:$0xff]
  %846 = vmatpush.msra.mxu0 %v842
  %847 = vmatpush.msra.mxu0 %v838
  %848 = vmatpush.msra.mxu0 %v834
  %849 = vmatpush.msra.mxu0 %v830
  %850 = vmatpush.msra.mxu0 %v826
  %851 = vmatpush.msra.mxu0 %v822
  %852 = vmatpush.msra.mxu0 %v818
  %853 = vmatpush.msra.mxu0 %v814
  %854 = vmatpush.msra.mxu0 %v810
  %855 = vmatpush.msra.mxu0 %v806
  %856 = vmatpush.msra.mxu0 %v802
  %857 = vmatpush.msra.mxu0 %v798
  %858 = vmatpush.msra.mxu0 %v794
  %859 = vmatpush.msra.mxu0 %v790
  %860 = vmatpush.msra.mxu0 %v786
  %861 = vmatpush.msra.mxu0 %v782
  %862 = vmatmul.f32.gmra.mxu0 %v776
  %v863 = vpop.f32.mrf.mxu0
  %v864 = vadd.f32 0.0, %v863
  %865 = vdwg.mxu0
  %866 = vmatpush.msra.mxu0 %v843
  %867 = vmatpush.msra.mxu0 %v839
  %868 = vmatpush.msra.mxu0 %v835
  %869 = vmatpush.msra.mxu0 %v831
  %870 = vmatpush.msra.mxu0 %v827
  %871 = vmatpush.msra.mxu0 %v823
  %872 = vmatpush.msra.mxu0 %v819
  %873 = vmatpush.msra.mxu0 %v815
  %874 = vmatpush.msra.mxu0 %v811
  %875 = vmatpush.msra.mxu0 %v807
  %876 = vmatpush.msra.mxu0 %v803
  %877 = vmatpush.msra.mxu0 %v799
  %878 = vmatpush.msra.mxu0 %v795
  %879 = vmatpush.msra.mxu0 %v791
  %880 = vmatpush.msra.mxu0 %v787
  %881 = vmatpush.msra.mxu0 %v783
  %882 = vmatmul.f32.gmra.mxu0 %v776
  %v883 = vpop.f32.mrf.mxu0
  %v884 = vadd.f32 0.0, %v883
  %885 = vdwg.mxu0
  %886 = vmatpush.msra.mxu0 %v844
  %887 = vmatpush.msra.mxu0 %v840
  %888 = vmatpush.msra.mxu0 %v836
  %889 = vmatpush.msra.mxu0 %v832
  %890 = vmatpush.msra.mxu0 %v828
  %891 = vmatpush.msra.mxu0 %v824
  %892 = vmatpush.msra.mxu0 %v820
  %893 = vmatpush.msra.mxu0 %v816
  %894 = vmatpush.msra.mxu0 %v812
  %895 = vmatpush.msra.mxu0 %v808
  %896 = vmatpush.msra.mxu0 %v804
  %897 = vmatpush.msra.mxu0 %v800
  %898 = vmatpush.msra.mxu0 %v796
  %899 = vmatpush.msra.mxu0 %v792
  %900 = vmatpush.msra.mxu0 %v788
  %901 = vmatpush.msra.mxu0 %v784
  %902 = vmatmul.f32.gmra.mxu0 %v776
  %v903 = vpop.f32.mrf.mxu0
  %v904 = vadd.f32 0.0, %v903
  %905 = vdwg.mxu0
  %906 = vmatpush.msra.mxu0 %v845
  %907 = vmatpush.msra.mxu0 %v841
  %908 = vmatpush.msra.mxu0 %v837
  %909 = vmatpush.msra.mxu0 %v833
  %910 = vmatpush.msra.mxu0 %v829
  %911 = vmatpush.msra.mxu0 %v825
  %912 = vmatpush.msra.mxu0 %v821
  %913 = vmatpush.msra.mxu0 %v817
  %914 = vmatpush.msra.mxu0 %v813
  %915 = vmatpush.msra.mxu0 %v809
  %916 = vmatpush.msra.mxu0 %v805
  %917 = vmatpush.msra.mxu0 %v801
  %918 = vmatpush.msra.mxu0 %v797
  %919 = vmatpush.msra.mxu0 %v793
  %920 = vmatpush.msra.mxu0 %v789
  %921 = vmatpush.msra.mxu0 %v785
  %922 = vmatmul.f32.gmra.mxu0 %v776
  %v923 = vpop.f32.mrf.mxu0
  %v924 = vadd.f32 0.0, %v923
  %925 = vdwg.mxu0
  %v926 = vadd.f32 %v778, %v864
  %v927 = vadd.f32 %v779, %v884
  %v928 = vadd.f32 %v780, %v904
  %v929 = vadd.f32 %v781, %v924
  %v930 = vmul.f32 %v926, 0.5
  %v931 = vtanh.pop %v930
  %v932 = vmul.f32 %v931, 0.5
  %v933 = vadd.f32 %v932, 0.5
  %v934 = vmul.f32 %v927, 0.5
  %v935 = vtanh.pop %v934
  %v936 = vmul.f32 %v935, 0.5
  %v937 = vadd.f32 %v936, 0.5
  %v938 = vtanh.pop %v928
  %v939 = vmul.f32 %v929, 0.5
  %v940 = vtanh.pop %v939
  %v941 = vmul.f32 %v940, 0.5
  %v942 = vadd.f32 %v941, 0.5
  %v943 = vmul.f32 %v937, %v777
  %v944 = vmul.f32 %v933, %v938
  %v945 = vadd.f32 %v943, %v944
  %v946 = vtanh.pop %v945
  %v947 = vmul.f32 %v942, %v946
  %948 = vst [vmem:[%s7] sm:$0x3] %v945
  %949 = vst [vmem:[%s6] sm:$0x3] %v947
  %v950 = vld [vmem:[%s6] sm:$0x3]
  %v951 = vld [vmem:[%s7] sm:$0x3]
  %v952 = vld [vmem:[%s0 + $0x20] sm:$0xc]
  %v953 = vld [vmem:[%s0 + $0x28] sm:$0xc]
  %v954 = vld [vmem:[%s0 + $0x30] sm:$0xc]
  %v955 = vld [vmem:[%s0 + $0x38] sm:$0xc]
  %v956 = vld [vmem:[%s3] sm:$0xff]
  %v957 = vld [vmem:[%s3 + $0x8] sm:$0xff]
  %v958 = vld [vmem:[%s3 + $0x10] sm:$0xff]
  %v959 = vld [vmem:[%s3 + $0x18] sm:$0xff]
  %v960 = vld [vmem:[%s3 + $0x20] sm:$0xff]
  %v961 = vld [vmem:[%s3 + $0x28] sm:$0xff]
  %v962 = vld [vmem:[%s3 + $0x30] sm:$0xff]
  %v963 = vld [vmem:[%s3 + $0x38] sm:$0xff]
  %v964 = vld [vmem:[%s3 + $0x40] sm:$0xff]
  %v965 = vld [vmem:[%s3 + $0x48] sm:$0xff]
  %v966 = vld [vmem:[%s3 + $0x50] sm:$0xff]
  %v967 = vld [vmem:[%s3 + $0x58] sm:$0xff]
  %v968 = vld [vmem:[%s3 + $0x60] sm:$0xff]
  %v969 = vld [vmem:[%s3 + $0x68] sm:$0xff]
  %v970 = vld [vmem:[%s3 + $0x70] sm:$0xff]
  %v971 = vld [vmem:[%s3 + $0x78] sm:$0xff]
  %v972 = vld [vmem:[%s3 + $0x80] sm:$0xff]
  %v973 = vld [vmem:[%s3 + $0x88] sm:$0xff]
  %v974 = vld [vmem:[%s3 + $0x90] sm:$0xff]
  %v975 = vld [vmem:[%s3 + $0x98] sm:$0xff]
  %v976 = vld [vmem:[%s3 + $0xa0] sm:$0xff]
  %v977 = vld [vmem:[%s3 + $0xa8] sm:$0xff]
  %v978 = vld [vmem:[%s3 + $0xb0] sm:$0xff]
  %v979 = vld [vmem:[%s3 + $0xb8] sm:$0xff]
  %v980 = vld [vmem:[%s3 + $0xc0] sm:$0xff]
  %v981 = vld [vmem:[%s3 + $0xc8] sm:$0xff]
  %v982 = vld [vmem:[%s3 + $0xd0] sm:$0xff]
  %v983 = vld [vmem:[%s3 + $0xd8] sm:$0xff]
  %v984 = vld [vmem:[%s3 + $0xe0] sm:$0xff]
  %v985 = vld [vmem:[%s3 + $0xe8] sm:$0xff]
  %v986 = vld [vmem:[%s3 + $0xf0] sm:$0xff]
  %v987 = vld [vmem:[%s3 + $0xf8] sm:$0xff]
  %v988 = vld [vmem:[%s3 + $0x100] sm:$0xff]
  %v989 = vld [vmem:[%s3 + $0x108] sm:$0xff]
  %v990 = vld [vmem:[%s3 + $0x110] sm:$0xff]
  %v991 = vld [vmem:[%s3 + $0x118] sm:$0xff]
  %v992 = vld [vmem:[%s3 + $0x120] sm:$0xff]
  %v993 = vld [vmem:[%s3 + $0x128] sm:$0xff]
  %v994 = vld [vmem:[%s3 + $0x130] sm:$0xff]
  %v995 = vld [vmem:[%s3 + $0x138] sm:$0xff]
  %v996 = vld [vmem:[%s3 + $0x140] sm:$0xff]
  %v997 = vld [vmem:[%s3 + $0x148] sm:$0xff]
  %v998 = vld [vmem:[%s3 + $0x150] sm:$0xff]
  %v999 = vld [vmem:[%s3 + $0x158] sm:$0xff]
  %v1000 = vld [vmem:[%s3 + $0x160] sm:$0xff]
  %v1001 = vld [vmem:[%s3 + $0x168] sm:$0xff]
  %v1002 = vld [vmem:[%s3 + $0x170] sm:$0xff]
  %v1003 = vld [vmem:[%s3 + $0x178] sm:$0xff]
  %v1004 = vld [vmem:[%s3 + $0x180] sm:$0xff]
  %v1005 = vld [vmem:[%s3 + $0x188] sm:$0xff]
  %v1006 = vld [vmem:[%s3 + $0x190] sm:$0xff]
  %v1007 = vld [vmem:[%s3 + $0x198] sm:$0xff]
  %v1008 = vld [vmem:[%s3 + $0x1a0] sm:$0xff]
  %v1009 = vld [vmem:[%s3 + $0x1a8] sm:$0xff]
  %v1010 = vld [vmem:[%s3 + $0x1b0] sm:$0xff]
  %v1011 = vld [vmem:[%s3 + $0x1b8] sm:$0xff]
  %v1012 = vld [vmem:[%s3 + $0x1c0] sm:$0xff]
  %v1013 = vld [vmem:[%s3 + $0x1c8] sm:$0xff]
  %v1014 = vld [vmem:[%s3 + $0x1d0] sm:$0xff]
  %v1015 = vld [vmem:[%s3 + $0x1d8] sm:$0xff]
  %v1016 = vld [vmem:[%s3 + $0x1e0] sm:$0xff]
  %v1017 = vld [vmem:[%s3 + $0x1e8] sm:$0xff]
  %v1018 = vld [vmem:[%s3 + $0x1f0] sm:$0xff]
  %v1019 = vld [vmem:[%s3 + $0x1f8] sm:$0xff]
  %1020 = vmatpush.msra.mxu0 %v1016
  %1021 = vmatpush.msra.mxu0 %v1012
  %1022 = vmatpush.msra.mxu0 %v1008
  %1023 = vmatpush.msra.mxu0 %v1004
  %1024 = vmatpush.msra.mxu0 %v1000
  %1025 = vmatpush.msra.mxu0 %v996
  %1026 = vmatpush.msra.mxu0 %v992
  %1027 = vmatpush.msra.mxu0 %v988
  %1028 = vmatpush.msra.mxu0 %v984
  %1029 = vmatpush.msra.mxu0 %v980
  %1030 = vmatpush.msra.mxu0 %v976
  %1031 = vmatpush.msra.mxu0 %v972
  %1032 = vmatpush.msra.mxu0 %v968
  %1033 = vmatpush.msra.mxu0 %v964
  %1034 = vmatpush.msra.mxu0 %v960
  %1035 = vmatpush.msra.mxu0 %v956
  %1036 = vmatmul.f32.gmra.mxu0 %v950
  %v1037 = vpop.f32.mrf.mxu0
  %v1038 = vadd.f32 0.0, %v1037
  %1039 = vdwg.mxu0
  %1040 = vmatpush.msra.mxu0 %v1017
  %1041 = vmatpush.msra.mxu0 %v1013
  %1042 = vmatpush.msra.mxu0 %v1009
  %1043 = vmatpush.msra.mxu0 %v1005
  %1044 = vmatpush.msra.mxu0 %v1001
  %1045 = vmatpush.msra.mxu0 %v997
  %1046 = vmatpush.msra.mxu0 %v993
  %1047 = vmatpush.msra.mxu0 %v989
  %1048 = vmatpush.msra.mxu0 %v985
  %1049 = vmatpush.msra.mxu0 %v981
  %1050 = vmatpush.msra.mxu0 %v977
  %1051 = vmatpush.msra.mxu0 %v973
  %1052 = vmatpush.msra.mxu0 %v969
  %1053 = vmatpush.msra.mxu0 %v965
  %1054 = vmatpush.msra.mxu0 %v961
  %1055 = vmatpush.msra.mxu0 %v957
  %1056 = vmatmul.f32.gmra.mxu0 %v950
  %v1057 = vpop.f32.mrf.mxu0
  %v1058 = vadd.f32 0.0, %v1057
  %1059 = vdwg.mxu0
  %1060 = vmatpush.msra.mxu0 %v1018
  %1061 = vmatpush.msra.mxu0 %v1014
  %1062 = vmatpush.msra.mxu0 %v1010
  %1063 = vmatpush.msra.mxu0 %v1006
  %1064 = vmatpush.msra.mxu0 %v1002
  %1065 = vmatpush.msra.mxu0 %v998
  %1066 = vmatpush.msra.mxu0 %v994
  %1067 = vmatpush.msra.mxu0 %v990
  %1068 = vmatpush.msra.mxu0 %v986
  %1069 = vmatpush.msra.mxu0 %v982
  %1070 = vmatpush.msra.mxu0 %v978
  %1071 = vmatpush.msra.mxu0 %v974
  %1072 = vmatpush.msra.mxu0 %v970
  %1073 = vmatpush.msra.mxu0 %v966
  %1074 = vmatpush.msra.mxu0 %v962
  %1075 = vmatpush.msra.mxu0 %v958
  %1076 = vmatmul.f32.gmra.mxu0 %v950
  %v1077 = vpop.f32.mrf.mxu0
  %v1078 = vadd.f32 0.0, %v1077
  %1079 = vdwg.mxu0
  %1080 = vmatpush.msra.mxu0 %v1019
  %1081 = vmatpush.msra.mxu0 %v1015
  %1082 = vmatpush.msra.mxu0 %v1011
  %1083 = vmatpush.msra.mxu0 %v1007
  %1084 = vmatpush.msra.mxu0 %v1003
  %1085 = vmatpush.msra.mxu0 %v999
  %1086 = vmatpush.msra.mxu0 %v995
  %1087 = vmatpush.msra.mxu0 %v991
  %1088 = vmatpush.msra.mxu0 %v987
  %1089 = vmatpush.msra.mxu0 %v983
  %1090 = vmatpush.msra.mxu0 %v979
  %1091 = vmatpush.msra.mxu0 %v975
  %1092 = vmatpush.msra.mxu0 %v971
  %1093 = vmatpush.msra.mxu0 %v967
  %1094 = vmatpush.msra.mxu0 %v963
  %1095 = vmatpush.msra.mxu0 %v959
  %1096 = vmatmul.f32.gmra.mxu0 %v950
  %v1097 = vpop.f32.mrf.mxu0
  %v1098 = vadd.f32 0.0, %v1097
  %1099 = vdwg.mxu0
  %v1104 = vrot.slane %v1038, 6
  %v1105 = vrot.slane %v1058, 6
  %v1106 = vrot.slane %v1078, 6
  %v1107 = vrot.slane %v1098, 6
  %v1112 = vadd.f32 %v952, %v1104
  %v1113 = vadd.f32 %v953, %v1105
  %v1114 = vadd.f32 %v954, %v1106
  %v1115 = vadd.f32 %v955, %v1107
  %v1116 = vmul.f32 %v1112, 0.5
  %v1117 = vtanh.pop %v1116
  %v1118 = vmul.f32 %v1117, 0.5
  %v1119 = vadd.f32 %v1118, 0.5
  %v1120 = vmul.f32 %v1113, 0.5
  %v1121 = vtanh.pop %v1120
  %v1122 = vmul.f32 %v1121, 0.5
  %v1123 = vadd.f32 %v1122, 0.5
  %v1124 = vtanh.pop %v1114
  %v1125 = vmul.f32 %v1115, 0.5
  %v1126 = vtanh.pop %v1125
  %v1127 = vmul.f32 %v1126, 0.5
  %v1128 = vadd.f32 %v1127, 0.5
  %v1130 = vrot.slane %v951, 6
  %v1132 = vmul.f32 %v1123, %v1130
  %v1133 = vmul.f32 %v1119, %v1124
  %v1134 = vadd.f32 %v1132, %v1133
  %v1135 = vtanh.pop %v1134
  %v1136 = vmul.f32 %v1128, %v1135
  %1137 = vst [vmem:[%s7 - $0x2] sm:$0xc] %v1134
  %1138 = vst [vmem:[%s6 - $0x2] sm:$0xc] %v1136
  %v1139 = vld [vmem:[%s6] sm:$0x3]
  %v1140 = vld [vmem:[%s7] sm:$0x3]
  %v1141 = vld [vmem:[%s0 + $0x20] sm:$0x30]
  %v1142 = vld [vmem:[%s0 + $0x28] sm:$0x30]
  %v1143 = vld [vmem:[%s0 + $0x30] sm:$0x30]
  %v1144 = vld [vmem:[%s0 + $0x38] sm:$0x30]
  %v1145 = vld [vmem:[%s3] sm:$0xff]
  %v1146 = vld [vmem:[%s3 + $0x8] sm:$0xff]
  %v1147 = vld [vmem:[%s3 + $0x10] sm:$0xff]
  %v1148 = vld [vmem:[%s3 + $0x18] sm:$0xff]
  %v1149 = vld [vmem:[%s3 + $0x20] sm:$0xff]
  %v1150 = vld [vmem:[%s3 + $0x28] sm:$0xff]
  %v1151 = vld [vmem:[%s3 + $0x30] sm:$0xff]
  %v1152 = vld [vmem:[%s3 + $0x38] sm:$0xff]
  %v1153 = vld [vmem:[%s3 + $0x40] sm:$0xff]
  %v1154 = vld [vmem:[%s3 + $0x48] sm:$0xff]
  %v1155 = vld [vmem:[%s3 + $0x50] sm:$0xff]
  %v1156 = vld [vmem:[%s3 + $0x58] sm:$0xff]
  %v1157 = vld [vmem:[%s3 + $0x60] sm:$0xff]
  %v1158 = vld [vmem:[%s3 + $0x68] sm:$0xff]
  %v1159 = vld [vmem:[%s3 + $0x70] sm:$0xff]
  %v1160 = vld [vmem:[%s3 + $0x78] sm:$0xff]
  %v1161 = vld [vmem:[%s3 + $0x80] sm:$0xff]
  %v1162 = vld [vmem:[%s3 + $0x88] sm:$0xff]
  %v1163 = vld [vmem:[%s3 + $0x90] sm:$0xff]
  %v1164 = vld [vmem:[%s3 + $0x98] sm:$0xff]
  %v1165 = vld [vmem:[%s3 + $0xa0] sm:$0xff]
  %v1166 = vld [vmem:[%s3 + $0xa8] sm:$0xff]
  %v1167 = vld [vmem:[%s3 + $0xb0] sm:$0xff]
  %v1168 = vld [vmem:[%s3 + $0xb8] sm:$0xff]
  %v1169 = vld [vmem:[%s3 + $0xc0] sm:$0xff]
  %v1170 = vld [vmem:[%s3 + $0xc8] sm:$0xff]
  %v1171 = vld [vmem:[%s3 + $0xd0] sm:$0xff]
  %v1172 = vld [vmem:[%s3 + $0xd8] sm:$0xff]
  %v1173 = vld [vmem:[%s3 + $0xe0] sm:$0xff]
  %v1174 = vld [vmem:[%s3 + $0xe8] sm:$0xff]
  %v1175 = vld [vmem:[%s3 + $0xf0] sm:$0xff]
  %v1176 = vld [vmem:[%s3 + $0xf8] sm:$0xff]
  %v1177 = vld [vmem:[%s3 + $0x100] sm:$0xff]
  %v1178 = vld [vmem:[%s3 + $0x108] sm:$0xff]
  %v1179 = vld [vmem:[%s3 + $0x110] sm:$0xff]
  %v1180 = vld [vmem:[%s3 + $0x118] sm:$0xff]
  %v1181 = vld [vmem:[%s3 + $0x120] sm:$0xff]
  %v1182 = vld [vmem:[%s3 + $0x128] sm:$0xff]
  %v1183 = vld [vmem:[%s3 + $0x130] sm:$0xff]
  %v1184 = vld [vmem:[%s3 + $0x138] sm:$0xff]
  %v1185 = vld [vmem:[%s3 + $0x140] sm:$0xff]
  %v1186 = vld [vmem:[%s3 + $0x148] sm:$0xff]
  %v1187 = vld [vmem:[%s3 + $0x150] sm:$0xff]
  %v1188 = vld [vmem:[%s3 + $0x158] sm:$0xff]
  %v1189 = vld [vmem:[%s3 + $0x160] sm:$0xff]
  %v1190 = vld [vmem:[%s3 + $0x168] sm:$0xff]
  %v1191 = vld [vmem:[%s3 + $0x170] sm:$0xff]
  %v1192 = vld [vmem:[%s3 + $0x178] sm:$0xff]
  %v1193 = vld [vmem:[%s3 + $0x180] sm:$0xff]
  %v1194 = vld [vmem:[%s3 + $0x188] sm:$0xff]
  %v1195 = vld [vmem:[%s3 + $0x190] sm:$0xff]
  %v1196 = vld [vmem:[%s3 + $0x198] sm:$0xff]
  %v1197 = vld [vmem:[%s3 + $0x1a0] sm:$0xff]
  %v1198 = vld [vmem:[%s3 + $0x1a8] sm:$0xff]
  %v1199 = vld [vmem:[%s3 + $0x1b0] sm:$0xff]
  %v1200 = vld [vmem:[%s3 + $0x1b8] sm:$0xff]
  %v1201 = vld [vmem:[%s3 + $0x1c0] sm:$0xff]
  %v1202 = vld [vmem:[%s3 + $0x1c8] sm:$0xff]
  %v1203 = vld [vmem:[%s3 + $0x1d0] sm:$0xff]
  %v1204 = vld [vmem:[%s3 + $0x1d8] sm:$0xff]
  %v1205 = vld [vmem:[%s3 + $0x1e0] sm:$0xff]
  %v1206 = vld [vmem:[%s3 + $0x1e8] sm:$0xff]
  %v1207 = vld [vmem:[%s3 + $0x1f0] sm:$0xff]
  %v1208 = vld [vmem:[%s3 + $0x1f8] sm:$0xff]
  %1209 = vmatpush.msra.mxu0 %v1205
  %1210 = vmatpush.msra.mxu0 %v1201
  %1211 = vmatpush.msra.mxu0 %v1197
  %1212 = vmatpush.msra.mxu0 %v1193
  %1213 = vmatpush.msra.mxu0 %v1189
  %1214 = vmatpush.msra.mxu0 %v1185
  %1215 = vmatpush.msra.mxu0 %v1181
  %1216 = vmatpush.msra.mxu0 %v1177
  %1217 = vmatpush.msra.mxu0 %v1173
  %1218 = vmatpush.msra.mxu0 %v1169
  %1219 = vmatpush.msra.mxu0 %v1165
  %1220 = vmatpush.msra.mxu0 %v1161
  %1221 = vmatpush.msra.mxu0 %v1157
  %1222 = vmatpush.msra.mxu0 %v1153
  %1223 = vmatpush.msra.mxu0 %v1149
  %1224 = vmatpush.msra.mxu0 %v1145
  %1225 = vmatmul.f32.gmra.mxu0 %v1139
  %v1226 = vpop.f32.mrf.mxu0
  %v1227 = vadd.f32 0.0, %v1226
  %1228 = vdwg.mxu0
  %1229 = vmatpush.msra.mxu0 %v1206
  %1230 = vmatpush.msra.mxu0 %v1202
  %1231 = vmatpush.msra.mxu0 %v1198
  %1232 = vmatpush.msra.mxu0 %v1194
  %1233 = vmatpush.msra.mxu0 %v1190
  %1234 = vmatpush.msra.mxu0 %v1186
  %1235 = vmatpush.msra.mxu0 %v1182
  %1236 = vmatpush.msra.mxu0 %v1178
  %1237 = vmatpush.msra.mxu0 %v1174
  %1238 = vmatpush.msra.mxu0 %v1170
  %1239 = vmatpush.msra.mxu0 %v1166
  %1240 = vmatpush.msra.mxu0 %v1162
  %1241 = vmatpush.msra.mxu0 %v1158
  %1242 = vmatpush.msra.mxu0 %v1154
  %1243 = vmatpush.msra.mxu0 %v1150
  %1244 = vmatpush.msra.mxu0 %v1146
  %1245 = vmatmul.f32.gmra.mxu0 %v1139
  %v1246 = vpop.f32.mrf.mxu0
  %v1247 = vadd.f32 0.0, %v1246
  %1248 = vdwg.mxu0
  %1249 = vmatpush.msra.mxu0 %v1207
  %1250 = vmatpush.msra.mxu0 %v1203
  %1251 = vmatpush.msra.mxu0 %v1199
  %1252 = vmatpush.msra.mxu0 %v1195
  %1253 = vmatpush.msra.mxu0 %v1191
  %1254 = vmatpush.msra.mxu0 %v1187
  %1255 = vmatpush.msra.mxu0 %v1183
  %1256 = vmatpush.msra.mxu0 %v1179
  %1257 = vmatpush.msra.mxu0 %v1175
  %1258 = vmatpush.msra.mxu0 %v1171
  %1259 = vmatpush.msra.mxu0 %v1167
  %1260 = vmatpush.msra.mxu0 %v1163
  %1261 = vmatpush.msra.mxu0 %v1159
  %1262 = vmatpush.msra.mxu0 %v1155
  %1263 = vmatpush.msra.mxu0 %v1151
  %1264 = vmatpush.msra.mxu0 %v1147
  %1265 = vmatmul.f32.gmra.mxu0 %v1139
  %v1266 = vpop.f32.mrf.mxu0
  %v1267 = vadd.f32 0.0, %v1266
  %1268 = vdwg.mxu0
  %1269 = vmatpush.msra.mxu0 %v1208
  %1270 = vmatpush.msra.mxu0 %v1204
  %1271 = vmatpush.msra.mxu0 %v1200
  %1272 = vmatpush.msra.mxu0 %v1196
  %1273 = vmatpush.msra.mxu0 %v1192
  %1274 = vmatpush.msra.mxu0 %v1188
  %1275 = vmatpush.msra.mxu0 %v1184
  %1276 = vmatpush.msra.mxu0 %v1180
  %1277 = vmatpush.msra.mxu0 %v1176
  %1278 = vmatpush.msra.mxu0 %v1172
  %1279 = vmatpush.msra.mxu0 %v1168
  %1280 = vmatpush.msra.mxu0 %v1164
  %1281 = vmatpush.msra.mxu0 %v1160
  %1282 = vmatpush.msra.mxu0 %v1156
  %1283 = vmatpush.msra.mxu0 %v1152
  %1284 = vmatpush.msra.mxu0 %v1148
  %1285 = vmatmul.f32.gmra.mxu0 %v1139
  %v1286 = vpop.f32.mrf.mxu0
  %v1287 = vadd.f32 0.0, %v1286
  %1288 = vdwg.mxu0
  %v1293 = vrot.slane %v1227, 4
  %v1294 = vrot.slane %v1247, 4
  %v1295 = vrot.slane %v1267, 4
  %v1296 = vrot.slane %v1287, 4
  %v1301 = vadd.f32 %v1141, %v1293
  %v1302 = vadd.f32 %v1142, %v1294
  %v1303 = vadd.f32 %v1143, %v1295
  %v1304 = vadd.f32 %v1144, %v1296
  %v1305 = vmul.f32 %v1301, 0.5
  %v1306 = vtanh.pop %v1305
  %v1307 = vmul.f32 %v1306, 0.5
  %v1308 = vadd.f32 %v1307, 0.5
  %v1309 = vmul.f32 %v1302, 0.5
  %v1310 = vtanh.pop %v1309
  %v1311 = vmul.f32 %v1310, 0.5
  %v1312 = vadd.f32 %v1311, 0.5
  %v1313 = vtanh.pop %v1303
  %v1314 = vmul.f32 %v1304, 0.5
  %v1315 = vtanh.pop %v1314
  %v1316 = vmul.f32 %v1315, 0.5
  %v1317 = vadd.f32 %v1316, 0.5
  %v1319 = vrot.slane %v1140, 4
  %v1321 = vmul.f32 %v1312, %v1319
  %v1322 = vmul.f32 %v1308, %v1313
  %v1323 = vadd.f32 %v1321, %v1322
  %v1324 = vtanh.pop %v1323
  %v1325 = vmul.f32 %v1317, %v1324
  %1326 = vst [vmem:[%s7 - $0x4] sm:$0x30] %v1323
  %1327 = vst [vmem:[%s6 - $0x4] sm:$0x30] %v1325
  %v1328 = vld [vmem:[%s6] sm:$0x3]
  %v1329 = vld [vmem:[%s7] sm:$0x3]
  %v1330 = vld [vmem:[%s0 + $0x20] sm:$0xc0]
  %v1331 = vld [vmem:[%s0 + $0x28] sm:$0xc0]
  %v1332 = vld [vmem:[%s0 + $0x30] sm:$0xc0]
  %v1333 = vld [vmem:[%s0 + $0x38] sm:$0xc0]
  %v1334 = vld [vmem:[%s3] sm:$0xff]
  %v1335 = vld [vmem:[%s3 + $0x8] sm:$0xff]
  %v1336 = vld [vmem:[%s3 + $0x10] sm:$0xff]
  %v1337 = vld [vmem:[%s3 + $0x18] sm:$0xff]
  %v1338 = vld [vmem:[%s3 + $0x20] sm:$0xff]
  %v1339 = vld [vmem:[%s3 + $0x28] sm:$0xff]
  %v1340 = vld [vmem:[%s3 + $0x30] sm:$0xff]
  %v1341 = vld [vmem:[%s3 + $0x38] sm:$0xff]
  %v1342 = vld [vmem:[%s3 + $0x40] sm:$0xff]
  %v1343 = vld [vmem:[%s3 + $0x48] sm:$0xff]
  %v1344 = vld [vmem:[%s3 + $0x50] sm:$0xff]
  %v1345 = vld [vmem:[%s3 + $0x58] sm:$0xff]
  %v1346 = vld [vmem:[%s3 + $0x60] sm:$0xff]
  %v1347 = vld [vmem:[%s3 + $0x68] sm:$0xff]
  %v1348 = vld [vmem:[%s3 + $0x70] sm:$0xff]
  %v1349 = vld [vmem:[%s3 + $0x78] sm:$0xff]
  %v1350 = vld [vmem:[%s3 + $0x80] sm:$0xff]
  %v1351 = vld [vmem:[%s3 + $0x88] sm:$0xff]
  %v1352 = vld [vmem:[%s3 + $0x90] sm:$0xff]
  %v1353 = vld [vmem:[%s3 + $0x98] sm:$0xff]
  %v1354 = vld [vmem:[%s3 + $0xa0] sm:$0xff]
  %v1355 = vld [vmem:[%s3 + $0xa8] sm:$0xff]
  %v1356 = vld [vmem:[%s3 + $0xb0] sm:$0xff]
  %v1357 = vld [vmem:[%s3 + $0xb8] sm:$0xff]
  %v1358 = vld [vmem:[%s3 + $0xc0] sm:$0xff]
  %v1359 = vld [vmem:[%s3 + $0xc8] sm:$0xff]
  %v1360 = vld [vmem:[%s3 + $0xd0] sm:$0xff]
  %v1361 = vld [vmem:[%s3 + $0xd8] sm:$0xff]
  %v1362 = vld [vmem:[%s3 + $0xe0] sm:$0xff]
  %v1363 = vld [vmem:[%s3 + $0xe8] sm:$0xff]
  %v1364 = vld [vmem:[%s3 + $0xf0] sm:$0xff]
  %v1365 = vld [vmem:[%s3 + $0xf8] sm:$0xff]
  %v1366 = vld [vmem:[%s3 + $0x100] sm:$0xff]
  %v1367 = vld [vmem:[%s3 + $0x108] sm:$0xff]
  %v1368 = vld [vmem:[%s3 + $0x110] sm:$0xff]
  %v1369 = vld [vmem:[%s3 + $0x118] sm:$0xff]
  %v1370 = vld [vmem:[%s3 + $0x120] sm:$0xff]
  %v1371 = vld [vmem:[%s3 + $0x128] sm:$0xff]
  %v1372 = vld [vmem:[%s3 + $0x130] sm:$0xff]
  %v1373 = vld [vmem:[%s3 + $0x138] sm:$0xff]
  %v1374 = vld [vmem:[%s3 + $0x140] sm:$0xff]
  %v1375 = vld [vmem:[%s3 + $0x148] sm:$0xff]
  %v1376 = vld [vmem:[%s3 + $0x150] sm:$0xff]
  %v1377 = vld [vmem:[%s3 + $0x158] sm:$0xff]
  %v1378 = vld [vmem:[%s3 + $0x160] sm:$0xff]
  %v1379 = vld [vmem:[%s3 + $0x168] sm:$0xff]
  %v1380 = vld [vmem:[%s3 + $0x170] sm:$0xff]
  %v1381 = vld [vmem:[%s3 + $0x178] sm:$0xff]
  %v1382 = vld [vmem:[%s3 + $0x180] sm:$0xff]
  %v1383 = vld [vmem:[%s3 + $0x188] sm:$0xff]
  %v1384 = vld [vmem:[%s3 + $0x190] sm:$0xff]
  %v1385 = vld [vmem:[%s3 + $0x198] sm:$0xff]
  %v1386 = vld [vmem:[%s3 + $0x1a0] sm:$0xff]
  %v1387 = vld [vmem:[%s3 + $0x1a8] sm:$0xff]
  %v1388 = vld [vmem:[%s3 + $0x1b0] sm:$0xff]
  %v1389 = vld [vmem:[%s3 + $0x1b8] sm:$0xff]
  %v1390 = vld [vmem:[%s3 + $0x1c0] sm:$0xff]
  %v1391 = vld [vmem:[%s3 + $0x1c8] sm:$0xff]
  %v1392 = vld [vmem:[%s3 + $0x1d0] sm:$0xff]
  %v1393 = vld [vmem:[%s3 + $0x1d8] sm:$0xff]
  %v1394 = vld [vmem:[%s3 + $0x1e0] sm:$0xff]
  %v1395 = vld [vmem:[%s3 + $0x1e8] sm:$0xff]
  %v1396 = vld [vmem:[%s3 + $0x1f0] sm:$0xff]
  %v1397 = vld [vmem:[%s3 + $0x1f8] sm:$0xff]
  %1398 = vmatpush.msra.mxu0 %v1394
  %1399 = vmatpush.msra.mxu0 %v1390
  %1400 = vmatpush.msra.mxu0 %v1386
  %1401 = vmatpush.msra.mxu0 %v1382
  %1402 = vmatpush.msra.mxu0 %v1378
  %1403 = vmatpush.msra.mxu0 %v1374
  %1404 = vmatpush.msra.mxu0 %v1370
  %1405 = vmatpush.msra.mxu0 %v1366
  %1406 = vmatpush.msra.mxu0 %v1362
  %1407 = vmatpush.msra.mxu0 %v1358
  %1408 = vmatpush.msra.mxu0 %v1354
  %1409 = vmatpush.msra.mxu0 %v1350
  %1410 = vmatpush.msra.mxu0 %v1346
  %1411 = vmatpush.msra.mxu0 %v1342
  %1412 = vmatpush.msra.mxu0 %v1338
  %1413 = vmatpush.msra.mxu0 %v1334
  %1414 = vmatmul.f32.gmra.mxu0 %v1328
  %v1415 = vpop.f32.mrf.mxu0
  %v1416 = vadd.f32 0.0, %v1415
  %1417 = vdwg.mxu0
  %1418 = vmatpush.msra.mxu0 %v1395
  %1419 = vmatpush.msra.mxu0 %v1391
  %1420 = vmatpush.msra.mxu0 %v1387
  %1421 = vmatpush.msra.mxu0 %v1383
  %1422 = vmatpush.msra.mxu0 %v1379
  %1423 = vmatpush.msra.mxu0 %v1375
  %1424 = vmatpush.msra.mxu0 %v1371
  %1425 = vmatpush.msra.mxu0 %v1367
  %1426 = vmatpush.msra.mxu0 %v1363
  %1427 = vmatpush.msra.mxu0 %v1359
  %1428 = vmatpush.msra.mxu0 %v1355
  %1429 = vmatpush.msra.mxu0 %v1351
  %1430 = vmatpush.msra.mxu0 %v1347
  %1431 = vmatpush.msra.mxu0 %v1343
  %1432 = vmatpush.msra.mxu0 %v1339
  %1433 = vmatpush.msra.mxu0 %v1335
  %1434 = vmatmul.f32.gmra.mxu0 %v1328
  %v1435 = vpop.f32.mrf.mxu0
  %v1436 = vadd.f32 0.0, %v1435
  %1437 = vdwg.mxu0
  %1438 = vmatpush.msra.mxu0 %v1396
  %1439 = vmatpush.msra.mxu0 %v1392
  %1440 = vmatpush.msra.mxu0 %v1388
  %1441 = vmatpush.msra.mxu0 %v1384
  %1442 = vmatpush.msra.mxu0 %v1380
  %1443 = vmatpush.msra.mxu0 %v1376
  %1444 = vmatpush.msra.mxu0 %v1372
  %1445 = vmatpush.msra.mxu0 %v1368
  %1446 = vmatpush.msra.mxu0 %v1364
  %1447 = vmatpush.msra.mxu0 %v1360
  %1448 = vmatpush.msra.mxu0 %v1356
  %1449 = vmatpush.msra.mxu0 %v1352
  %1450 = vmatpush.msra.mxu0 %v1348
  %1451 = vmatpush.msra.mxu0 %v1344
  %1452 = vmatpush.msra.mxu0 %v1340
  %1453 = vmatpush.msra.mxu0 %v1336
  %1454 = vmatmul.f32.gmra.mxu0 %v1328
  %v1455 = vpop.f32.mrf.mxu0
  %v1456 = vadd.f32 0.0, %v1455
  %1457 = vdwg.mxu0
  %1458 = vmatpush.msra.mxu0 %v1397
  %1459 = vmatpush.msra.mxu0 %v1393
  %1460 = vmatpush.msra.mxu0 %v1389
  %1461 = vmatpush.msra.mxu0 %v1385
  %1462 = vmatpush.msra.mxu0 %v1381
  %1463 = vmatpush.msra.mxu0 %v1377
  %1464 = vmatpush.msra.mxu0 %v1373
  %1465 = vmatpush.msra.mxu0 %v1369
  %1466 = vmatpush.msra.mxu0 %v1365
  %1467 = vmatpush.msra.mxu0 %v1361
  %1468 = vmatpush.msra.mxu0 %v1357
  %1469 = vmatpush.msra.mxu0 %v1353
  %1470 = vmatpush.msra.mxu0 %v1349
  %1471 = vmatpush.msra.mxu0 %v1345
  %1472 = vmatpush.msra.mxu0 %v1341
  %1473 = vmatpush.msra.mxu0 %v1337
  %1474 = vmatmul.f32.gmra.mxu0 %v1328
  %v1475 = vpop.f32.mrf.mxu0
  %v1476 = vadd.f32 0.0, %v1475
  %1477 = vdwg.mxu0
  %v1482 = vrot.slane %v1416, 2
  %v1483 = vrot.slane %v1436, 2
  %v1484 = vrot.slane %v1456, 2
  %v1485 = vrot.slane %v1476, 2
  %v1490 = vadd.f32 %v1330, %v1482
  %v1491 = vadd.f32 %v1331, %v1483
  %v1492 = vadd.f32 %v1332, %v1484
  %v1493 = vadd.f32 %v1333, %v1485
  %v1494 = vmul.f32 %v1490, 0.5
  %v1495 = vtanh.pop %v1494
  %v1496 = vmul.f32 %v1495, 0.5
  %v1497 = vadd.f32 %v1496, 0.5
  %v1498 = vmul.f32 %v1491, 0.5
  %v1499 = vtanh.pop %v1498
  %v1500 = vmul.f32 %v1499, 0.5
  %v1501 = vadd.f32 %v1500, 0.5
  %v1502 = vtanh.pop %v1492
  %v1503 = vmul.f32 %v1493, 0.5
  %v1504 = vtanh.pop %v1503
  %v1505 = vmul.f32 %v1504, 0.5
  %v1506 = vadd.f32 %v1505, 0.5
  %v1508 = vrot.slane %v1329, 2
  %v1510 = vmul.f32 %v1501, %v1508
  %v1511 = vmul.f32 %v1497, %v1502
  %v1512 = vadd.f32 %v1510, %v1511
  %v1513 = vtanh.pop %v1512
  %v1514 = vmul.f32 %v1506, %v1513
  %1515 = vst [vmem:[%s7 - $0x6] sm:$0xc0] %v1512
  %1516 = vst [vmem:[%s6 - $0x6] sm:$0xc0] %v1514
  // Predicated region
  $region30: #{lstm_module_forward.5} parent=0 // pred_check
    %p1517 = pneg %p27
  $region31: #{lstm_module_forward.5} parent=0 // pred_check_branch
    %1519 = sbr.rel (%p1517) target = $region33
  $region32: #{lstm_module_forward.5} parent=0 // pred_region
    %v1520 = vld [vmem:[%s6] sm:$0x3]
    %v1521 = vld [vmem:[%s4] sm:$0x1]
    %v1523 = vperm.slane %v1521, 0
    %v1525 = vmul.f32 %v1520, %v1523
    %vm1526 = vcmask 1041408
    %v1527 = vsel %vm1526, %v1525, 0.0
    %1528 = vadd.xlane.f32.xlu0 %v1527
    %v1529 = vpop.xlane.xlu0 %1528
    %s1530 = sld [smem:[#allocation2]]
    %v1531 = vstv %s1530
    %v1532 = vadd.f32 %v1529, %v1531
    %vm1533 = vcmask 1024
    %1534 = vst.msk [vmem:[%s8] sm:$0x3] %vm1533, %v1532
  $region33: #{lstm_module_forward.5} parent=0 // pred_fallthru
    _
  // Predicated region
  $region34: #{lstm_module_forward.5} parent=0 // pred_check
    _
  $region35: #{lstm_module_forward.5} parent=0 // pred_check_branch
    %1536 = sbr.rel (0) target = $region37
  $region36: #{lstm_module_forward.5} parent=0 // pred_region
    _
  $region37: #{lstm_module_forward.5} parent=0 // pred_fallthru
    _
  // Predicated region
  $region38: #{lstm_module_forward.5} parent=0 // pred_check
    _
  $region39: #{lstm_module_forward.5} parent=0 // pred_check_branch
    %1538 = sbr.rel (0) target = $region41
  $region40: #{lstm_module_forward.5} parent=0 // pred_region
    _
  $region41: #{lstm_module_forward.5} parent=0 // pred_fallthru
    _
  // Predicated region
  $region42: #{lstm_module_forward.5} parent=0 // pred_check
    _
  $region43: #{lstm_module_forward.5} parent=0 // pred_check_branch
    %1540 = sbr.rel (0) target = $region45
  $region44: #{lstm_module_forward.5} parent=0 // pred_region
    _
  $region45: #{lstm_module_forward.5} parent=0 // pred_fallthru
    _
  // Predicated region
  $region46: #{lstm_module_forward.5} parent=0 // pred_check
    _
  $region47: #{lstm_module_forward.5} parent=0 // pred_check_branch
    %1542 = sbr.rel (0) target = $region49
  $region48: #{lstm_module_forward.5} parent=0 // pred_region
    _
  $region49: #{lstm_module_forward.5} parent=0 // pred_fallthru
    _
  // Predicated region
  $region50: #{lstm_module_forward.5} parent=0 // pred_check
    _
  $region51: #{lstm_module_forward.5} parent=0 // pred_check_branch
    %1544 = sbr.rel (0) target = $region53
  $region52: #{lstm_module_forward.5} parent=0 // pred_region
    _
  $region53: #{lstm_module_forward.5} parent=0 // pred_fallthru
    _
  // Predicated region
  $region54: #{lstm_module_forward.5} parent=0 // pred_check
    _
  $region55: #{lstm_module_forward.5} parent=0 // pred_check_branch
    %1546 = sbr.rel (0) target = $region57
  $region56: #{lstm_module_forward.5} parent=0 // pred_region
    _
  $region57: #{lstm_module_forward.5} parent=0 // pred_fallthru
    _

</llo_original>
